<compile_context>
chip_gen: v7x
topology: tpu7x:2x2x1
jax: 0.10.0
libtpu: 0.0.40
codegen_flags: <defaults>
</compile_context>

<pallas_src>
import jax
import jax.numpy as jnp
from jax import lax
from jax.experimental import pallas as pl
from jax.experimental.pallas import tpu as pltpu

BN_EPS = 1e-5
LANE = 128
SUBLANE = 8


def _round_up(x, m):
    return ((x + m - 1) // m) * m


# ----------------------------------------------------------------------------
# Weight prep: reorder PyTorch gate blocks (i,f,g,o) -> (i,f,o,g), transpose,
# and zero-pad every gate to Hp lanes so each gate slice is vreg-aligned.
# ----------------------------------------------------------------------------
def _prep_gate_weight(w, H, Hp, pad_rows_to=None):
    """w: (4H, in_dim) torch layout -> (rows, 4*Hp) transposed / padded."""
    in_dim = w.shape[1]
    blocks = [w[0:H], w[H:2 * H], w[3 * H:4 * H], w[2 * H:3 * H]]  # (i,f,o,g)
    rows = in_dim if pad_rows_to is None else pad_rows_to
    out = jnp.zeros((rows, 4 * Hp), jnp.float32)
    for g, blk in enumerate(blocks):
        out = out.at[:in_dim, g * Hp:g * Hp + H].set(jnp.transpose(blk))
    return out


def _prep_gate_bias(b, H, Hp):
    blocks = [b[0:H], b[H:2 * H], b[3 * H:4 * H], b[2 * H:3 * H]]  # (i,f,o,g)
    out = jnp.zeros((1, 4 * Hp), jnp.float32)
    for g, blk in enumerate(blocks):
        out = out.at[0, g * Hp:g * Hp + H].set(blk)
    return out


# ----------------------------------------------------------------------------
# Fused kernel: all LSTM layers + (BN-folded) FC head, one batch tile per
# grid point.
# ----------------------------------------------------------------------------
def _make_fused_kernel(T, Bt, Hp, num_layers, num_act_bufs):
    UNROLL = min(T, 8)

    def kernel(*refs):
        x_ref = refs[0]
        off = 1
        layer_refs = []
        for _ in range(num_layers):
            layer_refs.append((refs[off], refs[off + 1], refs[off + 2]))
            off += 3
        whead_ref = refs[off]            # (Hp, Op)  eval-BN folded into FC
        bhead_ref = refs[off + 1]        # (1, Op)
        o_ref = refs[off + 2]            # (T*Bt, Op) output tile
        proj = refs[off + 3]             # VMEM (T*Bt, 4Hp) hoisted projections
        act_bufs = refs[off + 4: off + 4 + num_act_bufs]

        def run_layer(wih_ref, whh_ref, b_ref, inp_ref, out_act, is_last):
            # Hoisted input projection for the whole tile: one GEMM, fed
            # directly from the producing ref (no intermediate copy).
            proj[...] = (jnp.dot(inp_ref[...], wih_ref[...],
                                 preferred_element_type=jnp.float32)
                         + b_ref[...])

            def step(t, carry):
                h, c = carry
                row = pl.multiple_of(t * Bt, Bt)      # Bt is a multiple of 8
                gates = (proj[pl.ds(row, Bt), :]
                         + jnp.dot(h, whh_ref[...],
                                   preferred_element_type=jnp.float32))
                # gate order (i,f,o,g): one contiguous sigmoid slab + one tanh.
                sg = jax.nn.sigmoid(gates[:, :3 * Hp])
                g = jnp.tanh(gates[:, 3 * Hp:])
                i = sg[:, 0:Hp]
                f = sg[:, Hp:2 * Hp]
                o = sg[:, 2 * Hp:3 * Hp]
                c_new = f * c + i * g
                h_new = o * jnp.tanh(c_new)
                if is_last:
                    # Fused BN-folded FC head: lane-dense per-step store.
                    o_ref[pl.ds(row, Bt), :] = (
                        jnp.dot(h_new, whead_ref[...],
                                preferred_element_type=jnp.float32)
                        + bhead_ref[...])
                else:
                    out_act[pl.ds(row, Bt), :] = h_new
                return (h_new, c_new)

            init = (jnp.zeros((Bt, Hp), jnp.float32),
                    jnp.zeros((Bt, Hp), jnp.float32))
            lax.fori_loop(0, T, step, init, unroll=UNROLL)

        inp_ref = x_ref
        for l, (wih_ref, whh_ref, b_ref) in enumerate(layer_refs):
            is_last = l == num_layers - 1
            out_act = None if is_last else act_bufs[l % max(num_act_bufs, 1)]
            run_layer(wih_ref, whh_ref, b_ref, inp_ref, out_act, is_last)
            if not is_last:
                inp_ref = out_act
            # inter-layer dropout: identity in eval mode

    return kernel


# ----------------------------------------------------------------------------
# Full forward pass (eval mode)
# ----------------------------------------------------------------------------
@jax.jit
def lstm_forecaster_forward(x, params):
    """x: (B, T, input_dim) -> (B, T, output_dim)."""
    B, T, In = x.shape
    H = params["bn_gamma"].shape[0]
    O = params["w_fc"].shape[0]
    num_layers = len(params["lstm"])

    Hp = _round_up(max(H, LANE), LANE)          # lane-aligned gate width
    H4 = 4 * Hp
    Op = _round_up(max(O, LANE), LANE)          # lane-dense output width

    # Batch tiling: tiles of up to 64 padded rows; grid axis is "parallel".
    B8 = _round_up(B, SUBLANE)
    Bt = min(B8, 64)
    Bp = _round_up(B8, Bt)
    nbt = Bp // Bt
    rows_tile = T * Bt

    # Per-tile, time-major, flattened input: row = bt*(T*Bt) + t*Bt + b_local.
    x_p = jnp.zeros((Bp, T, In), jnp.float32).at[:B].set(x.astype(jnp.float32))
    x_flat = (x_p.reshape(nbt, Bt, T, In)
              .transpose(0, 2, 1, 3)
              .reshape(nbt * rows_tile, In))

    # Per-layer weights: gate-reordered (i,f,o,g), lane-padded, transposed.
    layer_args = []
    in_specs = [pl.BlockSpec((rows_tile, In), lambda i: (i, 0))]
    weight_bytes = 0
    for l, lp in enumerate(params["lstm"]):
        in_rows = In if l == 0 else Hp
        pad_rows = None if l == 0 else Hp
        wih_t = _prep_gate_weight(lp["w_ih"], H, Hp, pad_rows_to=pad_rows)
        whh_t = _prep_gate_weight(lp["w_hh"], H, Hp, pad_rows_to=Hp)
        b = _prep_gate_bias(lp["b_ih"] + lp["b_hh"], H, Hp)
        layer_args += [wih_t, whh_t, b]
        in_specs += [
            pl.BlockSpec((in_rows, H4), lambda i: (0, 0)),
            pl.BlockSpec((Hp, H4), lambda i: (0, 0)),
            pl.BlockSpec((1, H4), lambda i: (0, 0)),
        ]
        weight_bytes += 4 * (in_rows * H4 + Hp * H4 + H4)

    # Fold eval-mode BatchNorm (running stats) into the FC weights/bias.
    scale = params["bn_gamma"] * lax.rsqrt(params["bn_var"] + BN_EPS)   # (H,)
    wfc_t = jnp.transpose(params["w_fc"])                               # (H, O)
    w_head = wfc_t * scale[:, None]
    b_head = params["b_fc"] + (params["bn_beta"]
                               - params["bn_mean"] * scale) @ wfc_t     # (O,)
    w_head_p = jnp.zeros((Hp, Op), jnp.float32).at[:H, :O].set(w_head)
    b_head_p = jnp.zeros((1, Op), jnp.float32).at[0, :O].set(b_head)
    in_specs += [
        pl.BlockSpec((Hp, Op), lambda i: (0, 0)),
        pl.BlockSpec((1, Op), lambda i: (0, 0)),
    ]
    weight_bytes += 4 * (Hp * Op + Op)

    num_act_bufs = max(0, min(num_layers - 1, 2))
    scratch_shapes = [pltpu.VMEM((rows_tile, H4), jnp.float32)]
    scratch_shapes += [pltpu.VMEM((rows_tile, Hp), jnp.float32)
                       for _ in range(num_act_bufs)]

    # Advisory cost estimate for XLA's scheduler.
    rows_total = nbt * rows_tile
    flops = 2 * rows_total * Hp * Op
    transcendentals = 0
    for l in range(num_layers):
        in_rows = In if l == 0 else Hp
        flops += 2 * rows_total * (in_rows + Hp) * H4
        transcendentals += rows_total * 5 * Hp
    bytes_accessed = 4 * rows_total * (In + Op) + nbt * weight_bytes

    # VMEM budget: per-tile residency (double-buffered I/O + weights + scratch).
    vmem_est = (2 * 4 * rows_tile * (In + Op) + 2 * weight_bytes
                + 4 * rows_tile * H4 + num_act_bufs * 4 * rows_tile * Hp)
    vmem_limit = int(min(max(2 * vmem_est, 16 * 2**20), 64 * 2**20))

    kernel = _make_fused_kernel(T, Bt, Hp, num_layers, num_act_bufs)
    out_flat = pl.pallas_call(
        kernel,
        out_shape=jax.ShapeDtypeStruct((nbt * rows_tile, Op), jnp.float32),
        grid=(nbt,),
        in_specs=in_specs,
        out_specs=pl.BlockSpec((rows_tile, Op), lambda i: (i, 0)),
        scratch_shapes=scratch_shapes,
        compiler_params=pltpu.CompilerParams(
            dimension_semantics=("parallel",),
            vmem_limit_bytes=vmem_limit),
        cost_estimate=pl.CostEstimate(
            flops=int(flops),
            transcendentals=int(transcendentals),
            bytes_accessed=int(bytes_accessed)),
    )(x_flat, *layer_args, w_head_p, b_head_p)

    out = (out_flat.reshape(nbt, T, Bt, Op)
           .transpose(0, 2, 1, 3)
           .reshape(Bp, T, Op))[:B, :, :O]
    return out


# ----------------------------------------------------------------------------
# Parameter construction (deterministic, PyTorch-style uniform init)
# ----------------------------------------------------------------------------
def init_params(key, input_dim, hidden_dim, num_layers, output_dim):
    k = 1.0 / jnp.sqrt(hidden_dim)
    params = {"lstm": []}
    for layer in range(num_layers):
        in_dim = input_dim if layer == 0 else hidden_dim
        key, k1, k2, k3, k4 = jax.random.split(key, 5)
        params["lstm"].append({
            "w_ih": jax.random.uniform(k1, (4 * hidden_dim, in_dim),
                                       jnp.float32, -k, k),
            "w_hh": jax.random.uniform(k2, (4 * hidden_dim, hidden_dim),
                                       jnp.float32, -k, k),
            "b_ih": jax.random.uniform(k3, (4 * hidden_dim,),
                                       jnp.float32, -k, k),
            "b_hh": jax.random.uniform(k4, (4 * hidden_dim,),
                                       jnp.float32, -k, k),
        })
    # BatchNorm1d(hidden_dim): weight=1, bias=0, running_mean=0, running_var=1
    params["bn_gamma"] = jnp.ones((hidden_dim,), jnp.float32)
    params["bn_beta"] = jnp.zeros((hidden_dim,), jnp.float32)
    params["bn_mean"] = jnp.zeros((hidden_dim,), jnp.float32)
    params["bn_var"] = jnp.ones((hidden_dim,), jnp.float32)
    # Linear(hidden_dim, output_dim)
    key, k5, k6 = jax.random.split(key, 3)
    params["w_fc"] = jax.random.uniform(k5, (output_dim, hidden_dim),
                                        jnp.float32, -k, k)
    params["b_fc"] = jax.random.uniform(k6, (output_dim,),
                                        jnp.float32, -k, k)
    return params


# ----------------------------------------------------------------------------
# Pure-JAX reference (for correctness check)
# ----------------------------------------------------------------------------
def reference_forward(x, params):
    B, T, _ = x.shape
    H = params["bn_gamma"].shape[0]

    def layer(x_seq, lp):
        w_ih, w_hh = lp["w_ih"], lp["w_hh"]
        b = lp["b_ih"] + lp["b_hh"]

        def step(carry, x_t):
            h, c = carry
            gates = x_t @ w_ih.T + h @ w_hh.T + b
            i, f, g, o = jnp.split(gates, 4, axis=-1)
            i, f, o = jax.nn.sigmoid(i), jax.nn.sigmoid(f), jax.nn.sigmoid(o)
            g = jnp.tanh(g)
            c = f * c + i * g
            h = o * jnp.tanh(c)
            return (h, c), h

        init = (jnp.zeros((B, H), jnp.float32), jnp.zeros((B, H), jnp.float32))
        _, hs = lax.scan(step, init, jnp.transpose(x_seq, (1, 0, 2)))
        return jnp.transpose(hs, (1, 0, 2))

    h = x
    for lp in params["lstm"]:
        h = layer(h, lp)
    hf = h.reshape(B * T, H)
    xn = (hf - params["bn_mean"]) / jnp.sqrt(params["bn_var"] + BN_EPS)
    xn = xn * params["bn_gamma"] + params["bn_beta"]
    out = xn @ params["w_fc"].T + params["b_fc"]
    return out.reshape(B, T, -1)


if __name__ == "__main__":
    # Small shapes: batch=2, seq=8, input_dim=4, hidden_dim=32, num_layers=2
    B, T, INPUT_DIM, HIDDEN_DIM, NUM_LAYERS = 2, 8, 4, 32, 2
    OUTPUT_DIM = INPUT_DIM

    key = jax.random.PRNGKey(0)
    pkey, xkey = jax.random.split(key)
    params = init_params(pkey, INPUT_DIM, HIDDEN_DIM, NUM_LAYERS, OUTPUT_DIM)
    x = jax.random.normal(xkey, (B, T, INPUT_DIM), jnp.float32)

    out = lstm_forecaster_forward(x, params)
    out = jax.block_until_ready(out)
    assert out.shape == (B, T, OUTPUT_DIM), out.shape

    ref = jax.block_until_ready(reference_forward(x, params))
    assert jnp.allclose(out, ref, rtol=1e-4, atol=1e-4), (
        float(jnp.max(jnp.abs(out - ref))))

    print("KERNEL_OK")
</pallas_src>

<mosaic_0001>
module attributes {stable_mosaic.version = 11 : i64} {
  func.func @kernel(%arg0: i32, %arg1: memref<64x4xf32, #tpu.memory_space<vmem>>, %arg2: memref<4x512xf32, #tpu.memory_space<vmem>>, %arg3: memref<128x512xf32, #tpu.memory_space<vmem>>, %arg4: memref<1x512xf32, #tpu.memory_space<vmem>>, %arg5: memref<128x512xf32, #tpu.memory_space<vmem>>, %arg6: memref<128x512xf32, #tpu.memory_space<vmem>>, %arg7: memref<1x512xf32, #tpu.memory_space<vmem>>, %arg8: memref<128x128xf32, #tpu.memory_space<vmem>>, %arg9: memref<1x128xf32, #tpu.memory_space<vmem>>, %arg10: memref<64x128xf32, #tpu.memory_space<vmem>>, %arg11: memref<64x512xf32, #tpu.memory_space<vmem>>, %arg12: memref<64x128xf32, #tpu.memory_space<vmem>>) attributes {dimension_semantics = [#tpu.dimension_semantics<parallel>], iteration_bounds = array<i64: 1>, scalar_prefetch = 0 : i64, scratch_operands = 2 : i64, tpu.core_type = #tpu.core_type<tc>, window_params = [{transform_indices = @transform_0, window_bounds = array<i64: 64, 4>}, {pipeline_mode = #tpu.pipeline_mode<synchronous>, transform_indices = @transform_1, window_bounds = array<i64: 4, 512>}, {pipeline_mode = #tpu.pipeline_mode<synchronous>, transform_indices = @transform_2, window_bounds = array<i64: 128, 512>}, {pipeline_mode = #tpu.pipeline_mode<synchronous>, transform_indices = @transform_3, window_bounds = array<i64: 1, 512>}, {pipeline_mode = #tpu.pipeline_mode<synchronous>, transform_indices = @transform_4, window_bounds = array<i64: 128, 512>}, {pipeline_mode = #tpu.pipeline_mode<synchronous>, transform_indices = @transform_5, window_bounds = array<i64: 128, 512>}, {pipeline_mode = #tpu.pipeline_mode<synchronous>, transform_indices = @transform_6, window_bounds = array<i64: 1, 512>}, {pipeline_mode = #tpu.pipeline_mode<synchronous>, transform_indices = @transform_7, window_bounds = array<i64: 128, 128>}, {pipeline_mode = #tpu.pipeline_mode<synchronous>, transform_indices = @transform_8, window_bounds = array<i64: 1, 128>}, {transform_indices = @transform_9, window_bounds = array<i64: 64, 128>}]} {
    %c0 = arith.constant 0 : index
    %c0_0 = arith.constant 0 : index
    %0 = vector.load %arg1[%c0, %c0_0] : memref<64x4xf32, #tpu.memory_space<vmem>>, vector<64x4xf32>
    %c0_1 = arith.constant 0 : index
    %c0_2 = arith.constant 0 : index
    %1 = vector.load %arg2[%c0_1, %c0_2] : memref<4x512xf32, #tpu.memory_space<vmem>>, vector<4x512xf32>
    %cst = arith.constant dense<0.000000e+00> : vector<64x512xf32>
    %2 = tpu.matmul %0, %1, %cst {dimension_numbers = #tpu.dot_dimension_numbers<[1], [0], [0], [1], [0, 0, 1, 1], [], []>} : vector<64x4xf32>, vector<4x512xf32>, vector<64x512xf32> -> vector<64x512xf32>
    %c0_3 = arith.constant 0 : index
    %c0_4 = arith.constant 0 : index
    %3 = vector.load %arg4[%c0_3, %c0_4] : memref<1x512xf32, #tpu.memory_space<vmem>>, vector<1x512xf32>
    %4 = vector.broadcast %3 : vector<1x512xf32> to vector<64x512xf32>
    %5 = arith.addf %2, %4 : vector<64x512xf32>
    %c0_5 = arith.constant 0 : index
    %c0_6 = arith.constant 0 : index
    %6 = vector.load %arg11[%c0_5, %c0_6] : memref<64x512xf32, #tpu.memory_space<vmem>>, vector<64x512xf32>
    tpu.vector_store %arg11[%c0_5, %c0_6], %5 {strides = array<i32>} : memref<64x512xf32, #tpu.memory_space<vmem>>, vector<64x512xf32>,
    %cst_7 = arith.constant 0.000000e+00 : f32
    %7 = vector.broadcast %cst_7 : f32 to vector<8x128xf32>
    %cst_8 = arith.constant 0.000000e+00 : f32
    %8 = vector.broadcast %cst_8 : f32 to vector<8x128xf32>
    %c0_i32 = arith.constant 0 : i32
    %c8_i32 = arith.constant 8 : i32
    %9 = arith.muli %c0_i32, %c8_i32 : i32
    %10 = tpu.assume_multiple %9, 8 : i32
    %11 = arith.index_cast %10 : i32 to index
    %c0_9 = arith.constant 0 : index
    %12 = vector.load %arg11[%11, %c0_9] : memref<64x512xf32, #tpu.memory_space<vmem>>, vector<8x512xf32>
    %c0_10 = arith.constant 0 : index
    %c0_11 = arith.constant 0 : index
    %13 = vector.load %arg3[%c0_10, %c0_11] : memref<128x512xf32, #tpu.memory_space<vmem>>, vector<128x512xf32>
    %cst_12 = arith.constant dense<0.000000e+00> : vector<8x512xf32>
    %14 = tpu.matmul %7, %13, %cst_12 {dimension_numbers = #tpu.dot_dimension_numbers<[1], [0], [0], [1], [0, 0, 1, 1], [], []>} : vector<8x128xf32>, vector<128x512xf32>, vector<8x512xf32> -> vector<8x512xf32>
    %15 = arith.addf %12, %14 : vector<8x512xf32>
    %16 = vector.extract_strided_slice %15 {offsets = [0, 0], sizes = [8, 384], strides = [1, 1]} : vector<8x512xf32> to vector<8x384xf32>
    %17 = arith.negf %16 : vector<8x384xf32>
    %18 = math.exp %17 : vector<8x384xf32>
    %cst_13 = arith.constant 1.000000e+00 : f32
    %19 = vector.broadcast %cst_13 : f32 to vector<8x384xf32>
    %20 = arith.addf %19, %18 : vector<8x384xf32>
    %21 = arith.divf %19, %20 : vector<8x384xf32>
    %22 = vector.extract_strided_slice %15 {offsets = [0, 384], sizes = [8, 128], strides = [1, 1]} : vector<8x512xf32> to vector<8x128xf32>
    %23 = math.tanh %22 : vector<8x128xf32>
    %24 = vector.extract_strided_slice %21 {offsets = [0, 0], sizes = [8, 128], strides = [1, 1]} : vector<8x384xf32> to vector<8x128xf32>
    %25 = vector.extract_strided_slice %21 {offsets = [0, 128], sizes = [8, 128], strides = [1, 1]} : vector<8x384xf32> to vector<8x128xf32>
    %26 = vector.extract_strided_slice %21 {offsets = [0, 256], sizes = [8, 128], strides = [1, 1]} : vector<8x384xf32> to vector<8x128xf32>
    %27 = arith.mulf %25, %8 : vector<8x128xf32>
    %28 = arith.mulf %24, %23 : vector<8x128xf32>
    %29 = arith.addf %27, %28 : vector<8x128xf32>
    %30 = math.tanh %29 : vector<8x128xf32>
    %31 = arith.mulf %26, %30 : vector<8x128xf32>
    %32 = arith.index_cast %10 : i32 to index
    %c0_14 = arith.constant 0 : index
    %33 = vector.load %arg12[%32, %c0_14] : memref<64x128xf32, #tpu.memory_space<vmem>>, vector<8x128xf32>
    tpu.vector_store %arg12[%32, %c0_14], %31 {strides = array<i32>} : memref<64x128xf32, #tpu.memory_space<vmem>>, vector<8x128xf32>,
    %c1_i32 = arith.constant 1 : i32
    %c8_i32_15 = arith.constant 8 : i32
    %34 = arith.muli %c1_i32, %c8_i32_15 : i32
    %35 = tpu.assume_multiple %34, 8 : i32
    %36 = arith.index_cast %35 : i32 to index
    %c0_16 = arith.constant 0 : index
    %37 = vector.load %arg11[%36, %c0_16] : memref<64x512xf32, #tpu.memory_space<vmem>>, vector<8x512xf32>
    %c0_17 = arith.constant 0 : index
    %c0_18 = arith.constant 0 : index
    %38 = vector.load %arg3[%c0_17, %c0_18] : memref<128x512xf32, #tpu.memory_space<vmem>>, vector<128x512xf32>
    %cst_19 = arith.constant dense<0.000000e+00> : vector<8x512xf32>
    %39 = tpu.matmul %31, %38, %cst_19 {dimension_numbers = #tpu.dot_dimension_numbers<[1], [0], [0], [1], [0, 0, 1, 1], [], []>} : vector<8x128xf32>, vector<128x512xf32>, vector<8x512xf32> -> vector<8x512xf32>
    %40 = arith.addf %37, %39 : vector<8x512xf32>
    %41 = vector.extract_strided_slice %40 {offsets = [0, 0], sizes = [8, 384], strides = [1, 1]} : vector<8x512xf32> to vector<8x384xf32>
    %42 = arith.negf %41 : vector<8x384xf32>
    %43 = math.exp %42 : vector<8x384xf32>
    %cst_20 = arith.constant 1.000000e+00 : f32
    %44 = vector.broadcast %cst_20 : f32 to vector<8x384xf32>
    %45 = arith.addf %44, %43 : vector<8x384xf32>
    %46 = arith.divf %44, %45 : vector<8x384xf32>
    %47 = vector.extract_strided_slice %40 {offsets = [0, 384], sizes = [8, 128], strides = [1, 1]} : vector<8x512xf32> to vector<8x128xf32>
    %48 = math.tanh %47 : vector<8x128xf32>
    %49 = vector.extract_strided_slice %46 {offsets = [0, 0], sizes = [8, 128], strides = [1, 1]} : vector<8x384xf32> to vector<8x128xf32>
    %50 = vector.extract_strided_slice %46 {offsets = [0, 128], sizes = [8, 128], strides = [1, 1]} : vector<8x384xf32> to vector<8x128xf32>
    %51 = vector.extract_strided_slice %46 {offsets = [0, 256], sizes = [8, 128], strides = [1, 1]} : vector<8x384xf32> to vector<8x128xf32>
    %52 = arith.mulf %50, %29 : vector<8x128xf32>
    %53 = arith.mulf %49, %48 : vector<8x128xf32>
    %54 = arith.addf %52, %53 : vector<8x128xf32>
    %55 = math.tanh %54 : vector<8x128xf32>
    %56 = arith.mulf %51, %55 : vector<8x128xf32>
    %57 = arith.index_cast %35 : i32 to index
    %c0_21 = arith.constant 0 : index
    %58 = vector.load %arg12[%57, %c0_21] : memref<64x128xf32, #tpu.memory_space<vmem>>, vector<8x128xf32>
    tpu.vector_store %arg12[%57, %c0_21], %56 {strides = array<i32>} : memref<64x128xf32, #tpu.memory_space<vmem>>, vector<8x128xf32>,
    %c2_i32 = arith.constant 2 : i32
    %c8_i32_22 = arith.constant 8 : i32
    %59 = arith.muli %c2_i32, %c8_i32_22 : i32
    %60 = tpu.assume_multiple %59, 8 : i32
    %61 = arith.index_cast %60 : i32 to index
    %c0_23 = arith.constant 0 : index
    %62 = vector.load %arg11[%61, %c0_23] : memref<64x512xf32, #tpu.memory_space<vmem>>, vector<8x512xf32>
    %c0_24 = arith.constant 0 : index
    %c0_25 = arith.constant 0 : index
    %63 = vector.load %arg3[%c0_24, %c0_25] : memref<128x512xf32, #tpu.memory_space<vmem>>, vector<128x512xf32>
    %cst_26 = arith.constant dense<0.000000e+00> : vector<8x512xf32>
    %64 = tpu.matmul %56, %63, %cst_26 {dimension_numbers = #tpu.dot_dimension_numbers<[1], [0], [0], [1], [0, 0, 1, 1], [], []>} : vector<8x128xf32>, vector<128x512xf32>, vector<8x512xf32> -> vector<8x512xf32>
    %65 = arith.addf %62, %64 : vector<8x512xf32>
    %66 = vector.extract_strided_slice %65 {offsets = [0, 0], sizes = [8, 384], strides = [1, 1]} : vector<8x512xf32> to vector<8x384xf32>
    %67 = arith.negf %66 : vector<8x384xf32>
    %68 = math.exp %67 : vector<8x384xf32>
    %cst_27 = arith.constant 1.000000e+00 : f32
    %69 = vector.broadcast %cst_27 : f32 to vector<8x384xf32>
    %70 = arith.addf %69, %68 : vector<8x384xf32>
    %71 = arith.divf %69, %70 : vector<8x384xf32>
    %72 = vector.extract_strided_slice %65 {offsets = [0, 384], sizes = [8, 128], strides = [1, 1]} : vector<8x512xf32> to vector<8x128xf32>
    %73 = math.tanh %72 : vector<8x128xf32>
    %74 = vector.extract_strided_slice %71 {offsets = [0, 0], sizes = [8, 128], strides = [1, 1]} : vector<8x384xf32> to vector<8x128xf32>
    %75 = vector.extract_strided_slice %71 {offsets = [0, 128], sizes = [8, 128], strides = [1, 1]} : vector<8x384xf32> to vector<8x128xf32>
    %76 = vector.extract_strided_slice %71 {offsets = [0, 256], sizes = [8, 128], strides = [1, 1]} : vector<8x384xf32> to vector<8x128xf32>
    %77 = arith.mulf %75, %54 : vector<8x128xf32>
    %78 = arith.mulf %74, %73 : vector<8x128xf32>
    %79 = arith.addf %77, %78 : vector<8x128xf32>
    %80 = math.tanh %79 : vector<8x128xf32>
    %81 = arith.mulf %76, %80 : vector<8x128xf32>
    %82 = arith.index_cast %60 : i32 to index
    %c0_28 = arith.constant 0 : index
    %83 = vector.load %arg12[%82, %c0_28] : memref<64x128xf32, #tpu.memory_space<vmem>>, vector<8x128xf32>
    tpu.vector_store %arg12[%82, %c0_28], %81 {strides = array<i32>} : memref<64x128xf32, #tpu.memory_space<vmem>>, vector<8x128xf32>,
    %c3_i32 = arith.constant 3 : i32
    %c8_i32_29 = arith.constant 8 : i32
    %84 = arith.muli %c3_i32, %c8_i32_29 : i32
    %85 = tpu.assume_multiple %84, 8 : i32
    %86 = arith.index_cast %85 : i32 to index
    %c0_30 = arith.constant 0 : index
    %87 = vector.load %arg11[%86, %c0_30] : memref<64x512xf32, #tpu.memory_space<vmem>>, vector<8x512xf32>
    %c0_31 = arith.constant 0 : index
    %c0_32 = arith.constant 0 : index
    %88 = vector.load %arg3[%c0_31, %c0_32] : memref<128x512xf32, #tpu.memory_space<vmem>>, vector<128x512xf32>
    %cst_33 = arith.constant dense<0.000000e+00> : vector<8x512xf32>
    %89 = tpu.matmul %81, %88, %cst_33 {dimension_numbers = #tpu.dot_dimension_numbers<[1], [0], [0], [1], [0, 0, 1, 1], [], []>} : vector<8x128xf32>, vector<128x512xf32>, vector<8x512xf32> -> vector<8x512xf32>
    %90 = arith.addf %87, %89 : vector<8x512xf32>
    %91 = vector.extract_strided_slice %90 {offsets = [0, 0], sizes = [8, 384], strides = [1, 1]} : vector<8x512xf32> to vector<8x384xf32>
    %92 = arith.negf %91 : vector<8x384xf32>
    %93 = math.exp %92 : vector<8x384xf32>
    %cst_34 = arith.constant 1.000000e+00 : f32
    %94 = vector.broadcast %cst_34 : f32 to vector<8x384xf32>
    %95 = arith.addf %94, %93 : vector<8x384xf32>
    %96 = arith.divf %94, %95 : vector<8x384xf32>
    %97 = vector.extract_strided_slice %90 {offsets = [0, 384], sizes = [8, 128], strides = [1, 1]} : vector<8x512xf32> to vector<8x128xf32>
    %98 = math.tanh %97 : vector<8x128xf32>
    %99 = vector.extract_strided_slice %96 {offsets = [0, 0], sizes = [8, 128], strides = [1, 1]} : vector<8x384xf32> to vector<8x128xf32>
    %100 = vector.extract_strided_slice %96 {offsets = [0, 128], sizes = [8, 128], strides = [1, 1]} : vector<8x384xf32> to vector<8x128xf32>
    %101 = vector.extract_strided_slice %96 {offsets = [0, 256], sizes = [8, 128], strides = [1, 1]} : vector<8x384xf32> to vector<8x128xf32>
    %102 = arith.mulf %100, %79 : vector<8x128xf32>
    %103 = arith.mulf %99, %98 : vector<8x128xf32>
    %104 = arith.addf %102, %103 : vector<8x128xf32>
    %105 = math.tanh %104 : vector<8x128xf32>
    %106 = arith.mulf %101, %105 : vector<8x128xf32>
    %107 = arith.index_cast %85 : i32 to index
    %c0_35 = arith.constant 0 : index
    %108 = vector.load %arg12[%107, %c0_35] : memref<64x128xf32, #tpu.memory_space<vmem>>, vector<8x128xf32>
    tpu.vector_store %arg12[%107, %c0_35], %106 {strides = array<i32>} : memref<64x128xf32, #tpu.memory_space<vmem>>, vector<8x128xf32>,
    %c4_i32 = arith.constant 4 : i32
    %c8_i32_36 = arith.constant 8 : i32
    %109 = arith.muli %c4_i32, %c8_i32_36 : i32
    %110 = tpu.assume_multiple %109, 8 : i32
    %111 = arith.index_cast %110 : i32 to index
    %c0_37 = arith.constant 0 : index
    %112 = vector.load %arg11[%111, %c0_37] : memref<64x512xf32, #tpu.memory_space<vmem>>, vector<8x512xf32>
    %c0_38 = arith.constant 0 : index
    %c0_39 = arith.constant 0 : index
    %113 = vector.load %arg3[%c0_38, %c0_39] : memref<128x512xf32, #tpu.memory_space<vmem>>, vector<128x512xf32>
    %cst_40 = arith.constant dense<0.000000e+00> : vector<8x512xf32>
    %114 = tpu.matmul %106, %113, %cst_40 {dimension_numbers = #tpu.dot_dimension_numbers<[1], [0], [0], [1], [0, 0, 1, 1], [], []>} : vector<8x128xf32>, vector<128x512xf32>, vector<8x512xf32> -> vector<8x512xf32>
    %115 = arith.addf %112, %114 : vector<8x512xf32>
    %116 = vector.extract_strided_slice %115 {offsets = [0, 0], sizes = [8, 384], strides = [1, 1]} : vector<8x512xf32> to vector<8x384xf32>
    %117 = arith.negf %116 : vector<8x384xf32>
    %118 = math.exp %117 : vector<8x384xf32>
    %cst_41 = arith.constant 1.000000e+00 : f32
    %119 = vector.broadcast %cst_41 : f32 to vector<8x384xf32>
    %120 = arith.addf %119, %118 : vector<8x384xf32>
    %121 = arith.divf %119, %120 : vector<8x384xf32>
    %122 = vector.extract_strided_slice %115 {offsets = [0, 384], sizes = [8, 128], strides = [1, 1]} : vector<8x512xf32> to vector<8x128xf32>
    %123 = math.tanh %122 : vector<8x128xf32>
    %124 = vector.extract_strided_slice %121 {offsets = [0, 0], sizes = [8, 128], strides = [1, 1]} : vector<8x384xf32> to vector<8x128xf32>
    %125 = vector.extract_strided_slice %121 {offsets = [0, 128], sizes = [8, 128], strides = [1, 1]} : vector<8x384xf32> to vector<8x128xf32>
    %126 = vector.extract_strided_slice %121 {offsets = [0, 256], sizes = [8, 128], strides = [1, 1]} : vector<8x384xf32> to vector<8x128xf32>
    %127 = arith.mulf %125, %104 : vector<8x128xf32>
    %128 = arith.mulf %124, %123 : vector<8x128xf32>
    %129 = arith.addf %127, %128 : vector<8x128xf32>
    %130 = math.tanh %129 : vector<8x128xf32>
    %131 = arith.mulf %126, %130 : vector<8x128xf32>
    %132 = arith.index_cast %110 : i32 to index
    %c0_42 = arith.constant 0 : index
    %133 = vector.load %arg12[%132, %c0_42] : memref<64x128xf32, #tpu.memory_space<vmem>>, vector<8x128xf32>
    tpu.vector_store %arg12[%132, %c0_42], %131 {strides = array<i32>} : memref<64x128xf32, #tpu.memory_space<vmem>>, vector<8x128xf32>,
    %c5_i32 = arith.constant 5 : i32
    %c8_i32_43 = arith.constant 8 : i32
    %134 = arith.muli %c5_i32, %c8_i32_43 : i32
    %135 = tpu.assume_multiple %134, 8 : i32
    %136 = arith.index_cast %135 : i32 to index
    %c0_44 = arith.constant 0 : index
    %137 = vector.load %arg11[%136, %c0_44] : memref<64x512xf32, #tpu.memory_space<vmem>>, vector<8x512xf32>
    %c0_45 = arith.constant 0 : index
    %c0_46 = arith.constant 0 : index
    %138 = vector.load %arg3[%c0_45, %c0_46] : memref<128x512xf32, #tpu.memory_space<vmem>>, vector<128x512xf32>
    %cst_47 = arith.constant dense<0.000000e+00> : vector<8x512xf32>
    %139 = tpu.matmul %131, %138, %cst_47 {dimension_numbers = #tpu.dot_dimension_numbers<[1], [0], [0], [1], [0, 0, 1, 1], [], []>} : vector<8x128xf32>, vector<128x512xf32>, vector<8x512xf32> -> vector<8x512xf32>
    %140 = arith.addf %137, %139 : vector<8x512xf32>
    %141 = vector.extract_strided_slice %140 {offsets = [0, 0], sizes = [8, 384], strides = [1, 1]} : vector<8x512xf32> to vector<8x384xf32>
    %142 = arith.negf %141 : vector<8x384xf32>
    %143 = math.exp %142 : vector<8x384xf32>
    %cst_48 = arith.constant 1.000000e+00 : f32
    %144 = vector.broadcast %cst_48 : f32 to vector<8x384xf32>
    %145 = arith.addf %144, %143 : vector<8x384xf32>
    %146 = arith.divf %144, %145 : vector<8x384xf32>
    %147 = vector.extract_strided_slice %140 {offsets = [0, 384], sizes = [8, 128], strides = [1, 1]} : vector<8x512xf32> to vector<8x128xf32>
    %148 = math.tanh %147 : vector<8x128xf32>
    %149 = vector.extract_strided_slice %146 {offsets = [0, 0], sizes = [8, 128], strides = [1, 1]} : vector<8x384xf32> to vector<8x128xf32>
    %150 = vector.extract_strided_slice %146 {offsets = [0, 128], sizes = [8, 128], strides = [1, 1]} : vector<8x384xf32> to vector<8x128xf32>
    %151 = vector.extract_strided_slice %146 {offsets = [0, 256], sizes = [8, 128], strides = [1, 1]} : vector<8x384xf32> to vector<8x128xf32>
    %152 = arith.mulf %150, %129 : vector<8x128xf32>
    %153 = arith.mulf %149, %148 : vector<8x128xf32>
    %154 = arith.addf %152, %153 : vector<8x128xf32>
    %155 = math.tanh %154 : vector<8x128xf32>
    %156 = arith.mulf %151, %155 : vector<8x128xf32>
    %157 = arith.index_cast %135 : i32 to index
    %c0_49 = arith.constant 0 : index
    %158 = vector.load %arg12[%157, %c0_49] : memref<64x128xf32, #tpu.memory_space<vmem>>, vector<8x128xf32>
    tpu.vector_store %arg12[%157, %c0_49], %156 {strides = array<i32>} : memref<64x128xf32, #tpu.memory_space<vmem>>, vector<8x128xf32>,
    %c6_i32 = arith.constant 6 : i32
    %c8_i32_50 = arith.constant 8 : i32
    %159 = arith.muli %c6_i32, %c8_i32_50 : i32
    %160 = tpu.assume_multiple %159, 8 : i32
    %161 = arith.index_cast %160 : i32 to index
    %c0_51 = arith.constant 0 : index
    %162 = vector.load %arg11[%161, %c0_51] : memref<64x512xf32, #tpu.memory_space<vmem>>, vector<8x512xf32>
    %c0_52 = arith.constant 0 : index
    %c0_53 = arith.constant 0 : index
    %163 = vector.load %arg3[%c0_52, %c0_53] : memref<128x512xf32, #tpu.memory_space<vmem>>, vector<128x512xf32>
    %cst_54 = arith.constant dense<0.000000e+00> : vector<8x512xf32>
    %164 = tpu.matmul %156, %163, %cst_54 {dimension_numbers = #tpu.dot_dimension_numbers<[1], [0], [0], [1], [0, 0, 1, 1], [], []>} : vector<8x128xf32>, vector<128x512xf32>, vector<8x512xf32> -> vector<8x512xf32>
    %165 = arith.addf %162, %164 : vector<8x512xf32>
    %166 = vector.extract_strided_slice %165 {offsets = [0, 0], sizes = [8, 384], strides = [1, 1]} : vector<8x512xf32> to vector<8x384xf32>
    %167 = arith.negf %166 : vector<8x384xf32>
    %168 = math.exp %167 : vector<8x384xf32>
    %cst_55 = arith.constant 1.000000e+00 : f32
    %169 = vector.broadcast %cst_55 : f32 to vector<8x384xf32>
    %170 = arith.addf %169, %168 : vector<8x384xf32>
    %171 = arith.divf %169, %170 : vector<8x384xf32>
    %172 = vector.extract_strided_slice %165 {offsets = [0, 384], sizes = [8, 128], strides = [1, 1]} : vector<8x512xf32> to vector<8x128xf32>
    %173 = math.tanh %172 : vector<8x128xf32>
    %174 = vector.extract_strided_slice %171 {offsets = [0, 0], sizes = [8, 128], strides = [1, 1]} : vector<8x384xf32> to vector<8x128xf32>
    %175 = vector.extract_strided_slice %171 {offsets = [0, 128], sizes = [8, 128], strides = [1, 1]} : vector<8x384xf32> to vector<8x128xf32>
    %176 = vector.extract_strided_slice %171 {offsets = [0, 256], sizes = [8, 128], strides = [1, 1]} : vector<8x384xf32> to vector<8x128xf32>
    %177 = arith.mulf %175, %154 : vector<8x128xf32>
    %178 = arith.mulf %174, %173 : vector<8x128xf32>
    %179 = arith.addf %177, %178 : vector<8x128xf32>
    %180 = math.tanh %179 : vector<8x128xf32>
    %181 = arith.mulf %176, %180 : vector<8x128xf32>
    %182 = arith.index_cast %160 : i32 to index
    %c0_56 = arith.constant 0 : index
    %183 = vector.load %arg12[%182, %c0_56] : memref<64x128xf32, #tpu.memory_space<vmem>>, vector<8x128xf32>
    tpu.vector_store %arg12[%182, %c0_56], %181 {strides = array<i32>} : memref<64x128xf32, #tpu.memory_space<vmem>>, vector<8x128xf32>,
    %c7_i32 = arith.constant 7 : i32
    %c8_i32_57 = arith.constant 8 : i32
    %184 = arith.muli %c7_i32, %c8_i32_57 : i32
    %185 = tpu.assume_multiple %184, 8 : i32
    %186 = arith.index_cast %185 : i32 to index
    %c0_58 = arith.constant 0 : index
    %187 = vector.load %arg11[%186, %c0_58] : memref<64x512xf32, #tpu.memory_space<vmem>>, vector<8x512xf32>
    %c0_59 = arith.constant 0 : index
    %c0_60 = arith.constant 0 : index
    %188 = vector.load %arg3[%c0_59, %c0_60] : memref<128x512xf32, #tpu.memory_space<vmem>>, vector<128x512xf32>
    %cst_61 = arith.constant dense<0.000000e+00> : vector<8x512xf32>
    %189 = tpu.matmul %181, %188, %cst_61 {dimension_numbers = #tpu.dot_dimension_numbers<[1], [0], [0], [1], [0, 0, 1, 1], [], []>} : vector<8x128xf32>, vector<128x512xf32>, vector<8x512xf32> -> vector<8x512xf32>
    %190 = arith.addf %187, %189 : vector<8x512xf32>
    %191 = vector.extract_strided_slice %190 {offsets = [0, 0], sizes = [8, 384], strides = [1, 1]} : vector<8x512xf32> to vector<8x384xf32>
    %192 = arith.negf %191 : vector<8x384xf32>
    %193 = math.exp %192 : vector<8x384xf32>
    %cst_62 = arith.constant 1.000000e+00 : f32
    %194 = vector.broadcast %cst_62 : f32 to vector<8x384xf32>
    %195 = arith.addf %194, %193 : vector<8x384xf32>
    %196 = arith.divf %194, %195 : vector<8x384xf32>
    %197 = vector.extract_strided_slice %190 {offsets = [0, 384], sizes = [8, 128], strides = [1, 1]} : vector<8x512xf32> to vector<8x128xf32>
    %198 = math.tanh %197 : vector<8x128xf32>
    %199 = vector.extract_strided_slice %196 {offsets = [0, 0], sizes = [8, 128], strides = [1, 1]} : vector<8x384xf32> to vector<8x128xf32>
    %200 = vector.extract_strided_slice %196 {offsets = [0, 128], sizes = [8, 128], strides = [1, 1]} : vector<8x384xf32> to vector<8x128xf32>
    %201 = vector.extract_strided_slice %196 {offsets = [0, 256], sizes = [8, 128], strides = [1, 1]} : vector<8x384xf32> to vector<8x128xf32>
    %202 = arith.mulf %200, %179 : vector<8x128xf32>
    %203 = arith.mulf %199, %198 : vector<8x128xf32>
    %204 = arith.addf %202, %203 : vector<8x128xf32>
    %205 = math.tanh %204 : vector<8x128xf32>
    %206 = arith.mulf %201, %205 : vector<8x128xf32>
    %207 = arith.index_cast %185 : i32 to index
    %c0_63 = arith.constant 0 : index
    %208 = vector.load %arg12[%207, %c0_63] : memref<64x128xf32, #tpu.memory_space<vmem>>, vector<8x128xf32>
    tpu.vector_store %arg12[%207, %c0_63], %206 {strides = array<i32>} : memref<64x128xf32, #tpu.memory_space<vmem>>, vector<8x128xf32>,
    %c8_i32_64 = arith.constant 8 : i32
    %c0_65 = arith.constant 0 : index
    %c0_66 = arith.constant 0 : index
    %209 = vector.load %arg12[%c0_65, %c0_66] : memref<64x128xf32, #tpu.memory_space<vmem>>, vector<64x128xf32>
    %c0_67 = arith.constant 0 : index
    %c0_68 = arith.constant 0 : index
    %210 = vector.load %arg5[%c0_67, %c0_68] : memref<128x512xf32, #tpu.memory_space<vmem>>, vector<128x512xf32>
    %cst_69 = arith.constant dense<0.000000e+00> : vector<64x512xf32>
    %211 = tpu.matmul %209, %210, %cst_69 {dimension_numbers = #tpu.dot_dimension_numbers<[1], [0], [0], [1], [0, 0, 1, 1], [], []>} : vector<64x128xf32>, vector<128x512xf32>, vector<64x512xf32> -> vector<64x512xf32>
    %c0_70 = arith.constant 0 : index
    %c0_71 = arith.constant 0 : index
    %212 = vector.load %arg7[%c0_70, %c0_71] : memref<1x512xf32, #tpu.memory_space<vmem>>, vector<1x512xf32>
    %213 = vector.broadcast %212 : vector<1x512xf32> to vector<64x512xf32>
    %214 = arith.addf %211, %213 : vector<64x512xf32>
    %c0_72 = arith.constant 0 : index
    %c0_73 = arith.constant 0 : index
    %215 = vector.load %arg11[%c0_72, %c0_73] : memref<64x512xf32, #tpu.memory_space<vmem>>, vector<64x512xf32>
    tpu.vector_store %arg11[%c0_72, %c0_73], %214 {strides = array<i32>} : memref<64x512xf32, #tpu.memory_space<vmem>>, vector<64x512xf32>,
    %cst_74 = arith.constant 0.000000e+00 : f32
    %216 = vector.broadcast %cst_74 : f32 to vector<8x128xf32>
    %cst_75 = arith.constant 0.000000e+00 : f32
    %217 = vector.broadcast %cst_75 : f32 to vector<8x128xf32>
    %c0_i32_76 = arith.constant 0 : i32
    %c8_i32_77 = arith.constant 8 : i32
    %218 = arith.muli %c0_i32_76, %c8_i32_77 : i32
    %219 = tpu.assume_multiple %218, 8 : i32
    %220 = arith.index_cast %219 : i32 to index
    %c0_78 = arith.constant 0 : index
    %221 = vector.load %arg11[%220, %c0_78] : memref<64x512xf32, #tpu.memory_space<vmem>>, vector<8x512xf32>
    %c0_79 = arith.constant 0 : index
    %c0_80 = arith.constant 0 : index
    %222 = vector.load %arg6[%c0_79, %c0_80] : memref<128x512xf32, #tpu.memory_space<vmem>>, vector<128x512xf32>
    %cst_81 = arith.constant dense<0.000000e+00> : vector<8x512xf32>
    %223 = tpu.matmul %216, %222, %cst_81 {dimension_numbers = #tpu.dot_dimension_numbers<[1], [0], [0], [1], [0, 0, 1, 1], [], []>} : vector<8x128xf32>, vector<128x512xf32>, vector<8x512xf32> -> vector<8x512xf32>
    %224 = arith.addf %221, %223 : vector<8x512xf32>
    %225 = vector.extract_strided_slice %224 {offsets = [0, 0], sizes = [8, 384], strides = [1, 1]} : vector<8x512xf32> to vector<8x384xf32>
    %226 = arith.negf %225 : vector<8x384xf32>
    %227 = math.exp %226 : vector<8x384xf32>
    %cst_82 = arith.constant 1.000000e+00 : f32
    %228 = vector.broadcast %cst_82 : f32 to vector<8x384xf32>
    %229 = arith.addf %228, %227 : vector<8x384xf32>
    %230 = arith.divf %228, %229 : vector<8x384xf32>
    %231 = vector.extract_strided_slice %224 {offsets = [0, 384], sizes = [8, 128], strides = [1, 1]} : vector<8x512xf32> to vector<8x128xf32>
    %232 = math.tanh %231 : vector<8x128xf32>
    %233 = vector.extract_strided_slice %230 {offsets = [0, 0], sizes = [8, 128], strides = [1, 1]} : vector<8x384xf32> to vector<8x128xf32>
    %234 = vector.extract_strided_slice %230 {offsets = [0, 128], sizes = [8, 128], strides = [1, 1]} : vector<8x384xf32> to vector<8x128xf32>
    %235 = vector.extract_strided_slice %230 {offsets = [0, 256], sizes = [8, 128], strides = [1, 1]} : vector<8x384xf32> to vector<8x128xf32>
    %236 = arith.mulf %234, %217 : vector<8x128xf32>
    %237 = arith.mulf %233, %232 : vector<8x128xf32>
    %238 = arith.addf %236, %237 : vector<8x128xf32>
    %239 = math.tanh %238 : vector<8x128xf32>
    %240 = arith.mulf %235, %239 : vector<8x128xf32>
    %c0_83 = arith.constant 0 : index
    %c0_84 = arith.constant 0 : index
    %241 = vector.load %arg8[%c0_83, %c0_84] : memref<128x128xf32, #tpu.memory_space<vmem>>, vector<128x128xf32>
    %cst_85 = arith.constant dense<0.000000e+00> : vector<8x128xf32>
    %242 = tpu.matmul %240, %241, %cst_85 {dimension_numbers = #tpu.dot_dimension_numbers<[1], [0], [0], [1], [0, 0, 1, 1], [], []>} : vector<8x128xf32>, vector<128x128xf32>, vector<8x128xf32> -> vector<8x128xf32>
    %c0_86 = arith.constant 0 : index
    %c0_87 = arith.constant 0 : index
    %243 = vector.load %arg9[%c0_86, %c0_87] : memref<1x128xf32, #tpu.memory_space<vmem>>, vector<1x128xf32>
    %244 = vector.broadcast %243 : vector<1x128xf32> to vector<8x128xf32>
    %245 = arith.addf %242, %244 : vector<8x128xf32>
    %246 = arith.index_cast %219 : i32 to index
    %c0_88 = arith.constant 0 : index
    %247 = vector.load %arg10[%246, %c0_88] : memref<64x128xf32, #tpu.memory_space<vmem>>, vector<8x128xf32>
    tpu.vector_store %arg10[%246, %c0_88], %245 {strides = array<i32>} : memref<64x128xf32, #tpu.memory_space<vmem>>, vector<8x128xf32>,
    %c1_i32_89 = arith.constant 1 : i32
    %c8_i32_90 = arith.constant 8 : i32
    %248 = arith.muli %c1_i32_89, %c8_i32_90 : i32
    %249 = tpu.assume_multiple %248, 8 : i32
    %250 = arith.index_cast %249 : i32 to index
    %c0_91 = arith.constant 0 : index
    %251 = vector.load %arg11[%250, %c0_91] : memref<64x512xf32, #tpu.memory_space<vmem>>, vector<8x512xf32>
    %c0_92 = arith.constant 0 : index
    %c0_93 = arith.constant 0 : index
    %252 = vector.load %arg6[%c0_92, %c0_93] : memref<128x512xf32, #tpu.memory_space<vmem>>, vector<128x512xf32>
    %cst_94 = arith.constant dense<0.000000e+00> : vector<8x512xf32>
    %253 = tpu.matmul %240, %252, %cst_94 {dimension_numbers = #tpu.dot_dimension_numbers<[1], [0], [0], [1], [0, 0, 1, 1], [], []>} : vector<8x128xf32>, vector<128x512xf32>, vector<8x512xf32> -> vector<8x512xf32>
    %254 = arith.addf %251, %253 : vector<8x512xf32>
    %255 = vector.extract_strided_slice %254 {offsets = [0, 0], sizes = [8, 384], strides = [1, 1]} : vector<8x512xf32> to vector<8x384xf32>
    %256 = arith.negf %255 : vector<8x384xf32>
    %257 = math.exp %256 : vector<8x384xf32>
    %cst_95 = arith.constant 1.000000e+00 : f32
    %258 = vector.broadcast %cst_95 : f32 to vector<8x384xf32>
    %259 = arith.addf %258, %257 : vector<8x384xf32>
    %260 = arith.divf %258, %259 : vector<8x384xf32>
    %261 = vector.extract_strided_slice %254 {offsets = [0, 384], sizes = [8, 128], strides = [1, 1]} : vector<8x512xf32> to vector<8x128xf32>
    %262 = math.tanh %261 : vector<8x128xf32>
    %263 = vector.extract_strided_slice %260 {offsets = [0, 0], sizes = [8, 128], strides = [1, 1]} : vector<8x384xf32> to vector<8x128xf32>
    %264 = vector.extract_strided_slice %260 {offsets = [0, 128], sizes = [8, 128], strides = [1, 1]} : vector<8x384xf32> to vector<8x128xf32>
    %265 = vector.extract_strided_slice %260 {offsets = [0, 256], sizes = [8, 128], strides = [1, 1]} : vector<8x384xf32> to vector<8x128xf32>
    %266 = arith.mulf %264, %238 : vector<8x128xf32>
    %267 = arith.mulf %263, %262 : vector<8x128xf32>
    %268 = arith.addf %266, %267 : vector<8x128xf32>
    %269 = math.tanh %268 : vector<8x128xf32>
    %270 = arith.mulf %265, %269 : vector<8x128xf32>
    %c0_96 = arith.constant 0 : index
    %c0_97 = arith.constant 0 : index
    %271 = vector.load %arg8[%c0_96, %c0_97] : memref<128x128xf32, #tpu.memory_space<vmem>>, vector<128x128xf32>
    %cst_98 = arith.constant dense<0.000000e+00> : vector<8x128xf32>
    %272 = tpu.matmul %270, %271, %cst_98 {dimension_numbers = #tpu.dot_dimension_numbers<[1], [0], [0], [1], [0, 0, 1, 1], [], []>} : vector<8x128xf32>, vector<128x128xf32>, vector<8x128xf32> -> vector<8x128xf32>
    %c0_99 = arith.constant 0 : index
    %c0_100 = arith.constant 0 : index
    %273 = vector.load %arg9[%c0_99, %c0_100] : memref<1x128xf32, #tpu.memory_space<vmem>>, vector<1x128xf32>
    %274 = vector.broadcast %273 : vector<1x128xf32> to vector<8x128xf32>
    %275 = arith.addf %272, %274 : vector<8x128xf32>
    %276 = arith.index_cast %249 : i32 to index
    %c0_101 = arith.constant 0 : index
    %277 = vector.load %arg10[%276, %c0_101] : memref<64x128xf32, #tpu.memory_space<vmem>>, vector<8x128xf32>
    tpu.vector_store %arg10[%276, %c0_101], %275 {strides = array<i32>} : memref<64x128xf32, #tpu.memory_space<vmem>>, vector<8x128xf32>,
    %c2_i32_102 = arith.constant 2 : i32
    %c8_i32_103 = arith.constant 8 : i32
    %278 = arith.muli %c2_i32_102, %c8_i32_103 : i32
    %279 = tpu.assume_multiple %278, 8 : i32
    %280 = arith.index_cast %279 : i32 to index
    %c0_104 = arith.constant 0 : index
    %281 = vector.load %arg11[%280, %c0_104] : memref<64x512xf32, #tpu.memory_space<vmem>>, vector<8x512xf32>
    %c0_105 = arith.constant 0 : index
    %c0_106 = arith.constant 0 : index
    %282 = vector.load %arg6[%c0_105, %c0_106] : memref<128x512xf32, #tpu.memory_space<vmem>>, vector<128x512xf32>
    %cst_107 = arith.constant dense<0.000000e+00> : vector<8x512xf32>
    %283 = tpu.matmul %270, %282, %cst_107 {dimension_numbers = #tpu.dot_dimension_numbers<[1], [0], [0], [1], [0, 0, 1, 1], [], []>} : vector<8x128xf32>, vector<128x512xf32>, vector<8x512xf32> -> vector<8x512xf32>
    %284 = arith.addf %281, %283 : vector<8x512xf32>
    %285 = vector.extract_strided_slice %284 {offsets = [0, 0], sizes = [8, 384], strides = [1, 1]} : vector<8x512xf32> to vector<8x384xf32>
    %286 = arith.negf %285 : vector<8x384xf32>
    %287 = math.exp %286 : vector<8x384xf32>
    %cst_108 = arith.constant 1.000000e+00 : f32
    %288 = vector.broadcast %cst_108 : f32 to vector<8x384xf32>
    %289 = arith.addf %288, %287 : vector<8x384xf32>
    %290 = arith.divf %288, %289 : vector<8x384xf32>
    %291 = vector.extract_strided_slice %284 {offsets = [0, 384], sizes = [8, 128], strides = [1, 1]} : vector<8x512xf32> to vector<8x128xf32>
    %292 = math.tanh %291 : vector<8x128xf32>
    %293 = vector.extract_strided_slice %290 {offsets = [0, 0], sizes = [8, 128], strides = [1, 1]} : vector<8x384xf32> to vector<8x128xf32>
    %294 = vector.extract_strided_slice %290 {offsets = [0, 128], sizes = [8, 128], strides = [1, 1]} : vector<8x384xf32> to vector<8x128xf32>
    %295 = vector.extract_strided_slice %290 {offsets = [0, 256], sizes = [8, 128], strides = [1, 1]} : vector<8x384xf32> to vector<8x128xf32>
    %296 = arith.mulf %294, %268 : vector<8x128xf32>
    %297 = arith.mulf %293, %292 : vector<8x128xf32>
    %298 = arith.addf %296, %297 : vector<8x128xf32>
    %299 = math.tanh %298 : vector<8x128xf32>
    %300 = arith.mulf %295, %299 : vector<8x128xf32>
    %c0_109 = arith.constant 0 : index
    %c0_110 = arith.constant 0 : index
    %301 = vector.load %arg8[%c0_109, %c0_110] : memref<128x128xf32, #tpu.memory_space<vmem>>, vector<128x128xf32>
    %cst_111 = arith.constant dense<0.000000e+00> : vector<8x128xf32>
    %302 = tpu.matmul %300, %301, %cst_111 {dimension_numbers = #tpu.dot_dimension_numbers<[1], [0], [0], [1], [0, 0, 1, 1], [], []>} : vector<8x128xf32>, vector<128x128xf32>, vector<8x128xf32> -> vector<8x128xf32>
    %c0_112 = arith.constant 0 : index
    %c0_113 = arith.constant 0 : index
    %303 = vector.load %arg9[%c0_112, %c0_113] : memref<1x128xf32, #tpu.memory_space<vmem>>, vector<1x128xf32>
    %304 = vector.broadcast %303 : vector<1x128xf32> to vector<8x128xf32>
    %305 = arith.addf %302, %304 : vector<8x128xf32>
    %306 = arith.index_cast %279 : i32 to index
    %c0_114 = arith.constant 0 : index
    %307 = vector.load %arg10[%306, %c0_114] : memref<64x128xf32, #tpu.memory_space<vmem>>, vector<8x128xf32>
    tpu.vector_store %arg10[%306, %c0_114], %305 {strides = array<i32>} : memref<64x128xf32, #tpu.memory_space<vmem>>, vector<8x128xf32>,
    %c3_i32_115 = arith.constant 3 : i32
    %c8_i32_116 = arith.constant 8 : i32
    %308 = arith.muli %c3_i32_115, %c8_i32_116 : i32
    %309 = tpu.assume_multiple %308, 8 : i32
    %310 = arith.index_cast %309 : i32 to index
    %c0_117 = arith.constant 0 : index
    %311 = vector.load %arg11[%310, %c0_117] : memref<64x512xf32, #tpu.memory_space<vmem>>, vector<8x512xf32>
    %c0_118 = arith.constant 0 : index
    %c0_119 = arith.constant 0 : index
    %312 = vector.load %arg6[%c0_118, %c0_119] : memref<128x512xf32, #tpu.memory_space<vmem>>, vector<128x512xf32>
    %cst_120 = arith.constant dense<0.000000e+00> : vector<8x512xf32>
    %313 = tpu.matmul %300, %312, %cst_120 {dimension_numbers = #tpu.dot_dimension_numbers<[1], [0], [0], [1], [0, 0, 1, 1], [], []>} : vector<8x128xf32>, vector<128x512xf32>, vector<8x512xf32> -> vector<8x512xf32>
    %314 = arith.addf %311, %313 : vector<8x512xf32>
    %315 = vector.extract_strided_slice %314 {offsets = [0, 0], sizes = [8, 384], strides = [1, 1]} : vector<8x512xf32> to vector<8x384xf32>
    %316 = arith.negf %315 : vector<8x384xf32>
    %317 = math.exp %316 : vector<8x384xf32>
    %cst_121 = arith.constant 1.000000e+00 : f32
    %318 = vector.broadcast %cst_121 : f32 to vector<8x384xf32>
    %319 = arith.addf %318, %317 : vector<8x384xf32>
    %320 = arith.divf %318, %319 : vector<8x384xf32>
    %321 = vector.extract_strided_slice %314 {offsets = [0, 384], sizes = [8, 128], strides = [1, 1]} : vector<8x512xf32> to vector<8x128xf32>
    %322 = math.tanh %321 : vector<8x128xf32>
    %323 = vector.extract_strided_slice %320 {offsets = [0, 0], sizes = [8, 128], strides = [1, 1]} : vector<8x384xf32> to vector<8x128xf32>
    %324 = vector.extract_strided_slice %320 {offsets = [0, 128], sizes = [8, 128], strides = [1, 1]} : vector<8x384xf32> to vector<8x128xf32>
    %325 = vector.extract_strided_slice %320 {offsets = [0, 256], sizes = [8, 128], strides = [1, 1]} : vector<8x384xf32> to vector<8x128xf32>
    %326 = arith.mulf %324, %298 : vector<8x128xf32>
    %327 = arith.mulf %323, %322 : vector<8x128xf32>
    %328 = arith.addf %326, %327 : vector<8x128xf32>
    %329 = math.tanh %328 : vector<8x128xf32>
    %330 = arith.mulf %325, %329 : vector<8x128xf32>
    %c0_122 = arith.constant 0 : index
    %c0_123 = arith.constant 0 : index
    %331 = vector.load %arg8[%c0_122, %c0_123] : memref<128x128xf32, #tpu.memory_space<vmem>>, vector<128x128xf32>
    %cst_124 = arith.constant dense<0.000000e+00> : vector<8x128xf32>
    %332 = tpu.matmul %330, %331, %cst_124 {dimension_numbers = #tpu.dot_dimension_numbers<[1], [0], [0], [1], [0, 0, 1, 1], [], []>} : vector<8x128xf32>, vector<128x128xf32>, vector<8x128xf32> -> vector<8x128xf32>
    %c0_125 = arith.constant 0 : index
    %c0_126 = arith.constant 0 : index
    %333 = vector.load %arg9[%c0_125, %c0_126] : memref<1x128xf32, #tpu.memory_space<vmem>>, vector<1x128xf32>
    %334 = vector.broadcast %333 : vector<1x128xf32> to vector<8x128xf32>
    %335 = arith.addf %332, %334 : vector<8x128xf32>
    %336 = arith.index_cast %309 : i32 to index
    %c0_127 = arith.constant 0 : index
    %337 = vector.load %arg10[%336, %c0_127] : memref<64x128xf32, #tpu.memory_space<vmem>>, vector<8x128xf32>
    tpu.vector_store %arg10[%336, %c0_127], %335 {strides = array<i32>} : memref<64x128xf32, #tpu.memory_space<vmem>>, vector<8x128xf32>,
    %c4_i32_128 = arith.constant 4 : i32
    %c8_i32_129 = arith.constant 8 : i32
    %338 = arith.muli %c4_i32_128, %c8_i32_129 : i32
    %339 = tpu.assume_multiple %338, 8 : i32
    %340 = arith.index_cast %339 : i32 to index
    %c0_130 = arith.constant 0 : index
    %341 = vector.load %arg11[%340, %c0_130] : memref<64x512xf32, #tpu.memory_space<vmem>>, vector<8x512xf32>
    %c0_131 = arith.constant 0 : index
    %c0_132 = arith.constant 0 : index
    %342 = vector.load %arg6[%c0_131, %c0_132] : memref<128x512xf32, #tpu.memory_space<vmem>>, vector<128x512xf32>
    %cst_133 = arith.constant dense<0.000000e+00> : vector<8x512xf32>
    %343 = tpu.matmul %330, %342, %cst_133 {dimension_numbers = #tpu.dot_dimension_numbers<[1], [0], [0], [1], [0, 0, 1, 1], [], []>} : vector<8x128xf32>, vector<128x512xf32>, vector<8x512xf32> -> vector<8x512xf32>
    %344 = arith.addf %341, %343 : vector<8x512xf32>
    %345 = vector.extract_strided_slice %344 {offsets = [0, 0], sizes = [8, 384], strides = [1, 1]} : vector<8x512xf32> to vector<8x384xf32>
    %346 = arith.negf %345 : vector<8x384xf32>
    %347 = math.exp %346 : vector<8x384xf32>
    %cst_134 = arith.constant 1.000000e+00 : f32
    %348 = vector.broadcast %cst_134 : f32 to vector<8x384xf32>
    %349 = arith.addf %348, %347 : vector<8x384xf32>
    %350 = arith.divf %348, %349 : vector<8x384xf32>
    %351 = vector.extract_strided_slice %344 {offsets = [0, 384], sizes = [8, 128], strides = [1, 1]} : vector<8x512xf32> to vector<8x128xf32>
    %352 = math.tanh %351 : vector<8x128xf32>
    %353 = vector.extract_strided_slice %350 {offsets = [0, 0], sizes = [8, 128], strides = [1, 1]} : vector<8x384xf32> to vector<8x128xf32>
    %354 = vector.extract_strided_slice %350 {offsets = [0, 128], sizes = [8, 128], strides = [1, 1]} : vector<8x384xf32> to vector<8x128xf32>
    %355 = vector.extract_strided_slice %350 {offsets = [0, 256], sizes = [8, 128], strides = [1, 1]} : vector<8x384xf32> to vector<8x128xf32>
    %356 = arith.mulf %354, %328 : vector<8x128xf32>
    %357 = arith.mulf %353, %352 : vector<8x128xf32>
    %358 = arith.addf %356, %357 : vector<8x128xf32>
    %359 = math.tanh %358 : vector<8x128xf32>
    %360 = arith.mulf %355, %359 : vector<8x128xf32>
    %c0_135 = arith.constant 0 : index
    %c0_136 = arith.constant 0 : index
    %361 = vector.load %arg8[%c0_135, %c0_136] : memref<128x128xf32, #tpu.memory_space<vmem>>, vector<128x128xf32>
    %cst_137 = arith.constant dense<0.000000e+00> : vector<8x128xf32>
    %362 = tpu.matmul %360, %361, %cst_137 {dimension_numbers = #tpu.dot_dimension_numbers<[1], [0], [0], [1], [0, 0, 1, 1], [], []>} : vector<8x128xf32>, vector<128x128xf32>, vector<8x128xf32> -> vector<8x128xf32>
    %c0_138 = arith.constant 0 : index
    %c0_139 = arith.constant 0 : index
    %363 = vector.load %arg9[%c0_138, %c0_139] : memref<1x128xf32, #tpu.memory_space<vmem>>, vector<1x128xf32>
    %364 = vector.broadcast %363 : vector<1x128xf32> to vector<8x128xf32>
    %365 = arith.addf %362, %364 : vector<8x128xf32>
    %366 = arith.index_cast %339 : i32 to index
    %c0_140 = arith.constant 0 : index
    %367 = vector.load %arg10[%366, %c0_140] : memref<64x128xf32, #tpu.memory_space<vmem>>, vector<8x128xf32>
    tpu.vector_store %arg10[%366, %c0_140], %365 {strides = array<i32>} : memref<64x128xf32, #tpu.memory_space<vmem>>, vector<8x128xf32>,
    %c5_i32_141 = arith.constant 5 : i32
    %c8_i32_142 = arith.constant 8 : i32
    %368 = arith.muli %c5_i32_141, %c8_i32_142 : i32
    %369 = tpu.assume_multiple %368, 8 : i32
    %370 = arith.index_cast %369 : i32 to index
    %c0_143 = arith.constant 0 : index
    %371 = vector.load %arg11[%370, %c0_143] : memref<64x512xf32, #tpu.memory_space<vmem>>, vector<8x512xf32>
    %c0_144 = arith.constant 0 : index
    %c0_145 = arith.constant 0 : index
    %372 = vector.load %arg6[%c0_144, %c0_145] : memref<128x512xf32, #tpu.memory_space<vmem>>, vector<128x512xf32>
    %cst_146 = arith.constant dense<0.000000e+00> : vector<8x512xf32>
    %373 = tpu.matmul %360, %372, %cst_146 {dimension_numbers = #tpu.dot_dimension_numbers<[1], [0], [0], [1], [0, 0, 1, 1], [], []>} : vector<8x128xf32>, vector<128x512xf32>, vector<8x512xf32> -> vector<8x512xf32>
    %374 = arith.addf %371, %373 : vector<8x512xf32>
    %375 = vector.extract_strided_slice %374 {offsets = [0, 0], sizes = [8, 384], strides = [1, 1]} : vector<8x512xf32> to vector<8x384xf32>
    %376 = arith.negf %375 : vector<8x384xf32>
    %377 = math.exp %376 : vector<8x384xf32>
    %cst_147 = arith.constant 1.000000e+00 : f32
    %378 = vector.broadcast %cst_147 : f32 to vector<8x384xf32>
    %379 = arith.addf %378, %377 : vector<8x384xf32>
    %380 = arith.divf %378, %379 : vector<8x384xf32>
    %381 = vector.extract_strided_slice %374 {offsets = [0, 384], sizes = [8, 128], strides = [1, 1]} : vector<8x512xf32> to vector<8x128xf32>
    %382 = math.tanh %381 : vector<8x128xf32>
    %383 = vector.extract_strided_slice %380 {offsets = [0, 0], sizes = [8, 128], strides = [1, 1]} : vector<8x384xf32> to vector<8x128xf32>
    %384 = vector.extract_strided_slice %380 {offsets = [0, 128], sizes = [8, 128], strides = [1, 1]} : vector<8x384xf32> to vector<8x128xf32>
    %385 = vector.extract_strided_slice %380 {offsets = [0, 256], sizes = [8, 128], strides = [1, 1]} : vector<8x384xf32> to vector<8x128xf32>
    %386 = arith.mulf %384, %358 : vector<8x128xf32>
    %387 = arith.mulf %383, %382 : vector<8x128xf32>
    %388 = arith.addf %386, %387 : vector<8x128xf32>
    %389 = math.tanh %388 : vector<8x128xf32>
    %390 = arith.mulf %385, %389 : vector<8x128xf32>
    %c0_148 = arith.constant 0 : index
    %c0_149 = arith.constant 0 : index
    %391 = vector.load %arg8[%c0_148, %c0_149] : memref<128x128xf32, #tpu.memory_space<vmem>>, vector<128x128xf32>
    %cst_150 = arith.constant dense<0.000000e+00> : vector<8x128xf32>
    %392 = tpu.matmul %390, %391, %cst_150 {dimension_numbers = #tpu.dot_dimension_numbers<[1], [0], [0], [1], [0, 0, 1, 1], [], []>} : vector<8x128xf32>, vector<128x128xf32>, vector<8x128xf32> -> vector<8x128xf32>
    %c0_151 = arith.constant 0 : index
    %c0_152 = arith.constant 0 : index
    %393 = vector.load %arg9[%c0_151, %c0_152] : memref<1x128xf32, #tpu.memory_space<vmem>>, vector<1x128xf32>
    %394 = vector.broadcast %393 : vector<1x128xf32> to vector<8x128xf32>
    %395 = arith.addf %392, %394 : vector<8x128xf32>
    %396 = arith.index_cast %369 : i32 to index
    %c0_153 = arith.constant 0 : index
    %397 = vector.load %arg10[%396, %c0_153] : memref<64x128xf32, #tpu.memory_space<vmem>>, vector<8x128xf32>
    tpu.vector_store %arg10[%396, %c0_153], %395 {strides = array<i32>} : memref<64x128xf32, #tpu.memory_space<vmem>>, vector<8x128xf32>,
    %c6_i32_154 = arith.constant 6 : i32
    %c8_i32_155 = arith.constant 8 : i32
    %398 = arith.muli %c6_i32_154, %c8_i32_155 : i32
    %399 = tpu.assume_multiple %398, 8 : i32
    %400 = arith.index_cast %399 : i32 to index
    %c0_156 = arith.constant 0 : index
    %401 = vector.load %arg11[%400, %c0_156] : memref<64x512xf32, #tpu.memory_space<vmem>>, vector<8x512xf32>
    %c0_157 = arith.constant 0 : index
    %c0_158 = arith.constant 0 : index
    %402 = vector.load %arg6[%c0_157, %c0_158] : memref<128x512xf32, #tpu.memory_space<vmem>>, vector<128x512xf32>
    %cst_159 = arith.constant dense<0.000000e+00> : vector<8x512xf32>
    %403 = tpu.matmul %390, %402, %cst_159 {dimension_numbers = #tpu.dot_dimension_numbers<[1], [0], [0], [1], [0, 0, 1, 1], [], []>} : vector<8x128xf32>, vector<128x512xf32>, vector<8x512xf32> -> vector<8x512xf32>
    %404 = arith.addf %401, %403 : vector<8x512xf32>
    %405 = vector.extract_strided_slice %404 {offsets = [0, 0], sizes = [8, 384], strides = [1, 1]} : vector<8x512xf32> to vector<8x384xf32>
    %406 = arith.negf %405 : vector<8x384xf32>
    %407 = math.exp %406 : vector<8x384xf32>
    %cst_160 = arith.constant 1.000000e+00 : f32
    %408 = vector.broadcast %cst_160 : f32 to vector<8x384xf32>
    %409 = arith.addf %408, %407 : vector<8x384xf32>
    %410 = arith.divf %408, %409 : vector<8x384xf32>
    %411 = vector.extract_strided_slice %404 {offsets = [0, 384], sizes = [8, 128], strides = [1, 1]} : vector<8x512xf32> to vector<8x128xf32>
    %412 = math.tanh %411 : vector<8x128xf32>
    %413 = vector.extract_strided_slice %410 {offsets = [0, 0], sizes = [8, 128], strides = [1, 1]} : vector<8x384xf32> to vector<8x128xf32>
    %414 = vector.extract_strided_slice %410 {offsets = [0, 128], sizes = [8, 128], strides = [1, 1]} : vector<8x384xf32> to vector<8x128xf32>
    %415 = vector.extract_strided_slice %410 {offsets = [0, 256], sizes = [8, 128], strides = [1, 1]} : vector<8x384xf32> to vector<8x128xf32>
    %416 = arith.mulf %414, %388 : vector<8x128xf32>
    %417 = arith.mulf %413, %412 : vector<8x128xf32>
    %418 = arith.addf %416, %417 : vector<8x128xf32>
    %419 = math.tanh %418 : vector<8x128xf32>
    %420 = arith.mulf %415, %419 : vector<8x128xf32>
    %c0_161 = arith.constant 0 : index
    %c0_162 = arith.constant 0 : index
    %421 = vector.load %arg8[%c0_161, %c0_162] : memref<128x128xf32, #tpu.memory_space<vmem>>, vector<128x128xf32>
    %cst_163 = arith.constant dense<0.000000e+00> : vector<8x128xf32>
    %422 = tpu.matmul %420, %421, %cst_163 {dimension_numbers = #tpu.dot_dimension_numbers<[1], [0], [0], [1], [0, 0, 1, 1], [], []>} : vector<8x128xf32>, vector<128x128xf32>, vector<8x128xf32> -> vector<8x128xf32>
    %c0_164 = arith.constant 0 : index
    %c0_165 = arith.constant 0 : index
    %423 = vector.load %arg9[%c0_164, %c0_165] : memref<1x128xf32, #tpu.memory_space<vmem>>, vector<1x128xf32>
    %424 = vector.broadcast %423 : vector<1x128xf32> to vector<8x128xf32>
    %425 = arith.addf %422, %424 : vector<8x128xf32>
    %426 = arith.index_cast %399 : i32 to index
    %c0_166 = arith.constant 0 : index
    %427 = vector.load %arg10[%426, %c0_166] : memref<64x128xf32, #tpu.memory_space<vmem>>, vector<8x128xf32>
    tpu.vector_store %arg10[%426, %c0_166], %425 {strides = array<i32>} : memref<64x128xf32, #tpu.memory_space<vmem>>, vector<8x128xf32>,
    %c7_i32_167 = arith.constant 7 : i32
    %c8_i32_168 = arith.constant 8 : i32
    %428 = arith.muli %c7_i32_167, %c8_i32_168 : i32
    %429 = tpu.assume_multiple %428, 8 : i32
    %430 = arith.index_cast %429 : i32 to index
    %c0_169 = arith.constant 0 : index
    %431 = vector.load %arg11[%430, %c0_169] : memref<64x512xf32, #tpu.memory_space<vmem>>, vector<8x512xf32>
    %c0_170 = arith.constant 0 : index
    %c0_171 = arith.constant 0 : index
    %432 = vector.load %arg6[%c0_170, %c0_171] : memref<128x512xf32, #tpu.memory_space<vmem>>, vector<128x512xf32>
    %cst_172 = arith.constant dense<0.000000e+00> : vector<8x512xf32>
    %433 = tpu.matmul %420, %432, %cst_172 {dimension_numbers = #tpu.dot_dimension_numbers<[1], [0], [0], [1], [0, 0, 1, 1], [], []>} : vector<8x128xf32>, vector<128x512xf32>, vector<8x512xf32> -> vector<8x512xf32>
    %434 = arith.addf %431, %433 : vector<8x512xf32>
    %435 = vector.extract_strided_slice %434 {offsets = [0, 0], sizes = [8, 384], strides = [1, 1]} : vector<8x512xf32> to vector<8x384xf32>
    %436 = arith.negf %435 : vector<8x384xf32>
    %437 = math.exp %436 : vector<8x384xf32>
    %cst_173 = arith.constant 1.000000e+00 : f32
    %438 = vector.broadcast %cst_173 : f32 to vector<8x384xf32>
    %439 = arith.addf %438, %437 : vector<8x384xf32>
    %440 = arith.divf %438, %439 : vector<8x384xf32>
    %441 = vector.extract_strided_slice %434 {offsets = [0, 384], sizes = [8, 128], strides = [1, 1]} : vector<8x512xf32> to vector<8x128xf32>
    %442 = math.tanh %441 : vector<8x128xf32>
    %443 = vector.extract_strided_slice %440 {offsets = [0, 0], sizes = [8, 128], strides = [1, 1]} : vector<8x384xf32> to vector<8x128xf32>
    %444 = vector.extract_strided_slice %440 {offsets = [0, 128], sizes = [8, 128], strides = [1, 1]} : vector<8x384xf32> to vector<8x128xf32>
    %445 = vector.extract_strided_slice %440 {offsets = [0, 256], sizes = [8, 128], strides = [1, 1]} : vector<8x384xf32> to vector<8x128xf32>
    %446 = arith.mulf %444, %418 : vector<8x128xf32>
    %447 = arith.mulf %443, %442 : vector<8x128xf32>
    %448 = arith.addf %446, %447 : vector<8x128xf32>
    %449 = math.tanh %448 : vector<8x128xf32>
    %450 = arith.mulf %445, %449 : vector<8x128xf32>
    %c0_174 = arith.constant 0 : index
    %c0_175 = arith.constant 0 : index
    %451 = vector.load %arg8[%c0_174, %c0_175] : memref<128x128xf32, #tpu.memory_space<vmem>>, vector<128x128xf32>
    %cst_176 = arith.constant dense<0.000000e+00> : vector<8x128xf32>
    %452 = tpu.matmul %450, %451, %cst_176 {dimension_numbers = #tpu.dot_dimension_numbers<[1], [0], [0], [1], [0, 0, 1, 1], [], []>} : vector<8x128xf32>, vector<128x128xf32>, vector<8x128xf32> -> vector<8x128xf32>
    %c0_177 = arith.constant 0 : index
    %c0_178 = arith.constant 0 : index
    %453 = vector.load %arg9[%c0_177, %c0_178] : memref<1x128xf32, #tpu.memory_space<vmem>>, vector<1x128xf32>
    %454 = vector.broadcast %453 : vector<1x128xf32> to vector<8x128xf32>
    %455 = arith.addf %452, %454 : vector<8x128xf32>
    %456 = arith.index_cast %429 : i32 to index
    %c0_179 = arith.constant 0 : index
    %457 = vector.load %arg10[%456, %c0_179] : memref<64x128xf32, #tpu.memory_space<vmem>>, vector<8x128xf32>
    tpu.vector_store %arg10[%456, %c0_179], %455 {strides = array<i32>} : memref<64x128xf32, #tpu.memory_space<vmem>>, vector<8x128xf32>,
    %c8_i32_180 = arith.constant 8 : i32
    return
  }
  func.func @transform_0(%arg0: i32) -> (i32, i32) {
    %c0_i32 = arith.constant 0 : i32
    %c0_i32_0 = arith.constant 0 : i32
    return %arg0, %c0_i32 : i32, i32
  }
  func.func @transform_1(%arg0: i32) -> (i32, i32) {
    %c0_i32 = arith.constant 0 : i32
    %c0_i32_0 = arith.constant 0 : i32
    %c0_i32_1 = arith.constant 0 : i32
    return %c0_i32, %c0_i32_0 : i32, i32
  }
  func.func @transform_2(%arg0: i32) -> (i32, i32) {
    %c0_i32 = arith.constant 0 : i32
    %c0_i32_0 = arith.constant 0 : i32
    %c0_i32_1 = arith.constant 0 : i32
    return %c0_i32, %c0_i32_0 : i32, i32
  }
  func.func @transform_3(%arg0: i32) -> (i32, i32) {
    %c0_i32 = arith.constant 0 : i32
    %c0_i32_0 = arith.constant 0 : i32
    %c0_i32_1 = arith.constant 0 : i32
    return %c0_i32, %c0_i32_0 : i32, i32
  }
  func.func @transform_4(%arg0: i32) -> (i32, i32) {
    %c0_i32 = arith.constant 0 : i32
    %c0_i32_0 = arith.constant 0 : i32
    %c0_i32_1 = arith.constant 0 : i32
    return %c0_i32, %c0_i32_0 : i32, i32
  }
  func.func @transform_5(%arg0: i32) -> (i32, i32) {
    %c0_i32 = arith.constant 0 : i32
    %c0_i32_0 = arith.constant 0 : i32
    %c0_i32_1 = arith.constant 0 : i32
    return %c0_i32, %c0_i32_0 : i32, i32
  }
  func.func @transform_6(%arg0: i32) -> (i32, i32) {
    %c0_i32 = arith.constant 0 : i32
    %c0_i32_0 = arith.constant 0 : i32
    %c0_i32_1 = arith.constant 0 : i32
    return %c0_i32, %c0_i32_0 : i32, i32
  }
  func.func @transform_7(%arg0: i32) -> (i32, i32) {
    %c0_i32 = arith.constant 0 : i32
    %c0_i32_0 = arith.constant 0 : i32
    %c0_i32_1 = arith.constant 0 : i32
    return %c0_i32, %c0_i32_0 : i32, i32
  }
  func.func @transform_8(%arg0: i32) -> (i32, i32) {
    %c0_i32 = arith.constant 0 : i32
    %c0_i32_0 = arith.constant 0 : i32
    %c0_i32_1 = arith.constant 0 : i32
    return %c0_i32, %c0_i32_0 : i32, i32
  }
  func.func @transform_9(%arg0: i32) -> (i32, i32) {
    %c0_i32 = arith.constant 0 : i32
    %c0_i32_0 = arith.constant 0 : i32
    return %arg0, %c0_i32 : i32, i32
  }
}

</mosaic_0001>

<llo_original>
// kernel: lstm_forecaster_forward.1
$region0: #{lstm_forecaster_forward.1}
  #allocation0 [shape = 'u32[]', space=smem, size = 0x4, offset = 0x4, fixed_abs, tag = 'smem constant byte address 0x4 - core index']
  #allocation1 [shape = 'u32[144,128]{1,0:T(1,128)}', space=vmem, size = 0x12000, scoped, tag = 'internal scratch']
  #allocation2 [shape = 'f32[64,512]{1,0:T(8,128)}', space=vmem, size = 0x20000, scoped, tag = 'scratch operand']
  #allocation3 [shape = 'f32[64,128]{1,0:T(8,128)}', space=vmem, size = 0x8000, scoped, tag = 'scratch operand']
  %s0 = inlined_call_operand.vmem [shape: f32[64,4], index: 0, kind: input, shape index: {}]
  %s1 = inlined_call_operand.vmem [shape: f32[4,512], index: 1, kind: input, shape index: {}]
  %s2 = inlined_call_operand.vmem [shape: f32[128,512], index: 2, kind: input, shape index: {}]
  %s3 = inlined_call_operand.vmem [shape: f32[1,512], index: 3, kind: input, shape index: {}]
  %s4 = inlined_call_operand.vmem [shape: f32[128,512], index: 4, kind: input, shape index: {}]
  %s5 = inlined_call_operand.vmem [shape: f32[128,512], index: 5, kind: input, shape index: {}]
  %s6 = inlined_call_operand.vmem [shape: f32[1,512], index: 6, kind: input, shape index: {}]
  %s7 = inlined_call_operand.vmem [shape: f32[128,128], index: 7, kind: input, shape index: {}]
  %s8 = inlined_call_operand.vmem [shape: f32[1,128], index: 8, kind: input, shape index: {}]
  %s9 = inlined_call_operand.vmem [shape: f32[64,128], index: 9, kind: output, shape index: {}]
  %s10 = sld [smem:[#allocation0]]
  $region46: #{lstm_forecaster_forward.1} parent=0
    _
  %s12 = ssub.s32 1, %s10
  %s13 = scalar_select 0, %s12, %s10
  // Predicated region
  $region2: #{lstm_forecaster_forward.1} parent=0 // pred_check
    _
  $region3: #{lstm_forecaster_forward.1} parent=0 // pred_check_branch
    %15 = sbr.rel (0) target = $region5
  $region4: #{lstm_forecaster_forward.1} parent=0 // pred_region
    _
  $region5: #{lstm_forecaster_forward.1} parent=0 // pred_fallthru
    _
  // Predicated region
  $region6: #{lstm_forecaster_forward.1} parent=0 // pred_check
    _
  $region7: #{lstm_forecaster_forward.1} parent=0 // pred_check_branch
    %17 = sbr.rel (0) target = $region9
  $region8: #{lstm_forecaster_forward.1} parent=0 // pred_region
    _
  $region9: #{lstm_forecaster_forward.1} parent=0 // pred_fallthru
    _
  // Predicated region
  $region10: #{lstm_forecaster_forward.1} parent=0 // pred_check
    _
  $region11: #{lstm_forecaster_forward.1} parent=0 // pred_check_branch
    %19 = sbr.rel (0) target = $region13
  $region12: #{lstm_forecaster_forward.1} parent=0 // pred_region
    _
  $region13: #{lstm_forecaster_forward.1} parent=0 // pred_fallthru
    _
  // Predicated region
  $region14: #{lstm_forecaster_forward.1} parent=0 // pred_check
    _
  $region15: #{lstm_forecaster_forward.1} parent=0 // pred_check_branch
    %21 = sbr.rel (0) target = $region17
  $region16: #{lstm_forecaster_forward.1} parent=0 // pred_region
    _
  $region17: #{lstm_forecaster_forward.1} parent=0 // pred_fallthru
    _
  // Predicated region
  $region18: #{lstm_forecaster_forward.1} parent=0 // pred_check
    _
  $region19: #{lstm_forecaster_forward.1} parent=0 // pred_check_branch
    %23 = sbr.rel (0) target = $region21
  $region20: #{lstm_forecaster_forward.1} parent=0 // pred_region
    _
  $region21: #{lstm_forecaster_forward.1} parent=0 // pred_fallthru
    _
  // Predicated region
  $region22: #{lstm_forecaster_forward.1} parent=0 // pred_check
    _
  $region23: #{lstm_forecaster_forward.1} parent=0 // pred_check_branch
    %25 = sbr.rel (0) target = $region25
  $region24: #{lstm_forecaster_forward.1} parent=0 // pred_region
    _
  $region25: #{lstm_forecaster_forward.1} parent=0 // pred_fallthru
    _
  // Predicated region
  $region26: #{lstm_forecaster_forward.1} parent=0 // pred_check
    _
  $region27: #{lstm_forecaster_forward.1} parent=0 // pred_check_branch
    %27 = sbr.rel (0) target = $region29
  $region28: #{lstm_forecaster_forward.1} parent=0 // pred_region
    _
  $region29: #{lstm_forecaster_forward.1} parent=0 // pred_fallthru
    _
  // Predicated region
  $region30: #{lstm_forecaster_forward.1} parent=0 // pred_check
    _
  $region31: #{lstm_forecaster_forward.1} parent=0 // pred_check_branch
    %29 = sbr.rel (0) target = $region33
  $region32: #{lstm_forecaster_forward.1} parent=0 // pred_region
    _
  $region33: #{lstm_forecaster_forward.1} parent=0 // pred_fallthru
    _
  // Predicated region
  $region34: #{lstm_forecaster_forward.1} parent=0 // pred_check
    _
  $region35: #{lstm_forecaster_forward.1} parent=0 // pred_check_branch
    %31 = sbr.rel (0) target = $region37
  $region36: #{lstm_forecaster_forward.1} parent=0 // pred_region
    _
  $region37: #{lstm_forecaster_forward.1} parent=0 // pred_fallthru
    _
  %v32 = vld [vmem:[%s0] sm:$0xff]
  %v33 = vld [vmem:[%s0 + $0x8] sm:$0xff]
  %v34 = vld [vmem:[%s0 + $0x10] sm:$0xff]
  %v35 = vld [vmem:[%s0 + $0x18] sm:$0xff]
  %v36 = vld [vmem:[%s0 + $0x20] sm:$0xff]
  %v37 = vld [vmem:[%s0 + $0x28] sm:$0xff]
  %v38 = vld [vmem:[%s0 + $0x30] sm:$0xff]
  %v39 = vld [vmem:[%s0 + $0x38] sm:$0xff]
  %v40 = vld [vmem:[%s1] sm:$0xff]
  %v41 = vld [vmem:[%s1 + $0x8] sm:$0xff]
  %v42 = vld [vmem:[%s3] sm:$0xf]
  %v44 = vlaneseq
  %v45 = vshrl.u32 %v44, 7
  %v46 = vsub.s32 0, %v45
  %v47 = vrot.slane %v42, %v46
  %v48 = vlaneseq
  %v49 = vshrl.u32 %v48, 7
  %v50 = vsub.s32 1, %v49
  %v51 = vrot.slane %v42, %v50
  %v52 = vlaneseq
  %v53 = vshrl.u32 %v52, 7
  %v54 = vsub.s32 2, %v53
  %v55 = vrot.slane %v42, %v54
  %v56 = vlaneseq
  %v57 = vshrl.u32 %v56, 7
  %v58 = vsub.s32 3, %v57
  %v59 = vrot.slane %v42, %v58
  %v66 = vcombine.high %v40, %v40
  %v67 = vcombine.high %v41, %v41
  %vm68 = vcmask 31744
  %v70 = vsel %vm68, %v32, 0
  %v73 = vsel %vm68, %v33, 0
  %v76 = vsel %vm68, %v34, 0
  %v79 = vsel %vm68, %v35, 0
  %v82 = vsel %vm68, %v36, 0
  %v85 = vsel %vm68, %v37, 0
  %v88 = vsel %vm68, %v38, 0
  %v91 = vsel %vm68, %v39, 0
  %vm93 = vcmask 1043456
  %v94 = vsel %vm93, %v40, 0
  %v96 = vsel %vm93, %v66, 0
  %v98 = vsel %vm93, %v41, 0
  %v100 = vsel %vm93, %v67, 0
  %102 = vmatprep.subr.mxu0 %v96
  %103 = vmatpush1.msra.mxu0 %v94
  %104 = vmatprep.subr.mxu0 0.0
  %105 = vmatpush1.msra.mxu0 0.0
  %106 = vmatprep.subr.mxu0 0.0
  %107 = vmatpush1.msra.mxu0 0.0
  %108 = vmatprep.subr.mxu0 0.0
  %109 = vmatpush1.msra.mxu0 0.0
  %110 = vmatprep.subr.mxu0 0.0
  %111 = vmatpush1.msra.mxu0 0.0
  %112 = vmatprep.subr.mxu0 0.0
  %113 = vmatpush1.msra.mxu0 0.0
  %114 = vmatprep.subr.mxu0 0.0
  %115 = vmatpush1.msra.mxu0 0.0
  %116 = vmatprep.subr.mxu0 0.0
  %117 = vmatpush1.msra.mxu0 0.0
  %118 = vmatprep.subr.mxu0 0.0
  %119 = vmatpush1.msra.mxu0 0.0
  %120 = vmatprep.subr.mxu0 0.0
  %121 = vmatpush1.msra.mxu0 0.0
  %122 = vmatprep.subr.mxu0 0.0
  %123 = vmatpush1.msra.mxu0 0.0
  %124 = vmatprep.subr.mxu0 0.0
  %125 = vmatpush1.msra.mxu0 0.0
  %126 = vmatprep.subr.mxu0 0.0
  %127 = vmatpush1.msra.mxu0 0.0
  %128 = vmatprep.subr.mxu0 0.0
  %129 = vmatpush1.msra.mxu0 0.0
  %130 = vmatprep.subr.mxu0 0.0
  %131 = vmatpush1.msra.mxu0 0.0
  %132 = vmatprep.subr.mxu0 0.0
  %133 = vmatpush1.msra.mxu0 0.0
  %134 = vmatprep.subr.mxu0 0.0
  %135 = vmatpush1.msra.mxu0 0.0
  %136 = vmatprep.subr.mxu0 0.0
  %137 = vmatpush1.msra.mxu0 0.0
  %138 = vmatprep.subr.mxu0 0.0
  %139 = vmatpush1.msra.mxu0 0.0
  %140 = vmatprep.subr.mxu0 0.0
  %141 = vmatpush1.msra.mxu0 0.0
  %142 = vmatprep.subr.mxu0 0.0
  %143 = vmatpush1.msra.mxu0 0.0
  %144 = vmatprep.subr.mxu0 0.0
  %145 = vmatpush1.msra.mxu0 0.0
  %146 = vmatprep.subr.mxu0 0.0
  %147 = vmatpush1.msra.mxu0 0.0
  %148 = vmatprep.subr.mxu0 0.0
  %149 = vmatpush1.msra.mxu0 0.0
  %150 = vmatprep.subr.mxu0 0.0
  %151 = vmatpush1.msra.mxu0 0.0
  %152 = vmatprep.subr.mxu0 0.0
  %153 = vmatpush1.msra.mxu0 0.0
  %154 = vmatprep.subr.mxu0 0.0
  %155 = vmatpush1.msra.mxu0 0.0
  %156 = vmatprep.subr.mxu0 0.0
  %157 = vmatpush1.msra.mxu0 0.0
  %158 = vmatprep.subr.mxu0 0.0
  %159 = vmatpush1.msra.mxu0 0.0
  %160 = vmatprep.subr.mxu0 0.0
  %161 = vmatpush1.msra.mxu0 0.0
  %162 = vmatprep.subr.mxu0 0.0
  %163 = vmatpush1.msra.mxu0 0.0
  %164 = vmatprep.subr.mxu0 0.0
  %165 = vmatpush1.msra.mxu0 0.0
  %166 = vmatprep.mubr.f32.mxu0 0.0
  %167 = vmatmul.mubr.f32.gmra.mrb[0].mxu0 %v70
  %v168 = vpop.f32.mrb[0].mxu0
  %v169 = vadd.f32 %v47, %v168
  %v170 = vpop.f32.mrb[0].mxu0
  %v171 = vadd.f32 %v51, %v170
  %172 = vmatprep.mubr.f32.mxu0 0.0
  %173 = vmatmul.mubr.f32.gmra.mrb[0].mxu0 %v73
  %v174 = vpop.f32.mrb[0].mxu0
  %v175 = vadd.f32 %v47, %v174
  %v176 = vpop.f32.mrb[0].mxu0
  %v177 = vadd.f32 %v51, %v176
  %178 = vmatprep.mubr.f32.mxu0 0.0
  %179 = vmatmul.mubr.f32.gmra.mrb[0].mxu0 %v76
  %v180 = vpop.f32.mrb[0].mxu0
  %v181 = vadd.f32 %v47, %v180
  %v182 = vpop.f32.mrb[0].mxu0
  %v183 = vadd.f32 %v51, %v182
  %184 = vmatprep.mubr.f32.mxu0 0.0
  %185 = vmatmul.mubr.f32.gmra.mrb[0].mxu0 %v79
  %v186 = vpop.f32.mrb[0].mxu0
  %v187 = vadd.f32 %v47, %v186
  %v188 = vpop.f32.mrb[0].mxu0
  %v189 = vadd.f32 %v51, %v188
  %190 = vmatprep.mubr.f32.mxu0 0.0
  %191 = vmatmul.mubr.f32.gmra.mrb[0].mxu0 %v82
  %v192 = vpop.f32.mrb[0].mxu0
  %v193 = vadd.f32 %v47, %v192
  %v194 = vpop.f32.mrb[0].mxu0
  %v195 = vadd.f32 %v51, %v194
  %196 = vmatprep.mubr.f32.mxu0 0.0
  %197 = vmatmul.mubr.f32.gmra.mrb[0].mxu0 %v85
  %v198 = vpop.f32.mrb[0].mxu0
  %v199 = vadd.f32 %v47, %v198
  %v200 = vpop.f32.mrb[0].mxu0
  %v201 = vadd.f32 %v51, %v200
  %202 = vmatprep.mubr.f32.mxu0 0.0
  %203 = vmatmul.mubr.f32.gmra.mrb[0].mxu0 %v88
  %v204 = vpop.f32.mrb[0].mxu0
  %v205 = vadd.f32 %v47, %v204
  %v206 = vpop.f32.mrb[0].mxu0
  %v207 = vadd.f32 %v51, %v206
  %208 = vmatprep.mubr.f32.mxu0 0.0
  %209 = vmatmul.mubr.f32.gmra.mrb[0].mxu0 %v91
  %v210 = vpop.f32.mrb[0].mxu0
  %v211 = vadd.f32 %v47, %v210
  %v212 = vpop.f32.mrb[0].mxu0
  %v213 = vadd.f32 %v51, %v212
  %214 = vdwg.mxu0
  %215 = vmatprep.subr.mxu0 %v100
  %216 = vmatpush1.msra.mxu0 %v98
  %217 = vmatprep.subr.mxu0 0.0
  %218 = vmatpush1.msra.mxu0 0.0
  %219 = vmatprep.subr.mxu0 0.0
  %220 = vmatpush1.msra.mxu0 0.0
  %221 = vmatprep.subr.mxu0 0.0
  %222 = vmatpush1.msra.mxu0 0.0
  %223 = vmatprep.subr.mxu0 0.0
  %224 = vmatpush1.msra.mxu0 0.0
  %225 = vmatprep.subr.mxu0 0.0
  %226 = vmatpush1.msra.mxu0 0.0
  %227 = vmatprep.subr.mxu0 0.0
  %228 = vmatpush1.msra.mxu0 0.0
  %229 = vmatprep.subr.mxu0 0.0
  %230 = vmatpush1.msra.mxu0 0.0
  %231 = vmatprep.subr.mxu0 0.0
  %232 = vmatpush1.msra.mxu0 0.0
  %233 = vmatprep.subr.mxu0 0.0
  %234 = vmatpush1.msra.mxu0 0.0
  %235 = vmatprep.subr.mxu0 0.0
  %236 = vmatpush1.msra.mxu0 0.0
  %237 = vmatprep.subr.mxu0 0.0
  %238 = vmatpush1.msra.mxu0 0.0
  %239 = vmatprep.subr.mxu0 0.0
  %240 = vmatpush1.msra.mxu0 0.0
  %241 = vmatprep.subr.mxu0 0.0
  %242 = vmatpush1.msra.mxu0 0.0
  %243 = vmatprep.subr.mxu0 0.0
  %244 = vmatpush1.msra.mxu0 0.0
  %245 = vmatprep.subr.mxu0 0.0
  %246 = vmatpush1.msra.mxu0 0.0
  %247 = vmatprep.subr.mxu0 0.0
  %248 = vmatpush1.msra.mxu0 0.0
  %249 = vmatprep.subr.mxu0 0.0
  %250 = vmatpush1.msra.mxu0 0.0
  %251 = vmatprep.subr.mxu0 0.0
  %252 = vmatpush1.msra.mxu0 0.0
  %253 = vmatprep.subr.mxu0 0.0
  %254 = vmatpush1.msra.mxu0 0.0
  %255 = vmatprep.subr.mxu0 0.0
  %256 = vmatpush1.msra.mxu0 0.0
  %257 = vmatprep.subr.mxu0 0.0
  %258 = vmatpush1.msra.mxu0 0.0
  %259 = vmatprep.subr.mxu0 0.0
  %260 = vmatpush1.msra.mxu0 0.0
  %261 = vmatprep.subr.mxu0 0.0
  %262 = vmatpush1.msra.mxu0 0.0
  %263 = vmatprep.subr.mxu0 0.0
  %264 = vmatpush1.msra.mxu0 0.0
  %265 = vmatprep.subr.mxu0 0.0
  %266 = vmatpush1.msra.mxu0 0.0
  %267 = vmatprep.subr.mxu0 0.0
  %268 = vmatpush1.msra.mxu0 0.0
  %269 = vmatprep.subr.mxu0 0.0
  %270 = vmatpush1.msra.mxu0 0.0
  %271 = vmatprep.subr.mxu0 0.0
  %272 = vmatpush1.msra.mxu0 0.0
  %273 = vmatprep.subr.mxu0 0.0
  %274 = vmatpush1.msra.mxu0 0.0
  %275 = vmatprep.subr.mxu0 0.0
  %276 = vmatpush1.msra.mxu0 0.0
  %277 = vmatprep.subr.mxu0 0.0
  %278 = vmatpush1.msra.mxu0 0.0
  %279 = vmatprep.mubr.f32.mxu0 0.0
  %280 = vmatmul.mubr.f32.gmra.mrb[0].mxu0 %v70
  %v281 = vpop.f32.mrb[0].mxu0
  %v282 = vadd.f32 %v55, %v281
  %v283 = vpop.f32.mrb[0].mxu0
  %v284 = vadd.f32 %v59, %v283
  %285 = vmatprep.mubr.f32.mxu0 0.0
  %286 = vmatmul.mubr.f32.gmra.mrb[0].mxu0 %v73
  %v287 = vpop.f32.mrb[0].mxu0
  %v288 = vadd.f32 %v55, %v287
  %v289 = vpop.f32.mrb[0].mxu0
  %v290 = vadd.f32 %v59, %v289
  %291 = vmatprep.mubr.f32.mxu0 0.0
  %292 = vmatmul.mubr.f32.gmra.mrb[0].mxu0 %v76
  %v293 = vpop.f32.mrb[0].mxu0
  %v294 = vadd.f32 %v55, %v293
  %v295 = vpop.f32.mrb[0].mxu0
  %v296 = vadd.f32 %v59, %v295
  %297 = vmatprep.mubr.f32.mxu0 0.0
  %298 = vmatmul.mubr.f32.gmra.mrb[0].mxu0 %v79
  %v299 = vpop.f32.mrb[0].mxu0
  %v300 = vadd.f32 %v55, %v299
  %v301 = vpop.f32.mrb[0].mxu0
  %v302 = vadd.f32 %v59, %v301
  %303 = vmatprep.mubr.f32.mxu0 0.0
  %304 = vmatmul.mubr.f32.gmra.mrb[0].mxu0 %v82
  %v305 = vpop.f32.mrb[0].mxu0
  %v306 = vadd.f32 %v55, %v305
  %v307 = vpop.f32.mrb[0].mxu0
  %v308 = vadd.f32 %v59, %v307
  %309 = vmatprep.mubr.f32.mxu0 0.0
  %310 = vmatmul.mubr.f32.gmra.mrb[0].mxu0 %v85
  %v311 = vpop.f32.mrb[0].mxu0
  %v312 = vadd.f32 %v55, %v311
  %v313 = vpop.f32.mrb[0].mxu0
  %v314 = vadd.f32 %v59, %v313
  %315 = vmatprep.mubr.f32.mxu0 0.0
  %316 = vmatmul.mubr.f32.gmra.mrb[0].mxu0 %v88
  %v317 = vpop.f32.mrb[0].mxu0
  %v318 = vadd.f32 %v55, %v317
  %v319 = vpop.f32.mrb[0].mxu0
  %v320 = vadd.f32 %v59, %v319
  %321 = vmatprep.mubr.f32.mxu0 0.0
  %322 = vmatmul.mubr.f32.gmra.mrb[0].mxu0 %v91
  %v323 = vpop.f32.mrb[0].mxu0
  %v324 = vadd.f32 %v55, %v323
  %v325 = vpop.f32.mrb[0].mxu0
  %v326 = vadd.f32 %v59, %v325
  %327 = vdwg.mxu0
  %328 = vst [vmem:[#allocation2] sm:$0xff] %v169
  %329 = vst [vmem:[#allocation2 + $0x8] sm:$0xff] %v171
  %330 = vst [vmem:[#allocation2 + $0x10] sm:$0xff] %v282
  %331 = vst [vmem:[#allocation2 + $0x18] sm:$0xff] %v284
  %332 = vst [vmem:[#allocation2 + $0x20] sm:$0xff] %v175
  %333 = vst [vmem:[#allocation2 + $0x28] sm:$0xff] %v177
  %334 = vst [vmem:[#allocation2 + $0x30] sm:$0xff] %v288
  %335 = vst [vmem:[#allocation2 + $0x38] sm:$0xff] %v290
  %336 = vst [vmem:[#allocation2 + $0x40] sm:$0xff] %v181
  %337 = vst [vmem:[#allocation2 + $0x48] sm:$0xff] %v183
  %338 = vst [vmem:[#allocation2 + $0x50] sm:$0xff] %v294
  %339 = vst [vmem:[#allocation2 + $0x58] sm:$0xff] %v296
  %340 = vst [vmem:[#allocation2 + $0x60] sm:$0xff] %v187
  %341 = vst [vmem:[#allocation2 + $0x68] sm:$0xff] %v189
  %342 = vst [vmem:[#allocation2 + $0x70] sm:$0xff] %v300
  %343 = vst [vmem:[#allocation2 + $0x78] sm:$0xff] %v302
  %344 = vst [vmem:[#allocation2 + $0x80] sm:$0xff] %v193
  %345 = vst [vmem:[#allocation2 + $0x88] sm:$0xff] %v195
  %346 = vst [vmem:[#allocation2 + $0x90] sm:$0xff] %v306
  %347 = vst [vmem:[#allocation2 + $0x98] sm:$0xff] %v308
  %348 = vst [vmem:[#allocation2 + $0xa0] sm:$0xff] %v199
  %349 = vst [vmem:[#allocation2 + $0xa8] sm:$0xff] %v201
  %350 = vst [vmem:[#allocation2 + $0xb0] sm:$0xff] %v312
  %351 = vst [vmem:[#allocation2 + $0xb8] sm:$0xff] %v314
  %352 = vst [vmem:[#allocation2 + $0xc0] sm:$0xff] %v205
  %353 = vst [vmem:[#allocation2 + $0xc8] sm:$0xff] %v207
  %354 = vst [vmem:[#allocation2 + $0xd0] sm:$0xff] %v318
  %355 = vst [vmem:[#allocation2 + $0xd8] sm:$0xff] %v320
  %356 = vst [vmem:[#allocation2 + $0xe0] sm:$0xff] %v211
  %357 = vst [vmem:[#allocation2 + $0xe8] sm:$0xff] %v213
  %358 = vst [vmem:[#allocation2 + $0xf0] sm:$0xff] %v324
  %359 = vst [vmem:[#allocation2 + $0xf8] sm:$0xff] %v326
  %s360 = smul.u32 0, 4
  %s361 = smul.addr %s360, 8
  %s362 = scalar_lea.vmem [#allocation2], %s361
  %v363 = vld [vmem:[%s362] sm:$0xff]
  %v364 = vld [vmem:[%s362 + $0x8] sm:$0xff]
  %v365 = vld [vmem:[%s362 + $0x10] sm:$0xff]
  %v366 = vld [vmem:[%s362 + $0x18] sm:$0xff]
  %v367 = vld [vmem:[%s2] sm:$0xff]
  %v368 = vld [vmem:[%s2 + $0x8] sm:$0xff]
  %v369 = vld [vmem:[%s2 + $0x10] sm:$0xff]
  %v370 = vld [vmem:[%s2 + $0x18] sm:$0xff]
  %v371 = vld [vmem:[%s2 + $0x20] sm:$0xff]
  %v372 = vld [vmem:[%s2 + $0x28] sm:$0xff]
  %v373 = vld [vmem:[%s2 + $0x30] sm:$0xff]
  %v374 = vld [vmem:[%s2 + $0x38] sm:$0xff]
  %v375 = vld [vmem:[%s2 + $0x40] sm:$0xff]
  %v376 = vld [vmem:[%s2 + $0x48] sm:$0xff]
  %v377 = vld [vmem:[%s2 + $0x50] sm:$0xff]
  %v378 = vld [vmem:[%s2 + $0x58] sm:$0xff]
  %v379 = vld [vmem:[%s2 + $0x60] sm:$0xff]
  %v380 = vld [vmem:[%s2 + $0x68] sm:$0xff]
  %v381 = vld [vmem:[%s2 + $0x70] sm:$0xff]
  %v382 = vld [vmem:[%s2 + $0x78] sm:$0xff]
  %v383 = vld [vmem:[%s2 + $0x80] sm:$0xff]
  %v384 = vld [vmem:[%s2 + $0x88] sm:$0xff]
  %v385 = vld [vmem:[%s2 + $0x90] sm:$0xff]
  %v386 = vld [vmem:[%s2 + $0x98] sm:$0xff]
  %v387 = vld [vmem:[%s2 + $0xa0] sm:$0xff]
  %v388 = vld [vmem:[%s2 + $0xa8] sm:$0xff]
  %v389 = vld [vmem:[%s2 + $0xb0] sm:$0xff]
  %v390 = vld [vmem:[%s2 + $0xb8] sm:$0xff]
  %v391 = vld [vmem:[%s2 + $0xc0] sm:$0xff]
  %v392 = vld [vmem:[%s2 + $0xc8] sm:$0xff]
  %v393 = vld [vmem:[%s2 + $0xd0] sm:$0xff]
  %v394 = vld [vmem:[%s2 + $0xd8] sm:$0xff]
  %v395 = vld [vmem:[%s2 + $0xe0] sm:$0xff]
  %v396 = vld [vmem:[%s2 + $0xe8] sm:$0xff]
  %v397 = vld [vmem:[%s2 + $0xf0] sm:$0xff]
  %v398 = vld [vmem:[%s2 + $0xf8] sm:$0xff]
  %v399 = vld [vmem:[%s2 + $0x100] sm:$0xff]
  %v400 = vld [vmem:[%s2 + $0x108] sm:$0xff]
  %v401 = vld [vmem:[%s2 + $0x110] sm:$0xff]
  %v402 = vld [vmem:[%s2 + $0x118] sm:$0xff]
  %v403 = vld [vmem:[%s2 + $0x120] sm:$0xff]
  %v404 = vld [vmem:[%s2 + $0x128] sm:$0xff]
  %v405 = vld [vmem:[%s2 + $0x130] sm:$0xff]
  %v406 = vld [vmem:[%s2 + $0x138] sm:$0xff]
  %v407 = vld [vmem:[%s2 + $0x140] sm:$0xff]
  %v408 = vld [vmem:[%s2 + $0x148] sm:$0xff]
  %v409 = vld [vmem:[%s2 + $0x150] sm:$0xff]
  %v410 = vld [vmem:[%s2 + $0x158] sm:$0xff]
  %v411 = vld [vmem:[%s2 + $0x160] sm:$0xff]
  %v412 = vld [vmem:[%s2 + $0x168] sm:$0xff]
  %v413 = vld [vmem:[%s2 + $0x170] sm:$0xff]
  %v414 = vld [vmem:[%s2 + $0x178] sm:$0xff]
  %v415 = vld [vmem:[%s2 + $0x180] sm:$0xff]
  %v416 = vld [vmem:[%s2 + $0x188] sm:$0xff]
  %v417 = vld [vmem:[%s2 + $0x190] sm:$0xff]
  %v418 = vld [vmem:[%s2 + $0x198] sm:$0xff]
  %v419 = vld [vmem:[%s2 + $0x1a0] sm:$0xff]
  %v420 = vld [vmem:[%s2 + $0x1a8] sm:$0xff]
  %v421 = vld [vmem:[%s2 + $0x1b0] sm:$0xff]
  %v422 = vld [vmem:[%s2 + $0x1b8] sm:$0xff]
  %v423 = vld [vmem:[%s2 + $0x1c0] sm:$0xff]
  %v424 = vld [vmem:[%s2 + $0x1c8] sm:$0xff]
  %v425 = vld [vmem:[%s2 + $0x1d0] sm:$0xff]
  %v426 = vld [vmem:[%s2 + $0x1d8] sm:$0xff]
  %v427 = vld [vmem:[%s2 + $0x1e0] sm:$0xff]
  %v428 = vld [vmem:[%s2 + $0x1e8] sm:$0xff]
  %v429 = vld [vmem:[%s2 + $0x1f0] sm:$0xff]
  %v430 = vld [vmem:[%s2 + $0x1f8] sm:$0xff]
  %431 = vmatprep.subr.mxu0 %v368
  %432 = vmatpush1.msra.mxu0 %v367
  %433 = vmatprep.subr.mxu0 %v372
  %434 = vmatpush1.msra.mxu0 %v371
  %435 = vmatprep.subr.mxu0 %v376
  %436 = vmatpush1.msra.mxu0 %v375
  %437 = vmatprep.subr.mxu0 %v380
  %438 = vmatpush1.msra.mxu0 %v379
  %439 = vmatprep.subr.mxu0 %v384
  %440 = vmatpush1.msra.mxu0 %v383
  %441 = vmatprep.subr.mxu0 %v388
  %442 = vmatpush1.msra.mxu0 %v387
  %443 = vmatprep.subr.mxu0 %v392
  %444 = vmatpush1.msra.mxu0 %v391
  %445 = vmatprep.subr.mxu0 %v396
  %446 = vmatpush1.msra.mxu0 %v395
  %447 = vmatprep.subr.mxu0 %v400
  %448 = vmatpush1.msra.mxu0 %v399
  %449 = vmatprep.subr.mxu0 %v404
  %450 = vmatpush1.msra.mxu0 %v403
  %451 = vmatprep.subr.mxu0 %v408
  %452 = vmatpush1.msra.mxu0 %v407
  %453 = vmatprep.subr.mxu0 %v412
  %454 = vmatpush1.msra.mxu0 %v411
  %455 = vmatprep.subr.mxu0 %v416
  %456 = vmatpush1.msra.mxu0 %v415
  %457 = vmatprep.subr.mxu0 %v420
  %458 = vmatpush1.msra.mxu0 %v419
  %459 = vmatprep.subr.mxu0 %v424
  %460 = vmatpush1.msra.mxu0 %v423
  %461 = vmatprep.subr.mxu0 %v428
  %462 = vmatpush1.msra.mxu0 %v427
  %463 = vmatprep.subr.mxu0 0.0
  %464 = vmatpush1.msra.mxu0 0.0
  %465 = vmatprep.subr.mxu0 0.0
  %466 = vmatpush1.msra.mxu0 0.0
  %467 = vmatprep.subr.mxu0 0.0
  %468 = vmatpush1.msra.mxu0 0.0
  %469 = vmatprep.subr.mxu0 0.0
  %470 = vmatpush1.msra.mxu0 0.0
  %471 = vmatprep.subr.mxu0 0.0
  %472 = vmatpush1.msra.mxu0 0.0
  %473 = vmatprep.subr.mxu0 0.0
  %474 = vmatpush1.msra.mxu0 0.0
  %475 = vmatprep.subr.mxu0 0.0
  %476 = vmatpush1.msra.mxu0 0.0
  %477 = vmatprep.subr.mxu0 0.0
  %478 = vmatpush1.msra.mxu0 0.0
  %479 = vmatprep.subr.mxu0 0.0
  %480 = vmatpush1.msra.mxu0 0.0
  %481 = vmatprep.subr.mxu0 0.0
  %482 = vmatpush1.msra.mxu0 0.0
  %483 = vmatprep.subr.mxu0 0.0
  %484 = vmatpush1.msra.mxu0 0.0
  %485 = vmatprep.subr.mxu0 0.0
  %486 = vmatpush1.msra.mxu0 0.0
  %487 = vmatprep.subr.mxu0 0.0
  %488 = vmatpush1.msra.mxu0 0.0
  %489 = vmatprep.subr.mxu0 0.0
  %490 = vmatpush1.msra.mxu0 0.0
  %491 = vmatprep.subr.mxu0 0.0
  %492 = vmatpush1.msra.mxu0 0.0
  %493 = vmatprep.subr.mxu0 0.0
  %494 = vmatpush1.msra.mxu0 0.0
  %495 = vmatprep.mubr.f32.mxu0 0.0
  %496 = vmatmul.mubr.f32.gmra.mrb[0].mxu0 0.0
  %v497 = vpop.f32.mrb[0].mxu0
  %v498 = vadd.f32 0.0, %v497
  %v499 = vpop.f32.mrb[0].mxu0
  %v500 = vadd.f32 0.0, %v499
  %501 = vdwg.mxu0
  %502 = vmatprep.subr.mxu0 %v370
  %503 = vmatpush1.msra.mxu0 %v369
  %504 = vmatprep.subr.mxu0 %v374
  %505 = vmatpush1.msra.mxu0 %v373
  %506 = vmatprep.subr.mxu0 %v378
  %507 = vmatpush1.msra.mxu0 %v377
  %508 = vmatprep.subr.mxu0 %v382
  %509 = vmatpush1.msra.mxu0 %v381
  %510 = vmatprep.subr.mxu0 %v386
  %511 = vmatpush1.msra.mxu0 %v385
  %512 = vmatprep.subr.mxu0 %v390
  %513 = vmatpush1.msra.mxu0 %v389
  %514 = vmatprep.subr.mxu0 %v394
  %515 = vmatpush1.msra.mxu0 %v393
  %516 = vmatprep.subr.mxu0 %v398
  %517 = vmatpush1.msra.mxu0 %v397
  %518 = vmatprep.subr.mxu0 %v402
  %519 = vmatpush1.msra.mxu0 %v401
  %520 = vmatprep.subr.mxu0 %v406
  %521 = vmatpush1.msra.mxu0 %v405
  %522 = vmatprep.subr.mxu0 %v410
  %523 = vmatpush1.msra.mxu0 %v409
  %524 = vmatprep.subr.mxu0 %v414
  %525 = vmatpush1.msra.mxu0 %v413
  %526 = vmatprep.subr.mxu0 %v418
  %527 = vmatpush1.msra.mxu0 %v417
  %528 = vmatprep.subr.mxu0 %v422
  %529 = vmatpush1.msra.mxu0 %v421
  %530 = vmatprep.subr.mxu0 %v426
  %531 = vmatpush1.msra.mxu0 %v425
  %532 = vmatprep.subr.mxu0 %v430
  %533 = vmatpush1.msra.mxu0 %v429
  %534 = vmatprep.subr.mxu0 0.0
  %535 = vmatpush1.msra.mxu0 0.0
  %536 = vmatprep.subr.mxu0 0.0
  %537 = vmatpush1.msra.mxu0 0.0
  %538 = vmatprep.subr.mxu0 0.0
  %539 = vmatpush1.msra.mxu0 0.0
  %540 = vmatprep.subr.mxu0 0.0
  %541 = vmatpush1.msra.mxu0 0.0
  %542 = vmatprep.subr.mxu0 0.0
  %543 = vmatpush1.msra.mxu0 0.0
  %544 = vmatprep.subr.mxu0 0.0
  %545 = vmatpush1.msra.mxu0 0.0
  %546 = vmatprep.subr.mxu0 0.0
  %547 = vmatpush1.msra.mxu0 0.0
  %548 = vmatprep.subr.mxu0 0.0
  %549 = vmatpush1.msra.mxu0 0.0
  %550 = vmatprep.subr.mxu0 0.0
  %551 = vmatpush1.msra.mxu0 0.0
  %552 = vmatprep.subr.mxu0 0.0
  %553 = vmatpush1.msra.mxu0 0.0
  %554 = vmatprep.subr.mxu0 0.0
  %555 = vmatpush1.msra.mxu0 0.0
  %556 = vmatprep.subr.mxu0 0.0
  %557 = vmatpush1.msra.mxu0 0.0
  %558 = vmatprep.subr.mxu0 0.0
  %559 = vmatpush1.msra.mxu0 0.0
  %560 = vmatprep.subr.mxu0 0.0
  %561 = vmatpush1.msra.mxu0 0.0
  %562 = vmatprep.subr.mxu0 0.0
  %563 = vmatpush1.msra.mxu0 0.0
  %564 = vmatprep.subr.mxu0 0.0
  %565 = vmatpush1.msra.mxu0 0.0
  %566 = vmatprep.mubr.f32.mxu0 0.0
  %567 = vmatmul.mubr.f32.gmra.mrb[0].mxu0 0.0
  %v568 = vpop.f32.mrb[0].mxu0
  %v569 = vadd.f32 0.0, %v568
  %v570 = vpop.f32.mrb[0].mxu0
  %v571 = vadd.f32 0.0, %v570
  %572 = vdwg.mxu0
  %v573 = vadd.f32 %v363, %v498
  %v574 = vadd.f32 %v364, %v500
  %v575 = vadd.f32 %v365, %v569
  %v576 = vadd.f32 %v366, %v571
  %v577 = vxor.u32 %v573, 2147483648
  %v578 = vxor.u32 %v574, 2147483648
  %v579 = vxor.u32 %v575, 2147483648
  %v580 = vmul.f32 %v577, 1.442695
  %v581 = vpow.pop %v580
  %v582 = vmul.f32 %v578, 1.442695
  %v583 = vpow.pop %v582
  %v584 = vmul.f32 %v579, 1.442695
  %v585 = vpow.pop %v584
  %v586 = vadd.f32 %v581, 1.0
  %v587 = vadd.f32 %v583, 1.0
  %v588 = vadd.f32 %v585, 1.0
  %v589 = vrcp.pop %v586
  %v590 = vmul.f32 1.0, %v589
  %v591 = vrcp.pop %v587
  %v592 = vmul.f32 1.0, %v591
  %v593 = vrcp.pop %v588
  %v594 = vmul.f32 1.0, %v593
  %v595 = vtanh.pop %v576
  %v596 = vmul.f32 %v592, 0.0
  %v597 = vmul.f32 %v590, %v595
  %v598 = vadd.f32 %v596, %v597
  %v599 = vtanh.pop %v598
  %v600 = vmul.f32 %v594, %v599
  %601 = vst [vmem:[#allocation3] sm:$0xff] %v600
  %s602 = smul.u32 1, 4
  %s603 = smul.addr %s602, 8
  %s604 = scalar_lea.vmem [#allocation2], %s603
  %v605 = vld [vmem:[%s604] sm:$0xff]
  %v606 = vld [vmem:[%s604 + $0x8] sm:$0xff]
  %v607 = vld [vmem:[%s604 + $0x10] sm:$0xff]
  %v608 = vld [vmem:[%s604 + $0x18] sm:$0xff]
  %v609 = vld [vmem:[%s2] sm:$0xff]
  %v610 = vld [vmem:[%s2 + $0x8] sm:$0xff]
  %v611 = vld [vmem:[%s2 + $0x10] sm:$0xff]
  %v612 = vld [vmem:[%s2 + $0x18] sm:$0xff]
  %v613 = vld [vmem:[%s2 + $0x20] sm:$0xff]
  %v614 = vld [vmem:[%s2 + $0x28] sm:$0xff]
  %v615 = vld [vmem:[%s2 + $0x30] sm:$0xff]
  %v616 = vld [vmem:[%s2 + $0x38] sm:$0xff]
  %v617 = vld [vmem:[%s2 + $0x40] sm:$0xff]
  %v618 = vld [vmem:[%s2 + $0x48] sm:$0xff]
  %v619 = vld [vmem:[%s2 + $0x50] sm:$0xff]
  %v620 = vld [vmem:[%s2 + $0x58] sm:$0xff]
  %v621 = vld [vmem:[%s2 + $0x60] sm:$0xff]
  %v622 = vld [vmem:[%s2 + $0x68] sm:$0xff]
  %v623 = vld [vmem:[%s2 + $0x70] sm:$0xff]
  %v624 = vld [vmem:[%s2 + $0x78] sm:$0xff]
  %v625 = vld [vmem:[%s2 + $0x80] sm:$0xff]
  %v626 = vld [vmem:[%s2 + $0x88] sm:$0xff]
  %v627 = vld [vmem:[%s2 + $0x90] sm:$0xff]
  %v628 = vld [vmem:[%s2 + $0x98] sm:$0xff]
  %v629 = vld [vmem:[%s2 + $0xa0] sm:$0xff]
  %v630 = vld [vmem:[%s2 + $0xa8] sm:$0xff]
  %v631 = vld [vmem:[%s2 + $0xb0] sm:$0xff]
  %v632 = vld [vmem:[%s2 + $0xb8] sm:$0xff]
  %v633 = vld [vmem:[%s2 + $0xc0] sm:$0xff]
  %v634 = vld [vmem:[%s2 + $0xc8] sm:$0xff]
  %v635 = vld [vmem:[%s2 + $0xd0] sm:$0xff]
  %v636 = vld [vmem:[%s2 + $0xd8] sm:$0xff]
  %v637 = vld [vmem:[%s2 + $0xe0] sm:$0xff]
  %v638 = vld [vmem:[%s2 + $0xe8] sm:$0xff]
  %v639 = vld [vmem:[%s2 + $0xf0] sm:$0xff]
  %v640 = vld [vmem:[%s2 + $0xf8] sm:$0xff]
  %v641 = vld [vmem:[%s2 + $0x100] sm:$0xff]
  %v642 = vld [vmem:[%s2 + $0x108] sm:$0xff]
  %v643 = vld [vmem:[%s2 + $0x110] sm:$0xff]
  %v644 = vld [vmem:[%s2 + $0x118] sm:$0xff]
  %v645 = vld [vmem:[%s2 + $0x120] sm:$0xff]
  %v646 = vld [vmem:[%s2 + $0x128] sm:$0xff]
  %v647 = vld [vmem:[%s2 + $0x130] sm:$0xff]
  %v648 = vld [vmem:[%s2 + $0x138] sm:$0xff]
  %v649 = vld [vmem:[%s2 + $0x140] sm:$0xff]
  %v650 = vld [vmem:[%s2 + $0x148] sm:$0xff]
  %v651 = vld [vmem:[%s2 + $0x150] sm:$0xff]
  %v652 = vld [vmem:[%s2 + $0x158] sm:$0xff]
  %v653 = vld [vmem:[%s2 + $0x160] sm:$0xff]
  %v654 = vld [vmem:[%s2 + $0x168] sm:$0xff]
  %v655 = vld [vmem:[%s2 + $0x170] sm:$0xff]
  %v656 = vld [vmem:[%s2 + $0x178] sm:$0xff]
  %v657 = vld [vmem:[%s2 + $0x180] sm:$0xff]
  %v658 = vld [vmem:[%s2 + $0x188] sm:$0xff]
  %v659 = vld [vmem:[%s2 + $0x190] sm:$0xff]
  %v660 = vld [vmem:[%s2 + $0x198] sm:$0xff]
  %v661 = vld [vmem:[%s2 + $0x1a0] sm:$0xff]
  %v662 = vld [vmem:[%s2 + $0x1a8] sm:$0xff]
  %v663 = vld [vmem:[%s2 + $0x1b0] sm:$0xff]
  %v664 = vld [vmem:[%s2 + $0x1b8] sm:$0xff]
  %v665 = vld [vmem:[%s2 + $0x1c0] sm:$0xff]
  %v666 = vld [vmem:[%s2 + $0x1c8] sm:$0xff]
  %v667 = vld [vmem:[%s2 + $0x1d0] sm:$0xff]
  %v668 = vld [vmem:[%s2 + $0x1d8] sm:$0xff]
  %v669 = vld [vmem:[%s2 + $0x1e0] sm:$0xff]
  %v670 = vld [vmem:[%s2 + $0x1e8] sm:$0xff]
  %v671 = vld [vmem:[%s2 + $0x1f0] sm:$0xff]
  %v672 = vld [vmem:[%s2 + $0x1f8] sm:$0xff]
  %673 = vmatprep.subr.mxu0 %v610
  %674 = vmatpush1.msra.mxu0 %v609
  %675 = vmatprep.subr.mxu0 %v614
  %676 = vmatpush1.msra.mxu0 %v613
  %677 = vmatprep.subr.mxu0 %v618
  %678 = vmatpush1.msra.mxu0 %v617
  %679 = vmatprep.subr.mxu0 %v622
  %680 = vmatpush1.msra.mxu0 %v621
  %681 = vmatprep.subr.mxu0 %v626
  %682 = vmatpush1.msra.mxu0 %v625
  %683 = vmatprep.subr.mxu0 %v630
  %684 = vmatpush1.msra.mxu0 %v629
  %685 = vmatprep.subr.mxu0 %v634
  %686 = vmatpush1.msra.mxu0 %v633
  %687 = vmatprep.subr.mxu0 %v638
  %688 = vmatpush1.msra.mxu0 %v637
  %689 = vmatprep.subr.mxu0 %v642
  %690 = vmatpush1.msra.mxu0 %v641
  %691 = vmatprep.subr.mxu0 %v646
  %692 = vmatpush1.msra.mxu0 %v645
  %693 = vmatprep.subr.mxu0 %v650
  %694 = vmatpush1.msra.mxu0 %v649
  %695 = vmatprep.subr.mxu0 %v654
  %696 = vmatpush1.msra.mxu0 %v653
  %697 = vmatprep.subr.mxu0 %v658
  %698 = vmatpush1.msra.mxu0 %v657
  %699 = vmatprep.subr.mxu0 %v662
  %700 = vmatpush1.msra.mxu0 %v661
  %701 = vmatprep.subr.mxu0 %v666
  %702 = vmatpush1.msra.mxu0 %v665
  %703 = vmatprep.subr.mxu0 %v670
  %704 = vmatpush1.msra.mxu0 %v669
  %705 = vmatprep.subr.mxu0 0.0
  %706 = vmatpush1.msra.mxu0 0.0
  %707 = vmatprep.subr.mxu0 0.0
  %708 = vmatpush1.msra.mxu0 0.0
  %709 = vmatprep.subr.mxu0 0.0
  %710 = vmatpush1.msra.mxu0 0.0
  %711 = vmatprep.subr.mxu0 0.0
  %712 = vmatpush1.msra.mxu0 0.0
  %713 = vmatprep.subr.mxu0 0.0
  %714 = vmatpush1.msra.mxu0 0.0
  %715 = vmatprep.subr.mxu0 0.0
  %716 = vmatpush1.msra.mxu0 0.0
  %717 = vmatprep.subr.mxu0 0.0
  %718 = vmatpush1.msra.mxu0 0.0
  %719 = vmatprep.subr.mxu0 0.0
  %720 = vmatpush1.msra.mxu0 0.0
  %721 = vmatprep.subr.mxu0 0.0
  %722 = vmatpush1.msra.mxu0 0.0
  %723 = vmatprep.subr.mxu0 0.0
  %724 = vmatpush1.msra.mxu0 0.0
  %725 = vmatprep.subr.mxu0 0.0
  %726 = vmatpush1.msra.mxu0 0.0
  %727 = vmatprep.subr.mxu0 0.0
  %728 = vmatpush1.msra.mxu0 0.0
  %729 = vmatprep.subr.mxu0 0.0
  %730 = vmatpush1.msra.mxu0 0.0
  %731 = vmatprep.subr.mxu0 0.0
  %732 = vmatpush1.msra.mxu0 0.0
  %733 = vmatprep.subr.mxu0 0.0
  %734 = vmatpush1.msra.mxu0 0.0
  %735 = vmatprep.subr.mxu0 0.0
  %736 = vmatpush1.msra.mxu0 0.0
  %737 = vmatprep.mubr.f32.mxu0 0.0
  %738 = vmatmul.mubr.f32.gmra.mrb[0].mxu0 %v600
  %v739 = vpop.f32.mrb[0].mxu0
  %v740 = vadd.f32 0.0, %v739
  %v741 = vpop.f32.mrb[0].mxu0
  %v742 = vadd.f32 0.0, %v741
  %743 = vdwg.mxu0
  %744 = vmatprep.subr.mxu0 %v612
  %745 = vmatpush1.msra.mxu0 %v611
  %746 = vmatprep.subr.mxu0 %v616
  %747 = vmatpush1.msra.mxu0 %v615
  %748 = vmatprep.subr.mxu0 %v620
  %749 = vmatpush1.msra.mxu0 %v619
  %750 = vmatprep.subr.mxu0 %v624
  %751 = vmatpush1.msra.mxu0 %v623
  %752 = vmatprep.subr.mxu0 %v628
  %753 = vmatpush1.msra.mxu0 %v627
  %754 = vmatprep.subr.mxu0 %v632
  %755 = vmatpush1.msra.mxu0 %v631
  %756 = vmatprep.subr.mxu0 %v636
  %757 = vmatpush1.msra.mxu0 %v635
  %758 = vmatprep.subr.mxu0 %v640
  %759 = vmatpush1.msra.mxu0 %v639
  %760 = vmatprep.subr.mxu0 %v644
  %761 = vmatpush1.msra.mxu0 %v643
  %762 = vmatprep.subr.mxu0 %v648
  %763 = vmatpush1.msra.mxu0 %v647
  %764 = vmatprep.subr.mxu0 %v652
  %765 = vmatpush1.msra.mxu0 %v651
  %766 = vmatprep.subr.mxu0 %v656
  %767 = vmatpush1.msra.mxu0 %v655
  %768 = vmatprep.subr.mxu0 %v660
  %769 = vmatpush1.msra.mxu0 %v659
  %770 = vmatprep.subr.mxu0 %v664
  %771 = vmatpush1.msra.mxu0 %v663
  %772 = vmatprep.subr.mxu0 %v668
  %773 = vmatpush1.msra.mxu0 %v667
  %774 = vmatprep.subr.mxu0 %v672
  %775 = vmatpush1.msra.mxu0 %v671
  %776 = vmatprep.subr.mxu0 0.0
  %777 = vmatpush1.msra.mxu0 0.0
  %778 = vmatprep.subr.mxu0 0.0
  %779 = vmatpush1.msra.mxu0 0.0
  %780 = vmatprep.subr.mxu0 0.0
  %781 = vmatpush1.msra.mxu0 0.0
  %782 = vmatprep.subr.mxu0 0.0
  %783 = vmatpush1.msra.mxu0 0.0
  %784 = vmatprep.subr.mxu0 0.0
  %785 = vmatpush1.msra.mxu0 0.0
  %786 = vmatprep.subr.mxu0 0.0
  %787 = vmatpush1.msra.mxu0 0.0
  %788 = vmatprep.subr.mxu0 0.0
  %789 = vmatpush1.msra.mxu0 0.0
  %790 = vmatprep.subr.mxu0 0.0
  %791 = vmatpush1.msra.mxu0 0.0
  %792 = vmatprep.subr.mxu0 0.0
  %793 = vmatpush1.msra.mxu0 0.0
  %794 = vmatprep.subr.mxu0 0.0
  %795 = vmatpush1.msra.mxu0 0.0
  %796 = vmatprep.subr.mxu0 0.0
  %797 = vmatpush1.msra.mxu0 0.0
  %798 = vmatprep.subr.mxu0 0.0
  %799 = vmatpush1.msra.mxu0 0.0
  %800 = vmatprep.subr.mxu0 0.0
  %801 = vmatpush1.msra.mxu0 0.0
  %802 = vmatprep.subr.mxu0 0.0
  %803 = vmatpush1.msra.mxu0 0.0
  %804 = vmatprep.subr.mxu0 0.0
  %805 = vmatpush1.msra.mxu0 0.0
  %806 = vmatprep.subr.mxu0 0.0
  %807 = vmatpush1.msra.mxu0 0.0
  %808 = vmatprep.mubr.f32.mxu0 0.0
  %809 = vmatmul.mubr.f32.gmra.mrb[0].mxu0 %v600
  %v810 = vpop.f32.mrb[0].mxu0
  %v811 = vadd.f32 0.0, %v810
  %v812 = vpop.f32.mrb[0].mxu0
  %v813 = vadd.f32 0.0, %v812
  %814 = vdwg.mxu0
  %v815 = vadd.f32 %v605, %v740
  %v816 = vadd.f32 %v606, %v742
  %v817 = vadd.f32 %v607, %v811
  %v818 = vadd.f32 %v608, %v813
  %v819 = vxor.u32 %v815, 2147483648
  %v820 = vxor.u32 %v816, 2147483648
  %v821 = vxor.u32 %v817, 2147483648
  %v822 = vmul.f32 %v819, 1.442695
  %v823 = vpow.pop %v822
  %v824 = vmul.f32 %v820, 1.442695
  %v825 = vpow.pop %v824
  %v826 = vmul.f32 %v821, 1.442695
  %v827 = vpow.pop %v826
  %v828 = vadd.f32 %v823, 1.0
  %v829 = vadd.f32 %v825, 1.0
  %v830 = vadd.f32 %v827, 1.0
  %v831 = vrcp.pop %v828
  %v832 = vmul.f32 1.0, %v831
  %v833 = vrcp.pop %v829
  %v834 = vmul.f32 1.0, %v833
  %v835 = vrcp.pop %v830
  %v836 = vmul.f32 1.0, %v835
  %v837 = vtanh.pop %v818
  %v838 = vmul.f32 %v834, %v598
  %v839 = vmul.f32 %v832, %v837
  %v840 = vadd.f32 %v838, %v839
  %v841 = vtanh.pop %v840
  %v842 = vmul.f32 %v836, %v841
  %s843 = scalar_lea.vmem [#allocation3], 8
  %844 = vst [vmem:[%s843] sm:$0xff] %v842
  %s845 = smul.u32 2, 4
  %s846 = smul.addr %s845, 8
  %s847 = scalar_lea.vmem [#allocation2], %s846
  %v848 = vld [vmem:[%s847] sm:$0xff]
  %v849 = vld [vmem:[%s847 + $0x8] sm:$0xff]
  %v850 = vld [vmem:[%s847 + $0x10] sm:$0xff]
  %v851 = vld [vmem:[%s847 + $0x18] sm:$0xff]
  %v852 = vld [vmem:[%s2] sm:$0xff]
  %v853 = vld [vmem:[%s2 + $0x8] sm:$0xff]
  %v854 = vld [vmem:[%s2 + $0x10] sm:$0xff]
  %v855 = vld [vmem:[%s2 + $0x18] sm:$0xff]
  %v856 = vld [vmem:[%s2 + $0x20] sm:$0xff]
  %v857 = vld [vmem:[%s2 + $0x28] sm:$0xff]
  %v858 = vld [vmem:[%s2 + $0x30] sm:$0xff]
  %v859 = vld [vmem:[%s2 + $0x38] sm:$0xff]
  %v860 = vld [vmem:[%s2 + $0x40] sm:$0xff]
  %v861 = vld [vmem:[%s2 + $0x48] sm:$0xff]
  %v862 = vld [vmem:[%s2 + $0x50] sm:$0xff]
  %v863 = vld [vmem:[%s2 + $0x58] sm:$0xff]
  %v864 = vld [vmem:[%s2 + $0x60] sm:$0xff]
  %v865 = vld [vmem:[%s2 + $0x68] sm:$0xff]
  %v866 = vld [vmem:[%s2 + $0x70] sm:$0xff]
  %v867 = vld [vmem:[%s2 + $0x78] sm:$0xff]
  %v868 = vld [vmem:[%s2 + $0x80] sm:$0xff]
  %v869 = vld [vmem:[%s2 + $0x88] sm:$0xff]
  %v870 = vld [vmem:[%s2 + $0x90] sm:$0xff]
  %v871 = vld [vmem:[%s2 + $0x98] sm:$0xff]
  %v872 = vld [vmem:[%s2 + $0xa0] sm:$0xff]
  %v873 = vld [vmem:[%s2 + $0xa8] sm:$0xff]
  %v874 = vld [vmem:[%s2 + $0xb0] sm:$0xff]
  %v875 = vld [vmem:[%s2 + $0xb8] sm:$0xff]
  %v876 = vld [vmem:[%s2 + $0xc0] sm:$0xff]
  %v877 = vld [vmem:[%s2 + $0xc8] sm:$0xff]
  %v878 = vld [vmem:[%s2 + $0xd0] sm:$0xff]
  %v879 = vld [vmem:[%s2 + $0xd8] sm:$0xff]
  %v880 = vld [vmem:[%s2 + $0xe0] sm:$0xff]
  %v881 = vld [vmem:[%s2 + $0xe8] sm:$0xff]
  %v882 = vld [vmem:[%s2 + $0xf0] sm:$0xff]
  %v883 = vld [vmem:[%s2 + $0xf8] sm:$0xff]
  %v884 = vld [vmem:[%s2 + $0x100] sm:$0xff]
  %v885 = vld [vmem:[%s2 + $0x108] sm:$0xff]
  %v886 = vld [vmem:[%s2 + $0x110] sm:$0xff]
  %v887 = vld [vmem:[%s2 + $0x118] sm:$0xff]
  %v888 = vld [vmem:[%s2 + $0x120] sm:$0xff]
  %v889 = vld [vmem:[%s2 + $0x128] sm:$0xff]
  %v890 = vld [vmem:[%s2 + $0x130] sm:$0xff]
  %v891 = vld [vmem:[%s2 + $0x138] sm:$0xff]
  %v892 = vld [vmem:[%s2 + $0x140] sm:$0xff]
  %v893 = vld [vmem:[%s2 + $0x148] sm:$0xff]
  %v894 = vld [vmem:[%s2 + $0x150] sm:$0xff]
  %v895 = vld [vmem:[%s2 + $0x158] sm:$0xff]
  %v896 = vld [vmem:[%s2 + $0x160] sm:$0xff]
  %v897 = vld [vmem:[%s2 + $0x168] sm:$0xff]
  %v898 = vld [vmem:[%s2 + $0x170] sm:$0xff]
  %v899 = vld [vmem:[%s2 + $0x178] sm:$0xff]
  %v900 = vld [vmem:[%s2 + $0x180] sm:$0xff]
  %v901 = vld [vmem:[%s2 + $0x188] sm:$0xff]
  %v902 = vld [vmem:[%s2 + $0x190] sm:$0xff]
  %v903 = vld [vmem:[%s2 + $0x198] sm:$0xff]
  %v904 = vld [vmem:[%s2 + $0x1a0] sm:$0xff]
  %v905 = vld [vmem:[%s2 + $0x1a8] sm:$0xff]
  %v906 = vld [vmem:[%s2 + $0x1b0] sm:$0xff]
  %v907 = vld [vmem:[%s2 + $0x1b8] sm:$0xff]
  %v908 = vld [vmem:[%s2 + $0x1c0] sm:$0xff]
  %v909 = vld [vmem:[%s2 + $0x1c8] sm:$0xff]
  %v910 = vld [vmem:[%s2 + $0x1d0] sm:$0xff]
  %v911 = vld [vmem:[%s2 + $0x1d8] sm:$0xff]
  %v912 = vld [vmem:[%s2 + $0x1e0] sm:$0xff]
  %v913 = vld [vmem:[%s2 + $0x1e8] sm:$0xff]
  %v914 = vld [vmem:[%s2 + $0x1f0] sm:$0xff]
  %v915 = vld [vmem:[%s2 + $0x1f8] sm:$0xff]
  %916 = vmatprep.subr.mxu0 %v853
  %917 = vmatpush1.msra.mxu0 %v852
  %918 = vmatprep.subr.mxu0 %v857
  %919 = vmatpush1.msra.mxu0 %v856
  %920 = vmatprep.subr.mxu0 %v861
  %921 = vmatpush1.msra.mxu0 %v860
  %922 = vmatprep.subr.mxu0 %v865
  %923 = vmatpush1.msra.mxu0 %v864
  %924 = vmatprep.subr.mxu0 %v869
  %925 = vmatpush1.msra.mxu0 %v868
  %926 = vmatprep.subr.mxu0 %v873
  %927 = vmatpush1.msra.mxu0 %v872
  %928 = vmatprep.subr.mxu0 %v877
  %929 = vmatpush1.msra.mxu0 %v876
  %930 = vmatprep.subr.mxu0 %v881
  %931 = vmatpush1.msra.mxu0 %v880
  %932 = vmatprep.subr.mxu0 %v885
  %933 = vmatpush1.msra.mxu0 %v884
  %934 = vmatprep.subr.mxu0 %v889
  %935 = vmatpush1.msra.mxu0 %v888
  %936 = vmatprep.subr.mxu0 %v893
  %937 = vmatpush1.msra.mxu0 %v892
  %938 = vmatprep.subr.mxu0 %v897
  %939 = vmatpush1.msra.mxu0 %v896
  %940 = vmatprep.subr.mxu0 %v901
  %941 = vmatpush1.msra.mxu0 %v900
  %942 = vmatprep.subr.mxu0 %v905
  %943 = vmatpush1.msra.mxu0 %v904
  %944 = vmatprep.subr.mxu0 %v909
  %945 = vmatpush1.msra.mxu0 %v908
  %946 = vmatprep.subr.mxu0 %v913
  %947 = vmatpush1.msra.mxu0 %v912
  %948 = vmatprep.subr.mxu0 0.0
  %949 = vmatpush1.msra.mxu0 0.0
  %950 = vmatprep.subr.mxu0 0.0
  %951 = vmatpush1.msra.mxu0 0.0
  %952 = vmatprep.subr.mxu0 0.0
  %953 = vmatpush1.msra.mxu0 0.0
  %954 = vmatprep.subr.mxu0 0.0
  %955 = vmatpush1.msra.mxu0 0.0
  %956 = vmatprep.subr.mxu0 0.0
  %957 = vmatpush1.msra.mxu0 0.0
  %958 = vmatprep.subr.mxu0 0.0
  %959 = vmatpush1.msra.mxu0 0.0
  %960 = vmatprep.subr.mxu0 0.0
  %961 = vmatpush1.msra.mxu0 0.0
  %962 = vmatprep.subr.mxu0 0.0
  %963 = vmatpush1.msra.mxu0 0.0
  %964 = vmatprep.subr.mxu0 0.0
  %965 = vmatpush1.msra.mxu0 0.0
  %966 = vmatprep.subr.mxu0 0.0
  %967 = vmatpush1.msra.mxu0 0.0
  %968 = vmatprep.subr.mxu0 0.0
  %969 = vmatpush1.msra.mxu0 0.0
  %970 = vmatprep.subr.mxu0 0.0
  %971 = vmatpush1.msra.mxu0 0.0
  %972 = vmatprep.subr.mxu0 0.0
  %973 = vmatpush1.msra.mxu0 0.0
  %974 = vmatprep.subr.mxu0 0.0
  %975 = vmatpush1.msra.mxu0 0.0
  %976 = vmatprep.subr.mxu0 0.0
  %977 = vmatpush1.msra.mxu0 0.0
  %978 = vmatprep.subr.mxu0 0.0
  %979 = vmatpush1.msra.mxu0 0.0
  %980 = vmatprep.mubr.f32.mxu0 0.0
  %981 = vmatmul.mubr.f32.gmra.mrb[0].mxu0 %v842
  %v982 = vpop.f32.mrb[0].mxu0
  %v983 = vadd.f32 0.0, %v982
  %v984 = vpop.f32.mrb[0].mxu0
  %v985 = vadd.f32 0.0, %v984
  %986 = vdwg.mxu0
  %987 = vmatprep.subr.mxu0 %v855
  %988 = vmatpush1.msra.mxu0 %v854
  %989 = vmatprep.subr.mxu0 %v859
  %990 = vmatpush1.msra.mxu0 %v858
  %991 = vmatprep.subr.mxu0 %v863
  %992 = vmatpush1.msra.mxu0 %v862
  %993 = vmatprep.subr.mxu0 %v867
  %994 = vmatpush1.msra.mxu0 %v866
  %995 = vmatprep.subr.mxu0 %v871
  %996 = vmatpush1.msra.mxu0 %v870
  %997 = vmatprep.subr.mxu0 %v875
  %998 = vmatpush1.msra.mxu0 %v874
  %999 = vmatprep.subr.mxu0 %v879
  %1000 = vmatpush1.msra.mxu0 %v878
  %1001 = vmatprep.subr.mxu0 %v883
  %1002 = vmatpush1.msra.mxu0 %v882
  %1003 = vmatprep.subr.mxu0 %v887
  %1004 = vmatpush1.msra.mxu0 %v886
  %1005 = vmatprep.subr.mxu0 %v891
  %1006 = vmatpush1.msra.mxu0 %v890
  %1007 = vmatprep.subr.mxu0 %v895
  %1008 = vmatpush1.msra.mxu0 %v894
  %1009 = vmatprep.subr.mxu0 %v899
  %1010 = vmatpush1.msra.mxu0 %v898
  %1011 = vmatprep.subr.mxu0 %v903
  %1012 = vmatpush1.msra.mxu0 %v902
  %1013 = vmatprep.subr.mxu0 %v907
  %1014 = vmatpush1.msra.mxu0 %v906
  %1015 = vmatprep.subr.mxu0 %v911
  %1016 = vmatpush1.msra.mxu0 %v910
  %1017 = vmatprep.subr.mxu0 %v915
  %1018 = vmatpush1.msra.mxu0 %v914
  %1019 = vmatprep.subr.mxu0 0.0
  %1020 = vmatpush1.msra.mxu0 0.0
  %1021 = vmatprep.subr.mxu0 0.0
  %1022 = vmatpush1.msra.mxu0 0.0
  %1023 = vmatprep.subr.mxu0 0.0
  %1024 = vmatpush1.msra.mxu0 0.0
  %1025 = vmatprep.subr.mxu0 0.0
  %1026 = vmatpush1.msra.mxu0 0.0
  %1027 = vmatprep.subr.mxu0 0.0
  %1028 = vmatpush1.msra.mxu0 0.0
  %1029 = vmatprep.subr.mxu0 0.0
  %1030 = vmatpush1.msra.mxu0 0.0
  %1031 = vmatprep.subr.mxu0 0.0
  %1032 = vmatpush1.msra.mxu0 0.0
  %1033 = vmatprep.subr.mxu0 0.0
  %1034 = vmatpush1.msra.mxu0 0.0
  %1035 = vmatprep.subr.mxu0 0.0
  %1036 = vmatpush1.msra.mxu0 0.0
  %1037 = vmatprep.subr.mxu0 0.0
  %1038 = vmatpush1.msra.mxu0 0.0
  %1039 = vmatprep.subr.mxu0 0.0
  %1040 = vmatpush1.msra.mxu0 0.0
  %1041 = vmatprep.subr.mxu0 0.0
  %1042 = vmatpush1.msra.mxu0 0.0
  %1043 = vmatprep.subr.mxu0 0.0
  %1044 = vmatpush1.msra.mxu0 0.0
  %1045 = vmatprep.subr.mxu0 0.0
  %1046 = vmatpush1.msra.mxu0 0.0
  %1047 = vmatprep.subr.mxu0 0.0
  %1048 = vmatpush1.msra.mxu0 0.0
  %1049 = vmatprep.subr.mxu0 0.0
  %1050 = vmatpush1.msra.mxu0 0.0
  %1051 = vmatprep.mubr.f32.mxu0 0.0
  %1052 = vmatmul.mubr.f32.gmra.mrb[0].mxu0 %v842
  %v1053 = vpop.f32.mrb[0].mxu0
  %v1054 = vadd.f32 0.0, %v1053
  %v1055 = vpop.f32.mrb[0].mxu0
  %v1056 = vadd.f32 0.0, %v1055
  %1057 = vdwg.mxu0
  %v1058 = vadd.f32 %v848, %v983
  %v1059 = vadd.f32 %v849, %v985
  %v1060 = vadd.f32 %v850, %v1054
  %v1061 = vadd.f32 %v851, %v1056
  %v1062 = vxor.u32 %v1058, 2147483648
  %v1063 = vxor.u32 %v1059, 2147483648
  %v1064 = vxor.u32 %v1060, 2147483648
  %v1065 = vmul.f32 %v1062, 1.442695
  %v1066 = vpow.pop %v1065
  %v1067 = vmul.f32 %v1063, 1.442695
  %v1068 = vpow.pop %v1067
  %v1069 = vmul.f32 %v1064, 1.442695
  %v1070 = vpow.pop %v1069
  %v1071 = vadd.f32 %v1066, 1.0
  %v1072 = vadd.f32 %v1068, 1.0
  %v1073 = vadd.f32 %v1070, 1.0
  %v1074 = vrcp.pop %v1071
  %v1075 = vmul.f32 1.0, %v1074
  %v1076 = vrcp.pop %v1072
  %v1077 = vmul.f32 1.0, %v1076
  %v1078 = vrcp.pop %v1073
  %v1079 = vmul.f32 1.0, %v1078
  %v1080 = vtanh.pop %v1061
  %v1081 = vmul.f32 %v1077, %v840
  %v1082 = vmul.f32 %v1075, %v1080
  %v1083 = vadd.f32 %v1081, %v1082
  %v1084 = vtanh.pop %v1083
  %v1085 = vmul.f32 %v1079, %v1084
  %s1086 = scalar_lea.vmem [#allocation3], 16
  %1087 = vst [vmem:[%s1086] sm:$0xff] %v1085
  %s1088 = smul.u32 3, 4
  %s1089 = smul.addr %s1088, 8
  %s1090 = scalar_lea.vmem [#allocation2], %s1089
  %v1091 = vld [vmem:[%s1090] sm:$0xff]
  %v1092 = vld [vmem:[%s1090 + $0x8] sm:$0xff]
  %v1093 = vld [vmem:[%s1090 + $0x10] sm:$0xff]
  %v1094 = vld [vmem:[%s1090 + $0x18] sm:$0xff]
  %v1095 = vld [vmem:[%s2] sm:$0xff]
  %v1096 = vld [vmem:[%s2 + $0x8] sm:$0xff]
  %v1097 = vld [vmem:[%s2 + $0x10] sm:$0xff]
  %v1098 = vld [vmem:[%s2 + $0x18] sm:$0xff]
  %v1099 = vld [vmem:[%s2 + $0x20] sm:$0xff]
  %v1100 = vld [vmem:[%s2 + $0x28] sm:$0xff]
  %v1101 = vld [vmem:[%s2 + $0x30] sm:$0xff]
  %v1102 = vld [vmem:[%s2 + $0x38] sm:$0xff]
  %v1103 = vld [vmem:[%s2 + $0x40] sm:$0xff]
  %v1104 = vld [vmem:[%s2 + $0x48] sm:$0xff]
  %v1105 = vld [vmem:[%s2 + $0x50] sm:$0xff]
  %v1106 = vld [vmem:[%s2 + $0x58] sm:$0xff]
  %v1107 = vld [vmem:[%s2 + $0x60] sm:$0xff]
  %v1108 = vld [vmem:[%s2 + $0x68] sm:$0xff]
  %v1109 = vld [vmem:[%s2 + $0x70] sm:$0xff]
  %v1110 = vld [vmem:[%s2 + $0x78] sm:$0xff]
  %v1111 = vld [vmem:[%s2 + $0x80] sm:$0xff]
  %v1112 = vld [vmem:[%s2 + $0x88] sm:$0xff]
  %v1113 = vld [vmem:[%s2 + $0x90] sm:$0xff]
  %v1114 = vld [vmem:[%s2 + $0x98] sm:$0xff]
  %v1115 = vld [vmem:[%s2 + $0xa0] sm:$0xff]
  %v1116 = vld [vmem:[%s2 + $0xa8] sm:$0xff]
  %v1117 = vld [vmem:[%s2 + $0xb0] sm:$0xff]
  %v1118 = vld [vmem:[%s2 + $0xb8] sm:$0xff]
  %v1119 = vld [vmem:[%s2 + $0xc0] sm:$0xff]
  %v1120 = vld [vmem:[%s2 + $0xc8] sm:$0xff]
  %v1121 = vld [vmem:[%s2 + $0xd0] sm:$0xff]
  %v1122 = vld [vmem:[%s2 + $0xd8] sm:$0xff]
  %v1123 = vld [vmem:[%s2 + $0xe0] sm:$0xff]
  %v1124 = vld [vmem:[%s2 + $0xe8] sm:$0xff]
  %v1125 = vld [vmem:[%s2 + $0xf0] sm:$0xff]
  %v1126 = vld [vmem:[%s2 + $0xf8] sm:$0xff]
  %v1127 = vld [vmem:[%s2 + $0x100] sm:$0xff]
  %v1128 = vld [vmem:[%s2 + $0x108] sm:$0xff]
  %v1129 = vld [vmem:[%s2 + $0x110] sm:$0xff]
  %v1130 = vld [vmem:[%s2 + $0x118] sm:$0xff]
  %v1131 = vld [vmem:[%s2 + $0x120] sm:$0xff]
  %v1132 = vld [vmem:[%s2 + $0x128] sm:$0xff]
  %v1133 = vld [vmem:[%s2 + $0x130] sm:$0xff]
  %v1134 = vld [vmem:[%s2 + $0x138] sm:$0xff]
  %v1135 = vld [vmem:[%s2 + $0x140] sm:$0xff]
  %v1136 = vld [vmem:[%s2 + $0x148] sm:$0xff]
  %v1137 = vld [vmem:[%s2 + $0x150] sm:$0xff]
  %v1138 = vld [vmem:[%s2 + $0x158] sm:$0xff]
  %v1139 = vld [vmem:[%s2 + $0x160] sm:$0xff]
  %v1140 = vld [vmem:[%s2 + $0x168] sm:$0xff]
  %v1141 = vld [vmem:[%s2 + $0x170] sm:$0xff]
  %v1142 = vld [vmem:[%s2 + $0x178] sm:$0xff]
  %v1143 = vld [vmem:[%s2 + $0x180] sm:$0xff]
  %v1144 = vld [vmem:[%s2 + $0x188] sm:$0xff]
  %v1145 = vld [vmem:[%s2 + $0x190] sm:$0xff]
  %v1146 = vld [vmem:[%s2 + $0x198] sm:$0xff]
  %v1147 = vld [vmem:[%s2 + $0x1a0] sm:$0xff]
  %v1148 = vld [vmem:[%s2 + $0x1a8] sm:$0xff]
  %v1149 = vld [vmem:[%s2 + $0x1b0] sm:$0xff]
  %v1150 = vld [vmem:[%s2 + $0x1b8] sm:$0xff]
  %v1151 = vld [vmem:[%s2 + $0x1c0] sm:$0xff]
  %v1152 = vld [vmem:[%s2 + $0x1c8] sm:$0xff]
  %v1153 = vld [vmem:[%s2 + $0x1d0] sm:$0xff]
  %v1154 = vld [vmem:[%s2 + $0x1d8] sm:$0xff]
  %v1155 = vld [vmem:[%s2 + $0x1e0] sm:$0xff]
  %v1156 = vld [vmem:[%s2 + $0x1e8] sm:$0xff]
  %v1157 = vld [vmem:[%s2 + $0x1f0] sm:$0xff]
  %v1158 = vld [vmem:[%s2 + $0x1f8] sm:$0xff]
  %1159 = vmatprep.subr.mxu0 %v1096
  %1160 = vmatpush1.msra.mxu0 %v1095
  %1161 = vmatprep.subr.mxu0 %v1100
  %1162 = vmatpush1.msra.mxu0 %v1099
  %1163 = vmatprep.subr.mxu0 %v1104
  %1164 = vmatpush1.msra.mxu0 %v1103
  %1165 = vmatprep.subr.mxu0 %v1108
  %1166 = vmatpush1.msra.mxu0 %v1107
  %1167 = vmatprep.subr.mxu0 %v1112
  %1168 = vmatpush1.msra.mxu0 %v1111
  %1169 = vmatprep.subr.mxu0 %v1116
  %1170 = vmatpush1.msra.mxu0 %v1115
  %1171 = vmatprep.subr.mxu0 %v1120
  %1172 = vmatpush1.msra.mxu0 %v1119
  %1173 = vmatprep.subr.mxu0 %v1124
  %1174 = vmatpush1.msra.mxu0 %v1123
  %1175 = vmatprep.subr.mxu0 %v1128
  %1176 = vmatpush1.msra.mxu0 %v1127
  %1177 = vmatprep.subr.mxu0 %v1132
  %1178 = vmatpush1.msra.mxu0 %v1131
  %1179 = vmatprep.subr.mxu0 %v1136
  %1180 = vmatpush1.msra.mxu0 %v1135
  %1181 = vmatprep.subr.mxu0 %v1140
  %1182 = vmatpush1.msra.mxu0 %v1139
  %1183 = vmatprep.subr.mxu0 %v1144
  %1184 = vmatpush1.msra.mxu0 %v1143
  %1185 = vmatprep.subr.mxu0 %v1148
  %1186 = vmatpush1.msra.mxu0 %v1147
  %1187 = vmatprep.subr.mxu0 %v1152
  %1188 = vmatpush1.msra.mxu0 %v1151
  %1189 = vmatprep.subr.mxu0 %v1156
  %1190 = vmatpush1.msra.mxu0 %v1155
  %1191 = vmatprep.subr.mxu0 0.0
  %1192 = vmatpush1.msra.mxu0 0.0
  %1193 = vmatprep.subr.mxu0 0.0
  %1194 = vmatpush1.msra.mxu0 0.0
  %1195 = vmatprep.subr.mxu0 0.0
  %1196 = vmatpush1.msra.mxu0 0.0
  %1197 = vmatprep.subr.mxu0 0.0
  %1198 = vmatpush1.msra.mxu0 0.0
  %1199 = vmatprep.subr.mxu0 0.0
  %1200 = vmatpush1.msra.mxu0 0.0
  %1201 = vmatprep.subr.mxu0 0.0
  %1202 = vmatpush1.msra.mxu0 0.0
  %1203 = vmatprep.subr.mxu0 0.0
  %1204 = vmatpush1.msra.mxu0 0.0
  %1205 = vmatprep.subr.mxu0 0.0
  %1206 = vmatpush1.msra.mxu0 0.0
  %1207 = vmatprep.subr.mxu0 0.0
  %1208 = vmatpush1.msra.mxu0 0.0
  %1209 = vmatprep.subr.mxu0 0.0
  %1210 = vmatpush1.msra.mxu0 0.0
  %1211 = vmatprep.subr.mxu0 0.0
  %1212 = vmatpush1.msra.mxu0 0.0
  %1213 = vmatprep.subr.mxu0 0.0
  %1214 = vmatpush1.msra.mxu0 0.0
  %1215 = vmatprep.subr.mxu0 0.0
  %1216 = vmatpush1.msra.mxu0 0.0
  %1217 = vmatprep.subr.mxu0 0.0
  %1218 = vmatpush1.msra.mxu0 0.0
  %1219 = vmatprep.subr.mxu0 0.0
  %1220 = vmatpush1.msra.mxu0 0.0
  %1221 = vmatprep.subr.mxu0 0.0
  %1222 = vmatpush1.msra.mxu0 0.0
  %1223 = vmatprep.mubr.f32.mxu0 0.0
  %1224 = vmatmul.mubr.f32.gmra.mrb[0].mxu0 %v1085
  %v1225 = vpop.f32.mrb[0].mxu0
  %v1226 = vadd.f32 0.0, %v1225
  %v1227 = vpop.f32.mrb[0].mxu0
  %v1228 = vadd.f32 0.0, %v1227
  %1229 = vdwg.mxu0
  %1230 = vmatprep.subr.mxu0 %v1098
  %1231 = vmatpush1.msra.mxu0 %v1097
  %1232 = vmatprep.subr.mxu0 %v1102
  %1233 = vmatpush1.msra.mxu0 %v1101
  %1234 = vmatprep.subr.mxu0 %v1106
  %1235 = vmatpush1.msra.mxu0 %v1105
  %1236 = vmatprep.subr.mxu0 %v1110
  %1237 = vmatpush1.msra.mxu0 %v1109
  %1238 = vmatprep.subr.mxu0 %v1114
  %1239 = vmatpush1.msra.mxu0 %v1113
  %1240 = vmatprep.subr.mxu0 %v1118
  %1241 = vmatpush1.msra.mxu0 %v1117
  %1242 = vmatprep.subr.mxu0 %v1122
  %1243 = vmatpush1.msra.mxu0 %v1121
  %1244 = vmatprep.subr.mxu0 %v1126
  %1245 = vmatpush1.msra.mxu0 %v1125
  %1246 = vmatprep.subr.mxu0 %v1130
  %1247 = vmatpush1.msra.mxu0 %v1129
  %1248 = vmatprep.subr.mxu0 %v1134
  %1249 = vmatpush1.msra.mxu0 %v1133
  %1250 = vmatprep.subr.mxu0 %v1138
  %1251 = vmatpush1.msra.mxu0 %v1137
  %1252 = vmatprep.subr.mxu0 %v1142
  %1253 = vmatpush1.msra.mxu0 %v1141
  %1254 = vmatprep.subr.mxu0 %v1146
  %1255 = vmatpush1.msra.mxu0 %v1145
  %1256 = vmatprep.subr.mxu0 %v1150
  %1257 = vmatpush1.msra.mxu0 %v1149
  %1258 = vmatprep.subr.mxu0 %v1154
  %1259 = vmatpush1.msra.mxu0 %v1153
  %1260 = vmatprep.subr.mxu0 %v1158
  %1261 = vmatpush1.msra.mxu0 %v1157
  %1262 = vmatprep.subr.mxu0 0.0
  %1263 = vmatpush1.msra.mxu0 0.0
  %1264 = vmatprep.subr.mxu0 0.0
  %1265 = vmatpush1.msra.mxu0 0.0
  %1266 = vmatprep.subr.mxu0 0.0
  %1267 = vmatpush1.msra.mxu0 0.0
  %1268 = vmatprep.subr.mxu0 0.0
  %1269 = vmatpush1.msra.mxu0 0.0
  %1270 = vmatprep.subr.mxu0 0.0
  %1271 = vmatpush1.msra.mxu0 0.0
  %1272 = vmatprep.subr.mxu0 0.0
  %1273 = vmatpush1.msra.mxu0 0.0
  %1274 = vmatprep.subr.mxu0 0.0
  %1275 = vmatpush1.msra.mxu0 0.0
  %1276 = vmatprep.subr.mxu0 0.0
  %1277 = vmatpush1.msra.mxu0 0.0
  %1278 = vmatprep.subr.mxu0 0.0
  %1279 = vmatpush1.msra.mxu0 0.0
  %1280 = vmatprep.subr.mxu0 0.0
  %1281 = vmatpush1.msra.mxu0 0.0
  %1282 = vmatprep.subr.mxu0 0.0
  %1283 = vmatpush1.msra.mxu0 0.0
  %1284 = vmatprep.subr.mxu0 0.0
  %1285 = vmatpush1.msra.mxu0 0.0
  %1286 = vmatprep.subr.mxu0 0.0
  %1287 = vmatpush1.msra.mxu0 0.0
  %1288 = vmatprep.subr.mxu0 0.0
  %1289 = vmatpush1.msra.mxu0 0.0
  %1290 = vmatprep.subr.mxu0 0.0
  %1291 = vmatpush1.msra.mxu0 0.0
  %1292 = vmatprep.subr.mxu0 0.0
  %1293 = vmatpush1.msra.mxu0 0.0
  %1294 = vmatprep.mubr.f32.mxu0 0.0
  %1295 = vmatmul.mubr.f32.gmra.mrb[0].mxu0 %v1085
  %v1296 = vpop.f32.mrb[0].mxu0
  %v1297 = vadd.f32 0.0, %v1296
  %v1298 = vpop.f32.mrb[0].mxu0
  %v1299 = vadd.f32 0.0, %v1298
  %1300 = vdwg.mxu0
  %v1301 = vadd.f32 %v1091, %v1226
  %v1302 = vadd.f32 %v1092, %v1228
  %v1303 = vadd.f32 %v1093, %v1297
  %v1304 = vadd.f32 %v1094, %v1299
  %v1305 = vxor.u32 %v1301, 2147483648
  %v1306 = vxor.u32 %v1302, 2147483648
  %v1307 = vxor.u32 %v1303, 2147483648
  %v1308 = vmul.f32 %v1305, 1.442695
  %v1309 = vpow.pop %v1308
  %v1310 = vmul.f32 %v1306, 1.442695
  %v1311 = vpow.pop %v1310
  %v1312 = vmul.f32 %v1307, 1.442695
  %v1313 = vpow.pop %v1312
  %v1314 = vadd.f32 %v1309, 1.0
  %v1315 = vadd.f32 %v1311, 1.0
  %v1316 = vadd.f32 %v1313, 1.0
  %v1317 = vrcp.pop %v1314
  %v1318 = vmul.f32 1.0, %v1317
  %v1319 = vrcp.pop %v1315
  %v1320 = vmul.f32 1.0, %v1319
  %v1321 = vrcp.pop %v1316
  %v1322 = vmul.f32 1.0, %v1321
  %v1323 = vtanh.pop %v1304
  %v1324 = vmul.f32 %v1320, %v1083
  %v1325 = vmul.f32 %v1318, %v1323
  %v1326 = vadd.f32 %v1324, %v1325
  %v1327 = vtanh.pop %v1326
  %v1328 = vmul.f32 %v1322, %v1327
  %s1329 = scalar_lea.vmem [#allocation3], 24
  %1330 = vst [vmem:[%s1329] sm:$0xff] %v1328
  %s1331 = smul.u32 4, 4
  %s1332 = smul.addr %s1331, 8
  %s1333 = scalar_lea.vmem [#allocation2], %s1332
  %v1334 = vld [vmem:[%s1333] sm:$0xff]
  %v1335 = vld [vmem:[%s1333 + $0x8] sm:$0xff]
  %v1336 = vld [vmem:[%s1333 + $0x10] sm:$0xff]
  %v1337 = vld [vmem:[%s1333 + $0x18] sm:$0xff]
  %v1338 = vld [vmem:[%s2] sm:$0xff]
  %v1339 = vld [vmem:[%s2 + $0x8] sm:$0xff]
  %v1340 = vld [vmem:[%s2 + $0x10] sm:$0xff]
  %v1341 = vld [vmem:[%s2 + $0x18] sm:$0xff]
  %v1342 = vld [vmem:[%s2 + $0x20] sm:$0xff]
  %v1343 = vld [vmem:[%s2 + $0x28] sm:$0xff]
  %v1344 = vld [vmem:[%s2 + $0x30] sm:$0xff]
  %v1345 = vld [vmem:[%s2 + $0x38] sm:$0xff]
  %v1346 = vld [vmem:[%s2 + $0x40] sm:$0xff]
  %v1347 = vld [vmem:[%s2 + $0x48] sm:$0xff]
  %v1348 = vld [vmem:[%s2 + $0x50] sm:$0xff]
  %v1349 = vld [vmem:[%s2 + $0x58] sm:$0xff]
  %v1350 = vld [vmem:[%s2 + $0x60] sm:$0xff]
  %v1351 = vld [vmem:[%s2 + $0x68] sm:$0xff]
  %v1352 = vld [vmem:[%s2 + $0x70] sm:$0xff]
  %v1353 = vld [vmem:[%s2 + $0x78] sm:$0xff]
  %v1354 = vld [vmem:[%s2 + $0x80] sm:$0xff]
  %v1355 = vld [vmem:[%s2 + $0x88] sm:$0xff]
  %v1356 = vld [vmem:[%s2 + $0x90] sm:$0xff]
  %v1357 = vld [vmem:[%s2 + $0x98] sm:$0xff]
  %v1358 = vld [vmem:[%s2 + $0xa0] sm:$0xff]
  %v1359 = vld [vmem:[%s2 + $0xa8] sm:$0xff]
  %v1360 = vld [vmem:[%s2 + $0xb0] sm:$0xff]
  %v1361 = vld [vmem:[%s2 + $0xb8] sm:$0xff]
  %v1362 = vld [vmem:[%s2 + $0xc0] sm:$0xff]
  %v1363 = vld [vmem:[%s2 + $0xc8] sm:$0xff]
  %v1364 = vld [vmem:[%s2 + $0xd0] sm:$0xff]
  %v1365 = vld [vmem:[%s2 + $0xd8] sm:$0xff]
  %v1366 = vld [vmem:[%s2 + $0xe0] sm:$0xff]
  %v1367 = vld [vmem:[%s2 + $0xe8] sm:$0xff]
  %v1368 = vld [vmem:[%s2 + $0xf0] sm:$0xff]
  %v1369 = vld [vmem:[%s2 + $0xf8] sm:$0xff]
  %v1370 = vld [vmem:[%s2 + $0x100] sm:$0xff]
  %v1371 = vld [vmem:[%s2 + $0x108] sm:$0xff]
  %v1372 = vld [vmem:[%s2 + $0x110] sm:$0xff]
  %v1373 = vld [vmem:[%s2 + $0x118] sm:$0xff]
  %v1374 = vld [vmem:[%s2 + $0x120] sm:$0xff]
  %v1375 = vld [vmem:[%s2 + $0x128] sm:$0xff]
  %v1376 = vld [vmem:[%s2 + $0x130] sm:$0xff]
  %v1377 = vld [vmem:[%s2 + $0x138] sm:$0xff]
  %v1378 = vld [vmem:[%s2 + $0x140] sm:$0xff]
  %v1379 = vld [vmem:[%s2 + $0x148] sm:$0xff]
  %v1380 = vld [vmem:[%s2 + $0x150] sm:$0xff]
  %v1381 = vld [vmem:[%s2 + $0x158] sm:$0xff]
  %v1382 = vld [vmem:[%s2 + $0x160] sm:$0xff]
  %v1383 = vld [vmem:[%s2 + $0x168] sm:$0xff]
  %v1384 = vld [vmem:[%s2 + $0x170] sm:$0xff]
  %v1385 = vld [vmem:[%s2 + $0x178] sm:$0xff]
  %v1386 = vld [vmem:[%s2 + $0x180] sm:$0xff]
  %v1387 = vld [vmem:[%s2 + $0x188] sm:$0xff]
  %v1388 = vld [vmem:[%s2 + $0x190] sm:$0xff]
  %v1389 = vld [vmem:[%s2 + $0x198] sm:$0xff]
  %v1390 = vld [vmem:[%s2 + $0x1a0] sm:$0xff]
  %v1391 = vld [vmem:[%s2 + $0x1a8] sm:$0xff]
  %v1392 = vld [vmem:[%s2 + $0x1b0] sm:$0xff]
  %v1393 = vld [vmem:[%s2 + $0x1b8] sm:$0xff]
  %v1394 = vld [vmem:[%s2 + $0x1c0] sm:$0xff]
  %v1395 = vld [vmem:[%s2 + $0x1c8] sm:$0xff]
  %v1396 = vld [vmem:[%s2 + $0x1d0] sm:$0xff]
  %v1397 = vld [vmem:[%s2 + $0x1d8] sm:$0xff]
  %v1398 = vld [vmem:[%s2 + $0x1e0] sm:$0xff]
  %v1399 = vld [vmem:[%s2 + $0x1e8] sm:$0xff]
  %v1400 = vld [vmem:[%s2 + $0x1f0] sm:$0xff]
  %v1401 = vld [vmem:[%s2 + $0x1f8] sm:$0xff]
  %1402 = vmatprep.subr.mxu0 %v1339
  %1403 = vmatpush1.msra.mxu0 %v1338
  %1404 = vmatprep.subr.mxu0 %v1343
  %1405 = vmatpush1.msra.mxu0 %v1342
  %1406 = vmatprep.subr.mxu0 %v1347
  %1407 = vmatpush1.msra.mxu0 %v1346
  %1408 = vmatprep.subr.mxu0 %v1351
  %1409 = vmatpush1.msra.mxu0 %v1350
  %1410 = vmatprep.subr.mxu0 %v1355
  %1411 = vmatpush1.msra.mxu0 %v1354
  %1412 = vmatprep.subr.mxu0 %v1359
  %1413 = vmatpush1.msra.mxu0 %v1358
  %1414 = vmatprep.subr.mxu0 %v1363
  %1415 = vmatpush1.msra.mxu0 %v1362
  %1416 = vmatprep.subr.mxu0 %v1367
  %1417 = vmatpush1.msra.mxu0 %v1366
  %1418 = vmatprep.subr.mxu0 %v1371
  %1419 = vmatpush1.msra.mxu0 %v1370
  %1420 = vmatprep.subr.mxu0 %v1375
  %1421 = vmatpush1.msra.mxu0 %v1374
  %1422 = vmatprep.subr.mxu0 %v1379
  %1423 = vmatpush1.msra.mxu0 %v1378
  %1424 = vmatprep.subr.mxu0 %v1383
  %1425 = vmatpush1.msra.mxu0 %v1382
  %1426 = vmatprep.subr.mxu0 %v1387
  %1427 = vmatpush1.msra.mxu0 %v1386
  %1428 = vmatprep.subr.mxu0 %v1391
  %1429 = vmatpush1.msra.mxu0 %v1390
  %1430 = vmatprep.subr.mxu0 %v1395
  %1431 = vmatpush1.msra.mxu0 %v1394
  %1432 = vmatprep.subr.mxu0 %v1399
  %1433 = vmatpush1.msra.mxu0 %v1398
  %1434 = vmatprep.subr.mxu0 0.0
  %1435 = vmatpush1.msra.mxu0 0.0
  %1436 = vmatprep.subr.mxu0 0.0
  %1437 = vmatpush1.msra.mxu0 0.0
  %1438 = vmatprep.subr.mxu0 0.0
  %1439 = vmatpush1.msra.mxu0 0.0
  %1440 = vmatprep.subr.mxu0 0.0
  %1441 = vmatpush1.msra.mxu0 0.0
  %1442 = vmatprep.subr.mxu0 0.0
  %1443 = vmatpush1.msra.mxu0 0.0
  %1444 = vmatprep.subr.mxu0 0.0
  %1445 = vmatpush1.msra.mxu0 0.0
  %1446 = vmatprep.subr.mxu0 0.0
  %1447 = vmatpush1.msra.mxu0 0.0
  %1448 = vmatprep.subr.mxu0 0.0
  %1449 = vmatpush1.msra.mxu0 0.0
  %1450 = vmatprep.subr.mxu0 0.0
  %1451 = vmatpush1.msra.mxu0 0.0
  %1452 = vmatprep.subr.mxu0 0.0
  %1453 = vmatpush1.msra.mxu0 0.0
  %1454 = vmatprep.subr.mxu0 0.0
  %1455 = vmatpush1.msra.mxu0 0.0
  %1456 = vmatprep.subr.mxu0 0.0
  %1457 = vmatpush1.msra.mxu0 0.0
  %1458 = vmatprep.subr.mxu0 0.0
  %1459 = vmatpush1.msra.mxu0 0.0
  %1460 = vmatprep.subr.mxu0 0.0
  %1461 = vmatpush1.msra.mxu0 0.0
  %1462 = vmatprep.subr.mxu0 0.0
  %1463 = vmatpush1.msra.mxu0 0.0
  %1464 = vmatprep.subr.mxu0 0.0
  %1465 = vmatpush1.msra.mxu0 0.0
  %1466 = vmatprep.mubr.f32.mxu0 0.0
  %1467 = vmatmul.mubr.f32.gmra.mrb[0].mxu0 %v1328
  %v1468 = vpop.f32.mrb[0].mxu0
  %v1469 = vadd.f32 0.0, %v1468
  %v1470 = vpop.f32.mrb[0].mxu0
  %v1471 = vadd.f32 0.0, %v1470
  %1472 = vdwg.mxu0
  %1473 = vmatprep.subr.mxu0 %v1341
  %1474 = vmatpush1.msra.mxu0 %v1340
  %1475 = vmatprep.subr.mxu0 %v1345
  %1476 = vmatpush1.msra.mxu0 %v1344
  %1477 = vmatprep.subr.mxu0 %v1349
  %1478 = vmatpush1.msra.mxu0 %v1348
  %1479 = vmatprep.subr.mxu0 %v1353
  %1480 = vmatpush1.msra.mxu0 %v1352
  %1481 = vmatprep.subr.mxu0 %v1357
  %1482 = vmatpush1.msra.mxu0 %v1356
  %1483 = vmatprep.subr.mxu0 %v1361
  %1484 = vmatpush1.msra.mxu0 %v1360
  %1485 = vmatprep.subr.mxu0 %v1365
  %1486 = vmatpush1.msra.mxu0 %v1364
  %1487 = vmatprep.subr.mxu0 %v1369
  %1488 = vmatpush1.msra.mxu0 %v1368
  %1489 = vmatprep.subr.mxu0 %v1373
  %1490 = vmatpush1.msra.mxu0 %v1372
  %1491 = vmatprep.subr.mxu0 %v1377
  %1492 = vmatpush1.msra.mxu0 %v1376
  %1493 = vmatprep.subr.mxu0 %v1381
  %1494 = vmatpush1.msra.mxu0 %v1380
  %1495 = vmatprep.subr.mxu0 %v1385
  %1496 = vmatpush1.msra.mxu0 %v1384
  %1497 = vmatprep.subr.mxu0 %v1389
  %1498 = vmatpush1.msra.mxu0 %v1388
  %1499 = vmatprep.subr.mxu0 %v1393
  %1500 = vmatpush1.msra.mxu0 %v1392
  %1501 = vmatprep.subr.mxu0 %v1397
  %1502 = vmatpush1.msra.mxu0 %v1396
  %1503 = vmatprep.subr.mxu0 %v1401
  %1504 = vmatpush1.msra.mxu0 %v1400
  %1505 = vmatprep.subr.mxu0 0.0
  %1506 = vmatpush1.msra.mxu0 0.0
  %1507 = vmatprep.subr.mxu0 0.0
  %1508 = vmatpush1.msra.mxu0 0.0
  %1509 = vmatprep.subr.mxu0 0.0
  %1510 = vmatpush1.msra.mxu0 0.0
  %1511 = vmatprep.subr.mxu0 0.0
  %1512 = vmatpush1.msra.mxu0 0.0
  %1513 = vmatprep.subr.mxu0 0.0
  %1514 = vmatpush1.msra.mxu0 0.0
  %1515 = vmatprep.subr.mxu0 0.0
  %1516 = vmatpush1.msra.mxu0 0.0
  %1517 = vmatprep.subr.mxu0 0.0
  %1518 = vmatpush1.msra.mxu0 0.0
  %1519 = vmatprep.subr.mxu0 0.0
  %1520 = vmatpush1.msra.mxu0 0.0
  %1521 = vmatprep.subr.mxu0 0.0
  %1522 = vmatpush1.msra.mxu0 0.0
  %1523 = vmatprep.subr.mxu0 0.0
  %1524 = vmatpush1.msra.mxu0 0.0
  %1525 = vmatprep.subr.mxu0 0.0
  %1526 = vmatpush1.msra.mxu0 0.0
  %1527 = vmatprep.subr.mxu0 0.0
  %1528 = vmatpush1.msra.mxu0 0.0
  %1529 = vmatprep.subr.mxu0 0.0
  %1530 = vmatpush1.msra.mxu0 0.0
  %1531 = vmatprep.subr.mxu0 0.0
  %1532 = vmatpush1.msra.mxu0 0.0
  %1533 = vmatprep.subr.mxu0 0.0
  %1534 = vmatpush1.msra.mxu0 0.0
  %1535 = vmatprep.subr.mxu0 0.0
  %1536 = vmatpush1.msra.mxu0 0.0
  %1537 = vmatprep.mubr.f32.mxu0 0.0
  %1538 = vmatmul.mubr.f32.gmra.mrb[0].mxu0 %v1328
  %v1539 = vpop.f32.mrb[0].mxu0
  %v1540 = vadd.f32 0.0, %v1539
  %v1541 = vpop.f32.mrb[0].mxu0
  %v1542 = vadd.f32 0.0, %v1541
  %1543 = vdwg.mxu0
  %v1544 = vadd.f32 %v1334, %v1469
  %v1545 = vadd.f32 %v1335, %v1471
  %v1546 = vadd.f32 %v1336, %v1540
  %v1547 = vadd.f32 %v1337, %v1542
  %v1548 = vxor.u32 %v1544, 2147483648
  %v1549 = vxor.u32 %v1545, 2147483648
  %v1550 = vxor.u32 %v1546, 2147483648
  %v1551 = vmul.f32 %v1548, 1.442695
  %v1552 = vpow.pop %v1551
  %v1553 = vmul.f32 %v1549, 1.442695
  %v1554 = vpow.pop %v1553
  %v1555 = vmul.f32 %v1550, 1.442695
  %v1556 = vpow.pop %v1555
  %v1557 = vadd.f32 %v1552, 1.0
  %v1558 = vadd.f32 %v1554, 1.0
  %v1559 = vadd.f32 %v1556, 1.0
  %v1560 = vrcp.pop %v1557
  %v1561 = vmul.f32 1.0, %v1560
  %v1562 = vrcp.pop %v1558
  %v1563 = vmul.f32 1.0, %v1562
  %v1564 = vrcp.pop %v1559
  %v1565 = vmul.f32 1.0, %v1564
  %v1566 = vtanh.pop %v1547
  %v1567 = vmul.f32 %v1563, %v1326
  %v1568 = vmul.f32 %v1561, %v1566
  %v1569 = vadd.f32 %v1567, %v1568
  %v1570 = vtanh.pop %v1569
  %v1571 = vmul.f32 %v1565, %v1570
  %s1572 = scalar_lea.vmem [#allocation3], 32
  %1573 = vst [vmem:[%s1572] sm:$0xff] %v1571
  %s1574 = smul.u32 5, 4
  %s1575 = smul.addr %s1574, 8
  %s1576 = scalar_lea.vmem [#allocation2], %s1575
  %v1577 = vld [vmem:[%s1576] sm:$0xff]
  %v1578 = vld [vmem:[%s1576 + $0x8] sm:$0xff]
  %v1579 = vld [vmem:[%s1576 + $0x10] sm:$0xff]
  %v1580 = vld [vmem:[%s1576 + $0x18] sm:$0xff]
  %v1581 = vld [vmem:[%s2] sm:$0xff]
  %v1582 = vld [vmem:[%s2 + $0x8] sm:$0xff]
  %v1583 = vld [vmem:[%s2 + $0x10] sm:$0xff]
  %v1584 = vld [vmem:[%s2 + $0x18] sm:$0xff]
  %v1585 = vld [vmem:[%s2 + $0x20] sm:$0xff]
  %v1586 = vld [vmem:[%s2 + $0x28] sm:$0xff]
  %v1587 = vld [vmem:[%s2 + $0x30] sm:$0xff]
  %v1588 = vld [vmem:[%s2 + $0x38] sm:$0xff]
  %v1589 = vld [vmem:[%s2 + $0x40] sm:$0xff]
  %v1590 = vld [vmem:[%s2 + $0x48] sm:$0xff]
  %v1591 = vld [vmem:[%s2 + $0x50] sm:$0xff]
  %v1592 = vld [vmem:[%s2 + $0x58] sm:$0xff]
  %v1593 = vld [vmem:[%s2 + $0x60] sm:$0xff]
  %v1594 = vld [vmem:[%s2 + $0x68] sm:$0xff]
  %v1595 = vld [vmem:[%s2 + $0x70] sm:$0xff]
  %v1596 = vld [vmem:[%s2 + $0x78] sm:$0xff]
  %v1597 = vld [vmem:[%s2 + $0x80] sm:$0xff]
  %v1598 = vld [vmem:[%s2 + $0x88] sm:$0xff]
  %v1599 = vld [vmem:[%s2 + $0x90] sm:$0xff]
  %v1600 = vld [vmem:[%s2 + $0x98] sm:$0xff]
  %v1601 = vld [vmem:[%s2 + $0xa0] sm:$0xff]
  %v1602 = vld [vmem:[%s2 + $0xa8] sm:$0xff]
  %v1603 = vld [vmem:[%s2 + $0xb0] sm:$0xff]
  %v1604 = vld [vmem:[%s2 + $0xb8] sm:$0xff]
  %v1605 = vld [vmem:[%s2 + $0xc0] sm:$0xff]
  %v1606 = vld [vmem:[%s2 + $0xc8] sm:$0xff]
  %v1607 = vld [vmem:[%s2 + $0xd0] sm:$0xff]
  %v1608 = vld [vmem:[%s2 + $0xd8] sm:$0xff]
  %v1609 = vld [vmem:[%s2 + $0xe0] sm:$0xff]
  %v1610 = vld [vmem:[%s2 + $0xe8] sm:$0xff]
  %v1611 = vld [vmem:[%s2 + $0xf0] sm:$0xff]
  %v1612 = vld [vmem:[%s2 + $0xf8] sm:$0xff]
  %v1613 = vld [vmem:[%s2 + $0x100] sm:$0xff]
  %v1614 = vld [vmem:[%s2 + $0x108] sm:$0xff]
  %v1615 = vld [vmem:[%s2 + $0x110] sm:$0xff]
  %v1616 = vld [vmem:[%s2 + $0x118] sm:$0xff]
  %v1617 = vld [vmem:[%s2 + $0x120] sm:$0xff]
  %v1618 = vld [vmem:[%s2 + $0x128] sm:$0xff]
  %v1619 = vld [vmem:[%s2 + $0x130] sm:$0xff]
  %v1620 = vld [vmem:[%s2 + $0x138] sm:$0xff]
  %v1621 = vld [vmem:[%s2 + $0x140] sm:$0xff]
  %v1622 = vld [vmem:[%s2 + $0x148] sm:$0xff]
  %v1623 = vld [vmem:[%s2 + $0x150] sm:$0xff]
  %v1624 = vld [vmem:[%s2 + $0x158] sm:$0xff]
  %v1625 = vld [vmem:[%s2 + $0x160] sm:$0xff]
  %v1626 = vld [vmem:[%s2 + $0x168] sm:$0xff]
  %v1627 = vld [vmem:[%s2 + $0x170] sm:$0xff]
  %v1628 = vld [vmem:[%s2 + $0x178] sm:$0xff]
  %v1629 = vld [vmem:[%s2 + $0x180] sm:$0xff]
  %v1630 = vld [vmem:[%s2 + $0x188] sm:$0xff]
  %v1631 = vld [vmem:[%s2 + $0x190] sm:$0xff]
  %v1632 = vld [vmem:[%s2 + $0x198] sm:$0xff]
  %v1633 = vld [vmem:[%s2 + $0x1a0] sm:$0xff]
  %v1634 = vld [vmem:[%s2 + $0x1a8] sm:$0xff]
  %v1635 = vld [vmem:[%s2 + $0x1b0] sm:$0xff]
  %v1636 = vld [vmem:[%s2 + $0x1b8] sm:$0xff]
  %v1637 = vld [vmem:[%s2 + $0x1c0] sm:$0xff]
  %v1638 = vld [vmem:[%s2 + $0x1c8] sm:$0xff]
  %v1639 = vld [vmem:[%s2 + $0x1d0] sm:$0xff]
  %v1640 = vld [vmem:[%s2 + $0x1d8] sm:$0xff]
  %v1641 = vld [vmem:[%s2 + $0x1e0] sm:$0xff]
  %v1642 = vld [vmem:[%s2 + $0x1e8] sm:$0xff]
  %v1643 = vld [vmem:[%s2 + $0x1f0] sm:$0xff]
  %v1644 = vld [vmem:[%s2 + $0x1f8] sm:$0xff]
  %1645 = vmatprep.subr.mxu0 %v1582
  %1646 = vmatpush1.msra.mxu0 %v1581
  %1647 = vmatprep.subr.mxu0 %v1586
  %1648 = vmatpush1.msra.mxu0 %v1585
  %1649 = vmatprep.subr.mxu0 %v1590
  %1650 = vmatpush1.msra.mxu0 %v1589
  %1651 = vmatprep.subr.mxu0 %v1594
  %1652 = vmatpush1.msra.mxu0 %v1593
  %1653 = vmatprep.subr.mxu0 %v1598
  %1654 = vmatpush1.msra.mxu0 %v1597
  %1655 = vmatprep.subr.mxu0 %v1602
  %1656 = vmatpush1.msra.mxu0 %v1601
  %1657 = vmatprep.subr.mxu0 %v1606
  %1658 = vmatpush1.msra.mxu0 %v1605
  %1659 = vmatprep.subr.mxu0 %v1610
  %1660 = vmatpush1.msra.mxu0 %v1609
  %1661 = vmatprep.subr.mxu0 %v1614
  %1662 = vmatpush1.msra.mxu0 %v1613
  %1663 = vmatprep.subr.mxu0 %v1618
  %1664 = vmatpush1.msra.mxu0 %v1617
  %1665 = vmatprep.subr.mxu0 %v1622
  %1666 = vmatpush1.msra.mxu0 %v1621
  %1667 = vmatprep.subr.mxu0 %v1626
  %1668 = vmatpush1.msra.mxu0 %v1625
  %1669 = vmatprep.subr.mxu0 %v1630
  %1670 = vmatpush1.msra.mxu0 %v1629
  %1671 = vmatprep.subr.mxu0 %v1634
  %1672 = vmatpush1.msra.mxu0 %v1633
  %1673 = vmatprep.subr.mxu0 %v1638
  %1674 = vmatpush1.msra.mxu0 %v1637
  %1675 = vmatprep.subr.mxu0 %v1642
  %1676 = vmatpush1.msra.mxu0 %v1641
  %1677 = vmatprep.subr.mxu0 0.0
  %1678 = vmatpush1.msra.mxu0 0.0
  %1679 = vmatprep.subr.mxu0 0.0
  %1680 = vmatpush1.msra.mxu0 0.0
  %1681 = vmatprep.subr.mxu0 0.0
  %1682 = vmatpush1.msra.mxu0 0.0
  %1683 = vmatprep.subr.mxu0 0.0
  %1684 = vmatpush1.msra.mxu0 0.0
  %1685 = vmatprep.subr.mxu0 0.0
  %1686 = vmatpush1.msra.mxu0 0.0
  %1687 = vmatprep.subr.mxu0 0.0
  %1688 = vmatpush1.msra.mxu0 0.0
  %1689 = vmatprep.subr.mxu0 0.0
  %1690 = vmatpush1.msra.mxu0 0.0
  %1691 = vmatprep.subr.mxu0 0.0
  %1692 = vmatpush1.msra.mxu0 0.0
  %1693 = vmatprep.subr.mxu0 0.0
  %1694 = vmatpush1.msra.mxu0 0.0
  %1695 = vmatprep.subr.mxu0 0.0
  %1696 = vmatpush1.msra.mxu0 0.0
  %1697 = vmatprep.subr.mxu0 0.0
  %1698 = vmatpush1.msra.mxu0 0.0
  %1699 = vmatprep.subr.mxu0 0.0
  %1700 = vmatpush1.msra.mxu0 0.0
  %1701 = vmatprep.subr.mxu0 0.0
  %1702 = vmatpush1.msra.mxu0 0.0
  %1703 = vmatprep.subr.mxu0 0.0
  %1704 = vmatpush1.msra.mxu0 0.0
  %1705 = vmatprep.subr.mxu0 0.0
  %1706 = vmatpush1.msra.mxu0 0.0
  %1707 = vmatprep.subr.mxu0 0.0
  %1708 = vmatpush1.msra.mxu0 0.0
  %1709 = vmatprep.mubr.f32.mxu0 0.0
  %1710 = vmatmul.mubr.f32.gmra.mrb[0].mxu0 %v1571
  %v1711 = vpop.f32.mrb[0].mxu0
  %v1712 = vadd.f32 0.0, %v1711
  %v1713 = vpop.f32.mrb[0].mxu0
  %v1714 = vadd.f32 0.0, %v1713
  %1715 = vdwg.mxu0
  %1716 = vmatprep.subr.mxu0 %v1584
  %1717 = vmatpush1.msra.mxu0 %v1583
  %1718 = vmatprep.subr.mxu0 %v1588
  %1719 = vmatpush1.msra.mxu0 %v1587
  %1720 = vmatprep.subr.mxu0 %v1592
  %1721 = vmatpush1.msra.mxu0 %v1591
  %1722 = vmatprep.subr.mxu0 %v1596
  %1723 = vmatpush1.msra.mxu0 %v1595
  %1724 = vmatprep.subr.mxu0 %v1600
  %1725 = vmatpush1.msra.mxu0 %v1599
  %1726 = vmatprep.subr.mxu0 %v1604
  %1727 = vmatpush1.msra.mxu0 %v1603
  %1728 = vmatprep.subr.mxu0 %v1608
  %1729 = vmatpush1.msra.mxu0 %v1607
  %1730 = vmatprep.subr.mxu0 %v1612
  %1731 = vmatpush1.msra.mxu0 %v1611
  %1732 = vmatprep.subr.mxu0 %v1616
  %1733 = vmatpush1.msra.mxu0 %v1615
  %1734 = vmatprep.subr.mxu0 %v1620
  %1735 = vmatpush1.msra.mxu0 %v1619
  %1736 = vmatprep.subr.mxu0 %v1624
  %1737 = vmatpush1.msra.mxu0 %v1623
  %1738 = vmatprep.subr.mxu0 %v1628
  %1739 = vmatpush1.msra.mxu0 %v1627
  %1740 = vmatprep.subr.mxu0 %v1632
  %1741 = vmatpush1.msra.mxu0 %v1631
  %1742 = vmatprep.subr.mxu0 %v1636
  %1743 = vmatpush1.msra.mxu0 %v1635
  %1744 = vmatprep.subr.mxu0 %v1640
  %1745 = vmatpush1.msra.mxu0 %v1639
  %1746 = vmatprep.subr.mxu0 %v1644
  %1747 = vmatpush1.msra.mxu0 %v1643
  %1748 = vmatprep.subr.mxu0 0.0
  %1749 = vmatpush1.msra.mxu0 0.0
  %1750 = vmatprep.subr.mxu0 0.0
  %1751 = vmatpush1.msra.mxu0 0.0
  %1752 = vmatprep.subr.mxu0 0.0
  %1753 = vmatpush1.msra.mxu0 0.0
  %1754 = vmatprep.subr.mxu0 0.0
  %1755 = vmatpush1.msra.mxu0 0.0
  %1756 = vmatprep.subr.mxu0 0.0
  %1757 = vmatpush1.msra.mxu0 0.0
  %1758 = vmatprep.subr.mxu0 0.0
  %1759 = vmatpush1.msra.mxu0 0.0
  %1760 = vmatprep.subr.mxu0 0.0
  %1761 = vmatpush1.msra.mxu0 0.0
  %1762 = vmatprep.subr.mxu0 0.0
  %1763 = vmatpush1.msra.mxu0 0.0
  %1764 = vmatprep.subr.mxu0 0.0
  %1765 = vmatpush1.msra.mxu0 0.0
  %1766 = vmatprep.subr.mxu0 0.0
  %1767 = vmatpush1.msra.mxu0 0.0
  %1768 = vmatprep.subr.mxu0 0.0
  %1769 = vmatpush1.msra.mxu0 0.0
  %1770 = vmatprep.subr.mxu0 0.0
  %1771 = vmatpush1.msra.mxu0 0.0
  %1772 = vmatprep.subr.mxu0 0.0
  %1773 = vmatpush1.msra.mxu0 0.0
  %1774 = vmatprep.subr.mxu0 0.0
  %1775 = vmatpush1.msra.mxu0 0.0
  %1776 = vmatprep.subr.mxu0 0.0
  %1777 = vmatpush1.msra.mxu0 0.0
  %1778 = vmatprep.subr.mxu0 0.0
  %1779 = vmatpush1.msra.mxu0 0.0
  %1780 = vmatprep.mubr.f32.mxu0 0.0
  %1781 = vmatmul.mubr.f32.gmra.mrb[0].mxu0 %v1571
  %v1782 = vpop.f32.mrb[0].mxu0
  %v1783 = vadd.f32 0.0, %v1782
  %v1784 = vpop.f32.mrb[0].mxu0
  %v1785 = vadd.f32 0.0, %v1784
  %1786 = vdwg.mxu0
  %v1787 = vadd.f32 %v1577, %v1712
  %v1788 = vadd.f32 %v1578, %v1714
  %v1789 = vadd.f32 %v1579, %v1783
  %v1790 = vadd.f32 %v1580, %v1785
  %v1791 = vxor.u32 %v1787, 2147483648
  %v1792 = vxor.u32 %v1788, 2147483648
  %v1793 = vxor.u32 %v1789, 2147483648
  %v1794 = vmul.f32 %v1791, 1.442695
  %v1795 = vpow.pop %v1794
  %v1796 = vmul.f32 %v1792, 1.442695
  %v1797 = vpow.pop %v1796
  %v1798 = vmul.f32 %v1793, 1.442695
  %v1799 = vpow.pop %v1798
  %v1800 = vadd.f32 %v1795, 1.0
  %v1801 = vadd.f32 %v1797, 1.0
  %v1802 = vadd.f32 %v1799, 1.0
  %v1803 = vrcp.pop %v1800
  %v1804 = vmul.f32 1.0, %v1803
  %v1805 = vrcp.pop %v1801
  %v1806 = vmul.f32 1.0, %v1805
  %v1807 = vrcp.pop %v1802
  %v1808 = vmul.f32 1.0, %v1807
  %v1809 = vtanh.pop %v1790
  %v1810 = vmul.f32 %v1806, %v1569
  %v1811 = vmul.f32 %v1804, %v1809
  %v1812 = vadd.f32 %v1810, %v1811
  %v1813 = vtanh.pop %v1812
  %v1814 = vmul.f32 %v1808, %v1813
  %s1815 = scalar_lea.vmem [#allocation3], 40
  %1816 = vst [vmem:[%s1815] sm:$0xff] %v1814
  %s1817 = smul.u32 6, 4
  %s1818 = smul.addr %s1817, 8
  %s1819 = scalar_lea.vmem [#allocation2], %s1818
  %v1820 = vld [vmem:[%s1819] sm:$0xff]
  %v1821 = vld [vmem:[%s1819 + $0x8] sm:$0xff]
  %v1822 = vld [vmem:[%s1819 + $0x10] sm:$0xff]
  %v1823 = vld [vmem:[%s1819 + $0x18] sm:$0xff]
  %v1824 = vld [vmem:[%s2] sm:$0xff]
  %v1825 = vld [vmem:[%s2 + $0x8] sm:$0xff]
  %v1826 = vld [vmem:[%s2 + $0x10] sm:$0xff]
  %v1827 = vld [vmem:[%s2 + $0x18] sm:$0xff]
  %v1828 = vld [vmem:[%s2 + $0x20] sm:$0xff]
  %v1829 = vld [vmem:[%s2 + $0x28] sm:$0xff]
  %v1830 = vld [vmem:[%s2 + $0x30] sm:$0xff]
  %v1831 = vld [vmem:[%s2 + $0x38] sm:$0xff]
  %v1832 = vld [vmem:[%s2 + $0x40] sm:$0xff]
  %v1833 = vld [vmem:[%s2 + $0x48] sm:$0xff]
  %v1834 = vld [vmem:[%s2 + $0x50] sm:$0xff]
  %v1835 = vld [vmem:[%s2 + $0x58] sm:$0xff]
  %v1836 = vld [vmem:[%s2 + $0x60] sm:$0xff]
  %v1837 = vld [vmem:[%s2 + $0x68] sm:$0xff]
  %v1838 = vld [vmem:[%s2 + $0x70] sm:$0xff]
  %v1839 = vld [vmem:[%s2 + $0x78] sm:$0xff]
  %v1840 = vld [vmem:[%s2 + $0x80] sm:$0xff]
  %v1841 = vld [vmem:[%s2 + $0x88] sm:$0xff]
  %v1842 = vld [vmem:[%s2 + $0x90] sm:$0xff]
  %v1843 = vld [vmem:[%s2 + $0x98] sm:$0xff]
  %v1844 = vld [vmem:[%s2 + $0xa0] sm:$0xff]
  %v1845 = vld [vmem:[%s2 + $0xa8] sm:$0xff]
  %v1846 = vld [vmem:[%s2 + $0xb0] sm:$0xff]
  %v1847 = vld [vmem:[%s2 + $0xb8] sm:$0xff]
  %v1848 = vld [vmem:[%s2 + $0xc0] sm:$0xff]
  %v1849 = vld [vmem:[%s2 + $0xc8] sm:$0xff]
  %v1850 = vld [vmem:[%s2 + $0xd0] sm:$0xff]
  %v1851 = vld [vmem:[%s2 + $0xd8] sm:$0xff]
  %v1852 = vld [vmem:[%s2 + $0xe0] sm:$0xff]
  %v1853 = vld [vmem:[%s2 + $0xe8] sm:$0xff]
  %v1854 = vld [vmem:[%s2 + $0xf0] sm:$0xff]
  %v1855 = vld [vmem:[%s2 + $0xf8] sm:$0xff]
  %v1856 = vld [vmem:[%s2 + $0x100] sm:$0xff]
  %v1857 = vld [vmem:[%s2 + $0x108] sm:$0xff]
  %v1858 = vld [vmem:[%s2 + $0x110] sm:$0xff]
  %v1859 = vld [vmem:[%s2 + $0x118] sm:$0xff]
  %v1860 = vld [vmem:[%s2 + $0x120] sm:$0xff]
  %v1861 = vld [vmem:[%s2 + $0x128] sm:$0xff]
  %v1862 = vld [vmem:[%s2 + $0x130] sm:$0xff]
  %v1863 = vld [vmem:[%s2 + $0x138] sm:$0xff]
  %v1864 = vld [vmem:[%s2 + $0x140] sm:$0xff]
  %v1865 = vld [vmem:[%s2 + $0x148] sm:$0xff]
  %v1866 = vld [vmem:[%s2 + $0x150] sm:$0xff]
  %v1867 = vld [vmem:[%s2 + $0x158] sm:$0xff]
  %v1868 = vld [vmem:[%s2 + $0x160] sm:$0xff]
  %v1869 = vld [vmem:[%s2 + $0x168] sm:$0xff]
  %v1870 = vld [vmem:[%s2 + $0x170] sm:$0xff]
  %v1871 = vld [vmem:[%s2 + $0x178] sm:$0xff]
  %v1872 = vld [vmem:[%s2 + $0x180] sm:$0xff]
  %v1873 = vld [vmem:[%s2 + $0x188] sm:$0xff]
  %v1874 = vld [vmem:[%s2 + $0x190] sm:$0xff]
  %v1875 = vld [vmem:[%s2 + $0x198] sm:$0xff]
  %v1876 = vld [vmem:[%s2 + $0x1a0] sm:$0xff]
  %v1877 = vld [vmem:[%s2 + $0x1a8] sm:$0xff]
  %v1878 = vld [vmem:[%s2 + $0x1b0] sm:$0xff]
  %v1879 = vld [vmem:[%s2 + $0x1b8] sm:$0xff]
  %v1880 = vld [vmem:[%s2 + $0x1c0] sm:$0xff]
  %v1881 = vld [vmem:[%s2 + $0x1c8] sm:$0xff]
  %v1882 = vld [vmem:[%s2 + $0x1d0] sm:$0xff]
  %v1883 = vld [vmem:[%s2 + $0x1d8] sm:$0xff]
  %v1884 = vld [vmem:[%s2 + $0x1e0] sm:$0xff]
  %v1885 = vld [vmem:[%s2 + $0x1e8] sm:$0xff]
  %v1886 = vld [vmem:[%s2 + $0x1f0] sm:$0xff]
  %v1887 = vld [vmem:[%s2 + $0x1f8] sm:$0xff]
  %1888 = vmatprep.subr.mxu0 %v1825
  %1889 = vmatpush1.msra.mxu0 %v1824
  %1890 = vmatprep.subr.mxu0 %v1829
  %1891 = vmatpush1.msra.mxu0 %v1828
  %1892 = vmatprep.subr.mxu0 %v1833
  %1893 = vmatpush1.msra.mxu0 %v1832
  %1894 = vmatprep.subr.mxu0 %v1837
  %1895 = vmatpush1.msra.mxu0 %v1836
  %1896 = vmatprep.subr.mxu0 %v1841
  %1897 = vmatpush1.msra.mxu0 %v1840
  %1898 = vmatprep.subr.mxu0 %v1845
  %1899 = vmatpush1.msra.mxu0 %v1844
  %1900 = vmatprep.subr.mxu0 %v1849
  %1901 = vmatpush1.msra.mxu0 %v1848
  %1902 = vmatprep.subr.mxu0 %v1853
  %1903 = vmatpush1.msra.mxu0 %v1852
  %1904 = vmatprep.subr.mxu0 %v1857
  %1905 = vmatpush1.msra.mxu0 %v1856
  %1906 = vmatprep.subr.mxu0 %v1861
  %1907 = vmatpush1.msra.mxu0 %v1860
  %1908 = vmatprep.subr.mxu0 %v1865
  %1909 = vmatpush1.msra.mxu0 %v1864
  %1910 = vmatprep.subr.mxu0 %v1869
  %1911 = vmatpush1.msra.mxu0 %v1868
  %1912 = vmatprep.subr.mxu0 %v1873
  %1913 = vmatpush1.msra.mxu0 %v1872
  %1914 = vmatprep.subr.mxu0 %v1877
  %1915 = vmatpush1.msra.mxu0 %v1876
  %1916 = vmatprep.subr.mxu0 %v1881
  %1917 = vmatpush1.msra.mxu0 %v1880
  %1918 = vmatprep.subr.mxu0 %v1885
  %1919 = vmatpush1.msra.mxu0 %v1884
  %1920 = vmatprep.subr.mxu0 0.0
  %1921 = vmatpush1.msra.mxu0 0.0
  %1922 = vmatprep.subr.mxu0 0.0
  %1923 = vmatpush1.msra.mxu0 0.0
  %1924 = vmatprep.subr.mxu0 0.0
  %1925 = vmatpush1.msra.mxu0 0.0
  %1926 = vmatprep.subr.mxu0 0.0
  %1927 = vmatpush1.msra.mxu0 0.0
  %1928 = vmatprep.subr.mxu0 0.0
  %1929 = vmatpush1.msra.mxu0 0.0
  %1930 = vmatprep.subr.mxu0 0.0
  %1931 = vmatpush1.msra.mxu0 0.0
  %1932 = vmatprep.subr.mxu0 0.0
  %1933 = vmatpush1.msra.mxu0 0.0
  %1934 = vmatprep.subr.mxu0 0.0
  %1935 = vmatpush1.msra.mxu0 0.0
  %1936 = vmatprep.subr.mxu0 0.0
  %1937 = vmatpush1.msra.mxu0 0.0
  %1938 = vmatprep.subr.mxu0 0.0
  %1939 = vmatpush1.msra.mxu0 0.0
  %1940 = vmatprep.subr.mxu0 0.0
  %1941 = vmatpush1.msra.mxu0 0.0
  %1942 = vmatprep.subr.mxu0 0.0
  %1943 = vmatpush1.msra.mxu0 0.0
  %1944 = vmatprep.subr.mxu0 0.0
  %1945 = vmatpush1.msra.mxu0 0.0
  %1946 = vmatprep.subr.mxu0 0.0
  %1947 = vmatpush1.msra.mxu0 0.0
  %1948 = vmatprep.subr.mxu0 0.0
  %1949 = vmatpush1.msra.mxu0 0.0
  %1950 = vmatprep.subr.mxu0 0.0
  %1951 = vmatpush1.msra.mxu0 0.0
  %1952 = vmatprep.mubr.f32.mxu0 0.0
  %1953 = vmatmul.mubr.f32.gmra.mrb[0].mxu0 %v1814
  %v1954 = vpop.f32.mrb[0].mxu0
  %v1955 = vadd.f32 0.0, %v1954
  %v1956 = vpop.f32.mrb[0].mxu0
  %v1957 = vadd.f32 0.0, %v1956
  %1958 = vdwg.mxu0
  %1959 = vmatprep.subr.mxu0 %v1827
  %1960 = vmatpush1.msra.mxu0 %v1826
  %1961 = vmatprep.subr.mxu0 %v1831
  %1962 = vmatpush1.msra.mxu0 %v1830
  %1963 = vmatprep.subr.mxu0 %v1835
  %1964 = vmatpush1.msra.mxu0 %v1834
  %1965 = vmatprep.subr.mxu0 %v1839
  %1966 = vmatpush1.msra.mxu0 %v1838
  %1967 = vmatprep.subr.mxu0 %v1843
  %1968 = vmatpush1.msra.mxu0 %v1842
  %1969 = vmatprep.subr.mxu0 %v1847
  %1970 = vmatpush1.msra.mxu0 %v1846
  %1971 = vmatprep.subr.mxu0 %v1851
  %1972 = vmatpush1.msra.mxu0 %v1850
  %1973 = vmatprep.subr.mxu0 %v1855
  %1974 = vmatpush1.msra.mxu0 %v1854
  %1975 = vmatprep.subr.mxu0 %v1859
  %1976 = vmatpush1.msra.mxu0 %v1858
  %1977 = vmatprep.subr.mxu0 %v1863
  %1978 = vmatpush1.msra.mxu0 %v1862
  %1979 = vmatprep.subr.mxu0 %v1867
  %1980 = vmatpush1.msra.mxu0 %v1866
  %1981 = vmatprep.subr.mxu0 %v1871
  %1982 = vmatpush1.msra.mxu0 %v1870
  %1983 = vmatprep.subr.mxu0 %v1875
  %1984 = vmatpush1.msra.mxu0 %v1874
  %1985 = vmatprep.subr.mxu0 %v1879
  %1986 = vmatpush1.msra.mxu0 %v1878
  %1987 = vmatprep.subr.mxu0 %v1883
  %1988 = vmatpush1.msra.mxu0 %v1882
  %1989 = vmatprep.subr.mxu0 %v1887
  %1990 = vmatpush1.msra.mxu0 %v1886
  %1991 = vmatprep.subr.mxu0 0.0
  %1992 = vmatpush1.msra.mxu0 0.0
  %1993 = vmatprep.subr.mxu0 0.0
  %1994 = vmatpush1.msra.mxu0 0.0
  %1995 = vmatprep.subr.mxu0 0.0
  %1996 = vmatpush1.msra.mxu0 0.0
  %1997 = vmatprep.subr.mxu0 0.0
  %1998 = vmatpush1.msra.mxu0 0.0
  %1999 = vmatprep.subr.mxu0 0.0
  %2000 = vmatpush1.msra.mxu0 0.0
  %2001 = vmatprep.subr.mxu0 0.0
  %2002 = vmatpush1.msra.mxu0 0.0
  %2003 = vmatprep.subr.mxu0 0.0
  %2004 = vmatpush1.msra.mxu0 0.0
  %2005 = vmatprep.subr.mxu0 0.0
  %2006 = vmatpush1.msra.mxu0 0.0
  %2007 = vmatprep.subr.mxu0 0.0
  %2008 = vmatpush1.msra.mxu0 0.0
  %2009 = vmatprep.subr.mxu0 0.0
  %2010 = vmatpush1.msra.mxu0 0.0
  %2011 = vmatprep.subr.mxu0 0.0
  %2012 = vmatpush1.msra.mxu0 0.0
  %2013 = vmatprep.subr.mxu0 0.0
  %2014 = vmatpush1.msra.mxu0 0.0
  %2015 = vmatprep.subr.mxu0 0.0
  %2016 = vmatpush1.msra.mxu0 0.0
  %2017 = vmatprep.subr.mxu0 0.0
  %2018 = vmatpush1.msra.mxu0 0.0
  %2019 = vmatprep.subr.mxu0 0.0
  %2020 = vmatpush1.msra.mxu0 0.0
  %2021 = vmatprep.subr.mxu0 0.0
  %2022 = vmatpush1.msra.mxu0 0.0
  %2023 = vmatprep.mubr.f32.mxu0 0.0
  %2024 = vmatmul.mubr.f32.gmra.mrb[0].mxu0 %v1814
  %v2025 = vpop.f32.mrb[0].mxu0
  %v2026 = vadd.f32 0.0, %v2025
  %v2027 = vpop.f32.mrb[0].mxu0
  %v2028 = vadd.f32 0.0, %v2027
  %2029 = vdwg.mxu0
  %v2030 = vadd.f32 %v1820, %v1955
  %v2031 = vadd.f32 %v1821, %v1957
  %v2032 = vadd.f32 %v1822, %v2026
  %v2033 = vadd.f32 %v1823, %v2028
  %v2034 = vxor.u32 %v2030, 2147483648
  %v2035 = vxor.u32 %v2031, 2147483648
  %v2036 = vxor.u32 %v2032, 2147483648
  %v2037 = vmul.f32 %v2034, 1.442695
  %v2038 = vpow.pop %v2037
  %v2039 = vmul.f32 %v2035, 1.442695
  %v2040 = vpow.pop %v2039
  %v2041 = vmul.f32 %v2036, 1.442695
  %v2042 = vpow.pop %v2041
  %v2043 = vadd.f32 %v2038, 1.0
  %v2044 = vadd.f32 %v2040, 1.0
  %v2045 = vadd.f32 %v2042, 1.0
  %v2046 = vrcp.pop %v2043
  %v2047 = vmul.f32 1.0, %v2046
  %v2048 = vrcp.pop %v2044
  %v2049 = vmul.f32 1.0, %v2048
  %v2050 = vrcp.pop %v2045
  %v2051 = vmul.f32 1.0, %v2050
  %v2052 = vtanh.pop %v2033
  %v2053 = vmul.f32 %v2049, %v1812
  %v2054 = vmul.f32 %v2047, %v2052
  %v2055 = vadd.f32 %v2053, %v2054
  %v2056 = vtanh.pop %v2055
  %v2057 = vmul.f32 %v2051, %v2056
  %s2058 = scalar_lea.vmem [#allocation3], 48
  %2059 = vst [vmem:[%s2058] sm:$0xff] %v2057
  %s2060 = smul.u32 7, 4
  %s2061 = smul.addr %s2060, 8
  %s2062 = scalar_lea.vmem [#allocation2], %s2061
  %v2063 = vld [vmem:[%s2062] sm:$0xff]
  %v2064 = vld [vmem:[%s2062 + $0x8] sm:$0xff]
  %v2065 = vld [vmem:[%s2062 + $0x10] sm:$0xff]
  %v2066 = vld [vmem:[%s2062 + $0x18] sm:$0xff]
  %v2067 = vld [vmem:[%s2] sm:$0xff]
  %v2068 = vld [vmem:[%s2 + $0x8] sm:$0xff]
  %v2069 = vld [vmem:[%s2 + $0x10] sm:$0xff]
  %v2070 = vld [vmem:[%s2 + $0x18] sm:$0xff]
  %v2071 = vld [vmem:[%s2 + $0x20] sm:$0xff]
  %v2072 = vld [vmem:[%s2 + $0x28] sm:$0xff]
  %v2073 = vld [vmem:[%s2 + $0x30] sm:$0xff]
  %v2074 = vld [vmem:[%s2 + $0x38] sm:$0xff]
  %v2075 = vld [vmem:[%s2 + $0x40] sm:$0xff]
  %v2076 = vld [vmem:[%s2 + $0x48] sm:$0xff]
  %v2077 = vld [vmem:[%s2 + $0x50] sm:$0xff]
  %v2078 = vld [vmem:[%s2 + $0x58] sm:$0xff]
  %v2079 = vld [vmem:[%s2 + $0x60] sm:$0xff]
  %v2080 = vld [vmem:[%s2 + $0x68] sm:$0xff]
  %v2081 = vld [vmem:[%s2 + $0x70] sm:$0xff]
  %v2082 = vld [vmem:[%s2 + $0x78] sm:$0xff]
  %v2083 = vld [vmem:[%s2 + $0x80] sm:$0xff]
  %v2084 = vld [vmem:[%s2 + $0x88] sm:$0xff]
  %v2085 = vld [vmem:[%s2 + $0x90] sm:$0xff]
  %v2086 = vld [vmem:[%s2 + $0x98] sm:$0xff]
  %v2087 = vld [vmem:[%s2 + $0xa0] sm:$0xff]
  %v2088 = vld [vmem:[%s2 + $0xa8] sm:$0xff]
  %v2089 = vld [vmem:[%s2 + $0xb0] sm:$0xff]
  %v2090 = vld [vmem:[%s2 + $0xb8] sm:$0xff]
  %v2091 = vld [vmem:[%s2 + $0xc0] sm:$0xff]
  %v2092 = vld [vmem:[%s2 + $0xc8] sm:$0xff]
  %v2093 = vld [vmem:[%s2 + $0xd0] sm:$0xff]
  %v2094 = vld [vmem:[%s2 + $0xd8] sm:$0xff]
  %v2095 = vld [vmem:[%s2 + $0xe0] sm:$0xff]
  %v2096 = vld [vmem:[%s2 + $0xe8] sm:$0xff]
  %v2097 = vld [vmem:[%s2 + $0xf0] sm:$0xff]
  %v2098 = vld [vmem:[%s2 + $0xf8] sm:$0xff]
  %v2099 = vld [vmem:[%s2 + $0x100] sm:$0xff]
  %v2100 = vld [vmem:[%s2 + $0x108] sm:$0xff]
  %v2101 = vld [vmem:[%s2 + $0x110] sm:$0xff]
  %v2102 = vld [vmem:[%s2 + $0x118] sm:$0xff]
  %v2103 = vld [vmem:[%s2 + $0x120] sm:$0xff]
  %v2104 = vld [vmem:[%s2 + $0x128] sm:$0xff]
  %v2105 = vld [vmem:[%s2 + $0x130] sm:$0xff]
  %v2106 = vld [vmem:[%s2 + $0x138] sm:$0xff]
  %v2107 = vld [vmem:[%s2 + $0x140] sm:$0xff]
  %v2108 = vld [vmem:[%s2 + $0x148] sm:$0xff]
  %v2109 = vld [vmem:[%s2 + $0x150] sm:$0xff]
  %v2110 = vld [vmem:[%s2 + $0x158] sm:$0xff]
  %v2111 = vld [vmem:[%s2 + $0x160] sm:$0xff]
  %v2112 = vld [vmem:[%s2 + $0x168] sm:$0xff]
  %v2113 = vld [vmem:[%s2 + $0x170] sm:$0xff]
  %v2114 = vld [vmem:[%s2 + $0x178] sm:$0xff]
  %v2115 = vld [vmem:[%s2 + $0x180] sm:$0xff]
  %v2116 = vld [vmem:[%s2 + $0x188] sm:$0xff]
  %v2117 = vld [vmem:[%s2 + $0x190] sm:$0xff]
  %v2118 = vld [vmem:[%s2 + $0x198] sm:$0xff]
  %v2119 = vld [vmem:[%s2 + $0x1a0] sm:$0xff]
  %v2120 = vld [vmem:[%s2 + $0x1a8] sm:$0xff]
  %v2121 = vld [vmem:[%s2 + $0x1b0] sm:$0xff]
  %v2122 = vld [vmem:[%s2 + $0x1b8] sm:$0xff]
  %v2123 = vld [vmem:[%s2 + $0x1c0] sm:$0xff]
  %v2124 = vld [vmem:[%s2 + $0x1c8] sm:$0xff]
  %v2125 = vld [vmem:[%s2 + $0x1d0] sm:$0xff]
  %v2126 = vld [vmem:[%s2 + $0x1d8] sm:$0xff]
  %v2127 = vld [vmem:[%s2 + $0x1e0] sm:$0xff]
  %v2128 = vld [vmem:[%s2 + $0x1e8] sm:$0xff]
  %v2129 = vld [vmem:[%s2 + $0x1f0] sm:$0xff]
  %v2130 = vld [vmem:[%s2 + $0x1f8] sm:$0xff]
  %2131 = vmatprep.subr.mxu0 %v2068
  %2132 = vmatpush1.msra.mxu0 %v2067
  %2133 = vmatprep.subr.mxu0 %v2072
  %2134 = vmatpush1.msra.mxu0 %v2071
  %2135 = vmatprep.subr.mxu0 %v2076
  %2136 = vmatpush1.msra.mxu0 %v2075
  %2137 = vmatprep.subr.mxu0 %v2080
  %2138 = vmatpush1.msra.mxu0 %v2079
  %2139 = vmatprep.subr.mxu0 %v2084
  %2140 = vmatpush1.msra.mxu0 %v2083
  %2141 = vmatprep.subr.mxu0 %v2088
  %2142 = vmatpush1.msra.mxu0 %v2087
  %2143 = vmatprep.subr.mxu0 %v2092
  %2144 = vmatpush1.msra.mxu0 %v2091
  %2145 = vmatprep.subr.mxu0 %v2096
  %2146 = vmatpush1.msra.mxu0 %v2095
  %2147 = vmatprep.subr.mxu0 %v2100
  %2148 = vmatpush1.msra.mxu0 %v2099
  %2149 = vmatprep.subr.mxu0 %v2104
  %2150 = vmatpush1.msra.mxu0 %v2103
  %2151 = vmatprep.subr.mxu0 %v2108
  %2152 = vmatpush1.msra.mxu0 %v2107
  %2153 = vmatprep.subr.mxu0 %v2112
  %2154 = vmatpush1.msra.mxu0 %v2111
  %2155 = vmatprep.subr.mxu0 %v2116
  %2156 = vmatpush1.msra.mxu0 %v2115
  %2157 = vmatprep.subr.mxu0 %v2120
  %2158 = vmatpush1.msra.mxu0 %v2119
  %2159 = vmatprep.subr.mxu0 %v2124
  %2160 = vmatpush1.msra.mxu0 %v2123
  %2161 = vmatprep.subr.mxu0 %v2128
  %2162 = vmatpush1.msra.mxu0 %v2127
  %2163 = vmatprep.subr.mxu0 0.0
  %2164 = vmatpush1.msra.mxu0 0.0
  %2165 = vmatprep.subr.mxu0 0.0
  %2166 = vmatpush1.msra.mxu0 0.0
  %2167 = vmatprep.subr.mxu0 0.0
  %2168 = vmatpush1.msra.mxu0 0.0
  %2169 = vmatprep.subr.mxu0 0.0
  %2170 = vmatpush1.msra.mxu0 0.0
  %2171 = vmatprep.subr.mxu0 0.0
  %2172 = vmatpush1.msra.mxu0 0.0
  %2173 = vmatprep.subr.mxu0 0.0
  %2174 = vmatpush1.msra.mxu0 0.0
  %2175 = vmatprep.subr.mxu0 0.0
  %2176 = vmatpush1.msra.mxu0 0.0
  %2177 = vmatprep.subr.mxu0 0.0
  %2178 = vmatpush1.msra.mxu0 0.0
  %2179 = vmatprep.subr.mxu0 0.0
  %2180 = vmatpush1.msra.mxu0 0.0
  %2181 = vmatprep.subr.mxu0 0.0
  %2182 = vmatpush1.msra.mxu0 0.0
  %2183 = vmatprep.subr.mxu0 0.0
  %2184 = vmatpush1.msra.mxu0 0.0
  %2185 = vmatprep.subr.mxu0 0.0
  %2186 = vmatpush1.msra.mxu0 0.0
  %2187 = vmatprep.subr.mxu0 0.0
  %2188 = vmatpush1.msra.mxu0 0.0
  %2189 = vmatprep.subr.mxu0 0.0
  %2190 = vmatpush1.msra.mxu0 0.0
  %2191 = vmatprep.subr.mxu0 0.0
  %2192 = vmatpush1.msra.mxu0 0.0
  %2193 = vmatprep.subr.mxu0 0.0
  %2194 = vmatpush1.msra.mxu0 0.0
  %2195 = vmatprep.mubr.f32.mxu0 0.0
  %2196 = vmatmul.mubr.f32.gmra.mrb[0].mxu0 %v2057
  %v2197 = vpop.f32.mrb[0].mxu0
  %v2198 = vadd.f32 0.0, %v2197
  %v2199 = vpop.f32.mrb[0].mxu0
  %v2200 = vadd.f32 0.0, %v2199
  %2201 = vdwg.mxu0
  %2202 = vmatprep.subr.mxu0 %v2070
  %2203 = vmatpush1.msra.mxu0 %v2069
  %2204 = vmatprep.subr.mxu0 %v2074
  %2205 = vmatpush1.msra.mxu0 %v2073
  %2206 = vmatprep.subr.mxu0 %v2078
  %2207 = vmatpush1.msra.mxu0 %v2077
  %2208 = vmatprep.subr.mxu0 %v2082
  %2209 = vmatpush1.msra.mxu0 %v2081
  %2210 = vmatprep.subr.mxu0 %v2086
  %2211 = vmatpush1.msra.mxu0 %v2085
  %2212 = vmatprep.subr.mxu0 %v2090
  %2213 = vmatpush1.msra.mxu0 %v2089
  %2214 = vmatprep.subr.mxu0 %v2094
  %2215 = vmatpush1.msra.mxu0 %v2093
  %2216 = vmatprep.subr.mxu0 %v2098
  %2217 = vmatpush1.msra.mxu0 %v2097
  %2218 = vmatprep.subr.mxu0 %v2102
  %2219 = vmatpush1.msra.mxu0 %v2101
  %2220 = vmatprep.subr.mxu0 %v2106
  %2221 = vmatpush1.msra.mxu0 %v2105
  %2222 = vmatprep.subr.mxu0 %v2110
  %2223 = vmatpush1.msra.mxu0 %v2109
  %2224 = vmatprep.subr.mxu0 %v2114
  %2225 = vmatpush1.msra.mxu0 %v2113
  %2226 = vmatprep.subr.mxu0 %v2118
  %2227 = vmatpush1.msra.mxu0 %v2117
  %2228 = vmatprep.subr.mxu0 %v2122
  %2229 = vmatpush1.msra.mxu0 %v2121
  %2230 = vmatprep.subr.mxu0 %v2126
  %2231 = vmatpush1.msra.mxu0 %v2125
  %2232 = vmatprep.subr.mxu0 %v2130
  %2233 = vmatpush1.msra.mxu0 %v2129
  %2234 = vmatprep.subr.mxu0 0.0
  %2235 = vmatpush1.msra.mxu0 0.0
  %2236 = vmatprep.subr.mxu0 0.0
  %2237 = vmatpush1.msra.mxu0 0.0
  %2238 = vmatprep.subr.mxu0 0.0
  %2239 = vmatpush1.msra.mxu0 0.0
  %2240 = vmatprep.subr.mxu0 0.0
  %2241 = vmatpush1.msra.mxu0 0.0
  %2242 = vmatprep.subr.mxu0 0.0
  %2243 = vmatpush1.msra.mxu0 0.0
  %2244 = vmatprep.subr.mxu0 0.0
  %2245 = vmatpush1.msra.mxu0 0.0
  %2246 = vmatprep.subr.mxu0 0.0
  %2247 = vmatpush1.msra.mxu0 0.0
  %2248 = vmatprep.subr.mxu0 0.0
  %2249 = vmatpush1.msra.mxu0 0.0
  %2250 = vmatprep.subr.mxu0 0.0
  %2251 = vmatpush1.msra.mxu0 0.0
  %2252 = vmatprep.subr.mxu0 0.0
  %2253 = vmatpush1.msra.mxu0 0.0
  %2254 = vmatprep.subr.mxu0 0.0
  %2255 = vmatpush1.msra.mxu0 0.0
  %2256 = vmatprep.subr.mxu0 0.0
  %2257 = vmatpush1.msra.mxu0 0.0
  %2258 = vmatprep.subr.mxu0 0.0
  %2259 = vmatpush1.msra.mxu0 0.0
  %2260 = vmatprep.subr.mxu0 0.0
  %2261 = vmatpush1.msra.mxu0 0.0
  %2262 = vmatprep.subr.mxu0 0.0
  %2263 = vmatpush1.msra.mxu0 0.0
  %2264 = vmatprep.subr.mxu0 0.0
  %2265 = vmatpush1.msra.mxu0 0.0
  %2266 = vmatprep.mubr.f32.mxu0 0.0
  %2267 = vmatmul.mubr.f32.gmra.mrb[0].mxu0 %v2057
  %v2268 = vpop.f32.mrb[0].mxu0
  %v2269 = vadd.f32 0.0, %v2268
  %v2270 = vpop.f32.mrb[0].mxu0
  %v2271 = vadd.f32 0.0, %v2270
  %2272 = vdwg.mxu0
  %v2273 = vadd.f32 %v2063, %v2198
  %v2274 = vadd.f32 %v2064, %v2200
  %v2275 = vadd.f32 %v2065, %v2269
  %v2276 = vadd.f32 %v2066, %v2271
  %v2277 = vxor.u32 %v2273, 2147483648
  %v2278 = vxor.u32 %v2274, 2147483648
  %v2279 = vxor.u32 %v2275, 2147483648
  %v2280 = vmul.f32 %v2277, 1.442695
  %v2281 = vpow.pop %v2280
  %v2282 = vmul.f32 %v2278, 1.442695
  %v2283 = vpow.pop %v2282
  %v2284 = vmul.f32 %v2279, 1.442695
  %v2285 = vpow.pop %v2284
  %v2286 = vadd.f32 %v2281, 1.0
  %v2287 = vadd.f32 %v2283, 1.0
  %v2288 = vadd.f32 %v2285, 1.0
  %v2289 = vrcp.pop %v2286
  %v2290 = vmul.f32 1.0, %v2289
  %v2291 = vrcp.pop %v2287
  %v2292 = vmul.f32 1.0, %v2291
  %v2293 = vrcp.pop %v2288
  %v2294 = vmul.f32 1.0, %v2293
  %v2295 = vtanh.pop %v2276
  %v2296 = vmul.f32 %v2292, %v2055
  %v2297 = vmul.f32 %v2290, %v2295
  %v2298 = vadd.f32 %v2296, %v2297
  %v2299 = vtanh.pop %v2298
  %v2300 = vmul.f32 %v2294, %v2299
  %s2301 = scalar_lea.vmem [#allocation3], 56
  %2302 = vst [vmem:[%s2301] sm:$0xff] %v2300
  %v2303 = vld [vmem:[#allocation3] sm:$0xff]
  %v2304 = vld [vmem:[#allocation3 + $0x8] sm:$0xff]
  %v2305 = vld [vmem:[#allocation3 + $0x10] sm:$0xff]
  %v2306 = vld [vmem:[#allocation3 + $0x18] sm:$0xff]
  %v2307 = vld [vmem:[#allocation3 + $0x20] sm:$0xff]
  %v2308 = vld [vmem:[#allocation3 + $0x28] sm:$0xff]
  %v2309 = vld [vmem:[#allocation3 + $0x30] sm:$0xff]
  %v2310 = vld [vmem:[#allocation3 + $0x38] sm:$0xff]
  %v2311 = vld [vmem:[%s4] sm:$0xff]
  %v2312 = vld [vmem:[%s4 + $0x8] sm:$0xff]
  %v2313 = vld [vmem:[%s4 + $0x10] sm:$0xff]
  %v2314 = vld [vmem:[%s4 + $0x18] sm:$0xff]
  %v2315 = vld [vmem:[%s4 + $0x20] sm:$0xff]
  %v2316 = vld [vmem:[%s4 + $0x28] sm:$0xff]
  %v2317 = vld [vmem:[%s4 + $0x30] sm:$0xff]
  %v2318 = vld [vmem:[%s4 + $0x38] sm:$0xff]
  %v2319 = vld [vmem:[%s4 + $0x40] sm:$0xff]
  %v2320 = vld [vmem:[%s4 + $0x48] sm:$0xff]
  %v2321 = vld [vmem:[%s4 + $0x50] sm:$0xff]
  %v2322 = vld [vmem:[%s4 + $0x58] sm:$0xff]
  %v2323 = vld [vmem:[%s4 + $0x60] sm:$0xff]
  %v2324 = vld [vmem:[%s4 + $0x68] sm:$0xff]
  %v2325 = vld [vmem:[%s4 + $0x70] sm:$0xff]
  %v2326 = vld [vmem:[%s4 + $0x78] sm:$0xff]
  %v2327 = vld [vmem:[%s4 + $0x80] sm:$0xff]
  %v2328 = vld [vmem:[%s4 + $0x88] sm:$0xff]
  %v2329 = vld [vmem:[%s4 + $0x90] sm:$0xff]
  %v2330 = vld [vmem:[%s4 + $0x98] sm:$0xff]
  %v2331 = vld [vmem:[%s4 + $0xa0] sm:$0xff]
  %v2332 = vld [vmem:[%s4 + $0xa8] sm:$0xff]
  %v2333 = vld [vmem:[%s4 + $0xb0] sm:$0xff]
  %v2334 = vld [vmem:[%s4 + $0xb8] sm:$0xff]
  %v2335 = vld [vmem:[%s4 + $0xc0] sm:$0xff]
  %v2336 = vld [vmem:[%s4 + $0xc8] sm:$0xff]
  %v2337 = vld [vmem:[%s4 + $0xd0] sm:$0xff]
  %v2338 = vld [vmem:[%s4 + $0xd8] sm:$0xff]
  %v2339 = vld [vmem:[%s4 + $0xe0] sm:$0xff]
  %v2340 = vld [vmem:[%s4 + $0xe8] sm:$0xff]
  %v2341 = vld [vmem:[%s4 + $0xf0] sm:$0xff]
  %v2342 = vld [vmem:[%s4 + $0xf8] sm:$0xff]
  %v2343 = vld [vmem:[%s4 + $0x100] sm:$0xff]
  %v2344 = vld [vmem:[%s4 + $0x108] sm:$0xff]
  %v2345 = vld [vmem:[%s4 + $0x110] sm:$0xff]
  %v2346 = vld [vmem:[%s4 + $0x118] sm:$0xff]
  %v2347 = vld [vmem:[%s4 + $0x120] sm:$0xff]
  %v2348 = vld [vmem:[%s4 + $0x128] sm:$0xff]
  %v2349 = vld [vmem:[%s4 + $0x130] sm:$0xff]
  %v2350 = vld [vmem:[%s4 + $0x138] sm:$0xff]
  %v2351 = vld [vmem:[%s4 + $0x140] sm:$0xff]
  %v2352 = vld [vmem:[%s4 + $0x148] sm:$0xff]
  %v2353 = vld [vmem:[%s4 + $0x150] sm:$0xff]
  %v2354 = vld [vmem:[%s4 + $0x158] sm:$0xff]
  %v2355 = vld [vmem:[%s4 + $0x160] sm:$0xff]
  %v2356 = vld [vmem:[%s4 + $0x168] sm:$0xff]
  %v2357 = vld [vmem:[%s4 + $0x170] sm:$0xff]
  %v2358 = vld [vmem:[%s4 + $0x178] sm:$0xff]
  %v2359 = vld [vmem:[%s4 + $0x180] sm:$0xff]
  %v2360 = vld [vmem:[%s4 + $0x188] sm:$0xff]
  %v2361 = vld [vmem:[%s4 + $0x190] sm:$0xff]
  %v2362 = vld [vmem:[%s4 + $0x198] sm:$0xff]
  %v2363 = vld [vmem:[%s4 + $0x1a0] sm:$0xff]
  %v2364 = vld [vmem:[%s4 + $0x1a8] sm:$0xff]
  %v2365 = vld [vmem:[%s4 + $0x1b0] sm:$0xff]
  %v2366 = vld [vmem:[%s4 + $0x1b8] sm:$0xff]
  %v2367 = vld [vmem:[%s4 + $0x1c0] sm:$0xff]
  %v2368 = vld [vmem:[%s4 + $0x1c8] sm:$0xff]
  %v2369 = vld [vmem:[%s4 + $0x1d0] sm:$0xff]
  %v2370 = vld [vmem:[%s4 + $0x1d8] sm:$0xff]
  %v2371 = vld [vmem:[%s4 + $0x1e0] sm:$0xff]
  %v2372 = vld [vmem:[%s4 + $0x1e8] sm:$0xff]
  %v2373 = vld [vmem:[%s4 + $0x1f0] sm:$0xff]
  %v2374 = vld [vmem:[%s4 + $0x1f8] sm:$0xff]
  %v2375 = vld [vmem:[%s6] sm:$0xf]
  %v2377 = vlaneseq
  %v2378 = vshrl.u32 %v2377, 7
  %v2379 = vsub.s32 0, %v2378
  %v2380 = vrot.slane %v2375, %v2379
  %v2381 = vlaneseq
  %v2382 = vshrl.u32 %v2381, 7
  %v2383 = vsub.s32 1, %v2382
  %v2384 = vrot.slane %v2375, %v2383
  %v2385 = vlaneseq
  %v2386 = vshrl.u32 %v2385, 7
  %v2387 = vsub.s32 2, %v2386
  %v2388 = vrot.slane %v2375, %v2387
  %v2389 = vlaneseq
  %v2390 = vshrl.u32 %v2389, 7
  %v2391 = vsub.s32 3, %v2390
  %v2392 = vrot.slane %v2375, %v2391
  %2397 = vmatprep.subr.mxu0 %v2312
  %2398 = vmatpush1.msra.mxu0 %v2311
  %2399 = vmatprep.subr.mxu0 %v2316
  %2400 = vmatpush1.msra.mxu0 %v2315
  %2401 = vmatprep.subr.mxu0 %v2320
  %2402 = vmatpush1.msra.mxu0 %v2319
  %2403 = vmatprep.subr.mxu0 %v2324
  %2404 = vmatpush1.msra.mxu0 %v2323
  %2405 = vmatprep.subr.mxu0 %v2328
  %2406 = vmatpush1.msra.mxu0 %v2327
  %2407 = vmatprep.subr.mxu0 %v2332
  %2408 = vmatpush1.msra.mxu0 %v2331
  %2409 = vmatprep.subr.mxu0 %v2336
  %2410 = vmatpush1.msra.mxu0 %v2335
  %2411 = vmatprep.subr.mxu0 %v2340
  %2412 = vmatpush1.msra.mxu0 %v2339
  %2413 = vmatprep.subr.mxu0 %v2344
  %2414 = vmatpush1.msra.mxu0 %v2343
  %2415 = vmatprep.subr.mxu0 %v2348
  %2416 = vmatpush1.msra.mxu0 %v2347
  %2417 = vmatprep.subr.mxu0 %v2352
  %2418 = vmatpush1.msra.mxu0 %v2351
  %2419 = vmatprep.subr.mxu0 %v2356
  %2420 = vmatpush1.msra.mxu0 %v2355
  %2421 = vmatprep.subr.mxu0 %v2360
  %2422 = vmatpush1.msra.mxu0 %v2359
  %2423 = vmatprep.subr.mxu0 %v2364
  %2424 = vmatpush1.msra.mxu0 %v2363
  %2425 = vmatprep.subr.mxu0 %v2368
  %2426 = vmatpush1.msra.mxu0 %v2367
  %2427 = vmatprep.subr.mxu0 %v2372
  %2428 = vmatpush1.msra.mxu0 %v2371
  %2429 = vmatprep.subr.mxu0 0.0
  %2430 = vmatpush1.msra.mxu0 0.0
  %2431 = vmatprep.subr.mxu0 0.0
  %2432 = vmatpush1.msra.mxu0 0.0
  %2433 = vmatprep.subr.mxu0 0.0
  %2434 = vmatpush1.msra.mxu0 0.0
  %2435 = vmatprep.subr.mxu0 0.0
  %2436 = vmatpush1.msra.mxu0 0.0
  %2437 = vmatprep.subr.mxu0 0.0
  %2438 = vmatpush1.msra.mxu0 0.0
  %2439 = vmatprep.subr.mxu0 0.0
  %2440 = vmatpush1.msra.mxu0 0.0
  %2441 = vmatprep.subr.mxu0 0.0
  %2442 = vmatpush1.msra.mxu0 0.0
  %2443 = vmatprep.subr.mxu0 0.0
  %2444 = vmatpush1.msra.mxu0 0.0
  %2445 = vmatprep.subr.mxu0 0.0
  %2446 = vmatpush1.msra.mxu0 0.0
  %2447 = vmatprep.subr.mxu0 0.0
  %2448 = vmatpush1.msra.mxu0 0.0
  %2449 = vmatprep.subr.mxu0 0.0
  %2450 = vmatpush1.msra.mxu0 0.0
  %2451 = vmatprep.subr.mxu0 0.0
  %2452 = vmatpush1.msra.mxu0 0.0
  %2453 = vmatprep.subr.mxu0 0.0
  %2454 = vmatpush1.msra.mxu0 0.0
  %2455 = vmatprep.subr.mxu0 0.0
  %2456 = vmatpush1.msra.mxu0 0.0
  %2457 = vmatprep.subr.mxu0 0.0
  %2458 = vmatpush1.msra.mxu0 0.0
  %2459 = vmatprep.subr.mxu0 0.0
  %2460 = vmatpush1.msra.mxu0 0.0
  %2461 = vmatprep.mubr.f32.mxu0 0.0
  %2462 = vmatmul.mubr.f32.gmra.mrb[0].mxu0 %v2303
  %v2463 = vpop.f32.mrb[0].mxu0
  %v2464 = vadd.f32 %v2380, %v2463
  %v2465 = vpop.f32.mrb[0].mxu0
  %v2466 = vadd.f32 %v2384, %v2465
  %2467 = vmatprep.mubr.f32.mxu0 0.0
  %2468 = vmatmul.mubr.f32.gmra.mrb[0].mxu0 %v2304
  %v2469 = vpop.f32.mrb[0].mxu0
  %v2470 = vadd.f32 %v2380, %v2469
  %v2471 = vpop.f32.mrb[0].mxu0
  %v2472 = vadd.f32 %v2384, %v2471
  %2473 = vmatprep.mubr.f32.mxu0 0.0
  %2474 = vmatmul.mubr.f32.gmra.mrb[0].mxu0 %v2305
  %v2475 = vpop.f32.mrb[0].mxu0
  %v2476 = vadd.f32 %v2380, %v2475
  %v2477 = vpop.f32.mrb[0].mxu0
  %v2478 = vadd.f32 %v2384, %v2477
  %2479 = vmatprep.mubr.f32.mxu0 0.0
  %2480 = vmatmul.mubr.f32.gmra.mrb[0].mxu0 %v2306
  %v2481 = vpop.f32.mrb[0].mxu0
  %v2482 = vadd.f32 %v2380, %v2481
  %v2483 = vpop.f32.mrb[0].mxu0
  %v2484 = vadd.f32 %v2384, %v2483
  %2485 = vmatprep.mubr.f32.mxu0 0.0
  %2486 = vmatmul.mubr.f32.gmra.mrb[0].mxu0 %v2307
  %v2487 = vpop.f32.mrb[0].mxu0
  %v2488 = vadd.f32 %v2380, %v2487
  %v2489 = vpop.f32.mrb[0].mxu0
  %v2490 = vadd.f32 %v2384, %v2489
  %2491 = vmatprep.mubr.f32.mxu0 0.0
  %2492 = vmatmul.mubr.f32.gmra.mrb[0].mxu0 %v2308
  %v2493 = vpop.f32.mrb[0].mxu0
  %v2494 = vadd.f32 %v2380, %v2493
  %v2495 = vpop.f32.mrb[0].mxu0
  %v2496 = vadd.f32 %v2384, %v2495
  %2497 = vmatprep.mubr.f32.mxu0 0.0
  %2498 = vmatmul.mubr.f32.gmra.mrb[0].mxu0 %v2309
  %v2499 = vpop.f32.mrb[0].mxu0
  %v2500 = vadd.f32 %v2380, %v2499
  %v2501 = vpop.f32.mrb[0].mxu0
  %v2502 = vadd.f32 %v2384, %v2501
  %2503 = vmatprep.mubr.f32.mxu0 0.0
  %2504 = vmatmul.mubr.f32.gmra.mrb[0].mxu0 %v2310
  %v2505 = vpop.f32.mrb[0].mxu0
  %v2506 = vadd.f32 %v2380, %v2505
  %v2507 = vpop.f32.mrb[0].mxu0
  %v2508 = vadd.f32 %v2384, %v2507
  %2509 = vdwg.mxu0
  %2510 = vmatprep.subr.mxu0 %v2314
  %2511 = vmatpush1.msra.mxu0 %v2313
  %2512 = vmatprep.subr.mxu0 %v2318
  %2513 = vmatpush1.msra.mxu0 %v2317
  %2514 = vmatprep.subr.mxu0 %v2322
  %2515 = vmatpush1.msra.mxu0 %v2321
  %2516 = vmatprep.subr.mxu0 %v2326
  %2517 = vmatpush1.msra.mxu0 %v2325
  %2518 = vmatprep.subr.mxu0 %v2330
  %2519 = vmatpush1.msra.mxu0 %v2329
  %2520 = vmatprep.subr.mxu0 %v2334
  %2521 = vmatpush1.msra.mxu0 %v2333
  %2522 = vmatprep.subr.mxu0 %v2338
  %2523 = vmatpush1.msra.mxu0 %v2337
  %2524 = vmatprep.subr.mxu0 %v2342
  %2525 = vmatpush1.msra.mxu0 %v2341
  %2526 = vmatprep.subr.mxu0 %v2346
  %2527 = vmatpush1.msra.mxu0 %v2345
  %2528 = vmatprep.subr.mxu0 %v2350
  %2529 = vmatpush1.msra.mxu0 %v2349
  %2530 = vmatprep.subr.mxu0 %v2354
  %2531 = vmatpush1.msra.mxu0 %v2353
  %2532 = vmatprep.subr.mxu0 %v2358
  %2533 = vmatpush1.msra.mxu0 %v2357
  %2534 = vmatprep.subr.mxu0 %v2362
  %2535 = vmatpush1.msra.mxu0 %v2361
  %2536 = vmatprep.subr.mxu0 %v2366
  %2537 = vmatpush1.msra.mxu0 %v2365
  %2538 = vmatprep.subr.mxu0 %v2370
  %2539 = vmatpush1.msra.mxu0 %v2369
  %2540 = vmatprep.subr.mxu0 %v2374
  %2541 = vmatpush1.msra.mxu0 %v2373
  %2542 = vmatprep.subr.mxu0 0.0
  %2543 = vmatpush1.msra.mxu0 0.0
  %2544 = vmatprep.subr.mxu0 0.0
  %2545 = vmatpush1.msra.mxu0 0.0
  %2546 = vmatprep.subr.mxu0 0.0
  %2547 = vmatpush1.msra.mxu0 0.0
  %2548 = vmatprep.subr.mxu0 0.0
  %2549 = vmatpush1.msra.mxu0 0.0
  %2550 = vmatprep.subr.mxu0 0.0
  %2551 = vmatpush1.msra.mxu0 0.0
  %2552 = vmatprep.subr.mxu0 0.0
  %2553 = vmatpush1.msra.mxu0 0.0
  %2554 = vmatprep.subr.mxu0 0.0
  %2555 = vmatpush1.msra.mxu0 0.0
  %2556 = vmatprep.subr.mxu0 0.0
  %2557 = vmatpush1.msra.mxu0 0.0
  %2558 = vmatprep.subr.mxu0 0.0
  %2559 = vmatpush1.msra.mxu0 0.0
  %2560 = vmatprep.subr.mxu0 0.0
  %2561 = vmatpush1.msra.mxu0 0.0
  %2562 = vmatprep.subr.mxu0 0.0
  %2563 = vmatpush1.msra.mxu0 0.0
  %2564 = vmatprep.subr.mxu0 0.0
  %2565 = vmatpush1.msra.mxu0 0.0
  %2566 = vmatprep.subr.mxu0 0.0
  %2567 = vmatpush1.msra.mxu0 0.0
  %2568 = vmatprep.subr.mxu0 0.0
  %2569 = vmatpush1.msra.mxu0 0.0
  %2570 = vmatprep.subr.mxu0 0.0
  %2571 = vmatpush1.msra.mxu0 0.0
  %2572 = vmatprep.subr.mxu0 0.0
  %2573 = vmatpush1.msra.mxu0 0.0
  %2574 = vmatprep.mubr.f32.mxu0 0.0
  %2575 = vmatmul.mubr.f32.gmra.mrb[0].mxu0 %v2303
  %v2576 = vpop.f32.mrb[0].mxu0
  %v2577 = vadd.f32 %v2388, %v2576
  %v2578 = vpop.f32.mrb[0].mxu0
  %v2579 = vadd.f32 %v2392, %v2578
  %2580 = vmatprep.mubr.f32.mxu0 0.0
  %2581 = vmatmul.mubr.f32.gmra.mrb[0].mxu0 %v2304
  %v2582 = vpop.f32.mrb[0].mxu0
  %v2583 = vadd.f32 %v2388, %v2582
  %v2584 = vpop.f32.mrb[0].mxu0
  %v2585 = vadd.f32 %v2392, %v2584
  %2586 = vmatprep.mubr.f32.mxu0 0.0
  %2587 = vmatmul.mubr.f32.gmra.mrb[0].mxu0 %v2305
  %v2588 = vpop.f32.mrb[0].mxu0
  %v2589 = vadd.f32 %v2388, %v2588
  %v2590 = vpop.f32.mrb[0].mxu0
  %v2591 = vadd.f32 %v2392, %v2590
  %2592 = vmatprep.mubr.f32.mxu0 0.0
  %2593 = vmatmul.mubr.f32.gmra.mrb[0].mxu0 %v2306
  %v2594 = vpop.f32.mrb[0].mxu0
  %v2595 = vadd.f32 %v2388, %v2594
  %v2596 = vpop.f32.mrb[0].mxu0
  %v2597 = vadd.f32 %v2392, %v2596
  %2598 = vmatprep.mubr.f32.mxu0 0.0
  %2599 = vmatmul.mubr.f32.gmra.mrb[0].mxu0 %v2307
  %v2600 = vpop.f32.mrb[0].mxu0
  %v2601 = vadd.f32 %v2388, %v2600
  %v2602 = vpop.f32.mrb[0].mxu0
  %v2603 = vadd.f32 %v2392, %v2602
  %2604 = vmatprep.mubr.f32.mxu0 0.0
  %2605 = vmatmul.mubr.f32.gmra.mrb[0].mxu0 %v2308
  %v2606 = vpop.f32.mrb[0].mxu0
  %v2607 = vadd.f32 %v2388, %v2606
  %v2608 = vpop.f32.mrb[0].mxu0
  %v2609 = vadd.f32 %v2392, %v2608
  %2610 = vmatprep.mubr.f32.mxu0 0.0
  %2611 = vmatmul.mubr.f32.gmra.mrb[0].mxu0 %v2309
  %v2612 = vpop.f32.mrb[0].mxu0
  %v2613 = vadd.f32 %v2388, %v2612
  %v2614 = vpop.f32.mrb[0].mxu0
  %v2615 = vadd.f32 %v2392, %v2614
  %2616 = vmatprep.mubr.f32.mxu0 0.0
  %2617 = vmatmul.mubr.f32.gmra.mrb[0].mxu0 %v2310
  %v2618 = vpop.f32.mrb[0].mxu0
  %v2619 = vadd.f32 %v2388, %v2618
  %v2620 = vpop.f32.mrb[0].mxu0
  %v2621 = vadd.f32 %v2392, %v2620
  %2622 = vdwg.mxu0
  %2623 = vst [vmem:[#allocation2] sm:$0xff] %v2464
  %2624 = vst [vmem:[#allocation2 + $0x8] sm:$0xff] %v2466
  %2625 = vst [vmem:[#allocation2 + $0x10] sm:$0xff] %v2577
  %2626 = vst [vmem:[#allocation2 + $0x18] sm:$0xff] %v2579
  %2627 = vst [vmem:[#allocation2 + $0x20] sm:$0xff] %v2470
  %2628 = vst [vmem:[#allocation2 + $0x28] sm:$0xff] %v2472
  %2629 = vst [vmem:[#allocation2 + $0x30] sm:$0xff] %v2583
  %2630 = vst [vmem:[#allocation2 + $0x38] sm:$0xff] %v2585
  %2631 = vst [vmem:[#allocation2 + $0x40] sm:$0xff] %v2476
  %2632 = vst [vmem:[#allocation2 + $0x48] sm:$0xff] %v2478
  %2633 = vst [vmem:[#allocation2 + $0x50] sm:$0xff] %v2589
  %2634 = vst [vmem:[#allocation2 + $0x58] sm:$0xff] %v2591
  %2635 = vst [vmem:[#allocation2 + $0x60] sm:$0xff] %v2482
  %2636 = vst [vmem:[#allocation2 + $0x68] sm:$0xff] %v2484
  %2637 = vst [vmem:[#allocation2 + $0x70] sm:$0xff] %v2595
  %2638 = vst [vmem:[#allocation2 + $0x78] sm:$0xff] %v2597
  %2639 = vst [vmem:[#allocation2 + $0x80] sm:$0xff] %v2488
  %2640 = vst [vmem:[#allocation2 + $0x88] sm:$0xff] %v2490
  %2641 = vst [vmem:[#allocation2 + $0x90] sm:$0xff] %v2601
  %2642 = vst [vmem:[#allocation2 + $0x98] sm:$0xff] %v2603
  %2643 = vst [vmem:[#allocation2 + $0xa0] sm:$0xff] %v2494
  %2644 = vst [vmem:[#allocation2 + $0xa8] sm:$0xff] %v2496
  %2645 = vst [vmem:[#allocation2 + $0xb0] sm:$0xff] %v2607
  %2646 = vst [vmem:[#allocation2 + $0xb8] sm:$0xff] %v2609
  %2647 = vst [vmem:[#allocation2 + $0xc0] sm:$0xff] %v2500
  %2648 = vst [vmem:[#allocation2 + $0xc8] sm:$0xff] %v2502
  %2649 = vst [vmem:[#allocation2 + $0xd0] sm:$0xff] %v2613
  %2650 = vst [vmem:[#allocation2 + $0xd8] sm:$0xff] %v2615
  %2651 = vst [vmem:[#allocation2 + $0xe0] sm:$0xff] %v2506
  %2652 = vst [vmem:[#allocation2 + $0xe8] sm:$0xff] %v2508
  %2653 = vst [vmem:[#allocation2 + $0xf0] sm:$0xff] %v2619
  %2654 = vst [vmem:[#allocation2 + $0xf8] sm:$0xff] %v2621
  %v2655 = vld [vmem:[%s362] sm:$0xff]
  %v2656 = vld [vmem:[%s362 + $0x8] sm:$0xff]
  %v2657 = vld [vmem:[%s362 + $0x10] sm:$0xff]
  %v2658 = vld [vmem:[%s362 + $0x18] sm:$0xff]
  %v2659 = vld [vmem:[%s5] sm:$0xff]
  %v2660 = vld [vmem:[%s5 + $0x8] sm:$0xff]
  %v2661 = vld [vmem:[%s5 + $0x10] sm:$0xff]
  %v2662 = vld [vmem:[%s5 + $0x18] sm:$0xff]
  %v2663 = vld [vmem:[%s5 + $0x20] sm:$0xff]
  %v2664 = vld [vmem:[%s5 + $0x28] sm:$0xff]
  %v2665 = vld [vmem:[%s5 + $0x30] sm:$0xff]
  %v2666 = vld [vmem:[%s5 + $0x38] sm:$0xff]
  %v2667 = vld [vmem:[%s5 + $0x40] sm:$0xff]
  %v2668 = vld [vmem:[%s5 + $0x48] sm:$0xff]
  %v2669 = vld [vmem:[%s5 + $0x50] sm:$0xff]
  %v2670 = vld [vmem:[%s5 + $0x58] sm:$0xff]
  %v2671 = vld [vmem:[%s5 + $0x60] sm:$0xff]
  %v2672 = vld [vmem:[%s5 + $0x68] sm:$0xff]
  %v2673 = vld [vmem:[%s5 + $0x70] sm:$0xff]
  %v2674 = vld [vmem:[%s5 + $0x78] sm:$0xff]
  %v2675 = vld [vmem:[%s5 + $0x80] sm:$0xff]
  %v2676 = vld [vmem:[%s5 + $0x88] sm:$0xff]
  %v2677 = vld [vmem:[%s5 + $0x90] sm:$0xff]
  %v2678 = vld [vmem:[%s5 + $0x98] sm:$0xff]
  %v2679 = vld [vmem:[%s5 + $0xa0] sm:$0xff]
  %v2680 = vld [vmem:[%s5 + $0xa8] sm:$0xff]
  %v2681 = vld [vmem:[%s5 + $0xb0] sm:$0xff]
  %v2682 = vld [vmem:[%s5 + $0xb8] sm:$0xff]
  %v2683 = vld [vmem:[%s5 + $0xc0] sm:$0xff]
  %v2684 = vld [vmem:[%s5 + $0xc8] sm:$0xff]
  %v2685 = vld [vmem:[%s5 + $0xd0] sm:$0xff]
  %v2686 = vld [vmem:[%s5 + $0xd8] sm:$0xff]
  %v2687 = vld [vmem:[%s5 + $0xe0] sm:$0xff]
  %v2688 = vld [vmem:[%s5 + $0xe8] sm:$0xff]
  %v2689 = vld [vmem:[%s5 + $0xf0] sm:$0xff]
  %v2690 = vld [vmem:[%s5 + $0xf8] sm:$0xff]
  %v2691 = vld [vmem:[%s5 + $0x100] sm:$0xff]
  %v2692 = vld [vmem:[%s5 + $0x108] sm:$0xff]
  %v2693 = vld [vmem:[%s5 + $0x110] sm:$0xff]
  %v2694 = vld [vmem:[%s5 + $0x118] sm:$0xff]
  %v2695 = vld [vmem:[%s5 + $0x120] sm:$0xff]
  %v2696 = vld [vmem:[%s5 + $0x128] sm:$0xff]
  %v2697 = vld [vmem:[%s5 + $0x130] sm:$0xff]
  %v2698 = vld [vmem:[%s5 + $0x138] sm:$0xff]
  %v2699 = vld [vmem:[%s5 + $0x140] sm:$0xff]
  %v2700 = vld [vmem:[%s5 + $0x148] sm:$0xff]
  %v2701 = vld [vmem:[%s5 + $0x150] sm:$0xff]
  %v2702 = vld [vmem:[%s5 + $0x158] sm:$0xff]
  %v2703 = vld [vmem:[%s5 + $0x160] sm:$0xff]
  %v2704 = vld [vmem:[%s5 + $0x168] sm:$0xff]
  %v2705 = vld [vmem:[%s5 + $0x170] sm:$0xff]
  %v2706 = vld [vmem:[%s5 + $0x178] sm:$0xff]
  %v2707 = vld [vmem:[%s5 + $0x180] sm:$0xff]
  %v2708 = vld [vmem:[%s5 + $0x188] sm:$0xff]
  %v2709 = vld [vmem:[%s5 + $0x190] sm:$0xff]
  %v2710 = vld [vmem:[%s5 + $0x198] sm:$0xff]
  %v2711 = vld [vmem:[%s5 + $0x1a0] sm:$0xff]
  %v2712 = vld [vmem:[%s5 + $0x1a8] sm:$0xff]
  %v2713 = vld [vmem:[%s5 + $0x1b0] sm:$0xff]
  %v2714 = vld [vmem:[%s5 + $0x1b8] sm:$0xff]
  %v2715 = vld [vmem:[%s5 + $0x1c0] sm:$0xff]
  %v2716 = vld [vmem:[%s5 + $0x1c8] sm:$0xff]
  %v2717 = vld [vmem:[%s5 + $0x1d0] sm:$0xff]
  %v2718 = vld [vmem:[%s5 + $0x1d8] sm:$0xff]
  %v2719 = vld [vmem:[%s5 + $0x1e0] sm:$0xff]
  %v2720 = vld [vmem:[%s5 + $0x1e8] sm:$0xff]
  %v2721 = vld [vmem:[%s5 + $0x1f0] sm:$0xff]
  %v2722 = vld [vmem:[%s5 + $0x1f8] sm:$0xff]
  %2723 = vmatprep.subr.mxu0 %v2660
  %2724 = vmatpush1.msra.mxu0 %v2659
  %2725 = vmatprep.subr.mxu0 %v2664
  %2726 = vmatpush1.msra.mxu0 %v2663
  %2727 = vmatprep.subr.mxu0 %v2668
  %2728 = vmatpush1.msra.mxu0 %v2667
  %2729 = vmatprep.subr.mxu0 %v2672
  %2730 = vmatpush1.msra.mxu0 %v2671
  %2731 = vmatprep.subr.mxu0 %v2676
  %2732 = vmatpush1.msra.mxu0 %v2675
  %2733 = vmatprep.subr.mxu0 %v2680
  %2734 = vmatpush1.msra.mxu0 %v2679
  %2735 = vmatprep.subr.mxu0 %v2684
  %2736 = vmatpush1.msra.mxu0 %v2683
  %2737 = vmatprep.subr.mxu0 %v2688
  %2738 = vmatpush1.msra.mxu0 %v2687
  %2739 = vmatprep.subr.mxu0 %v2692
  %2740 = vmatpush1.msra.mxu0 %v2691
  %2741 = vmatprep.subr.mxu0 %v2696
  %2742 = vmatpush1.msra.mxu0 %v2695
  %2743 = vmatprep.subr.mxu0 %v2700
  %2744 = vmatpush1.msra.mxu0 %v2699
  %2745 = vmatprep.subr.mxu0 %v2704
  %2746 = vmatpush1.msra.mxu0 %v2703
  %2747 = vmatprep.subr.mxu0 %v2708
  %2748 = vmatpush1.msra.mxu0 %v2707
  %2749 = vmatprep.subr.mxu0 %v2712
  %2750 = vmatpush1.msra.mxu0 %v2711
  %2751 = vmatprep.subr.mxu0 %v2716
  %2752 = vmatpush1.msra.mxu0 %v2715
  %2753 = vmatprep.subr.mxu0 %v2720
  %2754 = vmatpush1.msra.mxu0 %v2719
  %2755 = vmatprep.subr.mxu0 0.0
  %2756 = vmatpush1.msra.mxu0 0.0
  %2757 = vmatprep.subr.mxu0 0.0
  %2758 = vmatpush1.msra.mxu0 0.0
  %2759 = vmatprep.subr.mxu0 0.0
  %2760 = vmatpush1.msra.mxu0 0.0
  %2761 = vmatprep.subr.mxu0 0.0
  %2762 = vmatpush1.msra.mxu0 0.0
  %2763 = vmatprep.subr.mxu0 0.0
  %2764 = vmatpush1.msra.mxu0 0.0
  %2765 = vmatprep.subr.mxu0 0.0
  %2766 = vmatpush1.msra.mxu0 0.0
  %2767 = vmatprep.subr.mxu0 0.0
  %2768 = vmatpush1.msra.mxu0 0.0
  %2769 = vmatprep.subr.mxu0 0.0
  %2770 = vmatpush1.msra.mxu0 0.0
  %2771 = vmatprep.subr.mxu0 0.0
  %2772 = vmatpush1.msra.mxu0 0.0
  %2773 = vmatprep.subr.mxu0 0.0
  %2774 = vmatpush1.msra.mxu0 0.0
  %2775 = vmatprep.subr.mxu0 0.0
  %2776 = vmatpush1.msra.mxu0 0.0
  %2777 = vmatprep.subr.mxu0 0.0
  %2778 = vmatpush1.msra.mxu0 0.0
  %2779 = vmatprep.subr.mxu0 0.0
  %2780 = vmatpush1.msra.mxu0 0.0
  %2781 = vmatprep.subr.mxu0 0.0
  %2782 = vmatpush1.msra.mxu0 0.0
  %2783 = vmatprep.subr.mxu0 0.0
  %2784 = vmatpush1.msra.mxu0 0.0
  %2785 = vmatprep.subr.mxu0 0.0
  %2786 = vmatpush1.msra.mxu0 0.0
  %2787 = vmatprep.mubr.f32.mxu0 0.0
  %2788 = vmatmul.mubr.f32.gmra.mrb[0].mxu0 0.0
  %v2789 = vpop.f32.mrb[0].mxu0
  %v2790 = vadd.f32 0.0, %v2789
  %v2791 = vpop.f32.mrb[0].mxu0
  %v2792 = vadd.f32 0.0, %v2791
  %2793 = vdwg.mxu0
  %2794 = vmatprep.subr.mxu0 %v2662
  %2795 = vmatpush1.msra.mxu0 %v2661
  %2796 = vmatprep.subr.mxu0 %v2666
  %2797 = vmatpush1.msra.mxu0 %v2665
  %2798 = vmatprep.subr.mxu0 %v2670
  %2799 = vmatpush1.msra.mxu0 %v2669
  %2800 = vmatprep.subr.mxu0 %v2674
  %2801 = vmatpush1.msra.mxu0 %v2673
  %2802 = vmatprep.subr.mxu0 %v2678
  %2803 = vmatpush1.msra.mxu0 %v2677
  %2804 = vmatprep.subr.mxu0 %v2682
  %2805 = vmatpush1.msra.mxu0 %v2681
  %2806 = vmatprep.subr.mxu0 %v2686
  %2807 = vmatpush1.msra.mxu0 %v2685
  %2808 = vmatprep.subr.mxu0 %v2690
  %2809 = vmatpush1.msra.mxu0 %v2689
  %2810 = vmatprep.subr.mxu0 %v2694
  %2811 = vmatpush1.msra.mxu0 %v2693
  %2812 = vmatprep.subr.mxu0 %v2698
  %2813 = vmatpush1.msra.mxu0 %v2697
  %2814 = vmatprep.subr.mxu0 %v2702
  %2815 = vmatpush1.msra.mxu0 %v2701
  %2816 = vmatprep.subr.mxu0 %v2706
  %2817 = vmatpush1.msra.mxu0 %v2705
  %2818 = vmatprep.subr.mxu0 %v2710
  %2819 = vmatpush1.msra.mxu0 %v2709
  %2820 = vmatprep.subr.mxu0 %v2714
  %2821 = vmatpush1.msra.mxu0 %v2713
  %2822 = vmatprep.subr.mxu0 %v2718
  %2823 = vmatpush1.msra.mxu0 %v2717
  %2824 = vmatprep.subr.mxu0 %v2722
  %2825 = vmatpush1.msra.mxu0 %v2721
  %2826 = vmatprep.subr.mxu0 0.0
  %2827 = vmatpush1.msra.mxu0 0.0
  %2828 = vmatprep.subr.mxu0 0.0
  %2829 = vmatpush1.msra.mxu0 0.0
  %2830 = vmatprep.subr.mxu0 0.0
  %2831 = vmatpush1.msra.mxu0 0.0
  %2832 = vmatprep.subr.mxu0 0.0
  %2833 = vmatpush1.msra.mxu0 0.0
  %2834 = vmatprep.subr.mxu0 0.0
  %2835 = vmatpush1.msra.mxu0 0.0
  %2836 = vmatprep.subr.mxu0 0.0
  %2837 = vmatpush1.msra.mxu0 0.0
  %2838 = vmatprep.subr.mxu0 0.0
  %2839 = vmatpush1.msra.mxu0 0.0
  %2840 = vmatprep.subr.mxu0 0.0
  %2841 = vmatpush1.msra.mxu0 0.0
  %2842 = vmatprep.subr.mxu0 0.0
  %2843 = vmatpush1.msra.mxu0 0.0
  %2844 = vmatprep.subr.mxu0 0.0
  %2845 = vmatpush1.msra.mxu0 0.0
  %2846 = vmatprep.subr.mxu0 0.0
  %2847 = vmatpush1.msra.mxu0 0.0
  %2848 = vmatprep.subr.mxu0 0.0
  %2849 = vmatpush1.msra.mxu0 0.0
  %2850 = vmatprep.subr.mxu0 0.0
  %2851 = vmatpush1.msra.mxu0 0.0
  %2852 = vmatprep.subr.mxu0 0.0
  %2853 = vmatpush1.msra.mxu0 0.0
  %2854 = vmatprep.subr.mxu0 0.0
  %2855 = vmatpush1.msra.mxu0 0.0
  %2856 = vmatprep.subr.mxu0 0.0
  %2857 = vmatpush1.msra.mxu0 0.0
  %2858 = vmatprep.mubr.f32.mxu0 0.0
  %2859 = vmatmul.mubr.f32.gmra.mrb[0].mxu0 0.0
  %v2860 = vpop.f32.mrb[0].mxu0
  %v2861 = vadd.f32 0.0, %v2860
  %v2862 = vpop.f32.mrb[0].mxu0
  %v2863 = vadd.f32 0.0, %v2862
  %2864 = vdwg.mxu0
  %v2865 = vadd.f32 %v2655, %v2790
  %v2866 = vadd.f32 %v2656, %v2792
  %v2867 = vadd.f32 %v2657, %v2861
  %v2868 = vadd.f32 %v2658, %v2863
  %v2869 = vxor.u32 %v2865, 2147483648
  %v2870 = vxor.u32 %v2866, 2147483648
  %v2871 = vxor.u32 %v2867, 2147483648
  %v2872 = vmul.f32 %v2869, 1.442695
  %v2873 = vpow.pop %v2872
  %v2874 = vmul.f32 %v2870, 1.442695
  %v2875 = vpow.pop %v2874
  %v2876 = vmul.f32 %v2871, 1.442695
  %v2877 = vpow.pop %v2876
  %v2878 = vadd.f32 %v2873, 1.0
  %v2879 = vadd.f32 %v2875, 1.0
  %v2880 = vadd.f32 %v2877, 1.0
  %v2881 = vrcp.pop %v2878
  %v2882 = vmul.f32 1.0, %v2881
  %v2883 = vrcp.pop %v2879
  %v2884 = vmul.f32 1.0, %v2883
  %v2885 = vrcp.pop %v2880
  %v2886 = vmul.f32 1.0, %v2885
  %v2887 = vtanh.pop %v2868
  %v2888 = vmul.f32 %v2884, 0.0
  %v2889 = vmul.f32 %v2882, %v2887
  %v2890 = vadd.f32 %v2888, %v2889
  %v2891 = vtanh.pop %v2890
  %v2892 = vmul.f32 %v2886, %v2891
  %v2893 = vld [vmem:[%s7] sm:$0xff]
  %v2894 = vld [vmem:[%s7 + $0x8] sm:$0xff]
  %v2895 = vld [vmem:[%s7 + $0x10] sm:$0xff]
  %v2896 = vld [vmem:[%s7 + $0x18] sm:$0xff]
  %v2897 = vld [vmem:[%s7 + $0x20] sm:$0xff]
  %v2898 = vld [vmem:[%s7 + $0x28] sm:$0xff]
  %v2899 = vld [vmem:[%s7 + $0x30] sm:$0xff]
  %v2900 = vld [vmem:[%s7 + $0x38] sm:$0xff]
  %v2901 = vld [vmem:[%s7 + $0x40] sm:$0xff]
  %v2902 = vld [vmem:[%s7 + $0x48] sm:$0xff]
  %v2903 = vld [vmem:[%s7 + $0x50] sm:$0xff]
  %v2904 = vld [vmem:[%s7 + $0x58] sm:$0xff]
  %v2905 = vld [vmem:[%s7 + $0x60] sm:$0xff]
  %v2906 = vld [vmem:[%s7 + $0x68] sm:$0xff]
  %v2907 = vld [vmem:[%s7 + $0x70] sm:$0xff]
  %v2908 = vld [vmem:[%s7 + $0x78] sm:$0xff]
  %v2909 = vld [vmem:[%s8] sm:$0x1]
  %v2911 = vlaneseq
  %v2912 = vshrl.u32 %v2911, 7
  %v2913 = vsub.s32 0, %v2912
  %v2914 = vrot.slane %v2909, %v2913
  %2916 = vmatprep.subr.mxu0 0.0
  %2917 = vmatpush1.msra.mxu0 %v2893
  %2918 = vmatprep.subr.mxu0 0.0
  %2919 = vmatpush1.msra.mxu0 %v2894
  %2920 = vmatprep.subr.mxu0 0.0
  %2921 = vmatpush1.msra.mxu0 %v2895
  %2922 = vmatprep.subr.mxu0 0.0
  %2923 = vmatpush1.msra.mxu0 %v2896
  %2924 = vmatprep.subr.mxu0 0.0
  %2925 = vmatpush1.msra.mxu0 %v2897
  %2926 = vmatprep.subr.mxu0 0.0
  %2927 = vmatpush1.msra.mxu0 %v2898
  %2928 = vmatprep.subr.mxu0 0.0
  %2929 = vmatpush1.msra.mxu0 %v2899
  %2930 = vmatprep.subr.mxu0 0.0
  %2931 = vmatpush1.msra.mxu0 %v2900
  %2932 = vmatprep.subr.mxu0 0.0
  %2933 = vmatpush1.msra.mxu0 %v2901
  %2934 = vmatprep.subr.mxu0 0.0
  %2935 = vmatpush1.msra.mxu0 %v2902
  %2936 = vmatprep.subr.mxu0 0.0
  %2937 = vmatpush1.msra.mxu0 %v2903
  %2938 = vmatprep.subr.mxu0 0.0
  %2939 = vmatpush1.msra.mxu0 %v2904
  %2940 = vmatprep.subr.mxu0 0.0
  %2941 = vmatpush1.msra.mxu0 %v2905
  %2942 = vmatprep.subr.mxu0 0.0
  %2943 = vmatpush1.msra.mxu0 %v2906
  %2944 = vmatprep.subr.mxu0 0.0
  %2945 = vmatpush1.msra.mxu0 %v2907
  %2946 = vmatprep.subr.mxu0 0.0
  %2947 = vmatpush1.msra.mxu0 %v2908
  %2948 = vmatprep.subr.mxu0 0.0
  %2949 = vmatpush1.msra.mxu0 0.0
  %2950 = vmatprep.subr.mxu0 0.0
  %2951 = vmatpush1.msra.mxu0 0.0
  %2952 = vmatprep.subr.mxu0 0.0
  %2953 = vmatpush1.msra.mxu0 0.0
  %2954 = vmatprep.subr.mxu0 0.0
  %2955 = vmatpush1.msra.mxu0 0.0
  %2956 = vmatprep.subr.mxu0 0.0
  %2957 = vmatpush1.msra.mxu0 0.0
  %2958 = vmatprep.subr.mxu0 0.0
  %2959 = vmatpush1.msra.mxu0 0.0
  %2960 = vmatprep.subr.mxu0 0.0
  %2961 = vmatpush1.msra.mxu0 0.0
  %2962 = vmatprep.subr.mxu0 0.0
  %2963 = vmatpush1.msra.mxu0 0.0
  %2964 = vmatprep.subr.mxu0 0.0
  %2965 = vmatpush1.msra.mxu0 0.0
  %2966 = vmatprep.subr.mxu0 0.0
  %2967 = vmatpush1.msra.mxu0 0.0
  %2968 = vmatprep.subr.mxu0 0.0
  %2969 = vmatpush1.msra.mxu0 0.0
  %2970 = vmatprep.subr.mxu0 0.0
  %2971 = vmatpush1.msra.mxu0 0.0
  %2972 = vmatprep.subr.mxu0 0.0
  %2973 = vmatpush1.msra.mxu0 0.0
  %2974 = vmatprep.subr.mxu0 0.0
  %2975 = vmatpush1.msra.mxu0 0.0
  %2976 = vmatprep.subr.mxu0 0.0
  %2977 = vmatpush1.msra.mxu0 0.0
  %2978 = vmatprep.subr.mxu0 0.0
  %2979 = vmatpush1.msra.mxu0 0.0
  %2980 = vmatprep.mubr.f32.mxu0 0.0
  %2981 = vmatmul.mubr.f32.gmra.mrb[0].mxu0 %v2892
  %v2982 = vpop.f32.mrb[0].mxu0
  %v2983 = vadd.f32 %v2914, %v2982
  %v2984 = vpop.f32.mrb[0].mxu0
  %2985 = vdwg.mxu0
  %2986 = vst [vmem:[%s9] sm:$0xff] %v2983
  %v2987 = vld [vmem:[%s604] sm:$0xff]
  %v2988 = vld [vmem:[%s604 + $0x8] sm:$0xff]
  %v2989 = vld [vmem:[%s604 + $0x10] sm:$0xff]
  %v2990 = vld [vmem:[%s604 + $0x18] sm:$0xff]
  %v2991 = vld [vmem:[%s5] sm:$0xff]
  %v2992 = vld [vmem:[%s5 + $0x8] sm:$0xff]
  %v2993 = vld [vmem:[%s5 + $0x10] sm:$0xff]
  %v2994 = vld [vmem:[%s5 + $0x18] sm:$0xff]
  %v2995 = vld [vmem:[%s5 + $0x20] sm:$0xff]
  %v2996 = vld [vmem:[%s5 + $0x28] sm:$0xff]
  %v2997 = vld [vmem:[%s5 + $0x30] sm:$0xff]
  %v2998 = vld [vmem:[%s5 + $0x38] sm:$0xff]
  %v2999 = vld [vmem:[%s5 + $0x40] sm:$0xff]
  %v3000 = vld [vmem:[%s5 + $0x48] sm:$0xff]
  %v3001 = vld [vmem:[%s5 + $0x50] sm:$0xff]
  %v3002 = vld [vmem:[%s5 + $0x58] sm:$0xff]
  %v3003 = vld [vmem:[%s5 + $0x60] sm:$0xff]
  %v3004 = vld [vmem:[%s5 + $0x68] sm:$0xff]
  %v3005 = vld [vmem:[%s5 + $0x70] sm:$0xff]
  %v3006 = vld [vmem:[%s5 + $0x78] sm:$0xff]
  %v3007 = vld [vmem:[%s5 + $0x80] sm:$0xff]
  %v3008 = vld [vmem:[%s5 + $0x88] sm:$0xff]
  %v3009 = vld [vmem:[%s5 + $0x90] sm:$0xff]
  %v3010 = vld [vmem:[%s5 + $0x98] sm:$0xff]
  %v3011 = vld [vmem:[%s5 + $0xa0] sm:$0xff]
  %v3012 = vld [vmem:[%s5 + $0xa8] sm:$0xff]
  %v3013 = vld [vmem:[%s5 + $0xb0] sm:$0xff]
  %v3014 = vld [vmem:[%s5 + $0xb8] sm:$0xff]
  %v3015 = vld [vmem:[%s5 + $0xc0] sm:$0xff]
  %v3016 = vld [vmem:[%s5 + $0xc8] sm:$0xff]
  %v3017 = vld [vmem:[%s5 + $0xd0] sm:$0xff]
  %v3018 = vld [vmem:[%s5 + $0xd8] sm:$0xff]
  %v3019 = vld [vmem:[%s5 + $0xe0] sm:$0xff]
  %v3020 = vld [vmem:[%s5 + $0xe8] sm:$0xff]
  %v3021 = vld [vmem:[%s5 + $0xf0] sm:$0xff]
  %v3022 = vld [vmem:[%s5 + $0xf8] sm:$0xff]
  %v3023 = vld [vmem:[%s5 + $0x100] sm:$0xff]
  %v3024 = vld [vmem:[%s5 + $0x108] sm:$0xff]
  %v3025 = vld [vmem:[%s5 + $0x110] sm:$0xff]
  %v3026 = vld [vmem:[%s5 + $0x118] sm:$0xff]
  %v3027 = vld [vmem:[%s5 + $0x120] sm:$0xff]
  %v3028 = vld [vmem:[%s5 + $0x128] sm:$0xff]
  %v3029 = vld [vmem:[%s5 + $0x130] sm:$0xff]
  %v3030 = vld [vmem:[%s5 + $0x138] sm:$0xff]
  %v3031 = vld [vmem:[%s5 + $0x140] sm:$0xff]
  %v3032 = vld [vmem:[%s5 + $0x148] sm:$0xff]
  %v3033 = vld [vmem:[%s5 + $0x150] sm:$0xff]
  %v3034 = vld [vmem:[%s5 + $0x158] sm:$0xff]
  %v3035 = vld [vmem:[%s5 + $0x160] sm:$0xff]
  %v3036 = vld [vmem:[%s5 + $0x168] sm:$0xff]
  %v3037 = vld [vmem:[%s5 + $0x170] sm:$0xff]
  %v3038 = vld [vmem:[%s5 + $0x178] sm:$0xff]
  %v3039 = vld [vmem:[%s5 + $0x180] sm:$0xff]
  %v3040 = vld [vmem:[%s5 + $0x188] sm:$0xff]
  %v3041 = vld [vmem:[%s5 + $0x190] sm:$0xff]
  %v3042 = vld [vmem:[%s5 + $0x198] sm:$0xff]
  %v3043 = vld [vmem:[%s5 + $0x1a0] sm:$0xff]
  %v3044 = vld [vmem:[%s5 + $0x1a8] sm:$0xff]
  %v3045 = vld [vmem:[%s5 + $0x1b0] sm:$0xff]
  %v3046 = vld [vmem:[%s5 + $0x1b8] sm:$0xff]
  %v3047 = vld [vmem:[%s5 + $0x1c0] sm:$0xff]
  %v3048 = vld [vmem:[%s5 + $0x1c8] sm:$0xff]
  %v3049 = vld [vmem:[%s5 + $0x1d0] sm:$0xff]
  %v3050 = vld [vmem:[%s5 + $0x1d8] sm:$0xff]
  %v3051 = vld [vmem:[%s5 + $0x1e0] sm:$0xff]
  %v3052 = vld [vmem:[%s5 + $0x1e8] sm:$0xff]
  %v3053 = vld [vmem:[%s5 + $0x1f0] sm:$0xff]
  %v3054 = vld [vmem:[%s5 + $0x1f8] sm:$0xff]
  %3055 = vmatprep.subr.mxu0 %v2992
  %3056 = vmatpush1.msra.mxu0 %v2991
  %3057 = vmatprep.subr.mxu0 %v2996
  %3058 = vmatpush1.msra.mxu0 %v2995
  %3059 = vmatprep.subr.mxu0 %v3000
  %3060 = vmatpush1.msra.mxu0 %v2999
  %3061 = vmatprep.subr.mxu0 %v3004
  %3062 = vmatpush1.msra.mxu0 %v3003
  %3063 = vmatprep.subr.mxu0 %v3008
  %3064 = vmatpush1.msra.mxu0 %v3007
  %3065 = vmatprep.subr.mxu0 %v3012
  %3066 = vmatpush1.msra.mxu0 %v3011
  %3067 = vmatprep.subr.mxu0 %v3016
  %3068 = vmatpush1.msra.mxu0 %v3015
  %3069 = vmatprep.subr.mxu0 %v3020
  %3070 = vmatpush1.msra.mxu0 %v3019
  %3071 = vmatprep.subr.mxu0 %v3024
  %3072 = vmatpush1.msra.mxu0 %v3023
  %3073 = vmatprep.subr.mxu0 %v3028
  %3074 = vmatpush1.msra.mxu0 %v3027
  %3075 = vmatprep.subr.mxu0 %v3032
  %3076 = vmatpush1.msra.mxu0 %v3031
  %3077 = vmatprep.subr.mxu0 %v3036
  %3078 = vmatpush1.msra.mxu0 %v3035
  %3079 = vmatprep.subr.mxu0 %v3040
  %3080 = vmatpush1.msra.mxu0 %v3039
  %3081 = vmatprep.subr.mxu0 %v3044
  %3082 = vmatpush1.msra.mxu0 %v3043
  %3083 = vmatprep.subr.mxu0 %v3048
  %3084 = vmatpush1.msra.mxu0 %v3047
  %3085 = vmatprep.subr.mxu0 %v3052
  %3086 = vmatpush1.msra.mxu0 %v3051
  %3087 = vmatprep.subr.mxu0 0.0
  %3088 = vmatpush1.msra.mxu0 0.0
  %3089 = vmatprep.subr.mxu0 0.0
  %3090 = vmatpush1.msra.mxu0 0.0
  %3091 = vmatprep.subr.mxu0 0.0
  %3092 = vmatpush1.msra.mxu0 0.0
  %3093 = vmatprep.subr.mxu0 0.0
  %3094 = vmatpush1.msra.mxu0 0.0
  %3095 = vmatprep.subr.mxu0 0.0
  %3096 = vmatpush1.msra.mxu0 0.0
  %3097 = vmatprep.subr.mxu0 0.0
  %3098 = vmatpush1.msra.mxu0 0.0
  %3099 = vmatprep.subr.mxu0 0.0
  %3100 = vmatpush1.msra.mxu0 0.0
  %3101 = vmatprep.subr.mxu0 0.0
  %3102 = vmatpush1.msra.mxu0 0.0
  %3103 = vmatprep.subr.mxu0 0.0
  %3104 = vmatpush1.msra.mxu0 0.0
  %3105 = vmatprep.subr.mxu0 0.0
  %3106 = vmatpush1.msra.mxu0 0.0
  %3107 = vmatprep.subr.mxu0 0.0
  %3108 = vmatpush1.msra.mxu0 0.0
  %3109 = vmatprep.subr.mxu0 0.0
  %3110 = vmatpush1.msra.mxu0 0.0
  %3111 = vmatprep.subr.mxu0 0.0
  %3112 = vmatpush1.msra.mxu0 0.0
  %3113 = vmatprep.subr.mxu0 0.0
  %3114 = vmatpush1.msra.mxu0 0.0
  %3115 = vmatprep.subr.mxu0 0.0
  %3116 = vmatpush1.msra.mxu0 0.0
  %3117 = vmatprep.subr.mxu0 0.0
  %3118 = vmatpush1.msra.mxu0 0.0
  %3119 = vmatprep.mubr.f32.mxu0 0.0
  %3120 = vmatmul.mubr.f32.gmra.mrb[0].mxu0 %v2892
  %v3121 = vpop.f32.mrb[0].mxu0
  %v3122 = vadd.f32 0.0, %v3121
  %v3123 = vpop.f32.mrb[0].mxu0
  %v3124 = vadd.f32 0.0, %v3123
  %3125 = vdwg.mxu0
  %3126 = vmatprep.subr.mxu0 %v2994
  %3127 = vmatpush1.msra.mxu0 %v2993
  %3128 = vmatprep.subr.mxu0 %v2998
  %3129 = vmatpush1.msra.mxu0 %v2997
  %3130 = vmatprep.subr.mxu0 %v3002
  %3131 = vmatpush1.msra.mxu0 %v3001
  %3132 = vmatprep.subr.mxu0 %v3006
  %3133 = vmatpush1.msra.mxu0 %v3005
  %3134 = vmatprep.subr.mxu0 %v3010
  %3135 = vmatpush1.msra.mxu0 %v3009
  %3136 = vmatprep.subr.mxu0 %v3014
  %3137 = vmatpush1.msra.mxu0 %v3013
  %3138 = vmatprep.subr.mxu0 %v3018
  %3139 = vmatpush1.msra.mxu0 %v3017
  %3140 = vmatprep.subr.mxu0 %v3022
  %3141 = vmatpush1.msra.mxu0 %v3021
  %3142 = vmatprep.subr.mxu0 %v3026
  %3143 = vmatpush1.msra.mxu0 %v3025
  %3144 = vmatprep.subr.mxu0 %v3030
  %3145 = vmatpush1.msra.mxu0 %v3029
  %3146 = vmatprep.subr.mxu0 %v3034
  %3147 = vmatpush1.msra.mxu0 %v3033
  %3148 = vmatprep.subr.mxu0 %v3038
  %3149 = vmatpush1.msra.mxu0 %v3037
  %3150 = vmatprep.subr.mxu0 %v3042
  %3151 = vmatpush1.msra.mxu0 %v3041
  %3152 = vmatprep.subr.mxu0 %v3046
  %3153 = vmatpush1.msra.mxu0 %v3045
  %3154 = vmatprep.subr.mxu0 %v3050
  %3155 = vmatpush1.msra.mxu0 %v3049
  %3156 = vmatprep.subr.mxu0 %v3054
  %3157 = vmatpush1.msra.mxu0 %v3053
  %3158 = vmatprep.subr.mxu0 0.0
  %3159 = vmatpush1.msra.mxu0 0.0
  %3160 = vmatprep.subr.mxu0 0.0
  %3161 = vmatpush1.msra.mxu0 0.0
  %3162 = vmatprep.subr.mxu0 0.0
  %3163 = vmatpush1.msra.mxu0 0.0
  %3164 = vmatprep.subr.mxu0 0.0
  %3165 = vmatpush1.msra.mxu0 0.0
  %3166 = vmatprep.subr.mxu0 0.0
  %3167 = vmatpush1.msra.mxu0 0.0
  %3168 = vmatprep.subr.mxu0 0.0
  %3169 = vmatpush1.msra.mxu0 0.0
  %3170 = vmatprep.subr.mxu0 0.0
  %3171 = vmatpush1.msra.mxu0 0.0
  %3172 = vmatprep.subr.mxu0 0.0
  %3173 = vmatpush1.msra.mxu0 0.0
  %3174 = vmatprep.subr.mxu0 0.0
  %3175 = vmatpush1.msra.mxu0 0.0
  %3176 = vmatprep.subr.mxu0 0.0
  %3177 = vmatpush1.msra.mxu0 0.0
  %3178 = vmatprep.subr.mxu0 0.0
  %3179 = vmatpush1.msra.mxu0 0.0
  %3180 = vmatprep.subr.mxu0 0.0
  %3181 = vmatpush1.msra.mxu0 0.0
  %3182 = vmatprep.subr.mxu0 0.0
  %3183 = vmatpush1.msra.mxu0 0.0
  %3184 = vmatprep.subr.mxu0 0.0
  %3185 = vmatpush1.msra.mxu0 0.0
  %3186 = vmatprep.subr.mxu0 0.0
  %3187 = vmatpush1.msra.mxu0 0.0
  %3188 = vmatprep.subr.mxu0 0.0
  %3189 = vmatpush1.msra.mxu0 0.0
  %3190 = vmatprep.mubr.f32.mxu0 0.0
  %3191 = vmatmul.mubr.f32.gmra.mrb[0].mxu0 %v2892
  %v3192 = vpop.f32.mrb[0].mxu0
  %v3193 = vadd.f32 0.0, %v3192
  %v3194 = vpop.f32.mrb[0].mxu0
  %v3195 = vadd.f32 0.0, %v3194
  %3196 = vdwg.mxu0
  %v3197 = vadd.f32 %v2987, %v3122
  %v3198 = vadd.f32 %v2988, %v3124
  %v3199 = vadd.f32 %v2989, %v3193
  %v3200 = vadd.f32 %v2990, %v3195
  %v3201 = vxor.u32 %v3197, 2147483648
  %v3202 = vxor.u32 %v3198, 2147483648
  %v3203 = vxor.u32 %v3199, 2147483648
  %v3204 = vmul.f32 %v3201, 1.442695
  %v3205 = vpow.pop %v3204
  %v3206 = vmul.f32 %v3202, 1.442695
  %v3207 = vpow.pop %v3206
  %v3208 = vmul.f32 %v3203, 1.442695
  %v3209 = vpow.pop %v3208
  %v3210 = vadd.f32 %v3205, 1.0
  %v3211 = vadd.f32 %v3207, 1.0
  %v3212 = vadd.f32 %v3209, 1.0
  %v3213 = vrcp.pop %v3210
  %v3214 = vmul.f32 1.0, %v3213
  %v3215 = vrcp.pop %v3211
  %v3216 = vmul.f32 1.0, %v3215
  %v3217 = vrcp.pop %v3212
  %v3218 = vmul.f32 1.0, %v3217
  %v3219 = vtanh.pop %v3200
  %v3220 = vmul.f32 %v3216, %v2890
  %v3221 = vmul.f32 %v3214, %v3219
  %v3222 = vadd.f32 %v3220, %v3221
  %v3223 = vtanh.pop %v3222
  %v3224 = vmul.f32 %v3218, %v3223
  %v3225 = vld [vmem:[%s7] sm:$0xff]
  %v3226 = vld [vmem:[%s7 + $0x8] sm:$0xff]
  %v3227 = vld [vmem:[%s7 + $0x10] sm:$0xff]
  %v3228 = vld [vmem:[%s7 + $0x18] sm:$0xff]
  %v3229 = vld [vmem:[%s7 + $0x20] sm:$0xff]
  %v3230 = vld [vmem:[%s7 + $0x28] sm:$0xff]
  %v3231 = vld [vmem:[%s7 + $0x30] sm:$0xff]
  %v3232 = vld [vmem:[%s7 + $0x38] sm:$0xff]
  %v3233 = vld [vmem:[%s7 + $0x40] sm:$0xff]
  %v3234 = vld [vmem:[%s7 + $0x48] sm:$0xff]
  %v3235 = vld [vmem:[%s7 + $0x50] sm:$0xff]
  %v3236 = vld [vmem:[%s7 + $0x58] sm:$0xff]
  %v3237 = vld [vmem:[%s7 + $0x60] sm:$0xff]
  %v3238 = vld [vmem:[%s7 + $0x68] sm:$0xff]
  %v3239 = vld [vmem:[%s7 + $0x70] sm:$0xff]
  %v3240 = vld [vmem:[%s7 + $0x78] sm:$0xff]
  %v3241 = vld [vmem:[%s8] sm:$0x1]
  %v3243 = vlaneseq
  %v3244 = vshrl.u32 %v3243, 7
  %v3245 = vsub.s32 0, %v3244
  %v3246 = vrot.slane %v3241, %v3245
  %3248 = vmatprep.subr.mxu0 0.0
  %3249 = vmatpush1.msra.mxu0 %v3225
  %3250 = vmatprep.subr.mxu0 0.0
  %3251 = vmatpush1.msra.mxu0 %v3226
  %3252 = vmatprep.subr.mxu0 0.0
  %3253 = vmatpush1.msra.mxu0 %v3227
  %3254 = vmatprep.subr.mxu0 0.0
  %3255 = vmatpush1.msra.mxu0 %v3228
  %3256 = vmatprep.subr.mxu0 0.0
  %3257 = vmatpush1.msra.mxu0 %v3229
  %3258 = vmatprep.subr.mxu0 0.0
  %3259 = vmatpush1.msra.mxu0 %v3230
  %3260 = vmatprep.subr.mxu0 0.0
  %3261 = vmatpush1.msra.mxu0 %v3231
  %3262 = vmatprep.subr.mxu0 0.0
  %3263 = vmatpush1.msra.mxu0 %v3232
  %3264 = vmatprep.subr.mxu0 0.0
  %3265 = vmatpush1.msra.mxu0 %v3233
  %3266 = vmatprep.subr.mxu0 0.0
  %3267 = vmatpush1.msra.mxu0 %v3234
  %3268 = vmatprep.subr.mxu0 0.0
  %3269 = vmatpush1.msra.mxu0 %v3235
  %3270 = vmatprep.subr.mxu0 0.0
  %3271 = vmatpush1.msra.mxu0 %v3236
  %3272 = vmatprep.subr.mxu0 0.0
  %3273 = vmatpush1.msra.mxu0 %v3237
  %3274 = vmatprep.subr.mxu0 0.0
  %3275 = vmatpush1.msra.mxu0 %v3238
  %3276 = vmatprep.subr.mxu0 0.0
  %3277 = vmatpush1.msra.mxu0 %v3239
  %3278 = vmatprep.subr.mxu0 0.0
  %3279 = vmatpush1.msra.mxu0 %v3240
  %3280 = vmatprep.subr.mxu0 0.0
  %3281 = vmatpush1.msra.mxu0 0.0
  %3282 = vmatprep.subr.mxu0 0.0
  %3283 = vmatpush1.msra.mxu0 0.0
  %3284 = vmatprep.subr.mxu0 0.0
  %3285 = vmatpush1.msra.mxu0 0.0
  %3286 = vmatprep.subr.mxu0 0.0
  %3287 = vmatpush1.msra.mxu0 0.0
  %3288 = vmatprep.subr.mxu0 0.0
  %3289 = vmatpush1.msra.mxu0 0.0
  %3290 = vmatprep.subr.mxu0 0.0
  %3291 = vmatpush1.msra.mxu0 0.0
  %3292 = vmatprep.subr.mxu0 0.0
  %3293 = vmatpush1.msra.mxu0 0.0
  %3294 = vmatprep.subr.mxu0 0.0
  %3295 = vmatpush1.msra.mxu0 0.0
  %3296 = vmatprep.subr.mxu0 0.0
  %3297 = vmatpush1.msra.mxu0 0.0
  %3298 = vmatprep.subr.mxu0 0.0
  %3299 = vmatpush1.msra.mxu0 0.0
  %3300 = vmatprep.subr.mxu0 0.0
  %3301 = vmatpush1.msra.mxu0 0.0
  %3302 = vmatprep.subr.mxu0 0.0
  %3303 = vmatpush1.msra.mxu0 0.0
  %3304 = vmatprep.subr.mxu0 0.0
  %3305 = vmatpush1.msra.mxu0 0.0
  %3306 = vmatprep.subr.mxu0 0.0
  %3307 = vmatpush1.msra.mxu0 0.0
  %3308 = vmatprep.subr.mxu0 0.0
  %3309 = vmatpush1.msra.mxu0 0.0
  %3310 = vmatprep.subr.mxu0 0.0
  %3311 = vmatpush1.msra.mxu0 0.0
  %3312 = vmatprep.mubr.f32.mxu0 0.0
  %3313 = vmatmul.mubr.f32.gmra.mrb[0].mxu0 %v3224
  %v3314 = vpop.f32.mrb[0].mxu0
  %v3315 = vadd.f32 %v3246, %v3314
  %v3316 = vpop.f32.mrb[0].mxu0
  %3317 = vdwg.mxu0
  %s3318 = scalar_lea.vmem %s9, 8
  %3319 = vst [vmem:[%s3318] sm:$0xff] %v3315
  %v3320 = vld [vmem:[%s847] sm:$0xff]
  %v3321 = vld [vmem:[%s847 + $0x8] sm:$0xff]
  %v3322 = vld [vmem:[%s847 + $0x10] sm:$0xff]
  %v3323 = vld [vmem:[%s847 + $0x18] sm:$0xff]
  %v3324 = vld [vmem:[%s5] sm:$0xff]
  %v3325 = vld [vmem:[%s5 + $0x8] sm:$0xff]
  %v3326 = vld [vmem:[%s5 + $0x10] sm:$0xff]
  %v3327 = vld [vmem:[%s5 + $0x18] sm:$0xff]
  %v3328 = vld [vmem:[%s5 + $0x20] sm:$0xff]
  %v3329 = vld [vmem:[%s5 + $0x28] sm:$0xff]
  %v3330 = vld [vmem:[%s5 + $0x30] sm:$0xff]
  %v3331 = vld [vmem:[%s5 + $0x38] sm:$0xff]
  %v3332 = vld [vmem:[%s5 + $0x40] sm:$0xff]
  %v3333 = vld [vmem:[%s5 + $0x48] sm:$0xff]
  %v3334 = vld [vmem:[%s5 + $0x50] sm:$0xff]
  %v3335 = vld [vmem:[%s5 + $0x58] sm:$0xff]
  %v3336 = vld [vmem:[%s5 + $0x60] sm:$0xff]
  %v3337 = vld [vmem:[%s5 + $0x68] sm:$0xff]
  %v3338 = vld [vmem:[%s5 + $0x70] sm:$0xff]
  %v3339 = vld [vmem:[%s5 + $0x78] sm:$0xff]
  %v3340 = vld [vmem:[%s5 + $0x80] sm:$0xff]
  %v3341 = vld [vmem:[%s5 + $0x88] sm:$0xff]
  %v3342 = vld [vmem:[%s5 + $0x90] sm:$0xff]
  %v3343 = vld [vmem:[%s5 + $0x98] sm:$0xff]
  %v3344 = vld [vmem:[%s5 + $0xa0] sm:$0xff]
  %v3345 = vld [vmem:[%s5 + $0xa8] sm:$0xff]
  %v3346 = vld [vmem:[%s5 + $0xb0] sm:$0xff]
  %v3347 = vld [vmem:[%s5 + $0xb8] sm:$0xff]
  %v3348 = vld [vmem:[%s5 + $0xc0] sm:$0xff]
  %v3349 = vld [vmem:[%s5 + $0xc8] sm:$0xff]
  %v3350 = vld [vmem:[%s5 + $0xd0] sm:$0xff]
  %v3351 = vld [vmem:[%s5 + $0xd8] sm:$0xff]
  %v3352 = vld [vmem:[%s5 + $0xe0] sm:$0xff]
  %v3353 = vld [vmem:[%s5 + $0xe8] sm:$0xff]
  %v3354 = vld [vmem:[%s5 + $0xf0] sm:$0xff]
  %v3355 = vld [vmem:[%s5 + $0xf8] sm:$0xff]
  %v3356 = vld [vmem:[%s5 + $0x100] sm:$0xff]
  %v3357 = vld [vmem:[%s5 + $0x108] sm:$0xff]
  %v3358 = vld [vmem:[%s5 + $0x110] sm:$0xff]
  %v3359 = vld [vmem:[%s5 + $0x118] sm:$0xff]
  %v3360 = vld [vmem:[%s5 + $0x120] sm:$0xff]
  %v3361 = vld [vmem:[%s5 + $0x128] sm:$0xff]
  %v3362 = vld [vmem:[%s5 + $0x130] sm:$0xff]
  %v3363 = vld [vmem:[%s5 + $0x138] sm:$0xff]
  %v3364 = vld [vmem:[%s5 + $0x140] sm:$0xff]
  %v3365 = vld [vmem:[%s5 + $0x148] sm:$0xff]
  %v3366 = vld [vmem:[%s5 + $0x150] sm:$0xff]
  %v3367 = vld [vmem:[%s5 + $0x158] sm:$0xff]
  %v3368 = vld [vmem:[%s5 + $0x160] sm:$0xff]
  %v3369 = vld [vmem:[%s5 + $0x168] sm:$0xff]
  %v3370 = vld [vmem:[%s5 + $0x170] sm:$0xff]
  %v3371 = vld [vmem:[%s5 + $0x178] sm:$0xff]
  %v3372 = vld [vmem:[%s5 + $0x180] sm:$0xff]
  %v3373 = vld [vmem:[%s5 + $0x188] sm:$0xff]
  %v3374 = vld [vmem:[%s5 + $0x190] sm:$0xff]
  %v3375 = vld [vmem:[%s5 + $0x198] sm:$0xff]
  %v3376 = vld [vmem:[%s5 + $0x1a0] sm:$0xff]
  %v3377 = vld [vmem:[%s5 + $0x1a8] sm:$0xff]
  %v3378 = vld [vmem:[%s5 + $0x1b0] sm:$0xff]
  %v3379 = vld [vmem:[%s5 + $0x1b8] sm:$0xff]
  %v3380 = vld [vmem:[%s5 + $0x1c0] sm:$0xff]
  %v3381 = vld [vmem:[%s5 + $0x1c8] sm:$0xff]
  %v3382 = vld [vmem:[%s5 + $0x1d0] sm:$0xff]
  %v3383 = vld [vmem:[%s5 + $0x1d8] sm:$0xff]
  %v3384 = vld [vmem:[%s5 + $0x1e0] sm:$0xff]
  %v3385 = vld [vmem:[%s5 + $0x1e8] sm:$0xff]
  %v3386 = vld [vmem:[%s5 + $0x1f0] sm:$0xff]
  %v3387 = vld [vmem:[%s5 + $0x1f8] sm:$0xff]
  %3388 = vmatprep.subr.mxu0 %v3325
  %3389 = vmatpush1.msra.mxu0 %v3324
  %3390 = vmatprep.subr.mxu0 %v3329
  %3391 = vmatpush1.msra.mxu0 %v3328
  %3392 = vmatprep.subr.mxu0 %v3333
  %3393 = vmatpush1.msra.mxu0 %v3332
  %3394 = vmatprep.subr.mxu0 %v3337
  %3395 = vmatpush1.msra.mxu0 %v3336
  %3396 = vmatprep.subr.mxu0 %v3341
  %3397 = vmatpush1.msra.mxu0 %v3340
  %3398 = vmatprep.subr.mxu0 %v3345
  %3399 = vmatpush1.msra.mxu0 %v3344
  %3400 = vmatprep.subr.mxu0 %v3349
  %3401 = vmatpush1.msra.mxu0 %v3348
  %3402 = vmatprep.subr.mxu0 %v3353
  %3403 = vmatpush1.msra.mxu0 %v3352
  %3404 = vmatprep.subr.mxu0 %v3357
  %3405 = vmatpush1.msra.mxu0 %v3356
  %3406 = vmatprep.subr.mxu0 %v3361
  %3407 = vmatpush1.msra.mxu0 %v3360
  %3408 = vmatprep.subr.mxu0 %v3365
  %3409 = vmatpush1.msra.mxu0 %v3364
  %3410 = vmatprep.subr.mxu0 %v3369
  %3411 = vmatpush1.msra.mxu0 %v3368
  %3412 = vmatprep.subr.mxu0 %v3373
  %3413 = vmatpush1.msra.mxu0 %v3372
  %3414 = vmatprep.subr.mxu0 %v3377
  %3415 = vmatpush1.msra.mxu0 %v3376
  %3416 = vmatprep.subr.mxu0 %v3381
  %3417 = vmatpush1.msra.mxu0 %v3380
  %3418 = vmatprep.subr.mxu0 %v3385
  %3419 = vmatpush1.msra.mxu0 %v3384
  %3420 = vmatprep.subr.mxu0 0.0
  %3421 = vmatpush1.msra.mxu0 0.0
  %3422 = vmatprep.subr.mxu0 0.0
  %3423 = vmatpush1.msra.mxu0 0.0
  %3424 = vmatprep.subr.mxu0 0.0
  %3425 = vmatpush1.msra.mxu0 0.0
  %3426 = vmatprep.subr.mxu0 0.0
  %3427 = vmatpush1.msra.mxu0 0.0
  %3428 = vmatprep.subr.mxu0 0.0
  %3429 = vmatpush1.msra.mxu0 0.0
  %3430 = vmatprep.subr.mxu0 0.0
  %3431 = vmatpush1.msra.mxu0 0.0
  %3432 = vmatprep.subr.mxu0 0.0
  %3433 = vmatpush1.msra.mxu0 0.0
  %3434 = vmatprep.subr.mxu0 0.0
  %3435 = vmatpush1.msra.mxu0 0.0
  %3436 = vmatprep.subr.mxu0 0.0
  %3437 = vmatpush1.msra.mxu0 0.0
  %3438 = vmatprep.subr.mxu0 0.0
  %3439 = vmatpush1.msra.mxu0 0.0
  %3440 = vmatprep.subr.mxu0 0.0
  %3441 = vmatpush1.msra.mxu0 0.0
  %3442 = vmatprep.subr.mxu0 0.0
  %3443 = vmatpush1.msra.mxu0 0.0
  %3444 = vmatprep.subr.mxu0 0.0
  %3445 = vmatpush1.msra.mxu0 0.0
  %3446 = vmatprep.subr.mxu0 0.0
  %3447 = vmatpush1.msra.mxu0 0.0
  %3448 = vmatprep.subr.mxu0 0.0
  %3449 = vmatpush1.msra.mxu0 0.0
  %3450 = vmatprep.subr.mxu0 0.0
  %3451 = vmatpush1.msra.mxu0 0.0
  %3452 = vmatprep.mubr.f32.mxu0 0.0
  %3453 = vmatmul.mubr.f32.gmra.mrb[0].mxu0 %v3224
  %v3454 = vpop.f32.mrb[0].mxu0
  %v3455 = vadd.f32 0.0, %v3454
  %v3456 = vpop.f32.mrb[0].mxu0
  %v3457 = vadd.f32 0.0, %v3456
  %3458 = vdwg.mxu0
  %3459 = vmatprep.subr.mxu0 %v3327
  %3460 = vmatpush1.msra.mxu0 %v3326
  %3461 = vmatprep.subr.mxu0 %v3331
  %3462 = vmatpush1.msra.mxu0 %v3330
  %3463 = vmatprep.subr.mxu0 %v3335
  %3464 = vmatpush1.msra.mxu0 %v3334
  %3465 = vmatprep.subr.mxu0 %v3339
  %3466 = vmatpush1.msra.mxu0 %v3338
  %3467 = vmatprep.subr.mxu0 %v3343
  %3468 = vmatpush1.msra.mxu0 %v3342
  %3469 = vmatprep.subr.mxu0 %v3347
  %3470 = vmatpush1.msra.mxu0 %v3346
  %3471 = vmatprep.subr.mxu0 %v3351
  %3472 = vmatpush1.msra.mxu0 %v3350
  %3473 = vmatprep.subr.mxu0 %v3355
  %3474 = vmatpush1.msra.mxu0 %v3354
  %3475 = vmatprep.subr.mxu0 %v3359
  %3476 = vmatpush1.msra.mxu0 %v3358
  %3477 = vmatprep.subr.mxu0 %v3363
  %3478 = vmatpush1.msra.mxu0 %v3362
  %3479 = vmatprep.subr.mxu0 %v3367
  %3480 = vmatpush1.msra.mxu0 %v3366
  %3481 = vmatprep.subr.mxu0 %v3371
  %3482 = vmatpush1.msra.mxu0 %v3370
  %3483 = vmatprep.subr.mxu0 %v3375
  %3484 = vmatpush1.msra.mxu0 %v3374
  %3485 = vmatprep.subr.mxu0 %v3379
  %3486 = vmatpush1.msra.mxu0 %v3378
  %3487 = vmatprep.subr.mxu0 %v3383
  %3488 = vmatpush1.msra.mxu0 %v3382
  %3489 = vmatprep.subr.mxu0 %v3387
  %3490 = vmatpush1.msra.mxu0 %v3386
  %3491 = vmatprep.subr.mxu0 0.0
  %3492 = vmatpush1.msra.mxu0 0.0
  %3493 = vmatprep.subr.mxu0 0.0
  %3494 = vmatpush1.msra.mxu0 0.0
  %3495 = vmatprep.subr.mxu0 0.0
  %3496 = vmatpush1.msra.mxu0 0.0
  %3497 = vmatprep.subr.mxu0 0.0
  %3498 = vmatpush1.msra.mxu0 0.0
  %3499 = vmatprep.subr.mxu0 0.0
  %3500 = vmatpush1.msra.mxu0 0.0
  %3501 = vmatprep.subr.mxu0 0.0
  %3502 = vmatpush1.msra.mxu0 0.0
  %3503 = vmatprep.subr.mxu0 0.0
  %3504 = vmatpush1.msra.mxu0 0.0
  %3505 = vmatprep.subr.mxu0 0.0
  %3506 = vmatpush1.msra.mxu0 0.0
  %3507 = vmatprep.subr.mxu0 0.0
  %3508 = vmatpush1.msra.mxu0 0.0
  %3509 = vmatprep.subr.mxu0 0.0
  %3510 = vmatpush1.msra.mxu0 0.0
  %3511 = vmatprep.subr.mxu0 0.0
  %3512 = vmatpush1.msra.mxu0 0.0
  %3513 = vmatprep.subr.mxu0 0.0
  %3514 = vmatpush1.msra.mxu0 0.0
  %3515 = vmatprep.subr.mxu0 0.0
  %3516 = vmatpush1.msra.mxu0 0.0
  %3517 = vmatprep.subr.mxu0 0.0
  %3518 = vmatpush1.msra.mxu0 0.0
  %3519 = vmatprep.subr.mxu0 0.0
  %3520 = vmatpush1.msra.mxu0 0.0
  %3521 = vmatprep.subr.mxu0 0.0
  %3522 = vmatpush1.msra.mxu0 0.0
  %3523 = vmatprep.mubr.f32.mxu0 0.0
  %3524 = vmatmul.mubr.f32.gmra.mrb[0].mxu0 %v3224
  %v3525 = vpop.f32.mrb[0].mxu0
  %v3526 = vadd.f32 0.0, %v3525
  %v3527 = vpop.f32.mrb[0].mxu0
  %v3528 = vadd.f32 0.0, %v3527
  %3529 = vdwg.mxu0
  %v3530 = vadd.f32 %v3320, %v3455
  %v3531 = vadd.f32 %v3321, %v3457
  %v3532 = vadd.f32 %v3322, %v3526
  %v3533 = vadd.f32 %v3323, %v3528
  %v3534 = vxor.u32 %v3530, 2147483648
  %v3535 = vxor.u32 %v3531, 2147483648
  %v3536 = vxor.u32 %v3532, 2147483648
  %v3537 = vmul.f32 %v3534, 1.442695
  %v3538 = vpow.pop %v3537
  %v3539 = vmul.f32 %v3535, 1.442695
  %v3540 = vpow.pop %v3539
  %v3541 = vmul.f32 %v3536, 1.442695
  %v3542 = vpow.pop %v3541
  %v3543 = vadd.f32 %v3538, 1.0
  %v3544 = vadd.f32 %v3540, 1.0
  %v3545 = vadd.f32 %v3542, 1.0
  %v3546 = vrcp.pop %v3543
  %v3547 = vmul.f32 1.0, %v3546
  %v3548 = vrcp.pop %v3544
  %v3549 = vmul.f32 1.0, %v3548
  %v3550 = vrcp.pop %v3545
  %v3551 = vmul.f32 1.0, %v3550
  %v3552 = vtanh.pop %v3533
  %v3553 = vmul.f32 %v3549, %v3222
  %v3554 = vmul.f32 %v3547, %v3552
  %v3555 = vadd.f32 %v3553, %v3554
  %v3556 = vtanh.pop %v3555
  %v3557 = vmul.f32 %v3551, %v3556
  %v3558 = vld [vmem:[%s7] sm:$0xff]
  %v3559 = vld [vmem:[%s7 + $0x8] sm:$0xff]
  %v3560 = vld [vmem:[%s7 + $0x10] sm:$0xff]
  %v3561 = vld [vmem:[%s7 + $0x18] sm:$0xff]
  %v3562 = vld [vmem:[%s7 + $0x20] sm:$0xff]
  %v3563 = vld [vmem:[%s7 + $0x28] sm:$0xff]
  %v3564 = vld [vmem:[%s7 + $0x30] sm:$0xff]
  %v3565 = vld [vmem:[%s7 + $0x38] sm:$0xff]
  %v3566 = vld [vmem:[%s7 + $0x40] sm:$0xff]
  %v3567 = vld [vmem:[%s7 + $0x48] sm:$0xff]
  %v3568 = vld [vmem:[%s7 + $0x50] sm:$0xff]
  %v3569 = vld [vmem:[%s7 + $0x58] sm:$0xff]
  %v3570 = vld [vmem:[%s7 + $0x60] sm:$0xff]
  %v3571 = vld [vmem:[%s7 + $0x68] sm:$0xff]
  %v3572 = vld [vmem:[%s7 + $0x70] sm:$0xff]
  %v3573 = vld [vmem:[%s7 + $0x78] sm:$0xff]
  %v3574 = vld [vmem:[%s8] sm:$0x1]
  %v3576 = vlaneseq
  %v3577 = vshrl.u32 %v3576, 7
  %v3578 = vsub.s32 0, %v3577
  %v3579 = vrot.slane %v3574, %v3578
  %3581 = vmatprep.subr.mxu0 0.0
  %3582 = vmatpush1.msra.mxu0 %v3558
  %3583 = vmatprep.subr.mxu0 0.0
  %3584 = vmatpush1.msra.mxu0 %v3559
  %3585 = vmatprep.subr.mxu0 0.0
  %3586 = vmatpush1.msra.mxu0 %v3560
  %3587 = vmatprep.subr.mxu0 0.0
  %3588 = vmatpush1.msra.mxu0 %v3561
  %3589 = vmatprep.subr.mxu0 0.0
  %3590 = vmatpush1.msra.mxu0 %v3562
  %3591 = vmatprep.subr.mxu0 0.0
  %3592 = vmatpush1.msra.mxu0 %v3563
  %3593 = vmatprep.subr.mxu0 0.0
  %3594 = vmatpush1.msra.mxu0 %v3564
  %3595 = vmatprep.subr.mxu0 0.0
  %3596 = vmatpush1.msra.mxu0 %v3565
  %3597 = vmatprep.subr.mxu0 0.0
  %3598 = vmatpush1.msra.mxu0 %v3566
  %3599 = vmatprep.subr.mxu0 0.0
  %3600 = vmatpush1.msra.mxu0 %v3567
  %3601 = vmatprep.subr.mxu0 0.0
  %3602 = vmatpush1.msra.mxu0 %v3568
  %3603 = vmatprep.subr.mxu0 0.0
  %3604 = vmatpush1.msra.mxu0 %v3569
  %3605 = vmatprep.subr.mxu0 0.0
  %3606 = vmatpush1.msra.mxu0 %v3570
  %3607 = vmatprep.subr.mxu0 0.0
  %3608 = vmatpush1.msra.mxu0 %v3571
  %3609 = vmatprep.subr.mxu0 0.0
  %3610 = vmatpush1.msra.mxu0 %v3572
  %3611 = vmatprep.subr.mxu0 0.0
  %3612 = vmatpush1.msra.mxu0 %v3573
  %3613 = vmatprep.subr.mxu0 0.0
  %3614 = vmatpush1.msra.mxu0 0.0
  %3615 = vmatprep.subr.mxu0 0.0
  %3616 = vmatpush1.msra.mxu0 0.0
  %3617 = vmatprep.subr.mxu0 0.0
  %3618 = vmatpush1.msra.mxu0 0.0
  %3619 = vmatprep.subr.mxu0 0.0
  %3620 = vmatpush1.msra.mxu0 0.0
  %3621 = vmatprep.subr.mxu0 0.0
  %3622 = vmatpush1.msra.mxu0 0.0
  %3623 = vmatprep.subr.mxu0 0.0
  %3624 = vmatpush1.msra.mxu0 0.0
  %3625 = vmatprep.subr.mxu0 0.0
  %3626 = vmatpush1.msra.mxu0 0.0
  %3627 = vmatprep.subr.mxu0 0.0
  %3628 = vmatpush1.msra.mxu0 0.0
  %3629 = vmatprep.subr.mxu0 0.0
  %3630 = vmatpush1.msra.mxu0 0.0
  %3631 = vmatprep.subr.mxu0 0.0
  %3632 = vmatpush1.msra.mxu0 0.0
  %3633 = vmatprep.subr.mxu0 0.0
  %3634 = vmatpush1.msra.mxu0 0.0
  %3635 = vmatprep.subr.mxu0 0.0
  %3636 = vmatpush1.msra.mxu0 0.0
  %3637 = vmatprep.subr.mxu0 0.0
  %3638 = vmatpush1.msra.mxu0 0.0
  %3639 = vmatprep.subr.mxu0 0.0
  %3640 = vmatpush1.msra.mxu0 0.0
  %3641 = vmatprep.subr.mxu0 0.0
  %3642 = vmatpush1.msra.mxu0 0.0
  %3643 = vmatprep.subr.mxu0 0.0
  %3644 = vmatpush1.msra.mxu0 0.0
  %3645 = vmatprep.mubr.f32.mxu0 0.0
  %3646 = vmatmul.mubr.f32.gmra.mrb[0].mxu0 %v3557
  %v3647 = vpop.f32.mrb[0].mxu0
  %v3648 = vadd.f32 %v3579, %v3647
  %v3649 = vpop.f32.mrb[0].mxu0
  %3650 = vdwg.mxu0
  %s3651 = scalar_lea.vmem %s9, 16
  %3652 = vst [vmem:[%s3651] sm:$0xff] %v3648
  %v3653 = vld [vmem:[%s1090] sm:$0xff]
  %v3654 = vld [vmem:[%s1090 + $0x8] sm:$0xff]
  %v3655 = vld [vmem:[%s1090 + $0x10] sm:$0xff]
  %v3656 = vld [vmem:[%s1090 + $0x18] sm:$0xff]
  %v3657 = vld [vmem:[%s5] sm:$0xff]
  %v3658 = vld [vmem:[%s5 + $0x8] sm:$0xff]
  %v3659 = vld [vmem:[%s5 + $0x10] sm:$0xff]
  %v3660 = vld [vmem:[%s5 + $0x18] sm:$0xff]
  %v3661 = vld [vmem:[%s5 + $0x20] sm:$0xff]
  %v3662 = vld [vmem:[%s5 + $0x28] sm:$0xff]
  %v3663 = vld [vmem:[%s5 + $0x30] sm:$0xff]
  %v3664 = vld [vmem:[%s5 + $0x38] sm:$0xff]
  %v3665 = vld [vmem:[%s5 + $0x40] sm:$0xff]
  %v3666 = vld [vmem:[%s5 + $0x48] sm:$0xff]
  %v3667 = vld [vmem:[%s5 + $0x50] sm:$0xff]
  %v3668 = vld [vmem:[%s5 + $0x58] sm:$0xff]
  %v3669 = vld [vmem:[%s5 + $0x60] sm:$0xff]
  %v3670 = vld [vmem:[%s5 + $0x68] sm:$0xff]
  %v3671 = vld [vmem:[%s5 + $0x70] sm:$0xff]
  %v3672 = vld [vmem:[%s5 + $0x78] sm:$0xff]
  %v3673 = vld [vmem:[%s5 + $0x80] sm:$0xff]
  %v3674 = vld [vmem:[%s5 + $0x88] sm:$0xff]
  %v3675 = vld [vmem:[%s5 + $0x90] sm:$0xff]
  %v3676 = vld [vmem:[%s5 + $0x98] sm:$0xff]
  %v3677 = vld [vmem:[%s5 + $0xa0] sm:$0xff]
  %v3678 = vld [vmem:[%s5 + $0xa8] sm:$0xff]
  %v3679 = vld [vmem:[%s5 + $0xb0] sm:$0xff]
  %v3680 = vld [vmem:[%s5 + $0xb8] sm:$0xff]
  %v3681 = vld [vmem:[%s5 + $0xc0] sm:$0xff]
  %v3682 = vld [vmem:[%s5 + $0xc8] sm:$0xff]
  %v3683 = vld [vmem:[%s5 + $0xd0] sm:$0xff]
  %v3684 = vld [vmem:[%s5 + $0xd8] sm:$0xff]
  %v3685 = vld [vmem:[%s5 + $0xe0] sm:$0xff]
  %v3686 = vld [vmem:[%s5 + $0xe8] sm:$0xff]
  %v3687 = vld [vmem:[%s5 + $0xf0] sm:$0xff]
  %v3688 = vld [vmem:[%s5 + $0xf8] sm:$0xff]
  %v3689 = vld [vmem:[%s5 + $0x100] sm:$0xff]
  %v3690 = vld [vmem:[%s5 + $0x108] sm:$0xff]
  %v3691 = vld [vmem:[%s5 + $0x110] sm:$0xff]
  %v3692 = vld [vmem:[%s5 + $0x118] sm:$0xff]
  %v3693 = vld [vmem:[%s5 + $0x120] sm:$0xff]
  %v3694 = vld [vmem:[%s5 + $0x128] sm:$0xff]
  %v3695 = vld [vmem:[%s5 + $0x130] sm:$0xff]
  %v3696 = vld [vmem:[%s5 + $0x138] sm:$0xff]
  %v3697 = vld [vmem:[%s5 + $0x140] sm:$0xff]
  %v3698 = vld [vmem:[%s5 + $0x148] sm:$0xff]
  %v3699 = vld [vmem:[%s5 + $0x150] sm:$0xff]
  %v3700 = vld [vmem:[%s5 + $0x158] sm:$0xff]
  %v3701 = vld [vmem:[%s5 + $0x160] sm:$0xff]
  %v3702 = vld [vmem:[%s5 + $0x168] sm:$0xff]
  %v3703 = vld [vmem:[%s5 + $0x170] sm:$0xff]
  %v3704 = vld [vmem:[%s5 + $0x178] sm:$0xff]
  %v3705 = vld [vmem:[%s5 + $0x180] sm:$0xff]
  %v3706 = vld [vmem:[%s5 + $0x188] sm:$0xff]
  %v3707 = vld [vmem:[%s5 + $0x190] sm:$0xff]
  %v3708 = vld [vmem:[%s5 + $0x198] sm:$0xff]
  %v3709 = vld [vmem:[%s5 + $0x1a0] sm:$0xff]
  %v3710 = vld [vmem:[%s5 + $0x1a8] sm:$0xff]
  %v3711 = vld [vmem:[%s5 + $0x1b0] sm:$0xff]
  %v3712 = vld [vmem:[%s5 + $0x1b8] sm:$0xff]
  %v3713 = vld [vmem:[%s5 + $0x1c0] sm:$0xff]
  %v3714 = vld [vmem:[%s5 + $0x1c8] sm:$0xff]
  %v3715 = vld [vmem:[%s5 + $0x1d0] sm:$0xff]
  %v3716 = vld [vmem:[%s5 + $0x1d8] sm:$0xff]
  %v3717 = vld [vmem:[%s5 + $0x1e0] sm:$0xff]
  %v3718 = vld [vmem:[%s5 + $0x1e8] sm:$0xff]
  %v3719 = vld [vmem:[%s5 + $0x1f0] sm:$0xff]
  %v3720 = vld [vmem:[%s5 + $0x1f8] sm:$0xff]
  %3721 = vmatprep.subr.mxu0 %v3658
  %3722 = vmatpush1.msra.mxu0 %v3657
  %3723 = vmatprep.subr.mxu0 %v3662
  %3724 = vmatpush1.msra.mxu0 %v3661
  %3725 = vmatprep.subr.mxu0 %v3666
  %3726 = vmatpush1.msra.mxu0 %v3665
  %3727 = vmatprep.subr.mxu0 %v3670
  %3728 = vmatpush1.msra.mxu0 %v3669
  %3729 = vmatprep.subr.mxu0 %v3674
  %3730 = vmatpush1.msra.mxu0 %v3673
  %3731 = vmatprep.subr.mxu0 %v3678
  %3732 = vmatpush1.msra.mxu0 %v3677
  %3733 = vmatprep.subr.mxu0 %v3682
  %3734 = vmatpush1.msra.mxu0 %v3681
  %3735 = vmatprep.subr.mxu0 %v3686
  %3736 = vmatpush1.msra.mxu0 %v3685
  %3737 = vmatprep.subr.mxu0 %v3690
  %3738 = vmatpush1.msra.mxu0 %v3689
  %3739 = vmatprep.subr.mxu0 %v3694
  %3740 = vmatpush1.msra.mxu0 %v3693
  %3741 = vmatprep.subr.mxu0 %v3698
  %3742 = vmatpush1.msra.mxu0 %v3697
  %3743 = vmatprep.subr.mxu0 %v3702
  %3744 = vmatpush1.msra.mxu0 %v3701
  %3745 = vmatprep.subr.mxu0 %v3706
  %3746 = vmatpush1.msra.mxu0 %v3705
  %3747 = vmatprep.subr.mxu0 %v3710
  %3748 = vmatpush1.msra.mxu0 %v3709
  %3749 = vmatprep.subr.mxu0 %v3714
  %3750 = vmatpush1.msra.mxu0 %v3713
  %3751 = vmatprep.subr.mxu0 %v3718
  %3752 = vmatpush1.msra.mxu0 %v3717
  %3753 = vmatprep.subr.mxu0 0.0
  %3754 = vmatpush1.msra.mxu0 0.0
  %3755 = vmatprep.subr.mxu0 0.0
  %3756 = vmatpush1.msra.mxu0 0.0
  %3757 = vmatprep.subr.mxu0 0.0
  %3758 = vmatpush1.msra.mxu0 0.0
  %3759 = vmatprep.subr.mxu0 0.0
  %3760 = vmatpush1.msra.mxu0 0.0
  %3761 = vmatprep.subr.mxu0 0.0
  %3762 = vmatpush1.msra.mxu0 0.0
  %3763 = vmatprep.subr.mxu0 0.0
  %3764 = vmatpush1.msra.mxu0 0.0
  %3765 = vmatprep.subr.mxu0 0.0
  %3766 = vmatpush1.msra.mxu0 0.0
  %3767 = vmatprep.subr.mxu0 0.0
  %3768 = vmatpush1.msra.mxu0 0.0
  %3769 = vmatprep.subr.mxu0 0.0
  %3770 = vmatpush1.msra.mxu0 0.0
  %3771 = vmatprep.subr.mxu0 0.0
  %3772 = vmatpush1.msra.mxu0 0.0
  %3773 = vmatprep.subr.mxu0 0.0
  %3774 = vmatpush1.msra.mxu0 0.0
  %3775 = vmatprep.subr.mxu0 0.0
  %3776 = vmatpush1.msra.mxu0 0.0
  %3777 = vmatprep.subr.mxu0 0.0
  %3778 = vmatpush1.msra.mxu0 0.0
  %3779 = vmatprep.subr.mxu0 0.0
  %3780 = vmatpush1.msra.mxu0 0.0
  %3781 = vmatprep.subr.mxu0 0.0
  %3782 = vmatpush1.msra.mxu0 0.0
  %3783 = vmatprep.subr.mxu0 0.0
  %3784 = vmatpush1.msra.mxu0 0.0
  %3785 = vmatprep.mubr.f32.mxu0 0.0
  %3786 = vmatmul.mubr.f32.gmra.mrb[0].mxu0 %v3557
  %v3787 = vpop.f32.mrb[0].mxu0
  %v3788 = vadd.f32 0.0, %v3787
  %v3789 = vpop.f32.mrb[0].mxu0
  %v3790 = vadd.f32 0.0, %v3789
  %3791 = vdwg.mxu0
  %3792 = vmatprep.subr.mxu0 %v3660
  %3793 = vmatpush1.msra.mxu0 %v3659
  %3794 = vmatprep.subr.mxu0 %v3664
  %3795 = vmatpush1.msra.mxu0 %v3663
  %3796 = vmatprep.subr.mxu0 %v3668
  %3797 = vmatpush1.msra.mxu0 %v3667
  %3798 = vmatprep.subr.mxu0 %v3672
  %3799 = vmatpush1.msra.mxu0 %v3671
  %3800 = vmatprep.subr.mxu0 %v3676
  %3801 = vmatpush1.msra.mxu0 %v3675
  %3802 = vmatprep.subr.mxu0 %v3680
  %3803 = vmatpush1.msra.mxu0 %v3679
  %3804 = vmatprep.subr.mxu0 %v3684
  %3805 = vmatpush1.msra.mxu0 %v3683
  %3806 = vmatprep.subr.mxu0 %v3688
  %3807 = vmatpush1.msra.mxu0 %v3687
  %3808 = vmatprep.subr.mxu0 %v3692
  %3809 = vmatpush1.msra.mxu0 %v3691
  %3810 = vmatprep.subr.mxu0 %v3696
  %3811 = vmatpush1.msra.mxu0 %v3695
  %3812 = vmatprep.subr.mxu0 %v3700
  %3813 = vmatpush1.msra.mxu0 %v3699
  %3814 = vmatprep.subr.mxu0 %v3704
  %3815 = vmatpush1.msra.mxu0 %v3703
  %3816 = vmatprep.subr.mxu0 %v3708
  %3817 = vmatpush1.msra.mxu0 %v3707
  %3818 = vmatprep.subr.mxu0 %v3712
  %3819 = vmatpush1.msra.mxu0 %v3711
  %3820 = vmatprep.subr.mxu0 %v3716
  %3821 = vmatpush1.msra.mxu0 %v3715
  %3822 = vmatprep.subr.mxu0 %v3720
  %3823 = vmatpush1.msra.mxu0 %v3719
  %3824 = vmatprep.subr.mxu0 0.0
  %3825 = vmatpush1.msra.mxu0 0.0
  %3826 = vmatprep.subr.mxu0 0.0
  %3827 = vmatpush1.msra.mxu0 0.0
  %3828 = vmatprep.subr.mxu0 0.0
  %3829 = vmatpush1.msra.mxu0 0.0
  %3830 = vmatprep.subr.mxu0 0.0
  %3831 = vmatpush1.msra.mxu0 0.0
  %3832 = vmatprep.subr.mxu0 0.0
  %3833 = vmatpush1.msra.mxu0 0.0
  %3834 = vmatprep.subr.mxu0 0.0
  %3835 = vmatpush1.msra.mxu0 0.0
  %3836 = vmatprep.subr.mxu0 0.0
  %3837 = vmatpush1.msra.mxu0 0.0
  %3838 = vmatprep.subr.mxu0 0.0
  %3839 = vmatpush1.msra.mxu0 0.0
  %3840 = vmatprep.subr.mxu0 0.0
  %3841 = vmatpush1.msra.mxu0 0.0
  %3842 = vmatprep.subr.mxu0 0.0
  %3843 = vmatpush1.msra.mxu0 0.0
  %3844 = vmatprep.subr.mxu0 0.0
  %3845 = vmatpush1.msra.mxu0 0.0
  %3846 = vmatprep.subr.mxu0 0.0
  %3847 = vmatpush1.msra.mxu0 0.0
  %3848 = vmatprep.subr.mxu0 0.0
  %3849 = vmatpush1.msra.mxu0 0.0
  %3850 = vmatprep.subr.mxu0 0.0
  %3851 = vmatpush1.msra.mxu0 0.0
  %3852 = vmatprep.subr.mxu0 0.0
  %3853 = vmatpush1.msra.mxu0 0.0
  %3854 = vmatprep.subr.mxu0 0.0
  %3855 = vmatpush1.msra.mxu0 0.0
  %3856 = vmatprep.mubr.f32.mxu0 0.0
  %3857 = vmatmul.mubr.f32.gmra.mrb[0].mxu0 %v3557
  %v3858 = vpop.f32.mrb[0].mxu0
  %v3859 = vadd.f32 0.0, %v3858
  %v3860 = vpop.f32.mrb[0].mxu0
  %v3861 = vadd.f32 0.0, %v3860
  %3862 = vdwg.mxu0
  %v3863 = vadd.f32 %v3653, %v3788
  %v3864 = vadd.f32 %v3654, %v3790
  %v3865 = vadd.f32 %v3655, %v3859
  %v3866 = vadd.f32 %v3656, %v3861
  %v3867 = vxor.u32 %v3863, 2147483648
  %v3868 = vxor.u32 %v3864, 2147483648
  %v3869 = vxor.u32 %v3865, 2147483648
  %v3870 = vmul.f32 %v3867, 1.442695
  %v3871 = vpow.pop %v3870
  %v3872 = vmul.f32 %v3868, 1.442695
  %v3873 = vpow.pop %v3872
  %v3874 = vmul.f32 %v3869, 1.442695
  %v3875 = vpow.pop %v3874
  %v3876 = vadd.f32 %v3871, 1.0
  %v3877 = vadd.f32 %v3873, 1.0
  %v3878 = vadd.f32 %v3875, 1.0
  %v3879 = vrcp.pop %v3876
  %v3880 = vmul.f32 1.0, %v3879
  %v3881 = vrcp.pop %v3877
  %v3882 = vmul.f32 1.0, %v3881
  %v3883 = vrcp.pop %v3878
  %v3884 = vmul.f32 1.0, %v3883
  %v3885 = vtanh.pop %v3866
  %v3886 = vmul.f32 %v3882, %v3555
  %v3887 = vmul.f32 %v3880, %v3885
  %v3888 = vadd.f32 %v3886, %v3887
  %v3889 = vtanh.pop %v3888
  %v3890 = vmul.f32 %v3884, %v3889
  %v3891 = vld [vmem:[%s7] sm:$0xff]
  %v3892 = vld [vmem:[%s7 + $0x8] sm:$0xff]
  %v3893 = vld [vmem:[%s7 + $0x10] sm:$0xff]
  %v3894 = vld [vmem:[%s7 + $0x18] sm:$0xff]
  %v3895 = vld [vmem:[%s7 + $0x20] sm:$0xff]
  %v3896 = vld [vmem:[%s7 + $0x28] sm:$0xff]
  %v3897 = vld [vmem:[%s7 + $0x30] sm:$0xff]
  %v3898 = vld [vmem:[%s7 + $0x38] sm:$0xff]
  %v3899 = vld [vmem:[%s7 + $0x40] sm:$0xff]
  %v3900 = vld [vmem:[%s7 + $0x48] sm:$0xff]
  %v3901 = vld [vmem:[%s7 + $0x50] sm:$0xff]
  %v3902 = vld [vmem:[%s7 + $0x58] sm:$0xff]
  %v3903 = vld [vmem:[%s7 + $0x60] sm:$0xff]
  %v3904 = vld [vmem:[%s7 + $0x68] sm:$0xff]
  %v3905 = vld [vmem:[%s7 + $0x70] sm:$0xff]
  %v3906 = vld [vmem:[%s7 + $0x78] sm:$0xff]
  %v3907 = vld [vmem:[%s8] sm:$0x1]
  %v3909 = vlaneseq
  %v3910 = vshrl.u32 %v3909, 7
  %v3911 = vsub.s32 0, %v3910
  %v3912 = vrot.slane %v3907, %v3911
  %3914 = vmatprep.subr.mxu0 0.0
  %3915 = vmatpush1.msra.mxu0 %v3891
  %3916 = vmatprep.subr.mxu0 0.0
  %3917 = vmatpush1.msra.mxu0 %v3892
  %3918 = vmatprep.subr.mxu0 0.0
  %3919 = vmatpush1.msra.mxu0 %v3893
  %3920 = vmatprep.subr.mxu0 0.0
  %3921 = vmatpush1.msra.mxu0 %v3894
  %3922 = vmatprep.subr.mxu0 0.0
  %3923 = vmatpush1.msra.mxu0 %v3895
  %3924 = vmatprep.subr.mxu0 0.0
  %3925 = vmatpush1.msra.mxu0 %v3896
  %3926 = vmatprep.subr.mxu0 0.0
  %3927 = vmatpush1.msra.mxu0 %v3897
  %3928 = vmatprep.subr.mxu0 0.0
  %3929 = vmatpush1.msra.mxu0 %v3898
  %3930 = vmatprep.subr.mxu0 0.0
  %3931 = vmatpush1.msra.mxu0 %v3899
  %3932 = vmatprep.subr.mxu0 0.0
  %3933 = vmatpush1.msra.mxu0 %v3900
  %3934 = vmatprep.subr.mxu0 0.0
  %3935 = vmatpush1.msra.mxu0 %v3901
  %3936 = vmatprep.subr.mxu0 0.0
  %3937 = vmatpush1.msra.mxu0 %v3902
  %3938 = vmatprep.subr.mxu0 0.0
  %3939 = vmatpush1.msra.mxu0 %v3903
  %3940 = vmatprep.subr.mxu0 0.0
  %3941 = vmatpush1.msra.mxu0 %v3904
  %3942 = vmatprep.subr.mxu0 0.0
  %3943 = vmatpush1.msra.mxu0 %v3905
  %3944 = vmatprep.subr.mxu0 0.0
  %3945 = vmatpush1.msra.mxu0 %v3906
  %3946 = vmatprep.subr.mxu0 0.0
  %3947 = vmatpush1.msra.mxu0 0.0
  %3948 = vmatprep.subr.mxu0 0.0
  %3949 = vmatpush1.msra.mxu0 0.0
  %3950 = vmatprep.subr.mxu0 0.0
  %3951 = vmatpush1.msra.mxu0 0.0
  %3952 = vmatprep.subr.mxu0 0.0
  %3953 = vmatpush1.msra.mxu0 0.0
  %3954 = vmatprep.subr.mxu0 0.0
  %3955 = vmatpush1.msra.mxu0 0.0
  %3956 = vmatprep.subr.mxu0 0.0
  %3957 = vmatpush1.msra.mxu0 0.0
  %3958 = vmatprep.subr.mxu0 0.0
  %3959 = vmatpush1.msra.mxu0 0.0
  %3960 = vmatprep.subr.mxu0 0.0
  %3961 = vmatpush1.msra.mxu0 0.0
  %3962 = vmatprep.subr.mxu0 0.0
  %3963 = vmatpush1.msra.mxu0 0.0
  %3964 = vmatprep.subr.mxu0 0.0
  %3965 = vmatpush1.msra.mxu0 0.0
  %3966 = vmatprep.subr.mxu0 0.0
  %3967 = vmatpush1.msra.mxu0 0.0
  %3968 = vmatprep.subr.mxu0 0.0
  %3969 = vmatpush1.msra.mxu0 0.0
  %3970 = vmatprep.subr.mxu0 0.0
  %3971 = vmatpush1.msra.mxu0 0.0
  %3972 = vmatprep.subr.mxu0 0.0
  %3973 = vmatpush1.msra.mxu0 0.0
  %3974 = vmatprep.subr.mxu0 0.0
  %3975 = vmatpush1.msra.mxu0 0.0
  %3976 = vmatprep.subr.mxu0 0.0
  %3977 = vmatpush1.msra.mxu0 0.0
  %3978 = vmatprep.mubr.f32.mxu0 0.0
  %3979 = vmatmul.mubr.f32.gmra.mrb[0].mxu0 %v3890
  %v3980 = vpop.f32.mrb[0].mxu0
  %v3981 = vadd.f32 %v3912, %v3980
  %v3982 = vpop.f32.mrb[0].mxu0
  %3983 = vdwg.mxu0
  %s3984 = scalar_lea.vmem %s9, 24
  %3985 = vst [vmem:[%s3984] sm:$0xff] %v3981
  %v3986 = vld [vmem:[%s1333] sm:$0xff]
  %v3987 = vld [vmem:[%s1333 + $0x8] sm:$0xff]
  %v3988 = vld [vmem:[%s1333 + $0x10] sm:$0xff]
  %v3989 = vld [vmem:[%s1333 + $0x18] sm:$0xff]
  %v3990 = vld [vmem:[%s5] sm:$0xff]
  %v3991 = vld [vmem:[%s5 + $0x8] sm:$0xff]
  %v3992 = vld [vmem:[%s5 + $0x10] sm:$0xff]
  %v3993 = vld [vmem:[%s5 + $0x18] sm:$0xff]
  %v3994 = vld [vmem:[%s5 + $0x20] sm:$0xff]
  %v3995 = vld [vmem:[%s5 + $0x28] sm:$0xff]
  %v3996 = vld [vmem:[%s5 + $0x30] sm:$0xff]
  %v3997 = vld [vmem:[%s5 + $0x38] sm:$0xff]
  %v3998 = vld [vmem:[%s5 + $0x40] sm:$0xff]
  %v3999 = vld [vmem:[%s5 + $0x48] sm:$0xff]
  %v4000 = vld [vmem:[%s5 + $0x50] sm:$0xff]
  %v4001 = vld [vmem:[%s5 + $0x58] sm:$0xff]
  %v4002 = vld [vmem:[%s5 + $0x60] sm:$0xff]
  %v4003 = vld [vmem:[%s5 + $0x68] sm:$0xff]
  %v4004 = vld [vmem:[%s5 + $0x70] sm:$0xff]
  %v4005 = vld [vmem:[%s5 + $0x78] sm:$0xff]
  %v4006 = vld [vmem:[%s5 + $0x80] sm:$0xff]
  %v4007 = vld [vmem:[%s5 + $0x88] sm:$0xff]
  %v4008 = vld [vmem:[%s5 + $0x90] sm:$0xff]
  %v4009 = vld [vmem:[%s5 + $0x98] sm:$0xff]
  %v4010 = vld [vmem:[%s5 + $0xa0] sm:$0xff]
  %v4011 = vld [vmem:[%s5 + $0xa8] sm:$0xff]
  %v4012 = vld [vmem:[%s5 + $0xb0] sm:$0xff]
  %v4013 = vld [vmem:[%s5 + $0xb8] sm:$0xff]
  %v4014 = vld [vmem:[%s5 + $0xc0] sm:$0xff]
  %v4015 = vld [vmem:[%s5 + $0xc8] sm:$0xff]
  %v4016 = vld [vmem:[%s5 + $0xd0] sm:$0xff]
  %v4017 = vld [vmem:[%s5 + $0xd8] sm:$0xff]
  %v4018 = vld [vmem:[%s5 + $0xe0] sm:$0xff]
  %v4019 = vld [vmem:[%s5 + $0xe8] sm:$0xff]
  %v4020 = vld [vmem:[%s5 + $0xf0] sm:$0xff]
  %v4021 = vld [vmem:[%s5 + $0xf8] sm:$0xff]
  %v4022 = vld [vmem:[%s5 + $0x100] sm:$0xff]
  %v4023 = vld [vmem:[%s5 + $0x108] sm:$0xff]
  %v4024 = vld [vmem:[%s5 + $0x110] sm:$0xff]
  %v4025 = vld [vmem:[%s5 + $0x118] sm:$0xff]
  %v4026 = vld [vmem:[%s5 + $0x120] sm:$0xff]
  %v4027 = vld [vmem:[%s5 + $0x128] sm:$0xff]
  %v4028 = vld [vmem:[%s5 + $0x130] sm:$0xff]
  %v4029 = vld [vmem:[%s5 + $0x138] sm:$0xff]
  %v4030 = vld [vmem:[%s5 + $0x140] sm:$0xff]
  %v4031 = vld [vmem:[%s5 + $0x148] sm:$0xff]
  %v4032 = vld [vmem:[%s5 + $0x150] sm:$0xff]
  %v4033 = vld [vmem:[%s5 + $0x158] sm:$0xff]
  %v4034 = vld [vmem:[%s5 + $0x160] sm:$0xff]
  %v4035 = vld [vmem:[%s5 + $0x168] sm:$0xff]
  %v4036 = vld [vmem:[%s5 + $0x170] sm:$0xff]
  %v4037 = vld [vmem:[%s5 + $0x178] sm:$0xff]
  %v4038 = vld [vmem:[%s5 + $0x180] sm:$0xff]
  %v4039 = vld [vmem:[%s5 + $0x188] sm:$0xff]
  %v4040 = vld [vmem:[%s5 + $0x190] sm:$0xff]
  %v4041 = vld [vmem:[%s5 + $0x198] sm:$0xff]
  %v4042 = vld [vmem:[%s5 + $0x1a0] sm:$0xff]
  %v4043 = vld [vmem:[%s5 + $0x1a8] sm:$0xff]
  %v4044 = vld [vmem:[%s5 + $0x1b0] sm:$0xff]
  %v4045 = vld [vmem:[%s5 + $0x1b8] sm:$0xff]
  %v4046 = vld [vmem:[%s5 + $0x1c0] sm:$0xff]
  %v4047 = vld [vmem:[%s5 + $0x1c8] sm:$0xff]
  %v4048 = vld [vmem:[%s5 + $0x1d0] sm:$0xff]
  %v4049 = vld [vmem:[%s5 + $0x1d8] sm:$0xff]
  %v4050 = vld [vmem:[%s5 + $0x1e0] sm:$0xff]
  %v4051 = vld [vmem:[%s5 + $0x1e8] sm:$0xff]
  %v4052 = vld [vmem:[%s5 + $0x1f0] sm:$0xff]
  %v4053 = vld [vmem:[%s5 + $0x1f8] sm:$0xff]
  %4054 = vmatprep.subr.mxu0 %v3991
  %4055 = vmatpush1.msra.mxu0 %v3990
  %4056 = vmatprep.subr.mxu0 %v3995
  %4057 = vmatpush1.msra.mxu0 %v3994
  %4058 = vmatprep.subr.mxu0 %v3999
  %4059 = vmatpush1.msra.mxu0 %v3998
  %4060 = vmatprep.subr.mxu0 %v4003
  %4061 = vmatpush1.msra.mxu0 %v4002
  %4062 = vmatprep.subr.mxu0 %v4007
  %4063 = vmatpush1.msra.mxu0 %v4006
  %4064 = vmatprep.subr.mxu0 %v4011
  %4065 = vmatpush1.msra.mxu0 %v4010
  %4066 = vmatprep.subr.mxu0 %v4015
  %4067 = vmatpush1.msra.mxu0 %v4014
  %4068 = vmatprep.subr.mxu0 %v4019
  %4069 = vmatpush1.msra.mxu0 %v4018
  %4070 = vmatprep.subr.mxu0 %v4023
  %4071 = vmatpush1.msra.mxu0 %v4022
  %4072 = vmatprep.subr.mxu0 %v4027
  %4073 = vmatpush1.msra.mxu0 %v4026
  %4074 = vmatprep.subr.mxu0 %v4031
  %4075 = vmatpush1.msra.mxu0 %v4030
  %4076 = vmatprep.subr.mxu0 %v4035
  %4077 = vmatpush1.msra.mxu0 %v4034
  %4078 = vmatprep.subr.mxu0 %v4039
  %4079 = vmatpush1.msra.mxu0 %v4038
  %4080 = vmatprep.subr.mxu0 %v4043
  %4081 = vmatpush1.msra.mxu0 %v4042
  %4082 = vmatprep.subr.mxu0 %v4047
  %4083 = vmatpush1.msra.mxu0 %v4046
  %4084 = vmatprep.subr.mxu0 %v4051
  %4085 = vmatpush1.msra.mxu0 %v4050
  %4086 = vmatprep.subr.mxu0 0.0
  %4087 = vmatpush1.msra.mxu0 0.0
  %4088 = vmatprep.subr.mxu0 0.0
  %4089 = vmatpush1.msra.mxu0 0.0
  %4090 = vmatprep.subr.mxu0 0.0
  %4091 = vmatpush1.msra.mxu0 0.0
  %4092 = vmatprep.subr.mxu0 0.0
  %4093 = vmatpush1.msra.mxu0 0.0
  %4094 = vmatprep.subr.mxu0 0.0
  %4095 = vmatpush1.msra.mxu0 0.0
  %4096 = vmatprep.subr.mxu0 0.0
  %4097 = vmatpush1.msra.mxu0 0.0
  %4098 = vmatprep.subr.mxu0 0.0
  %4099 = vmatpush1.msra.mxu0 0.0
  %4100 = vmatprep.subr.mxu0 0.0
  %4101 = vmatpush1.msra.mxu0 0.0
  %4102 = vmatprep.subr.mxu0 0.0
  %4103 = vmatpush1.msra.mxu0 0.0
  %4104 = vmatprep.subr.mxu0 0.0
  %4105 = vmatpush1.msra.mxu0 0.0
  %4106 = vmatprep.subr.mxu0 0.0
  %4107 = vmatpush1.msra.mxu0 0.0
  %4108 = vmatprep.subr.mxu0 0.0
  %4109 = vmatpush1.msra.mxu0 0.0
  %4110 = vmatprep.subr.mxu0 0.0
  %4111 = vmatpush1.msra.mxu0 0.0
  %4112 = vmatprep.subr.mxu0 0.0
  %4113 = vmatpush1.msra.mxu0 0.0
  %4114 = vmatprep.subr.mxu0 0.0
  %4115 = vmatpush1.msra.mxu0 0.0
  %4116 = vmatprep.subr.mxu0 0.0
  %4117 = vmatpush1.msra.mxu0 0.0
  %4118 = vmatprep.mubr.f32.mxu0 0.0
  %4119 = vmatmul.mubr.f32.gmra.mrb[0].mxu0 %v3890
  %v4120 = vpop.f32.mrb[0].mxu0
  %v4121 = vadd.f32 0.0, %v4120
  %v4122 = vpop.f32.mrb[0].mxu0
  %v4123 = vadd.f32 0.0, %v4122
  %4124 = vdwg.mxu0
  %4125 = vmatprep.subr.mxu0 %v3993
  %4126 = vmatpush1.msra.mxu0 %v3992
  %4127 = vmatprep.subr.mxu0 %v3997
  %4128 = vmatpush1.msra.mxu0 %v3996
  %4129 = vmatprep.subr.mxu0 %v4001
  %4130 = vmatpush1.msra.mxu0 %v4000
  %4131 = vmatprep.subr.mxu0 %v4005
  %4132 = vmatpush1.msra.mxu0 %v4004
  %4133 = vmatprep.subr.mxu0 %v4009
  %4134 = vmatpush1.msra.mxu0 %v4008
  %4135 = vmatprep.subr.mxu0 %v4013
  %4136 = vmatpush1.msra.mxu0 %v4012
  %4137 = vmatprep.subr.mxu0 %v4017
  %4138 = vmatpush1.msra.mxu0 %v4016
  %4139 = vmatprep.subr.mxu0 %v4021
  %4140 = vmatpush1.msra.mxu0 %v4020
  %4141 = vmatprep.subr.mxu0 %v4025
  %4142 = vmatpush1.msra.mxu0 %v4024
  %4143 = vmatprep.subr.mxu0 %v4029
  %4144 = vmatpush1.msra.mxu0 %v4028
  %4145 = vmatprep.subr.mxu0 %v4033
  %4146 = vmatpush1.msra.mxu0 %v4032
  %4147 = vmatprep.subr.mxu0 %v4037
  %4148 = vmatpush1.msra.mxu0 %v4036
  %4149 = vmatprep.subr.mxu0 %v4041
  %4150 = vmatpush1.msra.mxu0 %v4040
  %4151 = vmatprep.subr.mxu0 %v4045
  %4152 = vmatpush1.msra.mxu0 %v4044
  %4153 = vmatprep.subr.mxu0 %v4049
  %4154 = vmatpush1.msra.mxu0 %v4048
  %4155 = vmatprep.subr.mxu0 %v4053
  %4156 = vmatpush1.msra.mxu0 %v4052
  %4157 = vmatprep.subr.mxu0 0.0
  %4158 = vmatpush1.msra.mxu0 0.0
  %4159 = vmatprep.subr.mxu0 0.0
  %4160 = vmatpush1.msra.mxu0 0.0
  %4161 = vmatprep.subr.mxu0 0.0
  %4162 = vmatpush1.msra.mxu0 0.0
  %4163 = vmatprep.subr.mxu0 0.0
  %4164 = vmatpush1.msra.mxu0 0.0
  %4165 = vmatprep.subr.mxu0 0.0
  %4166 = vmatpush1.msra.mxu0 0.0
  %4167 = vmatprep.subr.mxu0 0.0
  %4168 = vmatpush1.msra.mxu0 0.0
  %4169 = vmatprep.subr.mxu0 0.0
  %4170 = vmatpush1.msra.mxu0 0.0
  %4171 = vmatprep.subr.mxu0 0.0
  %4172 = vmatpush1.msra.mxu0 0.0
  %4173 = vmatprep.subr.mxu0 0.0
  %4174 = vmatpush1.msra.mxu0 0.0
  %4175 = vmatprep.subr.mxu0 0.0
  %4176 = vmatpush1.msra.mxu0 0.0
  %4177 = vmatprep.subr.mxu0 0.0
  %4178 = vmatpush1.msra.mxu0 0.0
  %4179 = vmatprep.subr.mxu0 0.0
  %4180 = vmatpush1.msra.mxu0 0.0
  %4181 = vmatprep.subr.mxu0 0.0
  %4182 = vmatpush1.msra.mxu0 0.0
  %4183 = vmatprep.subr.mxu0 0.0
  %4184 = vmatpush1.msra.mxu0 0.0
  %4185 = vmatprep.subr.mxu0 0.0
  %4186 = vmatpush1.msra.mxu0 0.0
  %4187 = vmatprep.subr.mxu0 0.0
  %4188 = vmatpush1.msra.mxu0 0.0
  %4189 = vmatprep.mubr.f32.mxu0 0.0
  %4190 = vmatmul.mubr.f32.gmra.mrb[0].mxu0 %v3890
  %v4191 = vpop.f32.mrb[0].mxu0
  %v4192 = vadd.f32 0.0, %v4191
  %v4193 = vpop.f32.mrb[0].mxu0
  %v4194 = vadd.f32 0.0, %v4193
  %4195 = vdwg.mxu0
  %v4196 = vadd.f32 %v3986, %v4121
  %v4197 = vadd.f32 %v3987, %v4123
  %v4198 = vadd.f32 %v3988, %v4192
  %v4199 = vadd.f32 %v3989, %v4194
  %v4200 = vxor.u32 %v4196, 2147483648
  %v4201 = vxor.u32 %v4197, 2147483648
  %v4202 = vxor.u32 %v4198, 2147483648
  %v4203 = vmul.f32 %v4200, 1.442695
  %v4204 = vpow.pop %v4203
  %v4205 = vmul.f32 %v4201, 1.442695
  %v4206 = vpow.pop %v4205
  %v4207 = vmul.f32 %v4202, 1.442695
  %v4208 = vpow.pop %v4207
  %v4209 = vadd.f32 %v4204, 1.0
  %v4210 = vadd.f32 %v4206, 1.0
  %v4211 = vadd.f32 %v4208, 1.0
  %v4212 = vrcp.pop %v4209
  %v4213 = vmul.f32 1.0, %v4212
  %v4214 = vrcp.pop %v4210
  %v4215 = vmul.f32 1.0, %v4214
  %v4216 = vrcp.pop %v4211
  %v4217 = vmul.f32 1.0, %v4216
  %v4218 = vtanh.pop %v4199
  %v4219 = vmul.f32 %v4215, %v3888
  %v4220 = vmul.f32 %v4213, %v4218
  %v4221 = vadd.f32 %v4219, %v4220
  %v4222 = vtanh.pop %v4221
  %v4223 = vmul.f32 %v4217, %v4222
  %v4224 = vld [vmem:[%s7] sm:$0xff]
  %v4225 = vld [vmem:[%s7 + $0x8] sm:$0xff]
  %v4226 = vld [vmem:[%s7 + $0x10] sm:$0xff]
  %v4227 = vld [vmem:[%s7 + $0x18] sm:$0xff]
  %v4228 = vld [vmem:[%s7 + $0x20] sm:$0xff]
  %v4229 = vld [vmem:[%s7 + $0x28] sm:$0xff]
  %v4230 = vld [vmem:[%s7 + $0x30] sm:$0xff]
  %v4231 = vld [vmem:[%s7 + $0x38] sm:$0xff]
  %v4232 = vld [vmem:[%s7 + $0x40] sm:$0xff]
  %v4233 = vld [vmem:[%s7 + $0x48] sm:$0xff]
  %v4234 = vld [vmem:[%s7 + $0x50] sm:$0xff]
  %v4235 = vld [vmem:[%s7 + $0x58] sm:$0xff]
  %v4236 = vld [vmem:[%s7 + $0x60] sm:$0xff]
  %v4237 = vld [vmem:[%s7 + $0x68] sm:$0xff]
  %v4238 = vld [vmem:[%s7 + $0x70] sm:$0xff]
  %v4239 = vld [vmem:[%s7 + $0x78] sm:$0xff]
  %v4240 = vld [vmem:[%s8] sm:$0x1]
  %v4242 = vlaneseq
  %v4243 = vshrl.u32 %v4242, 7
  %v4244 = vsub.s32 0, %v4243
  %v4245 = vrot.slane %v4240, %v4244
  %4247 = vmatprep.subr.mxu0 0.0
  %4248 = vmatpush1.msra.mxu0 %v4224
  %4249 = vmatprep.subr.mxu0 0.0
  %4250 = vmatpush1.msra.mxu0 %v4225
  %4251 = vmatprep.subr.mxu0 0.0
  %4252 = vmatpush1.msra.mxu0 %v4226
  %4253 = vmatprep.subr.mxu0 0.0
  %4254 = vmatpush1.msra.mxu0 %v4227
  %4255 = vmatprep.subr.mxu0 0.0
  %4256 = vmatpush1.msra.mxu0 %v4228
  %4257 = vmatprep.subr.mxu0 0.0
  %4258 = vmatpush1.msra.mxu0 %v4229
  %4259 = vmatprep.subr.mxu0 0.0
  %4260 = vmatpush1.msra.mxu0 %v4230
  %4261 = vmatprep.subr.mxu0 0.0
  %4262 = vmatpush1.msra.mxu0 %v4231
  %4263 = vmatprep.subr.mxu0 0.0
  %4264 = vmatpush1.msra.mxu0 %v4232
  %4265 = vmatprep.subr.mxu0 0.0
  %4266 = vmatpush1.msra.mxu0 %v4233
  %4267 = vmatprep.subr.mxu0 0.0
  %4268 = vmatpush1.msra.mxu0 %v4234
  %4269 = vmatprep.subr.mxu0 0.0
  %4270 = vmatpush1.msra.mxu0 %v4235
  %4271 = vmatprep.subr.mxu0 0.0
  %4272 = vmatpush1.msra.mxu0 %v4236
  %4273 = vmatprep.subr.mxu0 0.0
  %4274 = vmatpush1.msra.mxu0 %v4237
  %4275 = vmatprep.subr.mxu0 0.0
  %4276 = vmatpush1.msra.mxu0 %v4238
  %4277 = vmatprep.subr.mxu0 0.0
  %4278 = vmatpush1.msra.mxu0 %v4239
  %4279 = vmatprep.subr.mxu0 0.0
  %4280 = vmatpush1.msra.mxu0 0.0
  %4281 = vmatprep.subr.mxu0 0.0
  %4282 = vmatpush1.msra.mxu0 0.0
  %4283 = vmatprep.subr.mxu0 0.0
  %4284 = vmatpush1.msra.mxu0 0.0
  %4285 = vmatprep.subr.mxu0 0.0
  %4286 = vmatpush1.msra.mxu0 0.0
  %4287 = vmatprep.subr.mxu0 0.0
  %4288 = vmatpush1.msra.mxu0 0.0
  %4289 = vmatprep.subr.mxu0 0.0
  %4290 = vmatpush1.msra.mxu0 0.0
  %4291 = vmatprep.subr.mxu0 0.0
  %4292 = vmatpush1.msra.mxu0 0.0
  %4293 = vmatprep.subr.mxu0 0.0
  %4294 = vmatpush1.msra.mxu0 0.0
  %4295 = vmatprep.subr.mxu0 0.0
  %4296 = vmatpush1.msra.mxu0 0.0
  %4297 = vmatprep.subr.mxu0 0.0
  %4298 = vmatpush1.msra.mxu0 0.0
  %4299 = vmatprep.subr.mxu0 0.0
  %4300 = vmatpush1.msra.mxu0 0.0
  %4301 = vmatprep.subr.mxu0 0.0
  %4302 = vmatpush1.msra.mxu0 0.0
  %4303 = vmatprep.subr.mxu0 0.0
  %4304 = vmatpush1.msra.mxu0 0.0
  %4305 = vmatprep.subr.mxu0 0.0
  %4306 = vmatpush1.msra.mxu0 0.0
  %4307 = vmatprep.subr.mxu0 0.0
  %4308 = vmatpush1.msra.mxu0 0.0
  %4309 = vmatprep.subr.mxu0 0.0
  %4310 = vmatpush1.msra.mxu0 0.0
  %4311 = vmatprep.mubr.f32.mxu0 0.0
  %4312 = vmatmul.mubr.f32.gmra.mrb[0].mxu0 %v4223
  %v4313 = vpop.f32.mrb[0].mxu0
  %v4314 = vadd.f32 %v4245, %v4313
  %v4315 = vpop.f32.mrb[0].mxu0
  %4316 = vdwg.mxu0
  %s4317 = scalar_lea.vmem %s9, 32
  %4318 = vst [vmem:[%s4317] sm:$0xff] %v4314
  %v4319 = vld [vmem:[%s1576] sm:$0xff]
  %v4320 = vld [vmem:[%s1576 + $0x8] sm:$0xff]
  %v4321 = vld [vmem:[%s1576 + $0x10] sm:$0xff]
  %v4322 = vld [vmem:[%s1576 + $0x18] sm:$0xff]
  %v4323 = vld [vmem:[%s5] sm:$0xff]
  %v4324 = vld [vmem:[%s5 + $0x8] sm:$0xff]
  %v4325 = vld [vmem:[%s5 + $0x10] sm:$0xff]
  %v4326 = vld [vmem:[%s5 + $0x18] sm:$0xff]
  %v4327 = vld [vmem:[%s5 + $0x20] sm:$0xff]
  %v4328 = vld [vmem:[%s5 + $0x28] sm:$0xff]
  %v4329 = vld [vmem:[%s5 + $0x30] sm:$0xff]
  %v4330 = vld [vmem:[%s5 + $0x38] sm:$0xff]
  %v4331 = vld [vmem:[%s5 + $0x40] sm:$0xff]
  %v4332 = vld [vmem:[%s5 + $0x48] sm:$0xff]
  %v4333 = vld [vmem:[%s5 + $0x50] sm:$0xff]
  %v4334 = vld [vmem:[%s5 + $0x58] sm:$0xff]
  %v4335 = vld [vmem:[%s5 + $0x60] sm:$0xff]
  %v4336 = vld [vmem:[%s5 + $0x68] sm:$0xff]
  %v4337 = vld [vmem:[%s5 + $0x70] sm:$0xff]
  %v4338 = vld [vmem:[%s5 + $0x78] sm:$0xff]
  %v4339 = vld [vmem:[%s5 + $0x80] sm:$0xff]
  %v4340 = vld [vmem:[%s5 + $0x88] sm:$0xff]
  %v4341 = vld [vmem:[%s5 + $0x90] sm:$0xff]
  %v4342 = vld [vmem:[%s5 + $0x98] sm:$0xff]
  %v4343 = vld [vmem:[%s5 + $0xa0] sm:$0xff]
  %v4344 = vld [vmem:[%s5 + $0xa8] sm:$0xff]
  %v4345 = vld [vmem:[%s5 + $0xb0] sm:$0xff]
  %v4346 = vld [vmem:[%s5 + $0xb8] sm:$0xff]
  %v4347 = vld [vmem:[%s5 + $0xc0] sm:$0xff]
  %v4348 = vld [vmem:[%s5 + $0xc8] sm:$0xff]
  %v4349 = vld [vmem:[%s5 + $0xd0] sm:$0xff]
  %v4350 = vld [vmem:[%s5 + $0xd8] sm:$0xff]
  %v4351 = vld [vmem:[%s5 + $0xe0] sm:$0xff]
  %v4352 = vld [vmem:[%s5 + $0xe8] sm:$0xff]
  %v4353 = vld [vmem:[%s5 + $0xf0] sm:$0xff]
  %v4354 = vld [vmem:[%s5 + $0xf8] sm:$0xff]
  %v4355 = vld [vmem:[%s5 + $0x100] sm:$0xff]
  %v4356 = vld [vmem:[%s5 + $0x108] sm:$0xff]
  %v4357 = vld [vmem:[%s5 + $0x110] sm:$0xff]
  %v4358 = vld [vmem:[%s5 + $0x118] sm:$0xff]
  %v4359 = vld [vmem:[%s5 + $0x120] sm:$0xff]
  %v4360 = vld [vmem:[%s5 + $0x128] sm:$0xff]
  %v4361 = vld [vmem:[%s5 + $0x130] sm:$0xff]
  %v4362 = vld [vmem:[%s5 + $0x138] sm:$0xff]
  %v4363 = vld [vmem:[%s5 + $0x140] sm:$0xff]
  %v4364 = vld [vmem:[%s5 + $0x148] sm:$0xff]
  %v4365 = vld [vmem:[%s5 + $0x150] sm:$0xff]
  %v4366 = vld [vmem:[%s5 + $0x158] sm:$0xff]
  %v4367 = vld [vmem:[%s5 + $0x160] sm:$0xff]
  %v4368 = vld [vmem:[%s5 + $0x168] sm:$0xff]
  %v4369 = vld [vmem:[%s5 + $0x170] sm:$0xff]
  %v4370 = vld [vmem:[%s5 + $0x178] sm:$0xff]
  %v4371 = vld [vmem:[%s5 + $0x180] sm:$0xff]
  %v4372 = vld [vmem:[%s5 + $0x188] sm:$0xff]
  %v4373 = vld [vmem:[%s5 + $0x190] sm:$0xff]
  %v4374 = vld [vmem:[%s5 + $0x198] sm:$0xff]
  %v4375 = vld [vmem:[%s5 + $0x1a0] sm:$0xff]
  %v4376 = vld [vmem:[%s5 + $0x1a8] sm:$0xff]
  %v4377 = vld [vmem:[%s5 + $0x1b0] sm:$0xff]
  %v4378 = vld [vmem:[%s5 + $0x1b8] sm:$0xff]
  %v4379 = vld [vmem:[%s5 + $0x1c0] sm:$0xff]
  %v4380 = vld [vmem:[%s5 + $0x1c8] sm:$0xff]
  %v4381 = vld [vmem:[%s5 + $0x1d0] sm:$0xff]
  %v4382 = vld [vmem:[%s5 + $0x1d8] sm:$0xff]
  %v4383 = vld [vmem:[%s5 + $0x1e0] sm:$0xff]
  %v4384 = vld [vmem:[%s5 + $0x1e8] sm:$0xff]
  %v4385 = vld [vmem:[%s5 + $0x1f0] sm:$0xff]
  %v4386 = vld [vmem:[%s5 + $0x1f8] sm:$0xff]
  %4387 = vmatprep.subr.mxu0 %v4324
  %4388 = vmatpush1.msra.mxu0 %v4323
  %4389 = vmatprep.subr.mxu0 %v4328
  %4390 = vmatpush1.msra.mxu0 %v4327
  %4391 = vmatprep.subr.mxu0 %v4332
  %4392 = vmatpush1.msra.mxu0 %v4331
  %4393 = vmatprep.subr.mxu0 %v4336
  %4394 = vmatpush1.msra.mxu0 %v4335
  %4395 = vmatprep.subr.mxu0 %v4340
  %4396 = vmatpush1.msra.mxu0 %v4339
  %4397 = vmatprep.subr.mxu0 %v4344
  %4398 = vmatpush1.msra.mxu0 %v4343
  %4399 = vmatprep.subr.mxu0 %v4348
  %4400 = vmatpush1.msra.mxu0 %v4347
  %4401 = vmatprep.subr.mxu0 %v4352
  %4402 = vmatpush1.msra.mxu0 %v4351
  %4403 = vmatprep.subr.mxu0 %v4356
  %4404 = vmatpush1.msra.mxu0 %v4355
  %4405 = vmatprep.subr.mxu0 %v4360
  %4406 = vmatpush1.msra.mxu0 %v4359
  %4407 = vmatprep.subr.mxu0 %v4364
  %4408 = vmatpush1.msra.mxu0 %v4363
  %4409 = vmatprep.subr.mxu0 %v4368
  %4410 = vmatpush1.msra.mxu0 %v4367
  %4411 = vmatprep.subr.mxu0 %v4372
  %4412 = vmatpush1.msra.mxu0 %v4371
  %4413 = vmatprep.subr.mxu0 %v4376
  %4414 = vmatpush1.msra.mxu0 %v4375
  %4415 = vmatprep.subr.mxu0 %v4380
  %4416 = vmatpush1.msra.mxu0 %v4379
  %4417 = vmatprep.subr.mxu0 %v4384
  %4418 = vmatpush1.msra.mxu0 %v4383
  %4419 = vmatprep.subr.mxu0 0.0
  %4420 = vmatpush1.msra.mxu0 0.0
  %4421 = vmatprep.subr.mxu0 0.0
  %4422 = vmatpush1.msra.mxu0 0.0
  %4423 = vmatprep.subr.mxu0 0.0
  %4424 = vmatpush1.msra.mxu0 0.0
  %4425 = vmatprep.subr.mxu0 0.0
  %4426 = vmatpush1.msra.mxu0 0.0
  %4427 = vmatprep.subr.mxu0 0.0
  %4428 = vmatpush1.msra.mxu0 0.0
  %4429 = vmatprep.subr.mxu0 0.0
  %4430 = vmatpush1.msra.mxu0 0.0
  %4431 = vmatprep.subr.mxu0 0.0
  %4432 = vmatpush1.msra.mxu0 0.0
  %4433 = vmatprep.subr.mxu0 0.0
  %4434 = vmatpush1.msra.mxu0 0.0
  %4435 = vmatprep.subr.mxu0 0.0
  %4436 = vmatpush1.msra.mxu0 0.0
  %4437 = vmatprep.subr.mxu0 0.0
  %4438 = vmatpush1.msra.mxu0 0.0
  %4439 = vmatprep.subr.mxu0 0.0
  %4440 = vmatpush1.msra.mxu0 0.0
  %4441 = vmatprep.subr.mxu0 0.0
  %4442 = vmatpush1.msra.mxu0 0.0
  %4443 = vmatprep.subr.mxu0 0.0
  %4444 = vmatpush1.msra.mxu0 0.0
  %4445 = vmatprep.subr.mxu0 0.0
  %4446 = vmatpush1.msra.mxu0 0.0
  %4447 = vmatprep.subr.mxu0 0.0
  %4448 = vmatpush1.msra.mxu0 0.0
  %4449 = vmatprep.subr.mxu0 0.0
  %4450 = vmatpush1.msra.mxu0 0.0
  %4451 = vmatprep.mubr.f32.mxu0 0.0
  %4452 = vmatmul.mubr.f32.gmra.mrb[0].mxu0 %v4223
  %v4453 = vpop.f32.mrb[0].mxu0
  %v4454 = vadd.f32 0.0, %v4453
  %v4455 = vpop.f32.mrb[0].mxu0
  %v4456 = vadd.f32 0.0, %v4455
  %4457 = vdwg.mxu0
  %4458 = vmatprep.subr.mxu0 %v4326
  %4459 = vmatpush1.msra.mxu0 %v4325
  %4460 = vmatprep.subr.mxu0 %v4330
  %4461 = vmatpush1.msra.mxu0 %v4329
  %4462 = vmatprep.subr.mxu0 %v4334
  %4463 = vmatpush1.msra.mxu0 %v4333
  %4464 = vmatprep.subr.mxu0 %v4338
  %4465 = vmatpush1.msra.mxu0 %v4337
  %4466 = vmatprep.subr.mxu0 %v4342
  %4467 = vmatpush1.msra.mxu0 %v4341
  %4468 = vmatprep.subr.mxu0 %v4346
  %4469 = vmatpush1.msra.mxu0 %v4345
  %4470 = vmatprep.subr.mxu0 %v4350
  %4471 = vmatpush1.msra.mxu0 %v4349
  %4472 = vmatprep.subr.mxu0 %v4354
  %4473 = vmatpush1.msra.mxu0 %v4353
  %4474 = vmatprep.subr.mxu0 %v4358
  %4475 = vmatpush1.msra.mxu0 %v4357
  %4476 = vmatprep.subr.mxu0 %v4362
  %4477 = vmatpush1.msra.mxu0 %v4361
  %4478 = vmatprep.subr.mxu0 %v4366
  %4479 = vmatpush1.msra.mxu0 %v4365
  %4480 = vmatprep.subr.mxu0 %v4370
  %4481 = vmatpush1.msra.mxu0 %v4369
  %4482 = vmatprep.subr.mxu0 %v4374
  %4483 = vmatpush1.msra.mxu0 %v4373
  %4484 = vmatprep.subr.mxu0 %v4378
  %4485 = vmatpush1.msra.mxu0 %v4377
  %4486 = vmatprep.subr.mxu0 %v4382
  %4487 = vmatpush1.msra.mxu0 %v4381
  %4488 = vmatprep.subr.mxu0 %v4386
  %4489 = vmatpush1.msra.mxu0 %v4385
  %4490 = vmatprep.subr.mxu0 0.0
  %4491 = vmatpush1.msra.mxu0 0.0
  %4492 = vmatprep.subr.mxu0 0.0
  %4493 = vmatpush1.msra.mxu0 0.0
  %4494 = vmatprep.subr.mxu0 0.0
  %4495 = vmatpush1.msra.mxu0 0.0
  %4496 = vmatprep.subr.mxu0 0.0
  %4497 = vmatpush1.msra.mxu0 0.0
  %4498 = vmatprep.subr.mxu0 0.0
  %4499 = vmatpush1.msra.mxu0 0.0
  %4500 = vmatprep.subr.mxu0 0.0
  %4501 = vmatpush1.msra.mxu0 0.0
  %4502 = vmatprep.subr.mxu0 0.0
  %4503 = vmatpush1.msra.mxu0 0.0
  %4504 = vmatprep.subr.mxu0 0.0
  %4505 = vmatpush1.msra.mxu0 0.0
  %4506 = vmatprep.subr.mxu0 0.0
  %4507 = vmatpush1.msra.mxu0 0.0
  %4508 = vmatprep.subr.mxu0 0.0
  %4509 = vmatpush1.msra.mxu0 0.0
  %4510 = vmatprep.subr.mxu0 0.0
  %4511 = vmatpush1.msra.mxu0 0.0
  %4512 = vmatprep.subr.mxu0 0.0
  %4513 = vmatpush1.msra.mxu0 0.0
  %4514 = vmatprep.subr.mxu0 0.0
  %4515 = vmatpush1.msra.mxu0 0.0
  %4516 = vmatprep.subr.mxu0 0.0
  %4517 = vmatpush1.msra.mxu0 0.0
  %4518 = vmatprep.subr.mxu0 0.0
  %4519 = vmatpush1.msra.mxu0 0.0
  %4520 = vmatprep.subr.mxu0 0.0
  %4521 = vmatpush1.msra.mxu0 0.0
  %4522 = vmatprep.mubr.f32.mxu0 0.0
  %4523 = vmatmul.mubr.f32.gmra.mrb[0].mxu0 %v4223
  %v4524 = vpop.f32.mrb[0].mxu0
  %v4525 = vadd.f32 0.0, %v4524
  %v4526 = vpop.f32.mrb[0].mxu0
  %v4527 = vadd.f32 0.0, %v4526
  %4528 = vdwg.mxu0
  %v4529 = vadd.f32 %v4319, %v4454
  %v4530 = vadd.f32 %v4320, %v4456
  %v4531 = vadd.f32 %v4321, %v4525
  %v4532 = vadd.f32 %v4322, %v4527
  %v4533 = vxor.u32 %v4529, 2147483648
  %v4534 = vxor.u32 %v4530, 2147483648
  %v4535 = vxor.u32 %v4531, 2147483648
  %v4536 = vmul.f32 %v4533, 1.442695
  %v4537 = vpow.pop %v4536
  %v4538 = vmul.f32 %v4534, 1.442695
  %v4539 = vpow.pop %v4538
  %v4540 = vmul.f32 %v4535, 1.442695
  %v4541 = vpow.pop %v4540
  %v4542 = vadd.f32 %v4537, 1.0
  %v4543 = vadd.f32 %v4539, 1.0
  %v4544 = vadd.f32 %v4541, 1.0
  %v4545 = vrcp.pop %v4542
  %v4546 = vmul.f32 1.0, %v4545
  %v4547 = vrcp.pop %v4543
  %v4548 = vmul.f32 1.0, %v4547
  %v4549 = vrcp.pop %v4544
  %v4550 = vmul.f32 1.0, %v4549
  %v4551 = vtanh.pop %v4532
  %v4552 = vmul.f32 %v4548, %v4221
  %v4553 = vmul.f32 %v4546, %v4551
  %v4554 = vadd.f32 %v4552, %v4553
  %v4555 = vtanh.pop %v4554
  %v4556 = vmul.f32 %v4550, %v4555
  %v4557 = vld [vmem:[%s7] sm:$0xff]
  %v4558 = vld [vmem:[%s7 + $0x8] sm:$0xff]
  %v4559 = vld [vmem:[%s7 + $0x10] sm:$0xff]
  %v4560 = vld [vmem:[%s7 + $0x18] sm:$0xff]
  %v4561 = vld [vmem:[%s7 + $0x20] sm:$0xff]
  %v4562 = vld [vmem:[%s7 + $0x28] sm:$0xff]
  %v4563 = vld [vmem:[%s7 + $0x30] sm:$0xff]
  %v4564 = vld [vmem:[%s7 + $0x38] sm:$0xff]
  %v4565 = vld [vmem:[%s7 + $0x40] sm:$0xff]
  %v4566 = vld [vmem:[%s7 + $0x48] sm:$0xff]
  %v4567 = vld [vmem:[%s7 + $0x50] sm:$0xff]
  %v4568 = vld [vmem:[%s7 + $0x58] sm:$0xff]
  %v4569 = vld [vmem:[%s7 + $0x60] sm:$0xff]
  %v4570 = vld [vmem:[%s7 + $0x68] sm:$0xff]
  %v4571 = vld [vmem:[%s7 + $0x70] sm:$0xff]
  %v4572 = vld [vmem:[%s7 + $0x78] sm:$0xff]
  %v4573 = vld [vmem:[%s8] sm:$0x1]
  %v4575 = vlaneseq
  %v4576 = vshrl.u32 %v4575, 7
  %v4577 = vsub.s32 0, %v4576
  %v4578 = vrot.slane %v4573, %v4577
  %4580 = vmatprep.subr.mxu0 0.0
  %4581 = vmatpush1.msra.mxu0 %v4557
  %4582 = vmatprep.subr.mxu0 0.0
  %4583 = vmatpush1.msra.mxu0 %v4558
  %4584 = vmatprep.subr.mxu0 0.0
  %4585 = vmatpush1.msra.mxu0 %v4559
  %4586 = vmatprep.subr.mxu0 0.0
  %4587 = vmatpush1.msra.mxu0 %v4560
  %4588 = vmatprep.subr.mxu0 0.0
  %4589 = vmatpush1.msra.mxu0 %v4561
  %4590 = vmatprep.subr.mxu0 0.0
  %4591 = vmatpush1.msra.mxu0 %v4562
  %4592 = vmatprep.subr.mxu0 0.0
  %4593 = vmatpush1.msra.mxu0 %v4563
  %4594 = vmatprep.subr.mxu0 0.0
  %4595 = vmatpush1.msra.mxu0 %v4564
  %4596 = vmatprep.subr.mxu0 0.0
  %4597 = vmatpush1.msra.mxu0 %v4565
  %4598 = vmatprep.subr.mxu0 0.0
  %4599 = vmatpush1.msra.mxu0 %v4566
  %4600 = vmatprep.subr.mxu0 0.0
  %4601 = vmatpush1.msra.mxu0 %v4567
  %4602 = vmatprep.subr.mxu0 0.0
  %4603 = vmatpush1.msra.mxu0 %v4568
  %4604 = vmatprep.subr.mxu0 0.0
  %4605 = vmatpush1.msra.mxu0 %v4569
  %4606 = vmatprep.subr.mxu0 0.0
  %4607 = vmatpush1.msra.mxu0 %v4570
  %4608 = vmatprep.subr.mxu0 0.0
  %4609 = vmatpush1.msra.mxu0 %v4571
  %4610 = vmatprep.subr.mxu0 0.0
  %4611 = vmatpush1.msra.mxu0 %v4572
  %4612 = vmatprep.subr.mxu0 0.0
  %4613 = vmatpush1.msra.mxu0 0.0
  %4614 = vmatprep.subr.mxu0 0.0
  %4615 = vmatpush1.msra.mxu0 0.0
  %4616 = vmatprep.subr.mxu0 0.0
  %4617 = vmatpush1.msra.mxu0 0.0
  %4618 = vmatprep.subr.mxu0 0.0
  %4619 = vmatpush1.msra.mxu0 0.0
  %4620 = vmatprep.subr.mxu0 0.0
  %4621 = vmatpush1.msra.mxu0 0.0
  %4622 = vmatprep.subr.mxu0 0.0
  %4623 = vmatpush1.msra.mxu0 0.0
  %4624 = vmatprep.subr.mxu0 0.0
  %4625 = vmatpush1.msra.mxu0 0.0
  %4626 = vmatprep.subr.mxu0 0.0
  %4627 = vmatpush1.msra.mxu0 0.0
  %4628 = vmatprep.subr.mxu0 0.0
  %4629 = vmatpush1.msra.mxu0 0.0
  %4630 = vmatprep.subr.mxu0 0.0
  %4631 = vmatpush1.msra.mxu0 0.0
  %4632 = vmatprep.subr.mxu0 0.0
  %4633 = vmatpush1.msra.mxu0 0.0
  %4634 = vmatprep.subr.mxu0 0.0
  %4635 = vmatpush1.msra.mxu0 0.0
  %4636 = vmatprep.subr.mxu0 0.0
  %4637 = vmatpush1.msra.mxu0 0.0
  %4638 = vmatprep.subr.mxu0 0.0
  %4639 = vmatpush1.msra.mxu0 0.0
  %4640 = vmatprep.subr.mxu0 0.0
  %4641 = vmatpush1.msra.mxu0 0.0
  %4642 = vmatprep.subr.mxu0 0.0
  %4643 = vmatpush1.msra.mxu0 0.0
  %4644 = vmatprep.mubr.f32.mxu0 0.0
  %4645 = vmatmul.mubr.f32.gmra.mrb[0].mxu0 %v4556
  %v4646 = vpop.f32.mrb[0].mxu0
  %v4647 = vadd.f32 %v4578, %v4646
  %v4648 = vpop.f32.mrb[0].mxu0
  %4649 = vdwg.mxu0
  %s4650 = scalar_lea.vmem %s9, 40
  %4651 = vst [vmem:[%s4650] sm:$0xff] %v4647
  %v4652 = vld [vmem:[%s1819] sm:$0xff]
  %v4653 = vld [vmem:[%s1819 + $0x8] sm:$0xff]
  %v4654 = vld [vmem:[%s1819 + $0x10] sm:$0xff]
  %v4655 = vld [vmem:[%s1819 + $0x18] sm:$0xff]
  %v4656 = vld [vmem:[%s5] sm:$0xff]
  %v4657 = vld [vmem:[%s5 + $0x8] sm:$0xff]
  %v4658 = vld [vmem:[%s5 + $0x10] sm:$0xff]
  %v4659 = vld [vmem:[%s5 + $0x18] sm:$0xff]
  %v4660 = vld [vmem:[%s5 + $0x20] sm:$0xff]
  %v4661 = vld [vmem:[%s5 + $0x28] sm:$0xff]
  %v4662 = vld [vmem:[%s5 + $0x30] sm:$0xff]
  %v4663 = vld [vmem:[%s5 + $0x38] sm:$0xff]
  %v4664 = vld [vmem:[%s5 + $0x40] sm:$0xff]
  %v4665 = vld [vmem:[%s5 + $0x48] sm:$0xff]
  %v4666 = vld [vmem:[%s5 + $0x50] sm:$0xff]
  %v4667 = vld [vmem:[%s5 + $0x58] sm:$0xff]
  %v4668 = vld [vmem:[%s5 + $0x60] sm:$0xff]
  %v4669 = vld [vmem:[%s5 + $0x68] sm:$0xff]
  %v4670 = vld [vmem:[%s5 + $0x70] sm:$0xff]
  %v4671 = vld [vmem:[%s5 + $0x78] sm:$0xff]
  %v4672 = vld [vmem:[%s5 + $0x80] sm:$0xff]
  %v4673 = vld [vmem:[%s5 + $0x88] sm:$0xff]
  %v4674 = vld [vmem:[%s5 + $0x90] sm:$0xff]
  %v4675 = vld [vmem:[%s5 + $0x98] sm:$0xff]
  %v4676 = vld [vmem:[%s5 + $0xa0] sm:$0xff]
  %v4677 = vld [vmem:[%s5 + $0xa8] sm:$0xff]
  %v4678 = vld [vmem:[%s5 + $0xb0] sm:$0xff]
  %v4679 = vld [vmem:[%s5 + $0xb8] sm:$0xff]
  %v4680 = vld [vmem:[%s5 + $0xc0] sm:$0xff]
  %v4681 = vld [vmem:[%s5 + $0xc8] sm:$0xff]
  %v4682 = vld [vmem:[%s5 + $0xd0] sm:$0xff]
  %v4683 = vld [vmem:[%s5 + $0xd8] sm:$0xff]
  %v4684 = vld [vmem:[%s5 + $0xe0] sm:$0xff]
  %v4685 = vld [vmem:[%s5 + $0xe8] sm:$0xff]
  %v4686 = vld [vmem:[%s5 + $0xf0] sm:$0xff]
  %v4687 = vld [vmem:[%s5 + $0xf8] sm:$0xff]
  %v4688 = vld [vmem:[%s5 + $0x100] sm:$0xff]
  %v4689 = vld [vmem:[%s5 + $0x108] sm:$0xff]
  %v4690 = vld [vmem:[%s5 + $0x110] sm:$0xff]
  %v4691 = vld [vmem:[%s5 + $0x118] sm:$0xff]
  %v4692 = vld [vmem:[%s5 + $0x120] sm:$0xff]
  %v4693 = vld [vmem:[%s5 + $0x128] sm:$0xff]
  %v4694 = vld [vmem:[%s5 + $0x130] sm:$0xff]
  %v4695 = vld [vmem:[%s5 + $0x138] sm:$0xff]
  %v4696 = vld [vmem:[%s5 + $0x140] sm:$0xff]
  %v4697 = vld [vmem:[%s5 + $0x148] sm:$0xff]
  %v4698 = vld [vmem:[%s5 + $0x150] sm:$0xff]
  %v4699 = vld [vmem:[%s5 + $0x158] sm:$0xff]
  %v4700 = vld [vmem:[%s5 + $0x160] sm:$0xff]
  %v4701 = vld [vmem:[%s5 + $0x168] sm:$0xff]
  %v4702 = vld [vmem:[%s5 + $0x170] sm:$0xff]
  %v4703 = vld [vmem:[%s5 + $0x178] sm:$0xff]
  %v4704 = vld [vmem:[%s5 + $0x180] sm:$0xff]
  %v4705 = vld [vmem:[%s5 + $0x188] sm:$0xff]
  %v4706 = vld [vmem:[%s5 + $0x190] sm:$0xff]
  %v4707 = vld [vmem:[%s5 + $0x198] sm:$0xff]
  %v4708 = vld [vmem:[%s5 + $0x1a0] sm:$0xff]
  %v4709 = vld [vmem:[%s5 + $0x1a8] sm:$0xff]
  %v4710 = vld [vmem:[%s5 + $0x1b0] sm:$0xff]
  %v4711 = vld [vmem:[%s5 + $0x1b8] sm:$0xff]
  %v4712 = vld [vmem:[%s5 + $0x1c0] sm:$0xff]
  %v4713 = vld [vmem:[%s5 + $0x1c8] sm:$0xff]
  %v4714 = vld [vmem:[%s5 + $0x1d0] sm:$0xff]
  %v4715 = vld [vmem:[%s5 + $0x1d8] sm:$0xff]
  %v4716 = vld [vmem:[%s5 + $0x1e0] sm:$0xff]
  %v4717 = vld [vmem:[%s5 + $0x1e8] sm:$0xff]
  %v4718 = vld [vmem:[%s5 + $0x1f0] sm:$0xff]
  %v4719 = vld [vmem:[%s5 + $0x1f8] sm:$0xff]
  %4720 = vmatprep.subr.mxu0 %v4657
  %4721 = vmatpush1.msra.mxu0 %v4656
  %4722 = vmatprep.subr.mxu0 %v4661
  %4723 = vmatpush1.msra.mxu0 %v4660
  %4724 = vmatprep.subr.mxu0 %v4665
  %4725 = vmatpush1.msra.mxu0 %v4664
  %4726 = vmatprep.subr.mxu0 %v4669
  %4727 = vmatpush1.msra.mxu0 %v4668
  %4728 = vmatprep.subr.mxu0 %v4673
  %4729 = vmatpush1.msra.mxu0 %v4672
  %4730 = vmatprep.subr.mxu0 %v4677
  %4731 = vmatpush1.msra.mxu0 %v4676
  %4732 = vmatprep.subr.mxu0 %v4681
  %4733 = vmatpush1.msra.mxu0 %v4680
  %4734 = vmatprep.subr.mxu0 %v4685
  %4735 = vmatpush1.msra.mxu0 %v4684
  %4736 = vmatprep.subr.mxu0 %v4689
  %4737 = vmatpush1.msra.mxu0 %v4688
  %4738 = vmatprep.subr.mxu0 %v4693
  %4739 = vmatpush1.msra.mxu0 %v4692
  %4740 = vmatprep.subr.mxu0 %v4697
  %4741 = vmatpush1.msra.mxu0 %v4696
  %4742 = vmatprep.subr.mxu0 %v4701
  %4743 = vmatpush1.msra.mxu0 %v4700
  %4744 = vmatprep.subr.mxu0 %v4705
  %4745 = vmatpush1.msra.mxu0 %v4704
  %4746 = vmatprep.subr.mxu0 %v4709
  %4747 = vmatpush1.msra.mxu0 %v4708
  %4748 = vmatprep.subr.mxu0 %v4713
  %4749 = vmatpush1.msra.mxu0 %v4712
  %4750 = vmatprep.subr.mxu0 %v4717
  %4751 = vmatpush1.msra.mxu0 %v4716
  %4752 = vmatprep.subr.mxu0 0.0
  %4753 = vmatpush1.msra.mxu0 0.0
  %4754 = vmatprep.subr.mxu0 0.0
  %4755 = vmatpush1.msra.mxu0 0.0
  %4756 = vmatprep.subr.mxu0 0.0
  %4757 = vmatpush1.msra.mxu0 0.0
  %4758 = vmatprep.subr.mxu0 0.0
  %4759 = vmatpush1.msra.mxu0 0.0
  %4760 = vmatprep.subr.mxu0 0.0
  %4761 = vmatpush1.msra.mxu0 0.0
  %4762 = vmatprep.subr.mxu0 0.0
  %4763 = vmatpush1.msra.mxu0 0.0
  %4764 = vmatprep.subr.mxu0 0.0
  %4765 = vmatpush1.msra.mxu0 0.0
  %4766 = vmatprep.subr.mxu0 0.0
  %4767 = vmatpush1.msra.mxu0 0.0
  %4768 = vmatprep.subr.mxu0 0.0
  %4769 = vmatpush1.msra.mxu0 0.0
  %4770 = vmatprep.subr.mxu0 0.0
  %4771 = vmatpush1.msra.mxu0 0.0
  %4772 = vmatprep.subr.mxu0 0.0
  %4773 = vmatpush1.msra.mxu0 0.0
  %4774 = vmatprep.subr.mxu0 0.0
  %4775 = vmatpush1.msra.mxu0 0.0
  %4776 = vmatprep.subr.mxu0 0.0
  %4777 = vmatpush1.msra.mxu0 0.0
  %4778 = vmatprep.subr.mxu0 0.0
  %4779 = vmatpush1.msra.mxu0 0.0
  %4780 = vmatprep.subr.mxu0 0.0
  %4781 = vmatpush1.msra.mxu0 0.0
  %4782 = vmatprep.subr.mxu0 0.0
  %4783 = vmatpush1.msra.mxu0 0.0
  %4784 = vmatprep.mubr.f32.mxu0 0.0
  %4785 = vmatmul.mubr.f32.gmra.mrb[0].mxu0 %v4556
  %v4786 = vpop.f32.mrb[0].mxu0
  %v4787 = vadd.f32 0.0, %v4786
  %v4788 = vpop.f32.mrb[0].mxu0
  %v4789 = vadd.f32 0.0, %v4788
  %4790 = vdwg.mxu0
  %4791 = vmatprep.subr.mxu0 %v4659
  %4792 = vmatpush1.msra.mxu0 %v4658
  %4793 = vmatprep.subr.mxu0 %v4663
  %4794 = vmatpush1.msra.mxu0 %v4662
  %4795 = vmatprep.subr.mxu0 %v4667
  %4796 = vmatpush1.msra.mxu0 %v4666
  %4797 = vmatprep.subr.mxu0 %v4671
  %4798 = vmatpush1.msra.mxu0 %v4670
  %4799 = vmatprep.subr.mxu0 %v4675
  %4800 = vmatpush1.msra.mxu0 %v4674
  %4801 = vmatprep.subr.mxu0 %v4679
  %4802 = vmatpush1.msra.mxu0 %v4678
  %4803 = vmatprep.subr.mxu0 %v4683
  %4804 = vmatpush1.msra.mxu0 %v4682
  %4805 = vmatprep.subr.mxu0 %v4687
  %4806 = vmatpush1.msra.mxu0 %v4686
  %4807 = vmatprep.subr.mxu0 %v4691
  %4808 = vmatpush1.msra.mxu0 %v4690
  %4809 = vmatprep.subr.mxu0 %v4695
  %4810 = vmatpush1.msra.mxu0 %v4694
  %4811 = vmatprep.subr.mxu0 %v4699
  %4812 = vmatpush1.msra.mxu0 %v4698
  %4813 = vmatprep.subr.mxu0 %v4703
  %4814 = vmatpush1.msra.mxu0 %v4702
  %4815 = vmatprep.subr.mxu0 %v4707
  %4816 = vmatpush1.msra.mxu0 %v4706
  %4817 = vmatprep.subr.mxu0 %v4711
  %4818 = vmatpush1.msra.mxu0 %v4710
  %4819 = vmatprep.subr.mxu0 %v4715
  %4820 = vmatpush1.msra.mxu0 %v4714
  %4821 = vmatprep.subr.mxu0 %v4719
  %4822 = vmatpush1.msra.mxu0 %v4718
  %4823 = vmatprep.subr.mxu0 0.0
  %4824 = vmatpush1.msra.mxu0 0.0
  %4825 = vmatprep.subr.mxu0 0.0
  %4826 = vmatpush1.msra.mxu0 0.0
  %4827 = vmatprep.subr.mxu0 0.0
  %4828 = vmatpush1.msra.mxu0 0.0
  %4829 = vmatprep.subr.mxu0 0.0
  %4830 = vmatpush1.msra.mxu0 0.0
  %4831 = vmatprep.subr.mxu0 0.0
  %4832 = vmatpush1.msra.mxu0 0.0
  %4833 = vmatprep.subr.mxu0 0.0
  %4834 = vmatpush1.msra.mxu0 0.0
  %4835 = vmatprep.subr.mxu0 0.0
  %4836 = vmatpush1.msra.mxu0 0.0
  %4837 = vmatprep.subr.mxu0 0.0
  %4838 = vmatpush1.msra.mxu0 0.0
  %4839 = vmatprep.subr.mxu0 0.0
  %4840 = vmatpush1.msra.mxu0 0.0
  %4841 = vmatprep.subr.mxu0 0.0
  %4842 = vmatpush1.msra.mxu0 0.0
  %4843 = vmatprep.subr.mxu0 0.0
  %4844 = vmatpush1.msra.mxu0 0.0
  %4845 = vmatprep.subr.mxu0 0.0
  %4846 = vmatpush1.msra.mxu0 0.0
  %4847 = vmatprep.subr.mxu0 0.0
  %4848 = vmatpush1.msra.mxu0 0.0
  %4849 = vmatprep.subr.mxu0 0.0
  %4850 = vmatpush1.msra.mxu0 0.0
  %4851 = vmatprep.subr.mxu0 0.0
  %4852 = vmatpush1.msra.mxu0 0.0
  %4853 = vmatprep.subr.mxu0 0.0
  %4854 = vmatpush1.msra.mxu0 0.0
  %4855 = vmatprep.mubr.f32.mxu0 0.0
  %4856 = vmatmul.mubr.f32.gmra.mrb[0].mxu0 %v4556
  %v4857 = vpop.f32.mrb[0].mxu0
  %v4858 = vadd.f32 0.0, %v4857
  %v4859 = vpop.f32.mrb[0].mxu0
  %v4860 = vadd.f32 0.0, %v4859
  %4861 = vdwg.mxu0
  %v4862 = vadd.f32 %v4652, %v4787
  %v4863 = vadd.f32 %v4653, %v4789
  %v4864 = vadd.f32 %v4654, %v4858
  %v4865 = vadd.f32 %v4655, %v4860
  %v4866 = vxor.u32 %v4862, 2147483648
  %v4867 = vxor.u32 %v4863, 2147483648
  %v4868 = vxor.u32 %v4864, 2147483648
  %v4869 = vmul.f32 %v4866, 1.442695
  %v4870 = vpow.pop %v4869
  %v4871 = vmul.f32 %v4867, 1.442695
  %v4872 = vpow.pop %v4871
  %v4873 = vmul.f32 %v4868, 1.442695
  %v4874 = vpow.pop %v4873
  %v4875 = vadd.f32 %v4870, 1.0
  %v4876 = vadd.f32 %v4872, 1.0
  %v4877 = vadd.f32 %v4874, 1.0
  %v4878 = vrcp.pop %v4875
  %v4879 = vmul.f32 1.0, %v4878
  %v4880 = vrcp.pop %v4876
  %v4881 = vmul.f32 1.0, %v4880
  %v4882 = vrcp.pop %v4877
  %v4883 = vmul.f32 1.0, %v4882
  %v4884 = vtanh.pop %v4865
  %v4885 = vmul.f32 %v4881, %v4554
  %v4886 = vmul.f32 %v4879, %v4884
  %v4887 = vadd.f32 %v4885, %v4886
  %v4888 = vtanh.pop %v4887
  %v4889 = vmul.f32 %v4883, %v4888
  %v4890 = vld [vmem:[%s7] sm:$0xff]
  %v4891 = vld [vmem:[%s7 + $0x8] sm:$0xff]
  %v4892 = vld [vmem:[%s7 + $0x10] sm:$0xff]
  %v4893 = vld [vmem:[%s7 + $0x18] sm:$0xff]
  %v4894 = vld [vmem:[%s7 + $0x20] sm:$0xff]
  %v4895 = vld [vmem:[%s7 + $0x28] sm:$0xff]
  %v4896 = vld [vmem:[%s7 + $0x30] sm:$0xff]
  %v4897 = vld [vmem:[%s7 + $0x38] sm:$0xff]
  %v4898 = vld [vmem:[%s7 + $0x40] sm:$0xff]
  %v4899 = vld [vmem:[%s7 + $0x48] sm:$0xff]
  %v4900 = vld [vmem:[%s7 + $0x50] sm:$0xff]
  %v4901 = vld [vmem:[%s7 + $0x58] sm:$0xff]
  %v4902 = vld [vmem:[%s7 + $0x60] sm:$0xff]
  %v4903 = vld [vmem:[%s7 + $0x68] sm:$0xff]
  %v4904 = vld [vmem:[%s7 + $0x70] sm:$0xff]
  %v4905 = vld [vmem:[%s7 + $0x78] sm:$0xff]
  %v4906 = vld [vmem:[%s8] sm:$0x1]
  %v4908 = vlaneseq
  %v4909 = vshrl.u32 %v4908, 7
  %v4910 = vsub.s32 0, %v4909
  %v4911 = vrot.slane %v4906, %v4910
  %4913 = vmatprep.subr.mxu0 0.0
  %4914 = vmatpush1.msra.mxu0 %v4890
  %4915 = vmatprep.subr.mxu0 0.0
  %4916 = vmatpush1.msra.mxu0 %v4891
  %4917 = vmatprep.subr.mxu0 0.0
  %4918 = vmatpush1.msra.mxu0 %v4892
  %4919 = vmatprep.subr.mxu0 0.0
  %4920 = vmatpush1.msra.mxu0 %v4893
  %4921 = vmatprep.subr.mxu0 0.0
  %4922 = vmatpush1.msra.mxu0 %v4894
  %4923 = vmatprep.subr.mxu0 0.0
  %4924 = vmatpush1.msra.mxu0 %v4895
  %4925 = vmatprep.subr.mxu0 0.0
  %4926 = vmatpush1.msra.mxu0 %v4896
  %4927 = vmatprep.subr.mxu0 0.0
  %4928 = vmatpush1.msra.mxu0 %v4897
  %4929 = vmatprep.subr.mxu0 0.0
  %4930 = vmatpush1.msra.mxu0 %v4898
  %4931 = vmatprep.subr.mxu0 0.0
  %4932 = vmatpush1.msra.mxu0 %v4899
  %4933 = vmatprep.subr.mxu0 0.0
  %4934 = vmatpush1.msra.mxu0 %v4900
  %4935 = vmatprep.subr.mxu0 0.0
  %4936 = vmatpush1.msra.mxu0 %v4901
  %4937 = vmatprep.subr.mxu0 0.0
  %4938 = vmatpush1.msra.mxu0 %v4902
  %4939 = vmatprep.subr.mxu0 0.0
  %4940 = vmatpush1.msra.mxu0 %v4903
  %4941 = vmatprep.subr.mxu0 0.0
  %4942 = vmatpush1.msra.mxu0 %v4904
  %4943 = vmatprep.subr.mxu0 0.0
  %4944 = vmatpush1.msra.mxu0 %v4905
  %4945 = vmatprep.subr.mxu0 0.0
  %4946 = vmatpush1.msra.mxu0 0.0
  %4947 = vmatprep.subr.mxu0 0.0
  %4948 = vmatpush1.msra.mxu0 0.0
  %4949 = vmatprep.subr.mxu0 0.0
  %4950 = vmatpush1.msra.mxu0 0.0
  %4951 = vmatprep.subr.mxu0 0.0
  %4952 = vmatpush1.msra.mxu0 0.0
  %4953 = vmatprep.subr.mxu0 0.0
  %4954 = vmatpush1.msra.mxu0 0.0
  %4955 = vmatprep.subr.mxu0 0.0
  %4956 = vmatpush1.msra.mxu0 0.0
  %4957 = vmatprep.subr.mxu0 0.0
  %4958 = vmatpush1.msra.mxu0 0.0
  %4959 = vmatprep.subr.mxu0 0.0
  %4960 = vmatpush1.msra.mxu0 0.0
  %4961 = vmatprep.subr.mxu0 0.0
  %4962 = vmatpush1.msra.mxu0 0.0
  %4963 = vmatprep.subr.mxu0 0.0
  %4964 = vmatpush1.msra.mxu0 0.0
  %4965 = vmatprep.subr.mxu0 0.0
  %4966 = vmatpush1.msra.mxu0 0.0
  %4967 = vmatprep.subr.mxu0 0.0
  %4968 = vmatpush1.msra.mxu0 0.0
  %4969 = vmatprep.subr.mxu0 0.0
  %4970 = vmatpush1.msra.mxu0 0.0
  %4971 = vmatprep.subr.mxu0 0.0
  %4972 = vmatpush1.msra.mxu0 0.0
  %4973 = vmatprep.subr.mxu0 0.0
  %4974 = vmatpush1.msra.mxu0 0.0
  %4975 = vmatprep.subr.mxu0 0.0
  %4976 = vmatpush1.msra.mxu0 0.0
  %4977 = vmatprep.mubr.f32.mxu0 0.0
  %4978 = vmatmul.mubr.f32.gmra.mrb[0].mxu0 %v4889
  %v4979 = vpop.f32.mrb[0].mxu0
  %v4980 = vadd.f32 %v4911, %v4979
  %v4981 = vpop.f32.mrb[0].mxu0
  %4982 = vdwg.mxu0
  %s4983 = scalar_lea.vmem %s9, 48
  %4984 = vst [vmem:[%s4983] sm:$0xff] %v4980
  %v4985 = vld [vmem:[%s2062] sm:$0xff]
  %v4986 = vld [vmem:[%s2062 + $0x8] sm:$0xff]
  %v4987 = vld [vmem:[%s2062 + $0x10] sm:$0xff]
  %v4988 = vld [vmem:[%s2062 + $0x18] sm:$0xff]
  %v4989 = vld [vmem:[%s5] sm:$0xff]
  %v4990 = vld [vmem:[%s5 + $0x8] sm:$0xff]
  %v4991 = vld [vmem:[%s5 + $0x10] sm:$0xff]
  %v4992 = vld [vmem:[%s5 + $0x18] sm:$0xff]
  %v4993 = vld [vmem:[%s5 + $0x20] sm:$0xff]
  %v4994 = vld [vmem:[%s5 + $0x28] sm:$0xff]
  %v4995 = vld [vmem:[%s5 + $0x30] sm:$0xff]
  %v4996 = vld [vmem:[%s5 + $0x38] sm:$0xff]
  %v4997 = vld [vmem:[%s5 + $0x40] sm:$0xff]
  %v4998 = vld [vmem:[%s5 + $0x48] sm:$0xff]
  %v4999 = vld [vmem:[%s5 + $0x50] sm:$0xff]
  %v5000 = vld [vmem:[%s5 + $0x58] sm:$0xff]
  %v5001 = vld [vmem:[%s5 + $0x60] sm:$0xff]
  %v5002 = vld [vmem:[%s5 + $0x68] sm:$0xff]
  %v5003 = vld [vmem:[%s5 + $0x70] sm:$0xff]
  %v5004 = vld [vmem:[%s5 + $0x78] sm:$0xff]
  %v5005 = vld [vmem:[%s5 + $0x80] sm:$0xff]
  %v5006 = vld [vmem:[%s5 + $0x88] sm:$0xff]
  %v5007 = vld [vmem:[%s5 + $0x90] sm:$0xff]
  %v5008 = vld [vmem:[%s5 + $0x98] sm:$0xff]
  %v5009 = vld [vmem:[%s5 + $0xa0] sm:$0xff]
  %v5010 = vld [vmem:[%s5 + $0xa8] sm:$0xff]
  %v5011 = vld [vmem:[%s5 + $0xb0] sm:$0xff]
  %v5012 = vld [vmem:[%s5 + $0xb8] sm:$0xff]
  %v5013 = vld [vmem:[%s5 + $0xc0] sm:$0xff]
  %v5014 = vld [vmem:[%s5 + $0xc8] sm:$0xff]
  %v5015 = vld [vmem:[%s5 + $0xd0] sm:$0xff]
  %v5016 = vld [vmem:[%s5 + $0xd8] sm:$0xff]
  %v5017 = vld [vmem:[%s5 + $0xe0] sm:$0xff]
  %v5018 = vld [vmem:[%s5 + $0xe8] sm:$0xff]
  %v5019 = vld [vmem:[%s5 + $0xf0] sm:$0xff]
  %v5020 = vld [vmem:[%s5 + $0xf8] sm:$0xff]
  %v5021 = vld [vmem:[%s5 + $0x100] sm:$0xff]
  %v5022 = vld [vmem:[%s5 + $0x108] sm:$0xff]
  %v5023 = vld [vmem:[%s5 + $0x110] sm:$0xff]
  %v5024 = vld [vmem:[%s5 + $0x118] sm:$0xff]
  %v5025 = vld [vmem:[%s5 + $0x120] sm:$0xff]
  %v5026 = vld [vmem:[%s5 + $0x128] sm:$0xff]
  %v5027 = vld [vmem:[%s5 + $0x130] sm:$0xff]
  %v5028 = vld [vmem:[%s5 + $0x138] sm:$0xff]
  %v5029 = vld [vmem:[%s5 + $0x140] sm:$0xff]
  %v5030 = vld [vmem:[%s5 + $0x148] sm:$0xff]
  %v5031 = vld [vmem:[%s5 + $0x150] sm:$0xff]
  %v5032 = vld [vmem:[%s5 + $0x158] sm:$0xff]
  %v5033 = vld [vmem:[%s5 + $0x160] sm:$0xff]
  %v5034 = vld [vmem:[%s5 + $0x168] sm:$0xff]
  %v5035 = vld [vmem:[%s5 + $0x170] sm:$0xff]
  %v5036 = vld [vmem:[%s5 + $0x178] sm:$0xff]
  %v5037 = vld [vmem:[%s5 + $0x180] sm:$0xff]
  %v5038 = vld [vmem:[%s5 + $0x188] sm:$0xff]
  %v5039 = vld [vmem:[%s5 + $0x190] sm:$0xff]
  %v5040 = vld [vmem:[%s5 + $0x198] sm:$0xff]
  %v5041 = vld [vmem:[%s5 + $0x1a0] sm:$0xff]
  %v5042 = vld [vmem:[%s5 + $0x1a8] sm:$0xff]
  %v5043 = vld [vmem:[%s5 + $0x1b0] sm:$0xff]
  %v5044 = vld [vmem:[%s5 + $0x1b8] sm:$0xff]
  %v5045 = vld [vmem:[%s5 + $0x1c0] sm:$0xff]
  %v5046 = vld [vmem:[%s5 + $0x1c8] sm:$0xff]
  %v5047 = vld [vmem:[%s5 + $0x1d0] sm:$0xff]
  %v5048 = vld [vmem:[%s5 + $0x1d8] sm:$0xff]
  %v5049 = vld [vmem:[%s5 + $0x1e0] sm:$0xff]
  %v5050 = vld [vmem:[%s5 + $0x1e8] sm:$0xff]
  %v5051 = vld [vmem:[%s5 + $0x1f0] sm:$0xff]
  %v5052 = vld [vmem:[%s5 + $0x1f8] sm:$0xff]
  %5053 = vmatprep.subr.mxu0 %v4990
  %5054 = vmatpush1.msra.mxu0 %v4989
  %5055 = vmatprep.subr.mxu0 %v4994
  %5056 = vmatpush1.msra.mxu0 %v4993
  %5057 = vmatprep.subr.mxu0 %v4998
  %5058 = vmatpush1.msra.mxu0 %v4997
  %5059 = vmatprep.subr.mxu0 %v5002
  %5060 = vmatpush1.msra.mxu0 %v5001
  %5061 = vmatprep.subr.mxu0 %v5006
  %5062 = vmatpush1.msra.mxu0 %v5005
  %5063 = vmatprep.subr.mxu0 %v5010
  %5064 = vmatpush1.msra.mxu0 %v5009
  %5065 = vmatprep.subr.mxu0 %v5014
  %5066 = vmatpush1.msra.mxu0 %v5013
  %5067 = vmatprep.subr.mxu0 %v5018
  %5068 = vmatpush1.msra.mxu0 %v5017
  %5069 = vmatprep.subr.mxu0 %v5022
  %5070 = vmatpush1.msra.mxu0 %v5021
  %5071 = vmatprep.subr.mxu0 %v5026
  %5072 = vmatpush1.msra.mxu0 %v5025
  %5073 = vmatprep.subr.mxu0 %v5030
  %5074 = vmatpush1.msra.mxu0 %v5029
  %5075 = vmatprep.subr.mxu0 %v5034
  %5076 = vmatpush1.msra.mxu0 %v5033
  %5077 = vmatprep.subr.mxu0 %v5038
  %5078 = vmatpush1.msra.mxu0 %v5037
  %5079 = vmatprep.subr.mxu0 %v5042
  %5080 = vmatpush1.msra.mxu0 %v5041
  %5081 = vmatprep.subr.mxu0 %v5046
  %5082 = vmatpush1.msra.mxu0 %v5045
  %5083 = vmatprep.subr.mxu0 %v5050
  %5084 = vmatpush1.msra.mxu0 %v5049
  %5085 = vmatprep.subr.mxu0 0.0
  %5086 = vmatpush1.msra.mxu0 0.0
  %5087 = vmatprep.subr.mxu0 0.0
  %5088 = vmatpush1.msra.mxu0 0.0
  %5089 = vmatprep.subr.mxu0 0.0
  %5090 = vmatpush1.msra.mxu0 0.0
  %5091 = vmatprep.subr.mxu0 0.0
  %5092 = vmatpush1.msra.mxu0 0.0
  %5093 = vmatprep.subr.mxu0 0.0
  %5094 = vmatpush1.msra.mxu0 0.0
  %5095 = vmatprep.subr.mxu0 0.0
  %5096 = vmatpush1.msra.mxu0 0.0
  %5097 = vmatprep.subr.mxu0 0.0
  %5098 = vmatpush1.msra.mxu0 0.0
  %5099 = vmatprep.subr.mxu0 0.0
  %5100 = vmatpush1.msra.mxu0 0.0
  %5101 = vmatprep.subr.mxu0 0.0
  %5102 = vmatpush1.msra.mxu0 0.0
  %5103 = vmatprep.subr.mxu0 0.0
  %5104 = vmatpush1.msra.mxu0 0.0
  %5105 = vmatprep.subr.mxu0 0.0
  %5106 = vmatpush1.msra.mxu0 0.0
  %5107 = vmatprep.subr.mxu0 0.0
  %5108 = vmatpush1.msra.mxu0 0.0
  %5109 = vmatprep.subr.mxu0 0.0
  %5110 = vmatpush1.msra.mxu0 0.0
  %5111 = vmatprep.subr.mxu0 0.0
  %5112 = vmatpush1.msra.mxu0 0.0
  %5113 = vmatprep.subr.mxu0 0.0
  %5114 = vmatpush1.msra.mxu0 0.0
  %5115 = vmatprep.subr.mxu0 0.0
  %5116 = vmatpush1.msra.mxu0 0.0
  %5117 = vmatprep.mubr.f32.mxu0 0.0
  %5118 = vmatmul.mubr.f32.gmra.mrb[0].mxu0 %v4889
  %v5119 = vpop.f32.mrb[0].mxu0
  %v5120 = vadd.f32 0.0, %v5119
  %v5121 = vpop.f32.mrb[0].mxu0
  %v5122 = vadd.f32 0.0, %v5121
  %5123 = vdwg.mxu0
  %5124 = vmatprep.subr.mxu0 %v4992
  %5125 = vmatpush1.msra.mxu0 %v4991
  %5126 = vmatprep.subr.mxu0 %v4996
  %5127 = vmatpush1.msra.mxu0 %v4995
  %5128 = vmatprep.subr.mxu0 %v5000
  %5129 = vmatpush1.msra.mxu0 %v4999
  %5130 = vmatprep.subr.mxu0 %v5004
  %5131 = vmatpush1.msra.mxu0 %v5003
  %5132 = vmatprep.subr.mxu0 %v5008
  %5133 = vmatpush1.msra.mxu0 %v5007
  %5134 = vmatprep.subr.mxu0 %v5012
  %5135 = vmatpush1.msra.mxu0 %v5011
  %5136 = vmatprep.subr.mxu0 %v5016
  %5137 = vmatpush1.msra.mxu0 %v5015
  %5138 = vmatprep.subr.mxu0 %v5020
  %5139 = vmatpush1.msra.mxu0 %v5019
  %5140 = vmatprep.subr.mxu0 %v5024
  %5141 = vmatpush1.msra.mxu0 %v5023
  %5142 = vmatprep.subr.mxu0 %v5028
  %5143 = vmatpush1.msra.mxu0 %v5027
  %5144 = vmatprep.subr.mxu0 %v5032
  %5145 = vmatpush1.msra.mxu0 %v5031
  %5146 = vmatprep.subr.mxu0 %v5036
  %5147 = vmatpush1.msra.mxu0 %v5035
  %5148 = vmatprep.subr.mxu0 %v5040
  %5149 = vmatpush1.msra.mxu0 %v5039
  %5150 = vmatprep.subr.mxu0 %v5044
  %5151 = vmatpush1.msra.mxu0 %v5043
  %5152 = vmatprep.subr.mxu0 %v5048
  %5153 = vmatpush1.msra.mxu0 %v5047
  %5154 = vmatprep.subr.mxu0 %v5052
  %5155 = vmatpush1.msra.mxu0 %v5051
  %5156 = vmatprep.subr.mxu0 0.0
  %5157 = vmatpush1.msra.mxu0 0.0
  %5158 = vmatprep.subr.mxu0 0.0
  %5159 = vmatpush1.msra.mxu0 0.0
  %5160 = vmatprep.subr.mxu0 0.0
  %5161 = vmatpush1.msra.mxu0 0.0
  %5162 = vmatprep.subr.mxu0 0.0
  %5163 = vmatpush1.msra.mxu0 0.0
  %5164 = vmatprep.subr.mxu0 0.0
  %5165 = vmatpush1.msra.mxu0 0.0
  %5166 = vmatprep.subr.mxu0 0.0
  %5167 = vmatpush1.msra.mxu0 0.0
  %5168 = vmatprep.subr.mxu0 0.0
  %5169 = vmatpush1.msra.mxu0 0.0
  %5170 = vmatprep.subr.mxu0 0.0
  %5171 = vmatpush1.msra.mxu0 0.0
  %5172 = vmatprep.subr.mxu0 0.0
  %5173 = vmatpush1.msra.mxu0 0.0
  %5174 = vmatprep.subr.mxu0 0.0
  %5175 = vmatpush1.msra.mxu0 0.0
  %5176 = vmatprep.subr.mxu0 0.0
  %5177 = vmatpush1.msra.mxu0 0.0
  %5178 = vmatprep.subr.mxu0 0.0
  %5179 = vmatpush1.msra.mxu0 0.0
  %5180 = vmatprep.subr.mxu0 0.0
  %5181 = vmatpush1.msra.mxu0 0.0
  %5182 = vmatprep.subr.mxu0 0.0
  %5183 = vmatpush1.msra.mxu0 0.0
  %5184 = vmatprep.subr.mxu0 0.0
  %5185 = vmatpush1.msra.mxu0 0.0
  %5186 = vmatprep.subr.mxu0 0.0
  %5187 = vmatpush1.msra.mxu0 0.0
  %5188 = vmatprep.mubr.f32.mxu0 0.0
  %5189 = vmatmul.mubr.f32.gmra.mrb[0].mxu0 %v4889
  %v5190 = vpop.f32.mrb[0].mxu0
  %v5191 = vadd.f32 0.0, %v5190
  %v5192 = vpop.f32.mrb[0].mxu0
  %v5193 = vadd.f32 0.0, %v5192
  %5194 = vdwg.mxu0
  %v5195 = vadd.f32 %v4985, %v5120
  %v5196 = vadd.f32 %v4986, %v5122
  %v5197 = vadd.f32 %v4987, %v5191
  %v5198 = vadd.f32 %v4988, %v5193
  %v5199 = vxor.u32 %v5195, 2147483648
  %v5200 = vxor.u32 %v5196, 2147483648
  %v5201 = vxor.u32 %v5197, 2147483648
  %v5202 = vmul.f32 %v5199, 1.442695
  %v5203 = vpow.pop %v5202
  %v5204 = vmul.f32 %v5200, 1.442695
  %v5205 = vpow.pop %v5204
  %v5206 = vmul.f32 %v5201, 1.442695
  %v5207 = vpow.pop %v5206
  %v5208 = vadd.f32 %v5203, 1.0
  %v5209 = vadd.f32 %v5205, 1.0
  %v5210 = vadd.f32 %v5207, 1.0
  %v5211 = vrcp.pop %v5208
  %v5212 = vmul.f32 1.0, %v5211
  %v5213 = vrcp.pop %v5209
  %v5214 = vmul.f32 1.0, %v5213
  %v5215 = vrcp.pop %v5210
  %v5216 = vmul.f32 1.0, %v5215
  %v5217 = vtanh.pop %v5198
  %v5218 = vmul.f32 %v5214, %v4887
  %v5219 = vmul.f32 %v5212, %v5217
  %v5220 = vadd.f32 %v5218, %v5219
  %v5221 = vtanh.pop %v5220
  %v5222 = vmul.f32 %v5216, %v5221
  %v5223 = vld [vmem:[%s7] sm:$0xff]
  %v5224 = vld [vmem:[%s7 + $0x8] sm:$0xff]
  %v5225 = vld [vmem:[%s7 + $0x10] sm:$0xff]
  %v5226 = vld [vmem:[%s7 + $0x18] sm:$0xff]
  %v5227 = vld [vmem:[%s7 + $0x20] sm:$0xff]
  %v5228 = vld [vmem:[%s7 + $0x28] sm:$0xff]
  %v5229 = vld [vmem:[%s7 + $0x30] sm:$0xff]
  %v5230 = vld [vmem:[%s7 + $0x38] sm:$0xff]
  %v5231 = vld [vmem:[%s7 + $0x40] sm:$0xff]
  %v5232 = vld [vmem:[%s7 + $0x48] sm:$0xff]
  %v5233 = vld [vmem:[%s7 + $0x50] sm:$0xff]
  %v5234 = vld [vmem:[%s7 + $0x58] sm:$0xff]
  %v5235 = vld [vmem:[%s7 + $0x60] sm:$0xff]
  %v5236 = vld [vmem:[%s7 + $0x68] sm:$0xff]
  %v5237 = vld [vmem:[%s7 + $0x70] sm:$0xff]
  %v5238 = vld [vmem:[%s7 + $0x78] sm:$0xff]
  %v5239 = vld [vmem:[%s8] sm:$0x1]
  %v5241 = vlaneseq
  %v5242 = vshrl.u32 %v5241, 7
  %v5243 = vsub.s32 0, %v5242
  %v5244 = vrot.slane %v5239, %v5243
  %5246 = vmatprep.subr.mxu0 0.0
  %5247 = vmatpush1.msra.mxu0 %v5223
  %5248 = vmatprep.subr.mxu0 0.0
  %5249 = vmatpush1.msra.mxu0 %v5224
  %5250 = vmatprep.subr.mxu0 0.0
  %5251 = vmatpush1.msra.mxu0 %v5225
  %5252 = vmatprep.subr.mxu0 0.0
  %5253 = vmatpush1.msra.mxu0 %v5226
  %5254 = vmatprep.subr.mxu0 0.0
  %5255 = vmatpush1.msra.mxu0 %v5227
  %5256 = vmatprep.subr.mxu0 0.0
  %5257 = vmatpush1.msra.mxu0 %v5228
  %5258 = vmatprep.subr.mxu0 0.0
  %5259 = vmatpush1.msra.mxu0 %v5229
  %5260 = vmatprep.subr.mxu0 0.0
  %5261 = vmatpush1.msra.mxu0 %v5230
  %5262 = vmatprep.subr.mxu0 0.0
  %5263 = vmatpush1.msra.mxu0 %v5231
  %5264 = vmatprep.subr.mxu0 0.0
  %5265 = vmatpush1.msra.mxu0 %v5232
  %5266 = vmatprep.subr.mxu0 0.0
  %5267 = vmatpush1.msra.mxu0 %v5233
  %5268 = vmatprep.subr.mxu0 0.0
  %5269 = vmatpush1.msra.mxu0 %v5234
  %5270 = vmatprep.subr.mxu0 0.0
  %5271 = vmatpush1.msra.mxu0 %v5235
  %5272 = vmatprep.subr.mxu0 0.0
  %5273 = vmatpush1.msra.mxu0 %v5236
  %5274 = vmatprep.subr.mxu0 0.0
  %5275 = vmatpush1.msra.mxu0 %v5237
  %5276 = vmatprep.subr.mxu0 0.0
  %5277 = vmatpush1.msra.mxu0 %v5238
  %5278 = vmatprep.subr.mxu0 0.0
  %5279 = vmatpush1.msra.mxu0 0.0
  %5280 = vmatprep.subr.mxu0 0.0
  %5281 = vmatpush1.msra.mxu0 0.0
  %5282 = vmatprep.subr.mxu0 0.0
  %5283 = vmatpush1.msra.mxu0 0.0
  %5284 = vmatprep.subr.mxu0 0.0
  %5285 = vmatpush1.msra.mxu0 0.0
  %5286 = vmatprep.subr.mxu0 0.0
  %5287 = vmatpush1.msra.mxu0 0.0
  %5288 = vmatprep.subr.mxu0 0.0
  %5289 = vmatpush1.msra.mxu0 0.0
  %5290 = vmatprep.subr.mxu0 0.0
  %5291 = vmatpush1.msra.mxu0 0.0
  %5292 = vmatprep.subr.mxu0 0.0
  %5293 = vmatpush1.msra.mxu0 0.0
  %5294 = vmatprep.subr.mxu0 0.0
  %5295 = vmatpush1.msra.mxu0 0.0
  %5296 = vmatprep.subr.mxu0 0.0
  %5297 = vmatpush1.msra.mxu0 0.0
  %5298 = vmatprep.subr.mxu0 0.0
  %5299 = vmatpush1.msra.mxu0 0.0
  %5300 = vmatprep.subr.mxu0 0.0
  %5301 = vmatpush1.msra.mxu0 0.0
  %5302 = vmatprep.subr.mxu0 0.0
  %5303 = vmatpush1.msra.mxu0 0.0
  %5304 = vmatprep.subr.mxu0 0.0
  %5305 = vmatpush1.msra.mxu0 0.0
  %5306 = vmatprep.subr.mxu0 0.0
  %5307 = vmatpush1.msra.mxu0 0.0
  %5308 = vmatprep.subr.mxu0 0.0
  %5309 = vmatpush1.msra.mxu0 0.0
  %5310 = vmatprep.mubr.f32.mxu0 0.0
  %5311 = vmatmul.mubr.f32.gmra.mrb[0].mxu0 %v5222
  %v5312 = vpop.f32.mrb[0].mxu0
  %v5313 = vadd.f32 %v5244, %v5312
  %v5314 = vpop.f32.mrb[0].mxu0
  %5315 = vdwg.mxu0
  %s5316 = scalar_lea.vmem %s9, 56
  %5317 = vst [vmem:[%s5316] sm:$0xff] %v5313
  // Predicated region
  $region38: #{lstm_forecaster_forward.1} parent=0 // pred_check
    _
  $region39: #{lstm_forecaster_forward.1} parent=0 // pred_check_branch
    %5319 = sbr.rel (0) target = $region41
  $region40: #{lstm_forecaster_forward.1} parent=0 // pred_region
    _
  $region41: #{lstm_forecaster_forward.1} parent=0 // pred_fallthru
    _
  // Predicated region
  $region42: #{lstm_forecaster_forward.1} parent=0 // pred_check
    _
  $region43: #{lstm_forecaster_forward.1} parent=0 // pred_check_branch
    %5321 = sbr.rel (0) target = $region45
  $region44: #{lstm_forecaster_forward.1} parent=0 // pred_region
    _
  $region45: #{lstm_forecaster_forward.1} parent=0 // pred_fallthru
    _

</llo_original>
